<compile_context>
chip_gen: v7x
topology: tpu7x:2x2x1
jax: 0.10.0
libtpu: 0.0.40
codegen_flags: <defaults>
</compile_context>

<pallas_src>
import functools

import jax
import jax.numpy as jnp
from jax import lax
from jax.experimental import pallas as pl
from jax.experimental.pallas import tpu as pltpu

EPS = 1e-12  # BERT/FNet LayerNorm epsilon

# Above the 16/32 MiB scoped defaults, below v7x's 64 MiB physical VMEM.
VMEM_LIMIT_BYTES = 48 * 1024 * 1024


# ----------------------------- Pallas kernel -------------------------------- #

def _layernorm(x, gamma, beta):
    """LayerNorm over the last dim, in f32."""
    mean = jnp.mean(x, axis=-1, keepdims=True)
    var = jnp.mean((x - mean) ** 2, axis=-1, keepdims=True)
    return (x - mean) * lax.rsqrt(var + EPS) * gamma + beta


def fnet_kernel(we_ref, pe_ref, te_ref, eg_ref, eb_ref, ew_ref, ebp_ref,
                fsr_ref, fsi_ref, fhr_ref, fhi_ref,
                mg_ref, mb_ref, w1_ref, b1_ref, w2_ref, b2_ref,
                og_ref, ob_ref, pw_ref, pb_ref,
                seq_ref, pool_ref,
                acc_ref, y_ref, z_ref, *, b_blk, s, h):
    """Fused FNet: embed -> L x (Fourier mix -> LN -> FF -> LN) -> pooler.

    grid = (batch_tiles, layers, f_chunks).  Scratches (all (B_blk*S, H) f32):
      acc_ref: residual stream carried across layers,
      y_ref:   post-mixing-LN activations carried across f-chunks of a layer,
      z_ref:   FF output accumulator across f-chunks.
    """
    l = pl.program_id(1)
    f = pl.program_id(2)
    n_l = pl.num_programs(1)
    n_f = pl.num_programs(2)

    # ---- Embedder: sum + LN + projection (first grid step of each batch tile) ----
    @pl.when(jnp.logical_and(l == 0, f == 0))
    def _embed():
        emb = (we_ref[...].astype(jnp.float32)
               + pe_ref[...].astype(jnp.float32)
               + te_ref[...].astype(jnp.float32)).reshape(b_blk * s, -1)
        xn = _layernorm(emb, eg_ref[...], eb_ref[...])
        acc_ref[...] = (jnp.dot(xn.astype(jnp.bfloat16), ew_ref[...],
                                preferred_element_type=jnp.float32)
                        + ebp_ref[...])

    # ---- Fourier mixing sublayer + mixing LN (first F-chunk of each layer) ----
    @pl.when(f == 0)
    def _mix():
        x = acc_ref[...]                                   # (B_blk*S, H) f32 residual
        for bi in range(b_blk):                            # static unroll over batch tile
            xi = x[bi * s:(bi + 1) * s, :]                 # (S, H)
            xb = xi.astype(jnp.bfloat16)
            t_re = jnp.dot(fsr_ref[...], xb, preferred_element_type=jnp.float32)
            t_im = jnp.dot(fsi_ref[...], xb, preferred_element_type=jnp.float32)
            mixed = (jnp.dot(t_re.astype(jnp.bfloat16), fhr_ref[...],
                             preferred_element_type=jnp.float32)
                     - jnp.dot(t_im.astype(jnp.bfloat16), fhi_ref[...],
                               preferred_element_type=jnp.float32))
            y_ref[bi * s:(bi + 1) * s, :] = _layernorm(mixed + xi,
                                                       mg_ref[0], mb_ref[0])
        z_ref[...] = jnp.zeros_like(z_ref)

    # ---- Feed-forward: one F-chunk per grid step, accumulate in-place into z_ref ----
    yb = y_ref[...].astype(jnp.bfloat16)
    hmid = jnp.dot(yb, w1_ref[0], preferred_element_type=jnp.float32) + b1_ref[0]
    hmid = jax.nn.gelu(hmid, approximate=True)
    z_ref[...] += jnp.dot(hmid.astype(jnp.bfloat16), w2_ref[0],
                          preferred_element_type=jnp.float32)

    # ---- Output LN -> residual carry for next layer (last F-chunk of a layer) ----
    @pl.when(f == n_f - 1)
    def _layer_done():
        acc_ref[...] = _layernorm(z_ref[...] + b2_ref[0] + y_ref[...],
                                  og_ref[0], ob_ref[0])

    # ---- Sequence output + fused pooler (last F-chunk of the last layer) ----
    @pl.when(jnp.logical_and(l == n_l - 1, f == n_f - 1))
    def _finalize():
        z = acc_ref[...]
        seq_ref[...] = z.reshape(b_blk, s, h).astype(seq_ref.dtype)
        first = jnp.concatenate(
            [z[bi * s:bi * s + 1, :] for bi in range(b_blk)], axis=0)   # (B_blk, H)
        pooled = (jnp.dot(first.astype(jnp.bfloat16), pw_ref[...],
                          preferred_element_type=jnp.float32) + pb_ref[...])
        pool_ref[...] = jnp.tanh(pooled).reshape(b_blk, 1, h).astype(pool_ref.dtype)


# ------------------------------ pallas_call wrapper ------------------------- #

def run_fnet(we, pe, te, emb_g, emb_b, emb_w, emb_bp,
             fs_re, fs_im, fh_re, fh_im,
             mix_g, mix_b, w1, b1, w2, b2, out_g, out_b,
             pool_w, pool_b, *, b_blk, f_chunk):
    B, S, E = we.shape
    H = emb_w.shape[1]
    L, _, F = w1.shape
    assert B % b_blk == 0 and F % f_chunk == 0
    n_bt = B // b_blk
    n_f = F // f_chunk

    flops = int(B * L * (4 * S * S * H + 4 * S * H * H + 4 * S * H * F)
                + 2 * B * S * E * H + 2 * B * H * H)
    transcendentals = int(B * L * S * F + B * H)
    bytes_accessed = int(
        2 * (we.size + te.size + pe.size)                                # bf16 embeddings
        + 2 * (emb_w.size + fs_re.size + fs_im.size + fh_re.size
               + fh_im.size + pool_w.size)                               # resident bf16
        + n_bt * 2 * (w1.size + w2.size)                                 # weights streamed per batch tile
        + n_bt * 4 * (b1.size + b2.size + mix_g.size + mix_b.size
                      + out_g.size + out_b.size)                         # f32 per-layer params
        + 4 * (emb_g.size + emb_b.size + emb_bp.size + pool_b.size)
        + 2 * B * S * H + 4 * B * H)                                     # outputs

    kernel = functools.partial(fnet_kernel, b_blk=b_blk, s=S, h=H)

    in_specs = [
        pl.BlockSpec((b_blk, S, E), lambda b, l, f: (b, 0, 0)),    # gathered word emb
        pl.BlockSpec((1, S, E), lambda b, l, f: (0, 0, 0)),        # pos emb (resident)
        pl.BlockSpec((b_blk, S, E), lambda b, l, f: (b, 0, 0)),    # gathered type emb
        pl.BlockSpec((1, E), lambda b, l, f: (0, 0)),              # emb LN gamma
        pl.BlockSpec((1, E), lambda b, l, f: (0, 0)),              # emb LN beta
        pl.BlockSpec((E, H), lambda b, l, f: (0, 0)),              # emb projection W
        pl.BlockSpec((1, H), lambda b, l, f: (0, 0)),              # emb projection b
        pl.BlockSpec((S, S), lambda b, l, f: (0, 0)),              # DFT_seq real (resident)
        pl.BlockSpec((S, S), lambda b, l, f: (0, 0)),              # DFT_seq imag (resident)
        pl.BlockSpec((H, H), lambda b, l, f: (0, 0)),              # DFT_hid real (resident)
        pl.BlockSpec((H, H), lambda b, l, f: (0, 0)),              # DFT_hid imag (resident)
        pl.BlockSpec((1, 1, H), lambda b, l, f: (l, 0, 0)),        # mix LN gamma
        pl.BlockSpec((1, 1, H), lambda b, l, f: (l, 0, 0)),        # mix LN beta
        pl.BlockSpec((1, H, f_chunk), lambda b, l, f: (l, 0, f)),  # FF w1 chunk
        pl.BlockSpec((1, 1, f_chunk), lambda b, l, f: (l, 0, f)),  # FF b1 chunk
        pl.BlockSpec((1, f_chunk, H), lambda b, l, f: (l, f, 0)),  # FF w2 chunk
        pl.BlockSpec((1, 1, H), lambda b, l, f: (l, 0, 0)),        # FF b2
        pl.BlockSpec((1, 1, H), lambda b, l, f: (l, 0, 0)),        # out LN gamma
        pl.BlockSpec((1, 1, H), lambda b, l, f: (l, 0, 0)),        # out LN beta
        pl.BlockSpec((H, H), lambda b, l, f: (0, 0)),              # pooler W (resident)
        pl.BlockSpec((1, H), lambda b, l, f: (0, 0)),              # pooler b (resident)
    ]
    out_specs = (
        pl.BlockSpec((b_blk, S, H), lambda b, l, f: (b, 0, 0)),    # sequence output
        pl.BlockSpec((b_blk, 1, H), lambda b, l, f: (b, 0, 0)),    # pooled output
    )

    seq, pooled = pl.pallas_call(
        kernel,
        grid=(n_bt, L, n_f),
        in_specs=in_specs,
        out_specs=out_specs,
        out_shape=(jax.ShapeDtypeStruct((B, S, H), jnp.bfloat16),
                   jax.ShapeDtypeStruct((B, 1, H), jnp.float32)),
        scratch_shapes=[pltpu.VMEM((b_blk * S, H), jnp.float32),   # residual stream
                        pltpu.VMEM((b_blk * S, H), jnp.float32),   # post-mix-LN activ.
                        pltpu.VMEM((b_blk * S, H), jnp.float32)],  # FF accumulator
        compiler_params=pltpu.CompilerParams(
            dimension_semantics=("parallel", "arbitrary", "arbitrary"),
            vmem_limit_bytes=VMEM_LIMIT_BYTES),
        cost_estimate=pl.CostEstimate(flops=flops,
                                      transcendentals=transcendentals,
                                      bytes_accessed=bytes_accessed),
    )(we, pe, te, emb_g, emb_b, emb_w, emb_bp,
      fs_re, fs_im, fh_re, fh_im,
      mix_g, mix_b, w1, b1, w2, b2, out_g, out_b,
      pool_w, pool_b)
    return seq, pooled[:, 0, :]


# ------------------------------ model glue ---------------------------------- #

def dft_matrices(n, dtype=jnp.bfloat16):
    """Real/imag parts of the n-point DFT matrix: F[k, m] = exp(-2*pi*i*k*m/n)."""
    k = jnp.arange(n, dtype=jnp.float32)
    ang = -2.0 * jnp.pi * jnp.outer(k, k) / n
    return jnp.cos(ang).astype(dtype), jnp.sin(ang).astype(dtype)


def init_params(key, cfg):
    f32, bf16 = jnp.float32, jnp.bfloat16

    def nrm(k, shape, std=0.02, dtype=bf16):
        return (std * jax.random.normal(k, shape, f32)).astype(dtype)

    keys = iter(jax.random.split(key, 16))
    H, F, E, L = cfg["hidden"], cfg["intermediate"], cfg["hidden"], cfg["num_layers"]
    return {
        "word_emb": nrm(next(keys), (cfg["vocab"], E)),
        "pos_emb": nrm(next(keys), (cfg["max_pos"], E)),
        "type_emb": nrm(next(keys), (cfg["type_vocab"], E)),
        "emb_ln_g": jnp.ones((1, E), f32),
        "emb_ln_b": jnp.zeros((1, E), f32),
        "emb_proj_w": nrm(next(keys), (E, H)),
        "emb_proj_b": jnp.zeros((1, H), f32),
        "mix_ln_g": jnp.ones((L, 1, H), f32),
        "mix_ln_b": jnp.zeros((L, 1, H), f32),
        "ff_w1": nrm(next(keys), (L, H, F)),
        "ff_b1": jnp.zeros((L, 1, F), f32),
        "ff_w2": nrm(next(keys), (L, F, H)),
        "ff_b2": jnp.zeros((L, 1, H), f32),
        "out_ln_g": jnp.ones((L, 1, H), f32),
        "out_ln_b": jnp.zeros((L, 1, H), f32),
        "pool_w": nrm(next(keys), (H, H)),
        "pool_b": jnp.zeros((1, H), f32),
    }


def _pick_b_blk(B):
    for c in (8, 4, 2):
        if B % c == 0:
            return c
    return 1


def _pick_f_chunk(F):
    for c in (512, 256, 128):
        if F % c == 0:
            return c
    return F


def fnet_forward(params, input_ids, token_type_ids, cfg):
    B, S = input_ids.shape
    H = cfg["hidden"]

    # TODO(synk): embedding-table gathers have no clean Pallas equivalent at these
    # shapes; they stay as jnp.take in the JAX wrapper.
    we = jnp.take(params["word_emb"], input_ids, axis=0)          # (B, S, E) bf16
    te = jnp.take(params["type_emb"], token_type_ids, axis=0)     # (B, S, E) bf16
    pe = params["pos_emb"][:S][None, :, :]                        # (1, S, E) bf16

    fs_re, fs_im = dft_matrices(S)
    fh_re, fh_im = dft_matrices(H)

    seq, pooled = run_fnet(
        we, pe, te, params["emb_ln_g"], params["emb_ln_b"],
        params["emb_proj_w"], params["emb_proj_b"],
        fs_re, fs_im, fh_re, fh_im,
        params["mix_ln_g"], params["mix_ln_b"],
        params["ff_w1"], params["ff_b1"], params["ff_w2"], params["ff_b2"],
        params["out_ln_g"], params["out_ln_b"],
        params["pool_w"], params["pool_b"],
        b_blk=_pick_b_blk(B), f_chunk=_pick_f_chunk(cfg["intermediate"]))
    return seq, pooled


# ----------------------------------- main ----------------------------------- #

if __name__ == "__main__":
    # Shapes are (8,128)-aligned per the perf review (lane-dense stores, MXU fill)
    # while staying small: H=128, S=16, F=1024, L=2, B=16 (2 parallel batch tiles).
    cfg = dict(vocab=128, type_vocab=2, max_pos=32, hidden=128,
               intermediate=1024, num_layers=2)
    B, S = 16, 16

    key = jax.random.PRNGKey(0)
    k_params, k_ids, k_types = jax.random.split(key, 3)

    params = init_params(k_params, cfg)
    input_ids = jax.random.randint(k_ids, (B, S), 0, cfg["vocab"], dtype=jnp.int32)
    token_type_ids = jax.random.randint(k_types, (B, S), 0, cfg["type_vocab"],
                                        dtype=jnp.int32)

    seq_out, pooled_out = fnet_forward(params, input_ids, token_type_ids, cfg)
    jax.block_until_ready(seq_out)
    jax.block_until_ready(pooled_out)

    assert seq_out.shape == (B, S, cfg["hidden"])
    assert pooled_out.shape == (B, cfg["hidden"])
    assert bool(jnp.all(jnp.isfinite(pooled_out)))
    assert bool(jnp.all(jnp.isfinite(seq_out.astype(jnp.float32))))
    print("KERNEL_OK")
</pallas_src>

<mosaic_0001>
module attributes {stable_mosaic.version = 11 : i64} {
  func.func @fnet_kernel(%arg0: i32, %arg1: i32, %arg2: i32, %arg3: memref<8x16x128xbf16, #tpu.memory_space<vmem>>, %arg4: memref<1x16x128xbf16, #tpu.memory_space<vmem>>, %arg5: memref<8x16x128xbf16, #tpu.memory_space<vmem>>, %arg6: memref<1x128xf32, #tpu.memory_space<vmem>>, %arg7: memref<1x128xf32, #tpu.memory_space<vmem>>, %arg8: memref<128x128xbf16, #tpu.memory_space<vmem>>, %arg9: memref<1x128xf32, #tpu.memory_space<vmem>>, %arg10: memref<16x16xbf16, #tpu.memory_space<vmem>>, %arg11: memref<16x16xbf16, #tpu.memory_space<vmem>>, %arg12: memref<128x128xbf16, #tpu.memory_space<vmem>>, %arg13: memref<128x128xbf16, #tpu.memory_space<vmem>>, %arg14: memref<1x1x128xf32, #tpu.memory_space<vmem>>, %arg15: memref<1x1x128xf32, #tpu.memory_space<vmem>>, %arg16: memref<1x128x512xbf16, #tpu.memory_space<vmem>>, %arg17: memref<1x1x512xf32, #tpu.memory_space<vmem>>, %arg18: memref<1x512x128xbf16, #tpu.memory_space<vmem>>, %arg19: memref<1x1x128xf32, #tpu.memory_space<vmem>>, %arg20: memref<1x1x128xf32, #tpu.memory_space<vmem>>, %arg21: memref<1x1x128xf32, #tpu.memory_space<vmem>>, %arg22: memref<128x128xbf16, #tpu.memory_space<vmem>>, %arg23: memref<1x128xf32, #tpu.memory_space<vmem>>, %arg24: memref<8x16x128xbf16, #tpu.memory_space<vmem>>, %arg25: memref<8x1x128xf32, #tpu.memory_space<vmem>>, %arg26: memref<128x128xf32, #tpu.memory_space<vmem>>, %arg27: memref<128x128xf32, #tpu.memory_space<vmem>>, %arg28: memref<128x128xf32, #tpu.memory_space<vmem>>) attributes {dimension_semantics = [#tpu.dimension_semantics<parallel>, #tpu.dimension_semantics<arbitrary>, #tpu.dimension_semantics<arbitrary>], iteration_bounds = array<i64: 2, 2, 2>, scalar_prefetch = 0 : i64, scratch_operands = 3 : i64, tpu.core_type = #tpu.core_type<tc>, window_params = [{transform_indices = @transform_0, window_bounds = array<i64: 8, 16, 128>}, {pipeline_mode = #tpu.pipeline_mode<synchronous>, transform_indices = @transform_1, window_bounds = array<i64: 1, 16, 128>}, {transform_indices = @transform_2, window_bounds = array<i64: 8, 16, 128>}, {pipeline_mode = #tpu.pipeline_mode<synchronous>, transform_indices = @transform_3, window_bounds = array<i64: 1, 128>}, {pipeline_mode = #tpu.pipeline_mode<synchronous>, transform_indices = @transform_4, window_bounds = array<i64: 1, 128>}, {pipeline_mode = #tpu.pipeline_mode<synchronous>, transform_indices = @transform_5, window_bounds = array<i64: 128, 128>}, {pipeline_mode = #tpu.pipeline_mode<synchronous>, transform_indices = @transform_6, window_bounds = array<i64: 1, 128>}, {pipeline_mode = #tpu.pipeline_mode<synchronous>, transform_indices = @transform_7, window_bounds = array<i64: 16, 16>}, {pipeline_mode = #tpu.pipeline_mode<synchronous>, transform_indices = @transform_8, window_bounds = array<i64: 16, 16>}, {pipeline_mode = #tpu.pipeline_mode<synchronous>, transform_indices = @transform_9, window_bounds = array<i64: 128, 128>}, {pipeline_mode = #tpu.pipeline_mode<synchronous>, transform_indices = @transform_10, window_bounds = array<i64: 128, 128>}, {transform_indices = @transform_11, window_bounds = array<i64: 1, 1, 128>}, {transform_indices = @transform_12, window_bounds = array<i64: 1, 1, 128>}, {transform_indices = @transform_13, window_bounds = array<i64: 1, 128, 512>}, {transform_indices = @transform_14, window_bounds = array<i64: 1, 1, 512>}, {transform_indices = @transform_15, window_bounds = array<i64: 1, 512, 128>}, {transform_indices = @transform_16, window_bounds = array<i64: 1, 1, 128>}, {transform_indices = @transform_17, window_bounds = array<i64: 1, 1, 128>}, {transform_indices = @transform_18, window_bounds = array<i64: 1, 1, 128>}, {pipeline_mode = #tpu.pipeline_mode<synchronous>, transform_indices = @transform_19, window_bounds = array<i64: 128, 128>}, {pipeline_mode = #tpu.pipeline_mode<synchronous>, transform_indices = @transform_20, window_bounds = array<i64: 1, 128>}, {transform_indices = @transform_21, window_bounds = array<i64: 8, 16, 128>}, {transform_indices = @transform_22, window_bounds = array<i64: 8, 1, 128>}]} {
    %c0_i32 = arith.constant 0 : i32
    %0 = arith.cmpi eq, %arg1, %c0_i32 : i32
    %c0_i32_0 = arith.constant 0 : i32
    %1 = arith.cmpi eq, %arg2, %c0_i32_0 : i32
    %2 = arith.andi %0, %1 : i1
    %3 = arith.extui %2 : i1 to i32
    %c0_i32_1 = arith.constant 0 : i32
    %4 = arith.cmpi ne, %3, %c0_i32_1 : i32
    scf.if %4 {
      %c0_27 = arith.constant 0 : index
      %c0_28 = arith.constant 0 : index
      %c0_29 = arith.constant 0 : index
      %45 = vector.load %arg3[%c0_27, %c0_28, %c0_29] : memref<8x16x128xbf16, #tpu.memory_space<vmem>>, vector<8x16x128xbf16>
      %46 = arith.extf %45 : vector<8x16x128xbf16> to vector<8x16x128xf32>
      %c0_30 = arith.constant 0 : index
      %c0_31 = arith.constant 0 : index
      %c0_32 = arith.constant 0 : index
      %47 = vector.load %arg4[%c0_30, %c0_31, %c0_32] : memref<1x16x128xbf16, #tpu.memory_space<vmem>>, vector<1x16x128xbf16>
      %48 = arith.extf %47 : vector<1x16x128xbf16> to vector<1x16x128xf32>
      %49 = vector.broadcast %48 : vector<1x16x128xf32> to vector<8x16x128xf32>
      %50 = arith.addf %46, %49 : vector<8x16x128xf32>
      %c0_33 = arith.constant 0 : index
      %c0_34 = arith.constant 0 : index
      %c0_35 = arith.constant 0 : index
      %51 = vector.load %arg5[%c0_33, %c0_34, %c0_35] : memref<8x16x128xbf16, #tpu.memory_space<vmem>>, vector<8x16x128xbf16>
      %52 = arith.extf %51 : vector<8x16x128xbf16> to vector<8x16x128xf32>
      %53 = arith.addf %50, %52 : vector<8x16x128xf32>
      %54 = vector.shape_cast %53 : vector<8x16x128xf32> to vector<128x128xf32>
      %c0_36 = arith.constant 0 : index
      %c0_37 = arith.constant 0 : index
      %55 = vector.load %arg6[%c0_36, %c0_37] : memref<1x128xf32, #tpu.memory_space<vmem>>, vector<1x128xf32>
      %c0_38 = arith.constant 0 : index
      %c0_39 = arith.constant 0 : index
      %56 = vector.load %arg7[%c0_38, %c0_39] : memref<1x128xf32, #tpu.memory_space<vmem>>, vector<1x128xf32>
      %cst_40 = arith.constant dense<0.000000e+00> : vector<128xf32>
      %57 = vector.multi_reduction <add>, %54, %cst_40 [1] : vector<128x128xf32> to vector<128xf32>
      %58 = vector.shape_cast %57 : vector<128xf32> to vector<128x1xf32>
      %cst_41 = arith.constant 1.280000e+02 : f32
      %59 = vector.broadcast %cst_41 : f32 to vector<128x1xf32>
      %60 = arith.divf %58, %59 : vector<128x1xf32>
      %61 = vector.broadcast %60 : vector<128x1xf32> to vector<128x128xf32>
      %62 = arith.subf %54, %61 : vector<128x128xf32>
      %63 = arith.mulf %62, %62 : vector<128x128xf32>
      %cst_42 = arith.constant dense<0.000000e+00> : vector<128xf32>
      %64 = vector.multi_reduction <add>, %63, %cst_42 [1] : vector<128x128xf32> to vector<128xf32>
      %65 = vector.shape_cast %64 : vector<128xf32> to vector<128x1xf32>
      %cst_43 = arith.constant 1.280000e+02 : f32
      %66 = vector.broadcast %cst_43 : f32 to vector<128x1xf32>
      %67 = arith.divf %65, %66 : vector<128x1xf32>
      %68 = vector.broadcast %60 : vector<128x1xf32> to vector<128x128xf32>
      %69 = arith.subf %54, %68 : vector<128x128xf32>
      %cst_44 = arith.constant 9.99999996E-13 : f32
      %70 = vector.broadcast %cst_44 : f32 to vector<128x1xf32>
      %71 = arith.addf %67, %70 : vector<128x1xf32>
      %72 = math.rsqrt %71 : vector<128x1xf32>
      %73 = vector.broadcast %72 : vector<128x1xf32> to vector<128x128xf32>
      %74 = arith.mulf %69, %73 : vector<128x128xf32>
      %75 = vector.broadcast %55 : vector<1x128xf32> to vector<128x128xf32>
      %76 = arith.mulf %74, %75 : vector<128x128xf32>
      %77 = vector.broadcast %56 : vector<1x128xf32> to vector<128x128xf32>
      %78 = arith.addf %76, %77 : vector<128x128xf32>
      %79 = arith.truncf %78 : vector<128x128xf32> to vector<128x128xbf16>
      %c0_45 = arith.constant 0 : index
      %c0_46 = arith.constant 0 : index
      %80 = vector.load %arg8[%c0_45, %c0_46] : memref<128x128xbf16, #tpu.memory_space<vmem>>, vector<128x128xbf16>
      %cst_47 = arith.constant dense<0.000000e+00> : vector<128x128xf32>
      %81 = tpu.matmul %79, %80, %cst_47 {dimension_numbers = #tpu.dot_dimension_numbers<[1], [0], [0], [1], [0, 0, 1, 1], [], []>} : vector<128x128xbf16>, vector<128x128xbf16>, vector<128x128xf32> -> vector<128x128xf32>
      %c0_48 = arith.constant 0 : index
      %c0_49 = arith.constant 0 : index
      %82 = vector.load %arg9[%c0_48, %c0_49] : memref<1x128xf32, #tpu.memory_space<vmem>>, vector<1x128xf32>
      %83 = vector.broadcast %82 : vector<1x128xf32> to vector<128x128xf32>
      %84 = arith.addf %81, %83 : vector<128x128xf32>
      %c0_50 = arith.constant 0 : index
      %c0_51 = arith.constant 0 : index
      %85 = vector.load %arg26[%c0_50, %c0_51] : memref<128x128xf32, #tpu.memory_space<vmem>>, vector<128x128xf32>
      tpu.vector_store %arg26[%c0_50, %c0_51], %84 {strides = array<i32>} : memref<128x128xf32, #tpu.memory_space<vmem>>, vector<128x128xf32>,
    } else {
    }
    %c0_i32_2 = arith.constant 0 : i32
    %5 = arith.cmpi eq, %arg2, %c0_i32_2 : i32
    %6 = arith.extui %5 : i1 to i32
    %c0_i32_3 = arith.constant 0 : i32
    %7 = arith.cmpi ne, %6, %c0_i32_3 : i32
    scf.if %7 {
      %c0_27 = arith.constant 0 : index
      %c0_28 = arith.constant 0 : index
      %45 = vector.load %arg26[%c0_27, %c0_28] : memref<128x128xf32, #tpu.memory_space<vmem>>, vector<128x128xf32>
      %46 = vector.extract_strided_slice %45 {offsets = [0, 0], sizes = [16, 128], strides = [1, 1]} : vector<128x128xf32> to vector<16x128xf32>
      %47 = arith.truncf %46 : vector<16x128xf32> to vector<16x128xbf16>
      %c0_29 = arith.constant 0 : index
      %c0_30 = arith.constant 0 : index
      %48 = vector.load %arg10[%c0_29, %c0_30] : memref<16x16xbf16, #tpu.memory_space<vmem>>, vector<16x16xbf16>
      %cst_31 = arith.constant dense<0.000000e+00> : vector<16x128xf32>
      %49 = tpu.matmul %48, %47, %cst_31 {dimension_numbers = #tpu.dot_dimension_numbers<[1], [0], [0], [1], [0, 0, 1, 1], [], []>} : vector<16x16xbf16>, vector<16x128xbf16>, vector<16x128xf32> -> vector<16x128xf32>
      %c0_32 = arith.constant 0 : index
      %c0_33 = arith.constant 0 : index
      %50 = vector.load %arg11[%c0_32, %c0_33] : memref<16x16xbf16, #tpu.memory_space<vmem>>, vector<16x16xbf16>
      %cst_34 = arith.constant dense<0.000000e+00> : vector<16x128xf32>
      %51 = tpu.matmul %50, %47, %cst_34 {dimension_numbers = #tpu.dot_dimension_numbers<[1], [0], [0], [1], [0, 0, 1, 1], [], []>} : vector<16x16xbf16>, vector<16x128xbf16>, vector<16x128xf32> -> vector<16x128xf32>
      %52 = arith.truncf %49 : vector<16x128xf32> to vector<16x128xbf16>
      %c0_35 = arith.constant 0 : index
      %c0_36 = arith.constant 0 : index
      %53 = vector.load %arg12[%c0_35, %c0_36] : memref<128x128xbf16, #tpu.memory_space<vmem>>, vector<128x128xbf16>
      %cst_37 = arith.constant dense<0.000000e+00> : vector<16x128xf32>
      %54 = tpu.matmul %52, %53, %cst_37 {dimension_numbers = #tpu.dot_dimension_numbers<[1], [0], [0], [1], [0, 0, 1, 1], [], []>} : vector<16x128xbf16>, vector<128x128xbf16>, vector<16x128xf32> -> vector<16x128xf32>
      %55 = arith.truncf %51 : vector<16x128xf32> to vector<16x128xbf16>
      %c0_38 = arith.constant 0 : index
      %c0_39 = arith.constant 0 : index
      %56 = vector.load %arg13[%c0_38, %c0_39] : memref<128x128xbf16, #tpu.memory_space<vmem>>, vector<128x128xbf16>
      %cst_40 = arith.constant dense<0.000000e+00> : vector<16x128xf32>
      %57 = tpu.matmul %55, %56, %cst_40 {dimension_numbers = #tpu.dot_dimension_numbers<[1], [0], [0], [1], [0, 0, 1, 1], [], []>} : vector<16x128xbf16>, vector<128x128xbf16>, vector<16x128xf32> -> vector<16x128xf32>
      %58 = arith.subf %54, %57 : vector<16x128xf32>
      %59 = arith.addf %58, %46 : vector<16x128xf32>
      %c0_41 = arith.constant 0 : index
      %c0_42 = arith.constant 0 : index
      %c0_43 = arith.constant 0 : index
      %60 = vector.load %arg14[%c0_41, %c0_42, %c0_43] : memref<1x1x128xf32, #tpu.memory_space<vmem>>, vector<1x1x128xf32>
      %61 = vector.shape_cast %60 : vector<1x1x128xf32> to vector<1x128xf32>
      %c0_44 = arith.constant 0 : index
      %c0_45 = arith.constant 0 : index
      %c0_46 = arith.constant 0 : index
      %62 = vector.load %arg15[%c0_44, %c0_45, %c0_46] : memref<1x1x128xf32, #tpu.memory_space<vmem>>, vector<1x1x128xf32>
      %63 = vector.shape_cast %62 : vector<1x1x128xf32> to vector<1x128xf32>
      %cst_47 = arith.constant dense<0.000000e+00> : vector<16xf32>
      %64 = vector.multi_reduction <add>, %59, %cst_47 [1] : vector<16x128xf32> to vector<16xf32>
      %65 = vector.shape_cast %64 : vector<16xf32> to vector<16x1xf32>
      %cst_48 = arith.constant 1.280000e+02 : f32
      %66 = vector.broadcast %cst_48 : f32 to vector<16x1xf32>
      %67 = arith.divf %65, %66 : vector<16x1xf32>
      %68 = vector.broadcast %67 : vector<16x1xf32> to vector<16x128xf32>
      %69 = arith.subf %59, %68 : vector<16x128xf32>
      %70 = arith.mulf %69, %69 : vector<16x128xf32>
      %cst_49 = arith.constant dense<0.000000e+00> : vector<16xf32>
      %71 = vector.multi_reduction <add>, %70, %cst_49 [1] : vector<16x128xf32> to vector<16xf32>
      %72 = vector.shape_cast %71 : vector<16xf32> to vector<16x1xf32>
      %cst_50 = arith.constant 1.280000e+02 : f32
      %73 = vector.broadcast %cst_50 : f32 to vector<16x1xf32>
      %74 = arith.divf %72, %73 : vector<16x1xf32>
      %75 = vector.broadcast %67 : vector<16x1xf32> to vector<16x128xf32>
      %76 = arith.subf %59, %75 : vector<16x128xf32>
      %cst_51 = arith.constant 9.99999996E-13 : f32
      %77 = vector.broadcast %cst_51 : f32 to vector<16x1xf32>
      %78 = arith.addf %74, %77 : vector<16x1xf32>
      %79 = math.rsqrt %78 : vector<16x1xf32>
      %80 = vector.broadcast %79 : vector<16x1xf32> to vector<16x128xf32>
      %81 = arith.mulf %76, %80 : vector<16x128xf32>
      %82 = vector.broadcast %61 : vector<1x128xf32> to vector<16x128xf32>
      %83 = arith.mulf %81, %82 : vector<16x128xf32>
      %84 = vector.broadcast %63 : vector<1x128xf32> to vector<16x128xf32>
      %85 = arith.addf %83, %84 : vector<16x128xf32>
      %c0_52 = arith.constant 0 : index
      %c0_53 = arith.constant 0 : index
      %86 = vector.load %arg27[%c0_52, %c0_53] : memref<128x128xf32, #tpu.memory_space<vmem>>, vector<16x128xf32>
      tpu.vector_store %arg27[%c0_52, %c0_53], %85 {strides = array<i32>} : memref<128x128xf32, #tpu.memory_space<vmem>>, vector<16x128xf32>,
      %87 = vector.extract_strided_slice %45 {offsets = [16, 0], sizes = [16, 128], strides = [1, 1]} : vector<128x128xf32> to vector<16x128xf32>
      %88 = arith.truncf %87 : vector<16x128xf32> to vector<16x128xbf16>
      %c0_54 = arith.constant 0 : index
      %c0_55 = arith.constant 0 : index
      %89 = vector.load %arg10[%c0_54, %c0_55] : memref<16x16xbf16, #tpu.memory_space<vmem>>, vector<16x16xbf16>
      %cst_56 = arith.constant dense<0.000000e+00> : vector<16x128xf32>
      %90 = tpu.matmul %89, %88, %cst_56 {dimension_numbers = #tpu.dot_dimension_numbers<[1], [0], [0], [1], [0, 0, 1, 1], [], []>} : vector<16x16xbf16>, vector<16x128xbf16>, vector<16x128xf32> -> vector<16x128xf32>
      %c0_57 = arith.constant 0 : index
      %c0_58 = arith.constant 0 : index
      %91 = vector.load %arg11[%c0_57, %c0_58] : memref<16x16xbf16, #tpu.memory_space<vmem>>, vector<16x16xbf16>
      %cst_59 = arith.constant dense<0.000000e+00> : vector<16x128xf32>
      %92 = tpu.matmul %91, %88, %cst_59 {dimension_numbers = #tpu.dot_dimension_numbers<[1], [0], [0], [1], [0, 0, 1, 1], [], []>} : vector<16x16xbf16>, vector<16x128xbf16>, vector<16x128xf32> -> vector<16x128xf32>
      %93 = arith.truncf %90 : vector<16x128xf32> to vector<16x128xbf16>
      %c0_60 = arith.constant 0 : index
      %c0_61 = arith.constant 0 : index
      %94 = vector.load %arg12[%c0_60, %c0_61] : memref<128x128xbf16, #tpu.memory_space<vmem>>, vector<128x128xbf16>
      %cst_62 = arith.constant dense<0.000000e+00> : vector<16x128xf32>
      %95 = tpu.matmul %93, %94, %cst_62 {dimension_numbers = #tpu.dot_dimension_numbers<[1], [0], [0], [1], [0, 0, 1, 1], [], []>} : vector<16x128xbf16>, vector<128x128xbf16>, vector<16x128xf32> -> vector<16x128xf32>
      %96 = arith.truncf %92 : vector<16x128xf32> to vector<16x128xbf16>
      %c0_63 = arith.constant 0 : index
      %c0_64 = arith.constant 0 : index
      %97 = vector.load %arg13[%c0_63, %c0_64] : memref<128x128xbf16, #tpu.memory_space<vmem>>, vector<128x128xbf16>
      %cst_65 = arith.constant dense<0.000000e+00> : vector<16x128xf32>
      %98 = tpu.matmul %96, %97, %cst_65 {dimension_numbers = #tpu.dot_dimension_numbers<[1], [0], [0], [1], [0, 0, 1, 1], [], []>} : vector<16x128xbf16>, vector<128x128xbf16>, vector<16x128xf32> -> vector<16x128xf32>
      %99 = arith.subf %95, %98 : vector<16x128xf32>
      %100 = arith.addf %99, %87 : vector<16x128xf32>
      %c0_66 = arith.constant 0 : index
      %c0_67 = arith.constant 0 : index
      %c0_68 = arith.constant 0 : index
      %101 = vector.load %arg14[%c0_66, %c0_67, %c0_68] : memref<1x1x128xf32, #tpu.memory_space<vmem>>, vector<1x1x128xf32>
      %102 = vector.shape_cast %101 : vector<1x1x128xf32> to vector<1x128xf32>
      %c0_69 = arith.constant 0 : index
      %c0_70 = arith.constant 0 : index
      %c0_71 = arith.constant 0 : index
      %103 = vector.load %arg15[%c0_69, %c0_70, %c0_71] : memref<1x1x128xf32, #tpu.memory_space<vmem>>, vector<1x1x128xf32>
      %104 = vector.shape_cast %103 : vector<1x1x128xf32> to vector<1x128xf32>
      %cst_72 = arith.constant dense<0.000000e+00> : vector<16xf32>
      %105 = vector.multi_reduction <add>, %100, %cst_72 [1] : vector<16x128xf32> to vector<16xf32>
      %106 = vector.shape_cast %105 : vector<16xf32> to vector<16x1xf32>
      %cst_73 = arith.constant 1.280000e+02 : f32
      %107 = vector.broadcast %cst_73 : f32 to vector<16x1xf32>
      %108 = arith.divf %106, %107 : vector<16x1xf32>
      %109 = vector.broadcast %108 : vector<16x1xf32> to vector<16x128xf32>
      %110 = arith.subf %100, %109 : vector<16x128xf32>
      %111 = arith.mulf %110, %110 : vector<16x128xf32>
      %cst_74 = arith.constant dense<0.000000e+00> : vector<16xf32>
      %112 = vector.multi_reduction <add>, %111, %cst_74 [1] : vector<16x128xf32> to vector<16xf32>
      %113 = vector.shape_cast %112 : vector<16xf32> to vector<16x1xf32>
      %cst_75 = arith.constant 1.280000e+02 : f32
      %114 = vector.broadcast %cst_75 : f32 to vector<16x1xf32>
      %115 = arith.divf %113, %114 : vector<16x1xf32>
      %116 = vector.broadcast %108 : vector<16x1xf32> to vector<16x128xf32>
      %117 = arith.subf %100, %116 : vector<16x128xf32>
      %cst_76 = arith.constant 9.99999996E-13 : f32
      %118 = vector.broadcast %cst_76 : f32 to vector<16x1xf32>
      %119 = arith.addf %115, %118 : vector<16x1xf32>
      %120 = math.rsqrt %119 : vector<16x1xf32>
      %121 = vector.broadcast %120 : vector<16x1xf32> to vector<16x128xf32>
      %122 = arith.mulf %117, %121 : vector<16x128xf32>
      %123 = vector.broadcast %102 : vector<1x128xf32> to vector<16x128xf32>
      %124 = arith.mulf %122, %123 : vector<16x128xf32>
      %125 = vector.broadcast %104 : vector<1x128xf32> to vector<16x128xf32>
      %126 = arith.addf %124, %125 : vector<16x128xf32>
      %c16 = arith.constant 16 : index
      %c0_77 = arith.constant 0 : index
      %127 = vector.load %arg27[%c16, %c0_77] : memref<128x128xf32, #tpu.memory_space<vmem>>, vector<16x128xf32>
      tpu.vector_store %arg27[%c16, %c0_77], %126 {strides = array<i32>} : memref<128x128xf32, #tpu.memory_space<vmem>>, vector<16x128xf32>,
      %128 = vector.extract_strided_slice %45 {offsets = [32, 0], sizes = [16, 128], strides = [1, 1]} : vector<128x128xf32> to vector<16x128xf32>
      %129 = arith.truncf %128 : vector<16x128xf32> to vector<16x128xbf16>
      %c0_78 = arith.constant 0 : index
      %c0_79 = arith.constant 0 : index
      %130 = vector.load %arg10[%c0_78, %c0_79] : memref<16x16xbf16, #tpu.memory_space<vmem>>, vector<16x16xbf16>
      %cst_80 = arith.constant dense<0.000000e+00> : vector<16x128xf32>
      %131 = tpu.matmul %130, %129, %cst_80 {dimension_numbers = #tpu.dot_dimension_numbers<[1], [0], [0], [1], [0, 0, 1, 1], [], []>} : vector<16x16xbf16>, vector<16x128xbf16>, vector<16x128xf32> -> vector<16x128xf32>
      %c0_81 = arith.constant 0 : index
      %c0_82 = arith.constant 0 : index
      %132 = vector.load %arg11[%c0_81, %c0_82] : memref<16x16xbf16, #tpu.memory_space<vmem>>, vector<16x16xbf16>
      %cst_83 = arith.constant dense<0.000000e+00> : vector<16x128xf32>
      %133 = tpu.matmul %132, %129, %cst_83 {dimension_numbers = #tpu.dot_dimension_numbers<[1], [0], [0], [1], [0, 0, 1, 1], [], []>} : vector<16x16xbf16>, vector<16x128xbf16>, vector<16x128xf32> -> vector<16x128xf32>
      %134 = arith.truncf %131 : vector<16x128xf32> to vector<16x128xbf16>
      %c0_84 = arith.constant 0 : index
      %c0_85 = arith.constant 0 : index
      %135 = vector.load %arg12[%c0_84, %c0_85] : memref<128x128xbf16, #tpu.memory_space<vmem>>, vector<128x128xbf16>
      %cst_86 = arith.constant dense<0.000000e+00> : vector<16x128xf32>
      %136 = tpu.matmul %134, %135, %cst_86 {dimension_numbers = #tpu.dot_dimension_numbers<[1], [0], [0], [1], [0, 0, 1, 1], [], []>} : vector<16x128xbf16>, vector<128x128xbf16>, vector<16x128xf32> -> vector<16x128xf32>
      %137 = arith.truncf %133 : vector<16x128xf32> to vector<16x128xbf16>
      %c0_87 = arith.constant 0 : index
      %c0_88 = arith.constant 0 : index
      %138 = vector.load %arg13[%c0_87, %c0_88] : memref<128x128xbf16, #tpu.memory_space<vmem>>, vector<128x128xbf16>
      %cst_89 = arith.constant dense<0.000000e+00> : vector<16x128xf32>
      %139 = tpu.matmul %137, %138, %cst_89 {dimension_numbers = #tpu.dot_dimension_numbers<[1], [0], [0], [1], [0, 0, 1, 1], [], []>} : vector<16x128xbf16>, vector<128x128xbf16>, vector<16x128xf32> -> vector<16x128xf32>
      %140 = arith.subf %136, %139 : vector<16x128xf32>
      %141 = arith.addf %140, %128 : vector<16x128xf32>
      %c0_90 = arith.constant 0 : index
      %c0_91 = arith.constant 0 : index
      %c0_92 = arith.constant 0 : index
      %142 = vector.load %arg14[%c0_90, %c0_91, %c0_92] : memref<1x1x128xf32, #tpu.memory_space<vmem>>, vector<1x1x128xf32>
      %143 = vector.shape_cast %142 : vector<1x1x128xf32> to vector<1x128xf32>
      %c0_93 = arith.constant 0 : index
      %c0_94 = arith.constant 0 : index
      %c0_95 = arith.constant 0 : index
      %144 = vector.load %arg15[%c0_93, %c0_94, %c0_95] : memref<1x1x128xf32, #tpu.memory_space<vmem>>, vector<1x1x128xf32>
      %145 = vector.shape_cast %144 : vector<1x1x128xf32> to vector<1x128xf32>
      %cst_96 = arith.constant dense<0.000000e+00> : vector<16xf32>
      %146 = vector.multi_reduction <add>, %141, %cst_96 [1] : vector<16x128xf32> to vector<16xf32>
      %147 = vector.shape_cast %146 : vector<16xf32> to vector<16x1xf32>
      %cst_97 = arith.constant 1.280000e+02 : f32
      %148 = vector.broadcast %cst_97 : f32 to vector<16x1xf32>
      %149 = arith.divf %147, %148 : vector<16x1xf32>
      %150 = vector.broadcast %149 : vector<16x1xf32> to vector<16x128xf32>
      %151 = arith.subf %141, %150 : vector<16x128xf32>
      %152 = arith.mulf %151, %151 : vector<16x128xf32>
      %cst_98 = arith.constant dense<0.000000e+00> : vector<16xf32>
      %153 = vector.multi_reduction <add>, %152, %cst_98 [1] : vector<16x128xf32> to vector<16xf32>
      %154 = vector.shape_cast %153 : vector<16xf32> to vector<16x1xf32>
      %cst_99 = arith.constant 1.280000e+02 : f32
      %155 = vector.broadcast %cst_99 : f32 to vector<16x1xf32>
      %156 = arith.divf %154, %155 : vector<16x1xf32>
      %157 = vector.broadcast %149 : vector<16x1xf32> to vector<16x128xf32>
      %158 = arith.subf %141, %157 : vector<16x128xf32>
      %cst_100 = arith.constant 9.99999996E-13 : f32
      %159 = vector.broadcast %cst_100 : f32 to vector<16x1xf32>
      %160 = arith.addf %156, %159 : vector<16x1xf32>
      %161 = math.rsqrt %160 : vector<16x1xf32>
      %162 = vector.broadcast %161 : vector<16x1xf32> to vector<16x128xf32>
      %163 = arith.mulf %158, %162 : vector<16x128xf32>
      %164 = vector.broadcast %143 : vector<1x128xf32> to vector<16x128xf32>
      %165 = arith.mulf %163, %164 : vector<16x128xf32>
      %166 = vector.broadcast %145 : vector<1x128xf32> to vector<16x128xf32>
      %167 = arith.addf %165, %166 : vector<16x128xf32>
      %c32 = arith.constant 32 : index
      %c0_101 = arith.constant 0 : index
      %168 = vector.load %arg27[%c32, %c0_101] : memref<128x128xf32, #tpu.memory_space<vmem>>, vector<16x128xf32>
      tpu.vector_store %arg27[%c32, %c0_101], %167 {strides = array<i32>} : memref<128x128xf32, #tpu.memory_space<vmem>>, vector<16x128xf32>,
      %169 = vector.extract_strided_slice %45 {offsets = [48, 0], sizes = [16, 128], strides = [1, 1]} : vector<128x128xf32> to vector<16x128xf32>
      %170 = arith.truncf %169 : vector<16x128xf32> to vector<16x128xbf16>
      %c0_102 = arith.constant 0 : index
      %c0_103 = arith.constant 0 : index
      %171 = vector.load %arg10[%c0_102, %c0_103] : memref<16x16xbf16, #tpu.memory_space<vmem>>, vector<16x16xbf16>
      %cst_104 = arith.constant dense<0.000000e+00> : vector<16x128xf32>
      %172 = tpu.matmul %171, %170, %cst_104 {dimension_numbers = #tpu.dot_dimension_numbers<[1], [0], [0], [1], [0, 0, 1, 1], [], []>} : vector<16x16xbf16>, vector<16x128xbf16>, vector<16x128xf32> -> vector<16x128xf32>
      %c0_105 = arith.constant 0 : index
      %c0_106 = arith.constant 0 : index
      %173 = vector.load %arg11[%c0_105, %c0_106] : memref<16x16xbf16, #tpu.memory_space<vmem>>, vector<16x16xbf16>
      %cst_107 = arith.constant dense<0.000000e+00> : vector<16x128xf32>
      %174 = tpu.matmul %173, %170, %cst_107 {dimension_numbers = #tpu.dot_dimension_numbers<[1], [0], [0], [1], [0, 0, 1, 1], [], []>} : vector<16x16xbf16>, vector<16x128xbf16>, vector<16x128xf32> -> vector<16x128xf32>
      %175 = arith.truncf %172 : vector<16x128xf32> to vector<16x128xbf16>
      %c0_108 = arith.constant 0 : index
      %c0_109 = arith.constant 0 : index
      %176 = vector.load %arg12[%c0_108, %c0_109] : memref<128x128xbf16, #tpu.memory_space<vmem>>, vector<128x128xbf16>
      %cst_110 = arith.constant dense<0.000000e+00> : vector<16x128xf32>
      %177 = tpu.matmul %175, %176, %cst_110 {dimension_numbers = #tpu.dot_dimension_numbers<[1], [0], [0], [1], [0, 0, 1, 1], [], []>} : vector<16x128xbf16>, vector<128x128xbf16>, vector<16x128xf32> -> vector<16x128xf32>
      %178 = arith.truncf %174 : vector<16x128xf32> to vector<16x128xbf16>
      %c0_111 = arith.constant 0 : index
      %c0_112 = arith.constant 0 : index
      %179 = vector.load %arg13[%c0_111, %c0_112] : memref<128x128xbf16, #tpu.memory_space<vmem>>, vector<128x128xbf16>
      %cst_113 = arith.constant dense<0.000000e+00> : vector<16x128xf32>
      %180 = tpu.matmul %178, %179, %cst_113 {dimension_numbers = #tpu.dot_dimension_numbers<[1], [0], [0], [1], [0, 0, 1, 1], [], []>} : vector<16x128xbf16>, vector<128x128xbf16>, vector<16x128xf32> -> vector<16x128xf32>
      %181 = arith.subf %177, %180 : vector<16x128xf32>
      %182 = arith.addf %181, %169 : vector<16x128xf32>
      %c0_114 = arith.constant 0 : index
      %c0_115 = arith.constant 0 : index
      %c0_116 = arith.constant 0 : index
      %183 = vector.load %arg14[%c0_114, %c0_115, %c0_116] : memref<1x1x128xf32, #tpu.memory_space<vmem>>, vector<1x1x128xf32>
      %184 = vector.shape_cast %183 : vector<1x1x128xf32> to vector<1x128xf32>
      %c0_117 = arith.constant 0 : index
      %c0_118 = arith.constant 0 : index
      %c0_119 = arith.constant 0 : index
      %185 = vector.load %arg15[%c0_117, %c0_118, %c0_119] : memref<1x1x128xf32, #tpu.memory_space<vmem>>, vector<1x1x128xf32>
      %186 = vector.shape_cast %185 : vector<1x1x128xf32> to vector<1x128xf32>
      %cst_120 = arith.constant dense<0.000000e+00> : vector<16xf32>
      %187 = vector.multi_reduction <add>, %182, %cst_120 [1] : vector<16x128xf32> to vector<16xf32>
      %188 = vector.shape_cast %187 : vector<16xf32> to vector<16x1xf32>
      %cst_121 = arith.constant 1.280000e+02 : f32
      %189 = vector.broadcast %cst_121 : f32 to vector<16x1xf32>
      %190 = arith.divf %188, %189 : vector<16x1xf32>
      %191 = vector.broadcast %190 : vector<16x1xf32> to vector<16x128xf32>
      %192 = arith.subf %182, %191 : vector<16x128xf32>
      %193 = arith.mulf %192, %192 : vector<16x128xf32>
      %cst_122 = arith.constant dense<0.000000e+00> : vector<16xf32>
      %194 = vector.multi_reduction <add>, %193, %cst_122 [1] : vector<16x128xf32> to vector<16xf32>
      %195 = vector.shape_cast %194 : vector<16xf32> to vector<16x1xf32>
      %cst_123 = arith.constant 1.280000e+02 : f32
      %196 = vector.broadcast %cst_123 : f32 to vector<16x1xf32>
      %197 = arith.divf %195, %196 : vector<16x1xf32>
      %198 = vector.broadcast %190 : vector<16x1xf32> to vector<16x128xf32>
      %199 = arith.subf %182, %198 : vector<16x128xf32>
      %cst_124 = arith.constant 9.99999996E-13 : f32
      %200 = vector.broadcast %cst_124 : f32 to vector<16x1xf32>
      %201 = arith.addf %197, %200 : vector<16x1xf32>
      %202 = math.rsqrt %201 : vector<16x1xf32>
      %203 = vector.broadcast %202 : vector<16x1xf32> to vector<16x128xf32>
      %204 = arith.mulf %199, %203 : vector<16x128xf32>
      %205 = vector.broadcast %184 : vector<1x128xf32> to vector<16x128xf32>
      %206 = arith.mulf %204, %205 : vector<16x128xf32>
      %207 = vector.broadcast %186 : vector<1x128xf32> to vector<16x128xf32>
      %208 = arith.addf %206, %207 : vector<16x128xf32>
      %c48 = arith.constant 48 : index
      %c0_125 = arith.constant 0 : index
      %209 = vector.load %arg27[%c48, %c0_125] : memref<128x128xf32, #tpu.memory_space<vmem>>, vector<16x128xf32>
      tpu.vector_store %arg27[%c48, %c0_125], %208 {strides = array<i32>} : memref<128x128xf32, #tpu.memory_space<vmem>>, vector<16x128xf32>,
      %210 = vector.extract_strided_slice %45 {offsets = [64, 0], sizes = [16, 128], strides = [1, 1]} : vector<128x128xf32> to vector<16x128xf32>
      %211 = arith.truncf %210 : vector<16x128xf32> to vector<16x128xbf16>
      %c0_126 = arith.constant 0 : index
      %c0_127 = arith.constant 0 : index
      %212 = vector.load %arg10[%c0_126, %c0_127] : memref<16x16xbf16, #tpu.memory_space<vmem>>, vector<16x16xbf16>
      %cst_128 = arith.constant dense<0.000000e+00> : vector<16x128xf32>
      %213 = tpu.matmul %212, %211, %cst_128 {dimension_numbers = #tpu.dot_dimension_numbers<[1], [0], [0], [1], [0, 0, 1, 1], [], []>} : vector<16x16xbf16>, vector<16x128xbf16>, vector<16x128xf32> -> vector<16x128xf32>
      %c0_129 = arith.constant 0 : index
      %c0_130 = arith.constant 0 : index
      %214 = vector.load %arg11[%c0_129, %c0_130] : memref<16x16xbf16, #tpu.memory_space<vmem>>, vector<16x16xbf16>
      %cst_131 = arith.constant dense<0.000000e+00> : vector<16x128xf32>
      %215 = tpu.matmul %214, %211, %cst_131 {dimension_numbers = #tpu.dot_dimension_numbers<[1], [0], [0], [1], [0, 0, 1, 1], [], []>} : vector<16x16xbf16>, vector<16x128xbf16>, vector<16x128xf32> -> vector<16x128xf32>
      %216 = arith.truncf %213 : vector<16x128xf32> to vector<16x128xbf16>
      %c0_132 = arith.constant 0 : index
      %c0_133 = arith.constant 0 : index
      %217 = vector.load %arg12[%c0_132, %c0_133] : memref<128x128xbf16, #tpu.memory_space<vmem>>, vector<128x128xbf16>
      %cst_134 = arith.constant dense<0.000000e+00> : vector<16x128xf32>
      %218 = tpu.matmul %216, %217, %cst_134 {dimension_numbers = #tpu.dot_dimension_numbers<[1], [0], [0], [1], [0, 0, 1, 1], [], []>} : vector<16x128xbf16>, vector<128x128xbf16>, vector<16x128xf32> -> vector<16x128xf32>
      %219 = arith.truncf %215 : vector<16x128xf32> to vector<16x128xbf16>
      %c0_135 = arith.constant 0 : index
      %c0_136 = arith.constant 0 : index
      %220 = vector.load %arg13[%c0_135, %c0_136] : memref<128x128xbf16, #tpu.memory_space<vmem>>, vector<128x128xbf16>
      %cst_137 = arith.constant dense<0.000000e+00> : vector<16x128xf32>
      %221 = tpu.matmul %219, %220, %cst_137 {dimension_numbers = #tpu.dot_dimension_numbers<[1], [0], [0], [1], [0, 0, 1, 1], [], []>} : vector<16x128xbf16>, vector<128x128xbf16>, vector<16x128xf32> -> vector<16x128xf32>
      %222 = arith.subf %218, %221 : vector<16x128xf32>
      %223 = arith.addf %222, %210 : vector<16x128xf32>
      %c0_138 = arith.constant 0 : index
      %c0_139 = arith.constant 0 : index
      %c0_140 = arith.constant 0 : index
      %224 = vector.load %arg14[%c0_138, %c0_139, %c0_140] : memref<1x1x128xf32, #tpu.memory_space<vmem>>, vector<1x1x128xf32>
      %225 = vector.shape_cast %224 : vector<1x1x128xf32> to vector<1x128xf32>
      %c0_141 = arith.constant 0 : index
      %c0_142 = arith.constant 0 : index
      %c0_143 = arith.constant 0 : index
      %226 = vector.load %arg15[%c0_141, %c0_142, %c0_143] : memref<1x1x128xf32, #tpu.memory_space<vmem>>, vector<1x1x128xf32>
      %227 = vector.shape_cast %226 : vector<1x1x128xf32> to vector<1x128xf32>
      %cst_144 = arith.constant dense<0.000000e+00> : vector<16xf32>
      %228 = vector.multi_reduction <add>, %223, %cst_144 [1] : vector<16x128xf32> to vector<16xf32>
      %229 = vector.shape_cast %228 : vector<16xf32> to vector<16x1xf32>
      %cst_145 = arith.constant 1.280000e+02 : f32
      %230 = vector.broadcast %cst_145 : f32 to vector<16x1xf32>
      %231 = arith.divf %229, %230 : vector<16x1xf32>
      %232 = vector.broadcast %231 : vector<16x1xf32> to vector<16x128xf32>
      %233 = arith.subf %223, %232 : vector<16x128xf32>
      %234 = arith.mulf %233, %233 : vector<16x128xf32>
      %cst_146 = arith.constant dense<0.000000e+00> : vector<16xf32>
      %235 = vector.multi_reduction <add>, %234, %cst_146 [1] : vector<16x128xf32> to vector<16xf32>
      %236 = vector.shape_cast %235 : vector<16xf32> to vector<16x1xf32>
      %cst_147 = arith.constant 1.280000e+02 : f32
      %237 = vector.broadcast %cst_147 : f32 to vector<16x1xf32>
      %238 = arith.divf %236, %237 : vector<16x1xf32>
      %239 = vector.broadcast %231 : vector<16x1xf32> to vector<16x128xf32>
      %240 = arith.subf %223, %239 : vector<16x128xf32>
      %cst_148 = arith.constant 9.99999996E-13 : f32
      %241 = vector.broadcast %cst_148 : f32 to vector<16x1xf32>
      %242 = arith.addf %238, %241 : vector<16x1xf32>
      %243 = math.rsqrt %242 : vector<16x1xf32>
      %244 = vector.broadcast %243 : vector<16x1xf32> to vector<16x128xf32>
      %245 = arith.mulf %240, %244 : vector<16x128xf32>
      %246 = vector.broadcast %225 : vector<1x128xf32> to vector<16x128xf32>
      %247 = arith.mulf %245, %246 : vector<16x128xf32>
      %248 = vector.broadcast %227 : vector<1x128xf32> to vector<16x128xf32>
      %249 = arith.addf %247, %248 : vector<16x128xf32>
      %c64 = arith.constant 64 : index
      %c0_149 = arith.constant 0 : index
      %250 = vector.load %arg27[%c64, %c0_149] : memref<128x128xf32, #tpu.memory_space<vmem>>, vector<16x128xf32>
      tpu.vector_store %arg27[%c64, %c0_149], %249 {strides = array<i32>} : memref<128x128xf32, #tpu.memory_space<vmem>>, vector<16x128xf32>,
      %251 = vector.extract_strided_slice %45 {offsets = [80, 0], sizes = [16, 128], strides = [1, 1]} : vector<128x128xf32> to vector<16x128xf32>
      %252 = arith.truncf %251 : vector<16x128xf32> to vector<16x128xbf16>
      %c0_150 = arith.constant 0 : index
      %c0_151 = arith.constant 0 : index
      %253 = vector.load %arg10[%c0_150, %c0_151] : memref<16x16xbf16, #tpu.memory_space<vmem>>, vector<16x16xbf16>
      %cst_152 = arith.constant dense<0.000000e+00> : vector<16x128xf32>
      %254 = tpu.matmul %253, %252, %cst_152 {dimension_numbers = #tpu.dot_dimension_numbers<[1], [0], [0], [1], [0, 0, 1, 1], [], []>} : vector<16x16xbf16>, vector<16x128xbf16>, vector<16x128xf32> -> vector<16x128xf32>
      %c0_153 = arith.constant 0 : index
      %c0_154 = arith.constant 0 : index
      %255 = vector.load %arg11[%c0_153, %c0_154] : memref<16x16xbf16, #tpu.memory_space<vmem>>, vector<16x16xbf16>
      %cst_155 = arith.constant dense<0.000000e+00> : vector<16x128xf32>
      %256 = tpu.matmul %255, %252, %cst_155 {dimension_numbers = #tpu.dot_dimension_numbers<[1], [0], [0], [1], [0, 0, 1, 1], [], []>} : vector<16x16xbf16>, vector<16x128xbf16>, vector<16x128xf32> -> vector<16x128xf32>
      %257 = arith.truncf %254 : vector<16x128xf32> to vector<16x128xbf16>
      %c0_156 = arith.constant 0 : index
      %c0_157 = arith.constant 0 : index
      %258 = vector.load %arg12[%c0_156, %c0_157] : memref<128x128xbf16, #tpu.memory_space<vmem>>, vector<128x128xbf16>
      %cst_158 = arith.constant dense<0.000000e+00> : vector<16x128xf32>
      %259 = tpu.matmul %257, %258, %cst_158 {dimension_numbers = #tpu.dot_dimension_numbers<[1], [0], [0], [1], [0, 0, 1, 1], [], []>} : vector<16x128xbf16>, vector<128x128xbf16>, vector<16x128xf32> -> vector<16x128xf32>
      %260 = arith.truncf %256 : vector<16x128xf32> to vector<16x128xbf16>
      %c0_159 = arith.constant 0 : index
      %c0_160 = arith.constant 0 : index
      %261 = vector.load %arg13[%c0_159, %c0_160] : memref<128x128xbf16, #tpu.memory_space<vmem>>, vector<128x128xbf16>
      %cst_161 = arith.constant dense<0.000000e+00> : vector<16x128xf32>
      %262 = tpu.matmul %260, %261, %cst_161 {dimension_numbers = #tpu.dot_dimension_numbers<[1], [0], [0], [1], [0, 0, 1, 1], [], []>} : vector<16x128xbf16>, vector<128x128xbf16>, vector<16x128xf32> -> vector<16x128xf32>
      %263 = arith.subf %259, %262 : vector<16x128xf32>
      %264 = arith.addf %263, %251 : vector<16x128xf32>
      %c0_162 = arith.constant 0 : index
      %c0_163 = arith.constant 0 : index
      %c0_164 = arith.constant 0 : index
      %265 = vector.load %arg14[%c0_162, %c0_163, %c0_164] : memref<1x1x128xf32, #tpu.memory_space<vmem>>, vector<1x1x128xf32>
      %266 = vector.shape_cast %265 : vector<1x1x128xf32> to vector<1x128xf32>
      %c0_165 = arith.constant 0 : index
      %c0_166 = arith.constant 0 : index
      %c0_167 = arith.constant 0 : index
      %267 = vector.load %arg15[%c0_165, %c0_166, %c0_167] : memref<1x1x128xf32, #tpu.memory_space<vmem>>, vector<1x1x128xf32>
      %268 = vector.shape_cast %267 : vector<1x1x128xf32> to vector<1x128xf32>
      %cst_168 = arith.constant dense<0.000000e+00> : vector<16xf32>
      %269 = vector.multi_reduction <add>, %264, %cst_168 [1] : vector<16x128xf32> to vector<16xf32>
      %270 = vector.shape_cast %269 : vector<16xf32> to vector<16x1xf32>
      %cst_169 = arith.constant 1.280000e+02 : f32
      %271 = vector.broadcast %cst_169 : f32 to vector<16x1xf32>
      %272 = arith.divf %270, %271 : vector<16x1xf32>
      %273 = vector.broadcast %272 : vector<16x1xf32> to vector<16x128xf32>
      %274 = arith.subf %264, %273 : vector<16x128xf32>
      %275 = arith.mulf %274, %274 : vector<16x128xf32>
      %cst_170 = arith.constant dense<0.000000e+00> : vector<16xf32>
      %276 = vector.multi_reduction <add>, %275, %cst_170 [1] : vector<16x128xf32> to vector<16xf32>
      %277 = vector.shape_cast %276 : vector<16xf32> to vector<16x1xf32>
      %cst_171 = arith.constant 1.280000e+02 : f32
      %278 = vector.broadcast %cst_171 : f32 to vector<16x1xf32>
      %279 = arith.divf %277, %278 : vector<16x1xf32>
      %280 = vector.broadcast %272 : vector<16x1xf32> to vector<16x128xf32>
      %281 = arith.subf %264, %280 : vector<16x128xf32>
      %cst_172 = arith.constant 9.99999996E-13 : f32
      %282 = vector.broadcast %cst_172 : f32 to vector<16x1xf32>
      %283 = arith.addf %279, %282 : vector<16x1xf32>
      %284 = math.rsqrt %283 : vector<16x1xf32>
      %285 = vector.broadcast %284 : vector<16x1xf32> to vector<16x128xf32>
      %286 = arith.mulf %281, %285 : vector<16x128xf32>
      %287 = vector.broadcast %266 : vector<1x128xf32> to vector<16x128xf32>
      %288 = arith.mulf %286, %287 : vector<16x128xf32>
      %289 = vector.broadcast %268 : vector<1x128xf32> to vector<16x128xf32>
      %290 = arith.addf %288, %289 : vector<16x128xf32>
      %c80 = arith.constant 80 : index
      %c0_173 = arith.constant 0 : index
      %291 = vector.load %arg27[%c80, %c0_173] : memref<128x128xf32, #tpu.memory_space<vmem>>, vector<16x128xf32>
      tpu.vector_store %arg27[%c80, %c0_173], %290 {strides = array<i32>} : memref<128x128xf32, #tpu.memory_space<vmem>>, vector<16x128xf32>,
      %292 = vector.extract_strided_slice %45 {offsets = [96, 0], sizes = [16, 128], strides = [1, 1]} : vector<128x128xf32> to vector<16x128xf32>
      %293 = arith.truncf %292 : vector<16x128xf32> to vector<16x128xbf16>
      %c0_174 = arith.constant 0 : index
      %c0_175 = arith.constant 0 : index
      %294 = vector.load %arg10[%c0_174, %c0_175] : memref<16x16xbf16, #tpu.memory_space<vmem>>, vector<16x16xbf16>
      %cst_176 = arith.constant dense<0.000000e+00> : vector<16x128xf32>
      %295 = tpu.matmul %294, %293, %cst_176 {dimension_numbers = #tpu.dot_dimension_numbers<[1], [0], [0], [1], [0, 0, 1, 1], [], []>} : vector<16x16xbf16>, vector<16x128xbf16>, vector<16x128xf32> -> vector<16x128xf32>
      %c0_177 = arith.constant 0 : index
      %c0_178 = arith.constant 0 : index
      %296 = vector.load %arg11[%c0_177, %c0_178] : memref<16x16xbf16, #tpu.memory_space<vmem>>, vector<16x16xbf16>
      %cst_179 = arith.constant dense<0.000000e+00> : vector<16x128xf32>
      %297 = tpu.matmul %296, %293, %cst_179 {dimension_numbers = #tpu.dot_dimension_numbers<[1], [0], [0], [1], [0, 0, 1, 1], [], []>} : vector<16x16xbf16>, vector<16x128xbf16>, vector<16x128xf32> -> vector<16x128xf32>
      %298 = arith.truncf %295 : vector<16x128xf32> to vector<16x128xbf16>
      %c0_180 = arith.constant 0 : index
      %c0_181 = arith.constant 0 : index
      %299 = vector.load %arg12[%c0_180, %c0_181] : memref<128x128xbf16, #tpu.memory_space<vmem>>, vector<128x128xbf16>
      %cst_182 = arith.constant dense<0.000000e+00> : vector<16x128xf32>
      %300 = tpu.matmul %298, %299, %cst_182 {dimension_numbers = #tpu.dot_dimension_numbers<[1], [0], [0], [1], [0, 0, 1, 1], [], []>} : vector<16x128xbf16>, vector<128x128xbf16>, vector<16x128xf32> -> vector<16x128xf32>
      %301 = arith.truncf %297 : vector<16x128xf32> to vector<16x128xbf16>
      %c0_183 = arith.constant 0 : index
      %c0_184 = arith.constant 0 : index
      %302 = vector.load %arg13[%c0_183, %c0_184] : memref<128x128xbf16, #tpu.memory_space<vmem>>, vector<128x128xbf16>
      %cst_185 = arith.constant dense<0.000000e+00> : vector<16x128xf32>
      %303 = tpu.matmul %301, %302, %cst_185 {dimension_numbers = #tpu.dot_dimension_numbers<[1], [0], [0], [1], [0, 0, 1, 1], [], []>} : vector<16x128xbf16>, vector<128x128xbf16>, vector<16x128xf32> -> vector<16x128xf32>
      %304 = arith.subf %300, %303 : vector<16x128xf32>
      %305 = arith.addf %304, %292 : vector<16x128xf32>
      %c0_186 = arith.constant 0 : index
      %c0_187 = arith.constant 0 : index
      %c0_188 = arith.constant 0 : index
      %306 = vector.load %arg14[%c0_186, %c0_187, %c0_188] : memref<1x1x128xf32, #tpu.memory_space<vmem>>, vector<1x1x128xf32>
      %307 = vector.shape_cast %306 : vector<1x1x128xf32> to vector<1x128xf32>
      %c0_189 = arith.constant 0 : index
      %c0_190 = arith.constant 0 : index
      %c0_191 = arith.constant 0 : index
      %308 = vector.load %arg15[%c0_189, %c0_190, %c0_191] : memref<1x1x128xf32, #tpu.memory_space<vmem>>, vector<1x1x128xf32>
      %309 = vector.shape_cast %308 : vector<1x1x128xf32> to vector<1x128xf32>
      %cst_192 = arith.constant dense<0.000000e+00> : vector<16xf32>
      %310 = vector.multi_reduction <add>, %305, %cst_192 [1] : vector<16x128xf32> to vector<16xf32>
      %311 = vector.shape_cast %310 : vector<16xf32> to vector<16x1xf32>
      %cst_193 = arith.constant 1.280000e+02 : f32
      %312 = vector.broadcast %cst_193 : f32 to vector<16x1xf32>
      %313 = arith.divf %311, %312 : vector<16x1xf32>
      %314 = vector.broadcast %313 : vector<16x1xf32> to vector<16x128xf32>
      %315 = arith.subf %305, %314 : vector<16x128xf32>
      %316 = arith.mulf %315, %315 : vector<16x128xf32>
      %cst_194 = arith.constant dense<0.000000e+00> : vector<16xf32>
      %317 = vector.multi_reduction <add>, %316, %cst_194 [1] : vector<16x128xf32> to vector<16xf32>
      %318 = vector.shape_cast %317 : vector<16xf32> to vector<16x1xf32>
      %cst_195 = arith.constant 1.280000e+02 : f32
      %319 = vector.broadcast %cst_195 : f32 to vector<16x1xf32>
      %320 = arith.divf %318, %319 : vector<16x1xf32>
      %321 = vector.broadcast %313 : vector<16x1xf32> to vector<16x128xf32>
      %322 = arith.subf %305, %321 : vector<16x128xf32>
      %cst_196 = arith.constant 9.99999996E-13 : f32
      %323 = vector.broadcast %cst_196 : f32 to vector<16x1xf32>
      %324 = arith.addf %320, %323 : vector<16x1xf32>
      %325 = math.rsqrt %324 : vector<16x1xf32>
      %326 = vector.broadcast %325 : vector<16x1xf32> to vector<16x128xf32>
      %327 = arith.mulf %322, %326 : vector<16x128xf32>
      %328 = vector.broadcast %307 : vector<1x128xf32> to vector<16x128xf32>
      %329 = arith.mulf %327, %328 : vector<16x128xf32>
      %330 = vector.broadcast %309 : vector<1x128xf32> to vector<16x128xf32>
      %331 = arith.addf %329, %330 : vector<16x128xf32>
      %c96 = arith.constant 96 : index
      %c0_197 = arith.constant 0 : index
      %332 = vector.load %arg27[%c96, %c0_197] : memref<128x128xf32, #tpu.memory_space<vmem>>, vector<16x128xf32>
      tpu.vector_store %arg27[%c96, %c0_197], %331 {strides = array<i32>} : memref<128x128xf32, #tpu.memory_space<vmem>>, vector<16x128xf32>,
      %333 = vector.extract_strided_slice %45 {offsets = [112, 0], sizes = [16, 128], strides = [1, 1]} : vector<128x128xf32> to vector<16x128xf32>
      %334 = arith.truncf %333 : vector<16x128xf32> to vector<16x128xbf16>
      %c0_198 = arith.constant 0 : index
      %c0_199 = arith.constant 0 : index
      %335 = vector.load %arg10[%c0_198, %c0_199] : memref<16x16xbf16, #tpu.memory_space<vmem>>, vector<16x16xbf16>
      %cst_200 = arith.constant dense<0.000000e+00> : vector<16x128xf32>
      %336 = tpu.matmul %335, %334, %cst_200 {dimension_numbers = #tpu.dot_dimension_numbers<[1], [0], [0], [1], [0, 0, 1, 1], [], []>} : vector<16x16xbf16>, vector<16x128xbf16>, vector<16x128xf32> -> vector<16x128xf32>
      %c0_201 = arith.constant 0 : index
      %c0_202 = arith.constant 0 : index
      %337 = vector.load %arg11[%c0_201, %c0_202] : memref<16x16xbf16, #tpu.memory_space<vmem>>, vector<16x16xbf16>
      %cst_203 = arith.constant dense<0.000000e+00> : vector<16x128xf32>
      %338 = tpu.matmul %337, %334, %cst_203 {dimension_numbers = #tpu.dot_dimension_numbers<[1], [0], [0], [1], [0, 0, 1, 1], [], []>} : vector<16x16xbf16>, vector<16x128xbf16>, vector<16x128xf32> -> vector<16x128xf32>
      %339 = arith.truncf %336 : vector<16x128xf32> to vector<16x128xbf16>
      %c0_204 = arith.constant 0 : index
      %c0_205 = arith.constant 0 : index
      %340 = vector.load %arg12[%c0_204, %c0_205] : memref<128x128xbf16, #tpu.memory_space<vmem>>, vector<128x128xbf16>
      %cst_206 = arith.constant dense<0.000000e+00> : vector<16x128xf32>
      %341 = tpu.matmul %339, %340, %cst_206 {dimension_numbers = #tpu.dot_dimension_numbers<[1], [0], [0], [1], [0, 0, 1, 1], [], []>} : vector<16x128xbf16>, vector<128x128xbf16>, vector<16x128xf32> -> vector<16x128xf32>
      %342 = arith.truncf %338 : vector<16x128xf32> to vector<16x128xbf16>
      %c0_207 = arith.constant 0 : index
      %c0_208 = arith.constant 0 : index
      %343 = vector.load %arg13[%c0_207, %c0_208] : memref<128x128xbf16, #tpu.memory_space<vmem>>, vector<128x128xbf16>
      %cst_209 = arith.constant dense<0.000000e+00> : vector<16x128xf32>
      %344 = tpu.matmul %342, %343, %cst_209 {dimension_numbers = #tpu.dot_dimension_numbers<[1], [0], [0], [1], [0, 0, 1, 1], [], []>} : vector<16x128xbf16>, vector<128x128xbf16>, vector<16x128xf32> -> vector<16x128xf32>
      %345 = arith.subf %341, %344 : vector<16x128xf32>
      %346 = arith.addf %345, %333 : vector<16x128xf32>
      %c0_210 = arith.constant 0 : index
      %c0_211 = arith.constant 0 : index
      %c0_212 = arith.constant 0 : index
      %347 = vector.load %arg14[%c0_210, %c0_211, %c0_212] : memref<1x1x128xf32, #tpu.memory_space<vmem>>, vector<1x1x128xf32>
      %348 = vector.shape_cast %347 : vector<1x1x128xf32> to vector<1x128xf32>
      %c0_213 = arith.constant 0 : index
      %c0_214 = arith.constant 0 : index
      %c0_215 = arith.constant 0 : index
      %349 = vector.load %arg15[%c0_213, %c0_214, %c0_215] : memref<1x1x128xf32, #tpu.memory_space<vmem>>, vector<1x1x128xf32>
      %350 = vector.shape_cast %349 : vector<1x1x128xf32> to vector<1x128xf32>
      %cst_216 = arith.constant dense<0.000000e+00> : vector<16xf32>
      %351 = vector.multi_reduction <add>, %346, %cst_216 [1] : vector<16x128xf32> to vector<16xf32>
      %352 = vector.shape_cast %351 : vector<16xf32> to vector<16x1xf32>
      %cst_217 = arith.constant 1.280000e+02 : f32
      %353 = vector.broadcast %cst_217 : f32 to vector<16x1xf32>
      %354 = arith.divf %352, %353 : vector<16x1xf32>
      %355 = vector.broadcast %354 : vector<16x1xf32> to vector<16x128xf32>
      %356 = arith.subf %346, %355 : vector<16x128xf32>
      %357 = arith.mulf %356, %356 : vector<16x128xf32>
      %cst_218 = arith.constant dense<0.000000e+00> : vector<16xf32>
      %358 = vector.multi_reduction <add>, %357, %cst_218 [1] : vector<16x128xf32> to vector<16xf32>
      %359 = vector.shape_cast %358 : vector<16xf32> to vector<16x1xf32>
      %cst_219 = arith.constant 1.280000e+02 : f32
      %360 = vector.broadcast %cst_219 : f32 to vector<16x1xf32>
      %361 = arith.divf %359, %360 : vector<16x1xf32>
      %362 = vector.broadcast %354 : vector<16x1xf32> to vector<16x128xf32>
      %363 = arith.subf %346, %362 : vector<16x128xf32>
      %cst_220 = arith.constant 9.99999996E-13 : f32
      %364 = vector.broadcast %cst_220 : f32 to vector<16x1xf32>
      %365 = arith.addf %361, %364 : vector<16x1xf32>
      %366 = math.rsqrt %365 : vector<16x1xf32>
      %367 = vector.broadcast %366 : vector<16x1xf32> to vector<16x128xf32>
      %368 = arith.mulf %363, %367 : vector<16x128xf32>
      %369 = vector.broadcast %348 : vector<1x128xf32> to vector<16x128xf32>
      %370 = arith.mulf %368, %369 : vector<16x128xf32>
      %371 = vector.broadcast %350 : vector<1x128xf32> to vector<16x128xf32>
      %372 = arith.addf %370, %371 : vector<16x128xf32>
      %c112 = arith.constant 112 : index
      %c0_221 = arith.constant 0 : index
      %373 = vector.load %arg27[%c112, %c0_221] : memref<128x128xf32, #tpu.memory_space<vmem>>, vector<16x128xf32>
      tpu.vector_store %arg27[%c112, %c0_221], %372 {strides = array<i32>} : memref<128x128xf32, #tpu.memory_space<vmem>>, vector<16x128xf32>,
      %cst_222 = arith.constant 0.000000e+00 : f32
      %374 = vector.broadcast %cst_222 : f32 to vector<128x128xf32>
      %c0_223 = arith.constant 0 : index
      %c0_224 = arith.constant 0 : index
      %375 = vector.load %arg28[%c0_223, %c0_224] : memref<128x128xf32, #tpu.memory_space<vmem>>, vector<128x128xf32>
      tpu.vector_store %arg28[%c0_223, %c0_224], %374 {strides = array<i32>} : memref<128x128xf32, #tpu.memory_space<vmem>>, vector<128x128xf32>,
    } else {
    }
    %c0 = arith.constant 0 : index
    %c0_4 = arith.constant 0 : index
    %8 = vector.load %arg27[%c0, %c0_4] : memref<128x128xf32, #tpu.memory_space<vmem>>, vector<128x128xf32>
    %9 = arith.truncf %8 : vector<128x128xf32> to vector<128x128xbf16>
    %c0_5 = arith.constant 0 : index
    %c0_6 = arith.constant 0 : index
    %c0_7 = arith.constant 0 : index
    %10 = vector.load %arg16[%c0_5, %c0_6, %c0_7] : memref<1x128x512xbf16, #tpu.memory_space<vmem>>, vector<1x128x512xbf16>
    %11 = vector.shape_cast %10 : vector<1x128x512xbf16> to vector<128x512xbf16>
    %cst = arith.constant dense<0.000000e+00> : vector<128x512xf32>
    %12 = tpu.matmul %9, %11, %cst {dimension_numbers = #tpu.dot_dimension_numbers<[1], [0], [0], [1], [0, 0, 1, 1], [], []>} : vector<128x128xbf16>, vector<128x512xbf16>, vector<128x512xf32> -> vector<128x512xf32>
    %c0_8 = arith.constant 0 : index
    %c0_9 = arith.constant 0 : index
    %c0_10 = arith.constant 0 : index
    %13 = vector.load %arg17[%c0_8, %c0_9, %c0_10] : memref<1x1x512xf32, #tpu.memory_space<vmem>>, vector<1x1x512xf32>
    %14 = vector.shape_cast %13 : vector<1x1x512xf32> to vector<1x512xf32>
    %15 = vector.broadcast %14 : vector<1x512xf32> to vector<128x512xf32>
    %16 = arith.addf %12, %15 : vector<128x512xf32>
    %17 = arith.mulf %16, %16 : vector<128x512xf32>
    %18 = arith.mulf %16, %17 : vector<128x512xf32>
    %cst_11 = arith.constant 4.471500e-02 : f32
    %19 = vector.broadcast %cst_11 : f32 to vector<128x512xf32>
    %20 = arith.mulf %19, %18 : vector<128x512xf32>
    %21 = arith.addf %16, %20 : vector<128x512xf32>
    %cst_12 = arith.constant 0.797884583 : f32
    %22 = vector.broadcast %cst_12 : f32 to vector<128x512xf32>
    %23 = arith.mulf %22, %21 : vector<128x512xf32>
    %24 = math.tanh %23 : vector<128x512xf32>
    %cst_13 = arith.constant 1.000000e+00 : f32
    %25 = vector.broadcast %cst_13 : f32 to vector<128x512xf32>
    %26 = arith.addf %25, %24 : vector<128x512xf32>
    %cst_14 = arith.constant 5.000000e-01 : f32
    %27 = vector.broadcast %cst_14 : f32 to vector<128x512xf32>
    %28 = arith.mulf %27, %26 : vector<128x512xf32>
    %29 = arith.mulf %16, %28 : vector<128x512xf32>
    %c0_15 = arith.constant 0 : index
    %c0_16 = arith.constant 0 : index
    %30 = vector.load %arg28[%c0_15, %c0_16] : memref<128x128xf32, #tpu.memory_space<vmem>>, vector<128x128xf32>
    %31 = arith.truncf %29 : vector<128x512xf32> to vector<128x512xbf16>
    %c0_17 = arith.constant 0 : index
    %c0_18 = arith.constant 0 : index
    %c0_19 = arith.constant 0 : index
    %32 = vector.load %arg18[%c0_17, %c0_18, %c0_19] : memref<1x512x128xbf16, #tpu.memory_space<vmem>>, vector<1x512x128xbf16>
    %33 = vector.shape_cast %32 : vector<1x512x128xbf16> to vector<512x128xbf16>
    %cst_20 = arith.constant dense<0.000000e+00> : vector<128x128xf32>
    %34 = tpu.matmul %31, %33, %cst_20 {dimension_numbers = #tpu.dot_dimension_numbers<[1], [0], [0], [1], [0, 0, 1, 1], [], []>} : vector<128x512xbf16>, vector<512x128xbf16>, vector<128x128xf32> -> vector<128x128xf32>
    %35 = arith.addf %30, %34 : vector<128x128xf32>
    %c0_21 = arith.constant 0 : index
    %c0_22 = arith.constant 0 : index
    %36 = vector.load %arg28[%c0_21, %c0_22] : memref<128x128xf32, #tpu.memory_space<vmem>>, vector<128x128xf32>
    tpu.vector_store %arg28[%c0_21, %c0_22], %35 {strides = array<i32>} : memref<128x128xf32, #tpu.memory_space<vmem>>, vector<128x128xf32>,
    %c1_i32 = arith.constant 1 : i32
    %37 = arith.cmpi eq, %arg2, %c1_i32 : i32
    %38 = arith.extui %37 : i1 to i32
    %c0_i32_23 = arith.constant 0 : i32
    %39 = arith.cmpi ne, %38, %c0_i32_23 : i32
    scf.if %39 {
      %c0_27 = arith.constant 0 : index
      %c0_28 = arith.constant 0 : index
      %45 = vector.load %arg28[%c0_27, %c0_28] : memref<128x128xf32, #tpu.memory_space<vmem>>, vector<128x128xf32>
      %c0_29 = arith.constant 0 : index
      %c0_30 = arith.constant 0 : index
      %c0_31 = arith.constant 0 : index
      %46 = vector.load %arg19[%c0_29, %c0_30, %c0_31] : memref<1x1x128xf32, #tpu.memory_space<vmem>>, vector<1x1x128xf32>
      %47 = vector.shape_cast %46 : vector<1x1x128xf32> to vector<1x128xf32>
      %48 = vector.broadcast %47 : vector<1x128xf32> to vector<128x128xf32>
      %49 = arith.addf %45, %48 : vector<128x128xf32>
      %c0_32 = arith.constant 0 : index
      %c0_33 = arith.constant 0 : index
      %50 = vector.load %arg27[%c0_32, %c0_33] : memref<128x128xf32, #tpu.memory_space<vmem>>, vector<128x128xf32>
      %51 = arith.addf %49, %50 : vector<128x128xf32>
      %c0_34 = arith.constant 0 : index
      %c0_35 = arith.constant 0 : index
      %c0_36 = arith.constant 0 : index
      %52 = vector.load %arg20[%c0_34, %c0_35, %c0_36] : memref<1x1x128xf32, #tpu.memory_space<vmem>>, vector<1x1x128xf32>
      %53 = vector.shape_cast %52 : vector<1x1x128xf32> to vector<1x128xf32>
      %c0_37 = arith.constant 0 : index
      %c0_38 = arith.constant 0 : index
      %c0_39 = arith.constant 0 : index
      %54 = vector.load %arg21[%c0_37, %c0_38, %c0_39] : memref<1x1x128xf32, #tpu.memory_space<vmem>>, vector<1x1x128xf32>
      %55 = vector.shape_cast %54 : vector<1x1x128xf32> to vector<1x128xf32>
      %cst_40 = arith.constant dense<0.000000e+00> : vector<128xf32>
      %56 = vector.multi_reduction <add>, %51, %cst_40 [1] : vector<128x128xf32> to vector<128xf32>
      %57 = vector.shape_cast %56 : vector<128xf32> to vector<128x1xf32>
      %cst_41 = arith.constant 1.280000e+02 : f32
      %58 = vector.broadcast %cst_41 : f32 to vector<128x1xf32>
      %59 = arith.divf %57, %58 : vector<128x1xf32>
      %60 = vector.broadcast %59 : vector<128x1xf32> to vector<128x128xf32>
      %61 = arith.subf %51, %60 : vector<128x128xf32>
      %62 = arith.mulf %61, %61 : vector<128x128xf32>
      %cst_42 = arith.constant dense<0.000000e+00> : vector<128xf32>
      %63 = vector.multi_reduction <add>, %62, %cst_42 [1] : vector<128x128xf32> to vector<128xf32>
      %64 = vector.shape_cast %63 : vector<128xf32> to vector<128x1xf32>
      %cst_43 = arith.constant 1.280000e+02 : f32
      %65 = vector.broadcast %cst_43 : f32 to vector<128x1xf32>
      %66 = arith.divf %64, %65 : vector<128x1xf32>
      %67 = vector.broadcast %59 : vector<128x1xf32> to vector<128x128xf32>
      %68 = arith.subf %51, %67 : vector<128x128xf32>
      %cst_44 = arith.constant 9.99999996E-13 : f32
      %69 = vector.broadcast %cst_44 : f32 to vector<128x1xf32>
      %70 = arith.addf %66, %69 : vector<128x1xf32>
      %71 = math.rsqrt %70 : vector<128x1xf32>
      %72 = vector.broadcast %71 : vector<128x1xf32> to vector<128x128xf32>
      %73 = arith.mulf %68, %72 : vector<128x128xf32>
      %74 = vector.broadcast %53 : vector<1x128xf32> to vector<128x128xf32>
      %75 = arith.mulf %73, %74 : vector<128x128xf32>
      %76 = vector.broadcast %55 : vector<1x128xf32> to vector<128x128xf32>
      %77 = arith.addf %75, %76 : vector<128x128xf32>
      %c0_45 = arith.constant 0 : index
      %c0_46 = arith.constant 0 : index
      %78 = vector.load %arg26[%c0_45, %c0_46] : memref<128x128xf32, #tpu.memory_space<vmem>>, vector<128x128xf32>
      tpu.vector_store %arg26[%c0_45, %c0_46], %77 {strides = array<i32>} : memref<128x128xf32, #tpu.memory_space<vmem>>, vector<128x128xf32>,
    } else {
    }
    %c1_i32_24 = arith.constant 1 : i32
    %40 = arith.cmpi eq, %arg1, %c1_i32_24 : i32
    %c1_i32_25 = arith.constant 1 : i32
    %41 = arith.cmpi eq, %arg2, %c1_i32_25 : i32
    %42 = arith.andi %40, %41 : i1
    %43 = arith.extui %42 : i1 to i32
    %c0_i32_26 = arith.constant 0 : i32
    %44 = arith.cmpi ne, %43, %c0_i32_26 : i32
    scf.if %44 {
      %c0_27 = arith.constant 0 : index
      %c0_28 = arith.constant 0 : index
      %45 = vector.load %arg26[%c0_27, %c0_28] : memref<128x128xf32, #tpu.memory_space<vmem>>, vector<128x128xf32>
      %46 = vector.shape_cast %45 : vector<128x128xf32> to vector<8x16x128xf32>
      %47 = arith.truncf %46 : vector<8x16x128xf32> to vector<8x16x128xbf16>
      %c0_29 = arith.constant 0 : index
      %c0_30 = arith.constant 0 : index
      %c0_31 = arith.constant 0 : index
      %48 = vector.load %arg24[%c0_29, %c0_30, %c0_31] : memref<8x16x128xbf16, #tpu.memory_space<vmem>>, vector<8x16x128xbf16>
      tpu.vector_store %arg24[%c0_29, %c0_30, %c0_31], %47 {strides = array<i32>} : memref<8x16x128xbf16, #tpu.memory_space<vmem>>, vector<8x16x128xbf16>,
      %49 = vector.extract_strided_slice %45 {offsets = [0, 0], sizes = [1, 128], strides = [1, 1]} : vector<128x128xf32> to vector<1x128xf32>
      %50 = vector.extract_strided_slice %45 {offsets = [16, 0], sizes = [1, 128], strides = [1, 1]} : vector<128x128xf32> to vector<1x128xf32>
      %51 = vector.extract_strided_slice %45 {offsets = [32, 0], sizes = [1, 128], strides = [1, 1]} : vector<128x128xf32> to vector<1x128xf32>
      %52 = vector.extract_strided_slice %45 {offsets = [48, 0], sizes = [1, 128], strides = [1, 1]} : vector<128x128xf32> to vector<1x128xf32>
      %53 = vector.extract_strided_slice %45 {offsets = [64, 0], sizes = [1, 128], strides = [1, 1]} : vector<128x128xf32> to vector<1x128xf32>
      %54 = vector.extract_strided_slice %45 {offsets = [80, 0], sizes = [1, 128], strides = [1, 1]} : vector<128x128xf32> to vector<1x128xf32>
      %55 = vector.extract_strided_slice %45 {offsets = [96, 0], sizes = [1, 128], strides = [1, 1]} : vector<128x128xf32> to vector<1x128xf32>
      %56 = vector.extract_strided_slice %45 {offsets = [112, 0], sizes = [1, 128], strides = [1, 1]} : vector<128x128xf32> to vector<1x128xf32>
      %57 = tpu.concatenate %49, %50, %51, %52, %53, %54, %55, %56 in 0 : vector<1x128xf32>, vector<1x128xf32>, vector<1x128xf32>, vector<1x128xf32>, vector<1x128xf32>, vector<1x128xf32>, vector<1x128xf32>, vector<1x128xf32> -> vector<8x128xf32>
      %58 = arith.truncf %57 : vector<8x128xf32> to vector<8x128xbf16>
      %c0_32 = arith.constant 0 : index
      %c0_33 = arith.constant 0 : index
      %59 = vector.load %arg22[%c0_32, %c0_33] : memref<128x128xbf16, #tpu.memory_space<vmem>>, vector<128x128xbf16>
      %cst_34 = arith.constant dense<0.000000e+00> : vector<8x128xf32>
      %60 = tpu.matmul %58, %59, %cst_34 {dimension_numbers = #tpu.dot_dimension_numbers<[1], [0], [0], [1], [0, 0, 1, 1], [], []>} : vector<8x128xbf16>, vector<128x128xbf16>, vector<8x128xf32> -> vector<8x128xf32>
      %c0_35 = arith.constant 0 : index
      %c0_36 = arith.constant 0 : index
      %61 = vector.load %arg23[%c0_35, %c0_36] : memref<1x128xf32, #tpu.memory_space<vmem>>, vector<1x128xf32>
      %62 = vector.broadcast %61 : vector<1x128xf32> to vector<8x128xf32>
      %63 = arith.addf %60, %62 : vector<8x128xf32>
      %64 = math.tanh %63 : vector<8x128xf32>
      %65 = vector.shape_cast %64 : vector<8x128xf32> to vector<8x1x128xf32>
      %c0_37 = arith.constant 0 : index
      %c0_38 = arith.constant 0 : index
      %c0_39 = arith.constant 0 : index
      %66 = vector.load %arg25[%c0_37, %c0_38, %c0_39] : memref<8x1x128xf32, #tpu.memory_space<vmem>>, vector<8x1x128xf32>
      tpu.vector_store %arg25[%c0_37, %c0_38, %c0_39], %65 {strides = array<i32>} : memref<8x1x128xf32, #tpu.memory_space<vmem>>, vector<8x1x128xf32>,
    } else {
    }
    return
  }
  func.func @transform_0(%arg0: i32, %arg1: i32, %arg2: i32) -> (i32, i32, i32) {
    %c0_i32 = arith.constant 0 : i32
    %c0_i32_0 = arith.constant 0 : i32
    %c0_i32_1 = arith.constant 0 : i32
    return %arg0, %c0_i32, %c0_i32_0 : i32, i32, i32
  }
  func.func @transform_1(%arg0: i32, %arg1: i32, %arg2: i32) -> (i32, i32, i32) {
    %c0_i32 = arith.constant 0 : i32
    %c0_i32_0 = arith.constant 0 : i32
    %c0_i32_1 = arith.constant 0 : i32
    %c0_i32_2 = arith.constant 0 : i32
    return %c0_i32, %c0_i32_0, %c0_i32_1 : i32, i32, i32
  }
  func.func @transform_2(%arg0: i32, %arg1: i32, %arg2: i32) -> (i32, i32, i32) {
    %c0_i32 = arith.constant 0 : i32
    %c0_i32_0 = arith.constant 0 : i32
    %c0_i32_1 = arith.constant 0 : i32
    return %arg0, %c0_i32, %c0_i32_0 : i32, i32, i32
  }
  func.func @transform_3(%arg0: i32, %arg1: i32, %arg2: i32) -> (i32, i32) {
    %c0_i32 = arith.constant 0 : i32
    %c0_i32_0 = arith.constant 0 : i32
    %c0_i32_1 = arith.constant 0 : i32
    return %c0_i32, %c0_i32_0 : i32, i32
  }
  func.func @transform_4(%arg0: i32, %arg1: i32, %arg2: i32) -> (i32, i32) {
    %c0_i32 = arith.constant 0 : i32
    %c0_i32_0 = arith.constant 0 : i32
    %c0_i32_1 = arith.constant 0 : i32
    return %c0_i32, %c0_i32_0 : i32, i32
  }
  func.func @transform_5(%arg0: i32, %arg1: i32, %arg2: i32) -> (i32, i32) {
    %c0_i32 = arith.constant 0 : i32
    %c0_i32_0 = arith.constant 0 : i32
    %c0_i32_1 = arith.constant 0 : i32
    return %c0_i32, %c0_i32_0 : i32, i32
  }
  func.func @transform_6(%arg0: i32, %arg1: i32, %arg2: i32) -> (i32, i32) {
    %c0_i32 = arith.constant 0 : i32
    %c0_i32_0 = arith.constant 0 : i32
    %c0_i32_1 = arith.constant 0 : i32
    return %c0_i32, %c0_i32_0 : i32, i32
  }
  func.func @transform_7(%arg0: i32, %arg1: i32, %arg2: i32) -> (i32, i32) {
    %c0_i32 = arith.constant 0 : i32
    %c0_i32_0 = arith.constant 0 : i32
    %c0_i32_1 = arith.constant 0 : i32
    return %c0_i32, %c0_i32_0 : i32, i32
  }
  func.func @transform_8(%arg0: i32, %arg1: i32, %arg2: i32) -> (i32, i32) {
    %c0_i32 = arith.constant 0 : i32
    %c0_i32_0 = arith.constant 0 : i32
    %c0_i32_1 = arith.constant 0 : i32
    return %c0_i32, %c0_i32_0 : i32, i32
  }
  func.func @transform_9(%arg0: i32, %arg1: i32, %arg2: i32) -> (i32, i32) {
    %c0_i32 = arith.constant 0 : i32
    %c0_i32_0 = arith.constant 0 : i32
    %c0_i32_1 = arith.constant 0 : i32
    return %c0_i32, %c0_i32_0 : i32, i32
  }
  func.func @transform_10(%arg0: i32, %arg1: i32, %arg2: i32) -> (i32, i32) {
    %c0_i32 = arith.constant 0 : i32
    %c0_i32_0 = arith.constant 0 : i32
    %c0_i32_1 = arith.constant 0 : i32
    return %c0_i32, %c0_i32_0 : i32, i32
  }
  func.func @transform_11(%arg0: i32, %arg1: i32, %arg2: i32) -> (i32, i32, i32) {
    %c0_i32 = arith.constant 0 : i32
    %c0_i32_0 = arith.constant 0 : i32
    %c0_i32_1 = arith.constant 0 : i32
    return %arg1, %c0_i32, %c0_i32_0 : i32, i32, i32
  }
  func.func @transform_12(%arg0: i32, %arg1: i32, %arg2: i32) -> (i32, i32, i32) {
    %c0_i32 = arith.constant 0 : i32
    %c0_i32_0 = arith.constant 0 : i32
    %c0_i32_1 = arith.constant 0 : i32
    return %arg1, %c0_i32, %c0_i32_0 : i32, i32, i32
  }
  func.func @transform_13(%arg0: i32, %arg1: i32, %arg2: i32) -> (i32, i32, i32) {
    %c0_i32 = arith.constant 0 : i32
    %c0_i32_0 = arith.constant 0 : i32
    return %arg1, %c0_i32, %arg2 : i32, i32, i32
  }
  func.func @transform_14(%arg0: i32, %arg1: i32, %arg2: i32) -> (i32, i32, i32) {
    %c0_i32 = arith.constant 0 : i32
    %c0_i32_0 = arith.constant 0 : i32
    return %arg1, %c0_i32, %arg2 : i32, i32, i32
  }
  func.func @transform_15(%arg0: i32, %arg1: i32, %arg2: i32) -> (i32, i32, i32) {
    %c0_i32 = arith.constant 0 : i32
    %c0_i32_0 = arith.constant 0 : i32
    return %arg1, %arg2, %c0_i32 : i32, i32, i32
  }
  func.func @transform_16(%arg0: i32, %arg1: i32, %arg2: i32) -> (i32, i32, i32) {
    %c0_i32 = arith.constant 0 : i32
    %c0_i32_0 = arith.constant 0 : i32
    %c0_i32_1 = arith.constant 0 : i32
    return %arg1, %c0_i32, %c0_i32_0 : i32, i32, i32
  }
  func.func @transform_17(%arg0: i32, %arg1: i32, %arg2: i32) -> (i32, i32, i32) {
    %c0_i32 = arith.constant 0 : i32
    %c0_i32_0 = arith.constant 0 : i32
    %c0_i32_1 = arith.constant 0 : i32
    return %arg1, %c0_i32, %c0_i32_0 : i32, i32, i32
  }
  func.func @transform_18(%arg0: i32, %arg1: i32, %arg2: i32) -> (i32, i32, i32) {
    %c0_i32 = arith.constant 0 : i32
    %c0_i32_0 = arith.constant 0 : i32
    %c0_i32_1 = arith.constant 0 : i32
    return %arg1, %c0_i32, %c0_i32_0 : i32, i32, i32
  }
  func.func @transform_19(%arg0: i32, %arg1: i32, %arg2: i32) -> (i32, i32) {
    %c0_i32 = arith.constant 0 : i32
    %c0_i32_0 = arith.constant 0 : i32
    %c0_i32_1 = arith.constant 0 : i32
    return %c0_i32, %c0_i32_0 : i32, i32
  }
  func.func @transform_20(%arg0: i32, %arg1: i32, %arg2: i32) -> (i32, i32) {
    %c0_i32 = arith.constant 0 : i32
    %c0_i32_0 = arith.constant 0 : i32
    %c0_i32_1 = arith.constant 0 : i32
    return %c0_i32, %c0_i32_0 : i32, i32
  }
  func.func @transform_21(%arg0: i32, %arg1: i32, %arg2: i32) -> (i32, i32, i32) {
    %c0_i32 = arith.constant 0 : i32
    %c0_i32_0 = arith.constant 0 : i32
    %c0_i32_1 = arith.constant 0 : i32
    return %arg0, %c0_i32, %c0_i32_0 : i32, i32, i32
  }
  func.func @transform_22(%arg0: i32, %arg1: i32, %arg2: i32) -> (i32, i32, i32) {
    %c0_i32 = arith.constant 0 : i32
    %c0_i32_0 = arith.constant 0 : i32
    %c0_i32_1 = arith.constant 0 : i32
    return %arg0, %c0_i32, %c0_i32_0 : i32, i32, i32
  }
}

</mosaic_0001>

<llo_original>
// kernel: tpu_custom_call.1
$region0: #{tpu_custom_call.1}
  #allocation0 [shape = 'u32[]', space=smem, size = 0x4, offset = 0x4, fixed_abs, tag = 'smem constant byte address 0x4 - core index']
  #allocation1 [shape = 'u32[144,128]{1,0:T(1,128)}', space=vmem, size = 0x12000, scoped, tag = 'internal scratch']
  #allocation2 [shape = 'f32[128,128]{1,0:T(8,128)}', space=vmem, size = 0x10000, scoped, tag = 'scratch operand']
  #allocation3 [shape = 'f32[128,128]{1,0:T(8,128)}', space=vmem, size = 0x10000, scoped, tag = 'scratch operand']
  #allocation4 [shape = 'f32[128,128]{1,0:T(8,128)}', space=vmem, size = 0x10000, scoped, tag = 'scratch operand']
  %s0 = inlined_call_operand.hbm [shape: bf16[16,16,128], index: 0, kind: input, shape index: {}]
  %s1 = inlined_call_operand.hbm [shape: bf16[1,16,128], index: 1, kind: input, shape index: {}]
  %s2 = inlined_call_operand.hbm [shape: bf16[16,16,128], index: 2, kind: input, shape index: {}]
  %s3 = inlined_call_operand.vmem [shape: f32[1,128], index: 3, kind: input, shape index: {}]
  %s4 = inlined_call_operand.hbm [shape: f32[1,128], index: 4, kind: input, shape index: {}]
  %s5 = inlined_call_operand.hbm [shape: bf16[128,128], index: 5, kind: input, shape index: {}]
  %s6 = inlined_call_operand.hbm [shape: f32[1,128], index: 6, kind: input, shape index: {}]
  %s7 = inlined_call_operand.hbm [shape: bf16[16,16], index: 7, kind: input, shape index: {}]
  %s8 = inlined_call_operand.hbm [shape: bf16[16,16], index: 8, kind: input, shape index: {}]
  %s9 = inlined_call_operand.hbm [shape: bf16[128,128], index: 9, kind: input, shape index: {}]
  %s10 = inlined_call_operand.hbm [shape: bf16[128,128], index: 10, kind: input, shape index: {}]
  %s11 = inlined_call_operand.vmem [shape: f32[2,1,128], index: 11, kind: input, shape index: {}]
  %s12 = inlined_call_operand.vmem [shape: f32[2,1,128], index: 12, kind: input, shape index: {}]
  %s13 = inlined_call_operand.hbm [shape: bf16[2,128,1024], index: 13, kind: input, shape index: {}]
  %s14 = inlined_call_operand.hbm [shape: f32[2,1,1024], index: 14, kind: input, shape index: {}]
  %s15 = inlined_call_operand.hbm [shape: bf16[2,1024,128], index: 15, kind: input, shape index: {}]
  %s16 = inlined_call_operand.vmem [shape: f32[2,1,128], index: 16, kind: input, shape index: {}]
  %s17 = inlined_call_operand.hbm [shape: f32[2,1,128], index: 17, kind: input, shape index: {}]
  %s18 = inlined_call_operand.hbm [shape: f32[2,1,128], index: 18, kind: input, shape index: {}]
  %s19 = inlined_call_operand.vmem [shape: bf16[128,128], index: 19, kind: input, shape index: {}]
  %s20 = inlined_call_operand.vmem [shape: f32[1,128], index: 20, kind: input, shape index: {}]
  %s21 = inlined_call_operand.hbm [shape: bf16[16,16,128], index: 21, kind: output, shape index: {0}]
  %s22 = inlined_call_operand.hbm [shape: f32[16,1,128], index: 22, kind: output, shape index: {1}]
  %23 = xla_tuple %s21, %s22
  %s24 = sld [smem:[#allocation0]]
  $region201: #{tpu_custom_call.1} parent=0
    _
  %s26 = ssub.s32 1, %s24
  %s27 = scalar_select 0, %s26, %s24
  $region1: #{tpu_custom_call.1} parent=0
    #allocation5 [shape = 'u8[65536]{0}', space=vmem, size = 0x10000, scoped, tag = 'input window, operand 0']
    #allocation6 [shape = 's32[2]{0}', space=sflag, size = 0x8, scoped, tag = 'scoped memory for tpu_custom_call.1']
    #allocation7 [shape = 's32[2]{0}', space=sflag, size = 0x8, scoped, tag = 'scoped memory for tpu_custom_call.1']
    #allocation8 [shape = 'u8[4096]{0}', space=vmem, size = 0x1000, scoped, tag = 'input window, operand 1, single buffered']
    #allocation9 [shape = 's32[1]{0}', space=sflag, size = 0x4, scoped, tag = 'scoped memory for tpu_custom_call.1']
    #allocation10 [shape = 'u8[65536]{0}', space=vmem, size = 0x10000, scoped, tag = 'input window, operand 2']
    #allocation11 [shape = 'u8[512]{0}', space=vmem, size = 0x400, scoped, tag = 'input window, operand 4, single buffered']
    #allocation12 [shape = 'u8[32768]{0}', space=vmem, size = 0x8000, scoped, tag = 'input window, operand 5, single buffered']
    #allocation13 [shape = 's32[1]{0}', space=sflag, size = 0x4, scoped, tag = 'scoped memory for tpu_custom_call.1']
    #allocation14 [shape = 'u8[512]{0}', space=vmem, size = 0x400, scoped, tag = 'input window, operand 6, single buffered']
    #allocation15 [shape = 'u8[4096]{0}', space=vmem, size = 0x1000, scoped, tag = 'input window, operand 7, single buffered']
    #allocation16 [shape = 's32[1]{0}', space=sflag, size = 0x4, scoped, tag = 'scoped memory for tpu_custom_call.1']
    #allocation17 [shape = 'u8[4096]{0}', space=vmem, size = 0x1000, scoped, tag = 'input window, operand 8, single buffered']
    #allocation18 [shape = 'u8[32768]{0}', space=vmem, size = 0x8000, scoped, tag = 'input window, operand 9, single buffered']
    #allocation19 [shape = 's32[1]{0}', space=sflag, size = 0x4, scoped, tag = 'scoped memory for tpu_custom_call.1']
    #allocation20 [shape = 'u8[32768]{0}', space=vmem, size = 0x8000, scoped, tag = 'input window, operand 10, single buffered']
    #allocation21 [shape = 'u8[262144]{0}', space=vmem, size = 0x40000, scoped, tag = 'input window, operand 13']
    #allocation22 [shape = 's32[2]{0}', space=sflag, size = 0x8, scoped, tag = 'scoped memory for tpu_custom_call.1']
    #allocation23 [shape = 'u8[4096]{0}', space=vmem, size = 0x1000, scoped, tag = 'input window, operand 14']
    #allocation24 [shape = 'u8[262144]{0}', space=vmem, size = 0x40000, scoped, tag = 'input window, operand 15']
    #allocation25 [shape = 's32[2]{0}', space=sflag, size = 0x8, scoped, tag = 'scoped memory for tpu_custom_call.1']
    #allocation26 [shape = 'u8[1024]{0}', space=vmem, size = 0x400, scoped, tag = 'input window, operand 17']
    #allocation27 [shape = 'u8[1024]{0}', space=vmem, size = 0x400, scoped, tag = 'input window, operand 18']
    #allocation28 [shape = 's32[2]{0}', space=sflag, size = 0x8, scoped, tag = 'scoped memory for tpu_custom_call.1']
    #allocation29 [shape = 'u8[65536]{0}', space=vmem, size = 0x10000, scoped, tag = 'output window, operand 0']
    #allocation30 [shape = 'u8[8192]{0}', space=vmem, size = 0x2000, scoped, tag = 'output window, operand 1']
    #allocation31 [shape = 's32[2]{0}', space=sflag, size = 0x8, scoped, tag = 'scoped memory for tpu_custom_call.1']
    %28 = vsyncpa [#allocation6], 0
    %s29 = scalar_lea.sflag [#allocation6], 1
    %30 = vsyncpa %s29, 0
    %31 = vsyncpa [#allocation9], 0
    %32 = vsyncpa [#allocation13], 0
    %33 = vsyncpa [#allocation16], 0
    %34 = vsyncpa [#allocation19], 0
    %35 = vsyncpa [#allocation22], 0
    %s36 = scalar_lea.sflag [#allocation22], 1
    %37 = vsyncpa %s36, 0
    %38 = vsyncpa [#allocation25], 0
    %s39 = scalar_lea.sflag [#allocation25], 1
    %40 = vsyncpa %s39, 0
    %41 = vsyncpa [#allocation28], 0
    %s42 = scalar_lea.sflag [#allocation28], 1
    %43 = vsyncpa %s42, 0
    %44 = vsyncpa [#allocation7], 0
    %s45 = scalar_lea.sflag [#allocation7], 1
    %46 = vsyncpa %s45, 0
    %47 = vsyncpa [#allocation31], 0
    %s48 = scalar_lea.sflag [#allocation31], 1
    %49 = vsyncpa %s48, 0
    loop: start=0, step=1, limit=10
    $region2: #{tpu_custom_call.1} parent=1 // loop_pre_header
      _
    $region3: #{tpu_custom_call.1} parent=1 // loop_header
      %s51 = sphi 0, %s55
      %p52 = scmp.ge.s32.totalorder %s51, 10
      %s58 = sphi 0, %s77
      %s59 = sphi 0, %s73
      %s60 = sphi 0, %s69
      %s61 = sphi 0, %s58
      %s62 = sphi 0, %s59
      %s63 = sphi 0, %s60
      %s64 = sphi 0, %s61
      %s65 = sphi 0, %s62
      %s66 = sphi 0, %s63
      %s80 = sphi 0, %s82
      %s83 = sphi 0, %s80
      %s84 = sphi 0, %s83
      %s100 = sphi 0, %s84
      %s104 = sphi 0, %s104
      %s106 = sphi 0, %s104
      %s107 = sphi 0, %s106
      %s121 = sphi 0, %s107
      %s127 = sphi 0, %s129
      %s130 = sphi 0, %s127
      %s131 = sphi 0, %s130
      %s147 = sphi 0, %s131
      %s151 = sphi 0, %s151
      %s153 = sphi 0, %s151
      %s154 = sphi 0, %s153
      %s168 = sphi 0, %s154
      %s172 = sphi 0, %s172
      %s174 = sphi 0, %s172
      %s175 = sphi 0, %s174
      %s189 = sphi 0, %s175
      %s193 = sphi 0, %s193
      %s195 = sphi 0, %s193
      %s196 = sphi 0, %s195
      %s210 = sphi 0, %s196
      %s214 = sphi 0, %s214
      %s216 = sphi 0, %s214
      %s217 = sphi 0, %s216
      %s231 = sphi 0, %s217
      %s235 = sphi 0, %s235
      %s237 = sphi 0, %s235
      %s238 = sphi 0, %s237
      %s252 = sphi 0, %s238
      %s256 = sphi 0, %s256
      %s258 = sphi 0, %s256
      %s259 = sphi 0, %s258
      %s273 = sphi 0, %s259
      %s277 = sphi 0, %s277
      %s279 = sphi 0, %s277
      %s280 = sphi 0, %s279
      %s294 = sphi 0, %s280
      %s298 = sphi 0, %s298
      %s300 = sphi 0, %s298
      %s301 = sphi 0, %s300
      %s315 = sphi 0, %s301
      %s321 = sphi 0, %s323
      %s324 = sphi 0, %s321
      %s325 = sphi 0, %s324
      %s341 = sphi 0, %s325
      %s347 = sphi 0, %s349
      %s350 = sphi 0, %s347
      %s351 = sphi 0, %s350
      %s367 = sphi 0, %s351
      %s375 = sphi 0, %s377
      %s378 = sphi 0, %s375
      %s379 = sphi 0, %s378
      %s395 = sphi 0, %s379
      %s403 = sphi 0, %s405
      %s406 = sphi 0, %s403
      %s407 = sphi 0, %s406
      %s423 = sphi 0, %s407
      %s431 = sphi 0, %s433
      %s434 = sphi 0, %s431
      %s435 = sphi 0, %s434
      %s451 = sphi 0, %s435
      %s457 = sphi 0, %s459
      %s460 = sphi 0, %s457
      %s461 = sphi 0, %s460
      %s477 = sphi 0, %s461
      %s483 = sphi 0, %s485
      %s486 = sphi 0, %s483
      %s487 = sphi 0, %s486
      %s503 = sphi 0, %s487
      %s509 = sphi 0, %s511
      %s512 = sphi 0, %s509
      %s513 = sphi 0, %s512
      %s529 = sphi 0, %s513
      %s533 = sphi 0, %s533
      %s535 = sphi 0, %s533
      %s536 = sphi 0, %s535
      %s550 = sphi 0, %s536
      %s554 = sphi 0, %s554
      %s556 = sphi 0, %s554
      %s557 = sphi 0, %s556
      %s571 = sphi 0, %s557
      %s577 = sphi 0, %s579
      %s580 = sphi 0, %s577
      %s581 = sphi 0, %s580
      %s597 = sphi 0, %s581
      %s603 = sphi 0, %s605
      %s606 = sphi 0, %s603
      %s607 = sphi 0, %s606
      %s623 = sphi 0, %s607
    $region4: #{tpu_custom_call.1} parent=1 // loop_header_branch
      %54 = sbr.rel (%p52) target = $region8
    $region5: #{tpu_custom_call.1} parent=1 // loop_body
      %s56 = ssub.s32 %s51, 1
      %s57 = ssub.s32 %s51, 2
      %s67 = sadd.s32 1, %s60
      %p68 = scmp.ge.s32.totalorder %s67, 2
      %s69 = scalar_select %p68, 0, %s67
      %s70 = sadd.s32 1, %s59
      %s71 = scalar_select %p68, %s70, %s59
      %p72 = scmp.ge.s32.totalorder %s71, 2
      %s73 = scalar_select %p72, 0, %s71
      %s74 = sadd.s32 1, %s58
      %s75 = scalar_select %p72, %s74, %s58
      %p76 = scmp.ge.s32.totalorder %s75, 2
      %s77 = scalar_select %p76, 0, %s75
      %s78 = ssub.s32 %s58, %s77
      %p79 = scmp.eq.s32.totalorder %s78, 0
      %s81 = sadd.s32 %s80, 1
      %s82 = scalar_select %p79, %s80, %s81
      %p85 = pneg %p79
      %p86 = scmp.eq.s32.totalorder %s51, 7
      %p87 = por %p85, %p86
      %p88 = scmp.ne.s32.totalorder %s80, %s83
      %p89 = scmp.eq.s32.totalorder %s51, 0
      %p90 = por %p88, %p89
      %p91 = scmp.ne.s32.totalorder %s80, %s83
      %p92 = scmp.eq.s32.totalorder %s56, 7
      %p93 = por %p91, %p92
      %p94 = scmp.ne.s32.totalorder %s83, %s84
      %p95 = scmp.eq.s32.totalorder %s56, 0
      %p96 = por %p94, %p95
      %p97 = scmp.ne.s32.totalorder %s83, %s84
      %p98 = scmp.eq.s32.totalorder %s57, 7
      %p99 = por %p97, %p98
      %p101 = scmp.ne.s32.totalorder %s84, %s100
      %p102 = scmp.eq.s32.totalorder %s57, 0
      %p103 = por %p101, %p102
      %s105 = sadd.s32 %s104, 1
      %p108 = scmp.eq.s32.totalorder %s51, 7
      %p109 = scmp.ne.s32.totalorder %s104, %s106
      %p110 = scmp.eq.s32.totalorder %s51, 0
      %p111 = por %p109, %p110
      %p112 = scmp.ne.s32.totalorder %s104, %s106
      %p113 = scmp.eq.s32.totalorder %s56, 7
      %p114 = por %p112, %p113
      %p115 = scmp.ne.s32.totalorder %s106, %s107
      %p116 = scmp.eq.s32.totalorder %s56, 0
      %p117 = por %p115, %p116
      %p118 = scmp.ne.s32.totalorder %s106, %s107
      %p119 = scmp.eq.s32.totalorder %s57, 7
      %p120 = por %p118, %p119
      %p122 = scmp.ne.s32.totalorder %s107, %s121
      %p123 = scmp.eq.s32.totalorder %s57, 0
      %p124 = por %p122, %p123
      %s125 = ssub.s32 %s58, %s77
      %p126 = scmp.eq.s32.totalorder %s125, 0
      %s128 = sadd.s32 %s127, 1
      %s129 = scalar_select %p126, %s127, %s128
      %p132 = pneg %p126
      %p133 = scmp.eq.s32.totalorder %s51, 7
      %p134 = por %p132, %p133
      %p135 = scmp.ne.s32.totalorder %s127, %s130
      %p136 = scmp.eq.s32.totalorder %s51, 0
      %p137 = por %p135, %p136
      %p138 = scmp.ne.s32.totalorder %s127, %s130
      %p139 = scmp.eq.s32.totalorder %s56, 7
      %p140 = por %p138, %p139
      %p141 = scmp.ne.s32.totalorder %s130, %s131
      %p142 = scmp.eq.s32.totalorder %s56, 0
      %p143 = por %p141, %p142
      %p144 = scmp.ne.s32.totalorder %s130, %s131
      %p145 = scmp.eq.s32.totalorder %s57, 7
      %p146 = por %p144, %p145
      %p148 = scmp.ne.s32.totalorder %s131, %s147
      %p149 = scmp.eq.s32.totalorder %s57, 0
      %p150 = por %p148, %p149
      %s152 = sadd.s32 %s151, 1
      %p155 = scmp.eq.s32.totalorder %s51, 7
      %p156 = scmp.ne.s32.totalorder %s151, %s153
      %p157 = scmp.eq.s32.totalorder %s51, 0
      %p158 = por %p156, %p157
      %p159 = scmp.ne.s32.totalorder %s151, %s153
      %p160 = scmp.eq.s32.totalorder %s56, 7
      %p161 = por %p159, %p160
      %p162 = scmp.ne.s32.totalorder %s153, %s154
      %p163 = scmp.eq.s32.totalorder %s56, 0
      %p164 = por %p162, %p163
      %p165 = scmp.ne.s32.totalorder %s153, %s154
      %p166 = scmp.eq.s32.totalorder %s57, 7
      %p167 = por %p165, %p166
      %p169 = scmp.ne.s32.totalorder %s154, %s168
      %p170 = scmp.eq.s32.totalorder %s57, 0
      %p171 = por %p169, %p170
      %s173 = sadd.s32 %s172, 1
      %p176 = scmp.eq.s32.totalorder %s51, 7
      %p177 = scmp.ne.s32.totalorder %s172, %s174
      %p178 = scmp.eq.s32.totalorder %s51, 0
      %p179 = por %p177, %p178
      %p180 = scmp.ne.s32.totalorder %s172, %s174
      %p181 = scmp.eq.s32.totalorder %s56, 7
      %p182 = por %p180, %p181
      %p183 = scmp.ne.s32.totalorder %s174, %s175
      %p184 = scmp.eq.s32.totalorder %s56, 0
      %p185 = por %p183, %p184
      %p186 = scmp.ne.s32.totalorder %s174, %s175
      %p187 = scmp.eq.s32.totalorder %s57, 7
      %p188 = por %p186, %p187
      %p190 = scmp.ne.s32.totalorder %s175, %s189
      %p191 = scmp.eq.s32.totalorder %s57, 0
      %p192 = por %p190, %p191
      %s194 = sadd.s32 %s193, 1
      %p197 = scmp.eq.s32.totalorder %s51, 7
      %p198 = scmp.ne.s32.totalorder %s193, %s195
      %p199 = scmp.eq.s32.totalorder %s51, 0
      %p200 = por %p198, %p199
      %p201 = scmp.ne.s32.totalorder %s193, %s195
      %p202 = scmp.eq.s32.totalorder %s56, 7
      %p203 = por %p201, %p202
      %p204 = scmp.ne.s32.totalorder %s195, %s196
      %p205 = scmp.eq.s32.totalorder %s56, 0
      %p206 = por %p204, %p205
      %p207 = scmp.ne.s32.totalorder %s195, %s196
      %p208 = scmp.eq.s32.totalorder %s57, 7
      %p209 = por %p207, %p208
      %p211 = scmp.ne.s32.totalorder %s196, %s210
      %p212 = scmp.eq.s32.totalorder %s57, 0
      %p213 = por %p211, %p212
      %s215 = sadd.s32 %s214, 1
      %p218 = scmp.eq.s32.totalorder %s51, 7
      %p219 = scmp.ne.s32.totalorder %s214, %s216
      %p220 = scmp.eq.s32.totalorder %s51, 0
      %p221 = por %p219, %p220
      %p222 = scmp.ne.s32.totalorder %s214, %s216
      %p223 = scmp.eq.s32.totalorder %s56, 7
      %p224 = por %p222, %p223
      %p225 = scmp.ne.s32.totalorder %s216, %s217
      %p226 = scmp.eq.s32.totalorder %s56, 0
      %p227 = por %p225, %p226
      %p228 = scmp.ne.s32.totalorder %s216, %s217
      %p229 = scmp.eq.s32.totalorder %s57, 7
      %p230 = por %p228, %p229
      %p232 = scmp.ne.s32.totalorder %s217, %s231
      %p233 = scmp.eq.s32.totalorder %s57, 0
      %p234 = por %p232, %p233
      %s236 = sadd.s32 %s235, 1
      %p239 = scmp.eq.s32.totalorder %s51, 7
      %p240 = scmp.ne.s32.totalorder %s235, %s237
      %p241 = scmp.eq.s32.totalorder %s51, 0
      %p242 = por %p240, %p241
      %p243 = scmp.ne.s32.totalorder %s235, %s237
      %p244 = scmp.eq.s32.totalorder %s56, 7
      %p245 = por %p243, %p244
      %p246 = scmp.ne.s32.totalorder %s237, %s238
      %p247 = scmp.eq.s32.totalorder %s56, 0
      %p248 = por %p246, %p247
      %p249 = scmp.ne.s32.totalorder %s237, %s238
      %p250 = scmp.eq.s32.totalorder %s57, 7
      %p251 = por %p249, %p250
      %p253 = scmp.ne.s32.totalorder %s238, %s252
      %p254 = scmp.eq.s32.totalorder %s57, 0
      %p255 = por %p253, %p254
      %s257 = sadd.s32 %s256, 1
      %p260 = scmp.eq.s32.totalorder %s51, 7
      %p261 = scmp.ne.s32.totalorder %s256, %s258
      %p262 = scmp.eq.s32.totalorder %s51, 0
      %p263 = por %p261, %p262
      %p264 = scmp.ne.s32.totalorder %s256, %s258
      %p265 = scmp.eq.s32.totalorder %s56, 7
      %p266 = por %p264, %p265
      %p267 = scmp.ne.s32.totalorder %s258, %s259
      %p268 = scmp.eq.s32.totalorder %s56, 0
      %p269 = por %p267, %p268
      %p270 = scmp.ne.s32.totalorder %s258, %s259
      %p271 = scmp.eq.s32.totalorder %s57, 7
      %p272 = por %p270, %p271
      %p274 = scmp.ne.s32.totalorder %s259, %s273
      %p275 = scmp.eq.s32.totalorder %s57, 0
      %p276 = por %p274, %p275
      %s278 = sadd.s32 %s277, 1
      %p281 = scmp.eq.s32.totalorder %s51, 7
      %p282 = scmp.ne.s32.totalorder %s277, %s279
      %p283 = scmp.eq.s32.totalorder %s51, 0
      %p284 = por %p282, %p283
      %p285 = scmp.ne.s32.totalorder %s277, %s279
      %p286 = scmp.eq.s32.totalorder %s56, 7
      %p287 = por %p285, %p286
      %p288 = scmp.ne.s32.totalorder %s279, %s280
      %p289 = scmp.eq.s32.totalorder %s56, 0
      %p290 = por %p288, %p289
      %p291 = scmp.ne.s32.totalorder %s279, %s280
      %p292 = scmp.eq.s32.totalorder %s57, 7
      %p293 = por %p291, %p292
      %p295 = scmp.ne.s32.totalorder %s280, %s294
      %p296 = scmp.eq.s32.totalorder %s57, 0
      %p297 = por %p295, %p296
      %s299 = sadd.s32 %s298, 1
      %p302 = scmp.eq.s32.totalorder %s51, 7
      %p303 = scmp.ne.s32.totalorder %s298, %s300
      %p304 = scmp.eq.s32.totalorder %s51, 0
      %p305 = por %p303, %p304
      %p306 = scmp.ne.s32.totalorder %s298, %s300
      %p307 = scmp.eq.s32.totalorder %s56, 7
      %p308 = por %p306, %p307
      %p309 = scmp.ne.s32.totalorder %s300, %s301
      %p310 = scmp.eq.s32.totalorder %s56, 0
      %p311 = por %p309, %p310
      %p312 = scmp.ne.s32.totalorder %s300, %s301
      %p313 = scmp.eq.s32.totalorder %s57, 7
      %p314 = por %p312, %p313
      %p316 = scmp.ne.s32.totalorder %s301, %s315
      %p317 = scmp.eq.s32.totalorder %s57, 0
      %p318 = por %p316, %p317
      %s319 = ssub.s32 %s59, %s73
      %p320 = scmp.eq.s32.totalorder %s319, 0
      %s322 = sadd.s32 %s321, 1
      %s323 = scalar_select %p320, %s321, %s322
      %p326 = pneg %p320
      %p327 = scmp.eq.s32.totalorder %s51, 7
      %p328 = por %p326, %p327
      %p329 = scmp.ne.s32.totalorder %s321, %s324
      %p330 = scmp.eq.s32.totalorder %s51, 0
      %p331 = por %p329, %p330
      %p332 = scmp.ne.s32.totalorder %s321, %s324
      %p333 = scmp.eq.s32.totalorder %s56, 7
      %p334 = por %p332, %p333
      %p335 = scmp.ne.s32.totalorder %s324, %s325
      %p336 = scmp.eq.s32.totalorder %s56, 0
      %p337 = por %p335, %p336
      %p338 = scmp.ne.s32.totalorder %s324, %s325
      %p339 = scmp.eq.s32.totalorder %s57, 7
      %p340 = por %p338, %p339
      %p342 = scmp.ne.s32.totalorder %s325, %s341
      %p343 = scmp.eq.s32.totalorder %s57, 0
      %p344 = por %p342, %p343
      %s345 = ssub.s32 %s59, %s73
      %p346 = scmp.eq.s32.totalorder %s345, 0
      %s348 = sadd.s32 %s347, 1
      %s349 = scalar_select %p346, %s347, %s348
      %p352 = pneg %p346
      %p353 = scmp.eq.s32.totalorder %s51, 7
      %p354 = por %p352, %p353
      %p355 = scmp.ne.s32.totalorder %s347, %s350
      %p356 = scmp.eq.s32.totalorder %s51, 0
      %p357 = por %p355, %p356
      %p358 = scmp.ne.s32.totalorder %s347, %s350
      %p359 = scmp.eq.s32.totalorder %s56, 7
      %p360 = por %p358, %p359
      %p361 = scmp.ne.s32.totalorder %s350, %s351
      %p362 = scmp.eq.s32.totalorder %s56, 0
      %p363 = por %p361, %p362
      %p364 = scmp.ne.s32.totalorder %s350, %s351
      %p365 = scmp.eq.s32.totalorder %s57, 7
      %p366 = por %p364, %p365
      %p368 = scmp.ne.s32.totalorder %s351, %s367
      %p369 = scmp.eq.s32.totalorder %s57, 0
      %p370 = por %p368, %p369
      %s371 = ssub.s32 %s59, %s73
      %s372 = ssub.s32 %s60, %s69
      %s373 = sor.u32 %s371, %s372
      %p374 = scmp.eq.s32.totalorder %s373, 0
      %s376 = sadd.s32 %s375, 1
      %s377 = scalar_select %p374, %s375, %s376
      %p380 = pneg %p374
      %p381 = scmp.eq.s32.totalorder %s51, 7
      %p382 = por %p380, %p381
      %p383 = scmp.ne.s32.totalorder %s375, %s378
      %p384 = scmp.eq.s32.totalorder %s51, 0
      %p385 = por %p383, %p384
      %p386 = scmp.ne.s32.totalorder %s375, %s378
      %p387 = scmp.eq.s32.totalorder %s56, 7
      %p388 = por %p386, %p387
      %p389 = scmp.ne.s32.totalorder %s378, %s379
      %p390 = scmp.eq.s32.totalorder %s56, 0
      %p391 = por %p389, %p390
      %p392 = scmp.ne.s32.totalorder %s378, %s379
      %p393 = scmp.eq.s32.totalorder %s57, 7
      %p394 = por %p392, %p393
      %p396 = scmp.ne.s32.totalorder %s379, %s395
      %p397 = scmp.eq.s32.totalorder %s57, 0
      %p398 = por %p396, %p397
      %s399 = ssub.s32 %s59, %s73
      %s400 = ssub.s32 %s60, %s69
      %s401 = sor.u32 %s399, %s400
      %p402 = scmp.eq.s32.totalorder %s401, 0
      %s404 = sadd.s32 %s403, 1
      %s405 = scalar_select %p402, %s403, %s404
      %p408 = pneg %p402
      %p409 = scmp.eq.s32.totalorder %s51, 7
      %p410 = por %p408, %p409
      %p411 = scmp.ne.s32.totalorder %s403, %s406
      %p412 = scmp.eq.s32.totalorder %s51, 0
      %p413 = por %p411, %p412
      %p414 = scmp.ne.s32.totalorder %s403, %s406
      %p415 = scmp.eq.s32.totalorder %s56, 7
      %p416 = por %p414, %p415
      %p417 = scmp.ne.s32.totalorder %s406, %s407
      %p418 = scmp.eq.s32.totalorder %s56, 0
      %p419 = por %p417, %p418
      %p420 = scmp.ne.s32.totalorder %s406, %s407
      %p421 = scmp.eq.s32.totalorder %s57, 7
      %p422 = por %p420, %p421
      %p424 = scmp.ne.s32.totalorder %s407, %s423
      %p425 = scmp.eq.s32.totalorder %s57, 0
      %p426 = por %p424, %p425
      %s427 = ssub.s32 %s59, %s73
      %s428 = ssub.s32 %s60, %s69
      %s429 = sor.u32 %s427, %s428
      %p430 = scmp.eq.s32.totalorder %s429, 0
      %s432 = sadd.s32 %s431, 1
      %s433 = scalar_select %p430, %s431, %s432
      %p436 = pneg %p430
      %p437 = scmp.eq.s32.totalorder %s51, 7
      %p438 = por %p436, %p437
      %p439 = scmp.ne.s32.totalorder %s431, %s434
      %p440 = scmp.eq.s32.totalorder %s51, 0
      %p441 = por %p439, %p440
      %p442 = scmp.ne.s32.totalorder %s431, %s434
      %p443 = scmp.eq.s32.totalorder %s56, 7
      %p444 = por %p442, %p443
      %p445 = scmp.ne.s32.totalorder %s434, %s435
      %p446 = scmp.eq.s32.totalorder %s56, 0
      %p447 = por %p445, %p446
      %p448 = scmp.ne.s32.totalorder %s434, %s435
      %p449 = scmp.eq.s32.totalorder %s57, 7
      %p450 = por %p448, %p449
      %p452 = scmp.ne.s32.totalorder %s435, %s451
      %p453 = scmp.eq.s32.totalorder %s57, 0
      %p454 = por %p452, %p453
      %s455 = ssub.s32 %s59, %s73
      %p456 = scmp.eq.s32.totalorder %s455, 0
      %s458 = sadd.s32 %s457, 1
      %s459 = scalar_select %p456, %s457, %s458
      %p462 = pneg %p456
      %p463 = scmp.eq.s32.totalorder %s51, 7
      %p464 = por %p462, %p463
      %p465 = scmp.ne.s32.totalorder %s457, %s460
      %p466 = scmp.eq.s32.totalorder %s51, 0
      %p467 = por %p465, %p466
      %p468 = scmp.ne.s32.totalorder %s457, %s460
      %p469 = scmp.eq.s32.totalorder %s56, 7
      %p470 = por %p468, %p469
      %p471 = scmp.ne.s32.totalorder %s460, %s461
      %p472 = scmp.eq.s32.totalorder %s56, 0
      %p473 = por %p471, %p472
      %p474 = scmp.ne.s32.totalorder %s460, %s461
      %p475 = scmp.eq.s32.totalorder %s57, 7
      %p476 = por %p474, %p475
      %p478 = scmp.ne.s32.totalorder %s461, %s477
      %p479 = scmp.eq.s32.totalorder %s57, 0
      %p480 = por %p478, %p479
      %s481 = ssub.s32 %s59, %s73
      %p482 = scmp.eq.s32.totalorder %s481, 0
      %s484 = sadd.s32 %s483, 1
      %s485 = scalar_select %p482, %s483, %s484
      %p488 = pneg %p482
      %p489 = scmp.eq.s32.totalorder %s51, 7
      %p490 = por %p488, %p489
      %p491 = scmp.ne.s32.totalorder %s483, %s486
      %p492 = scmp.eq.s32.totalorder %s51, 0
      %p493 = por %p491, %p492
      %p494 = scmp.ne.s32.totalorder %s483, %s486
      %p495 = scmp.eq.s32.totalorder %s56, 7
      %p496 = por %p494, %p495
      %p497 = scmp.ne.s32.totalorder %s486, %s487
      %p498 = scmp.eq.s32.totalorder %s56, 0
      %p499 = por %p497, %p498
      %p500 = scmp.ne.s32.totalorder %s486, %s487
      %p501 = scmp.eq.s32.totalorder %s57, 7
      %p502 = por %p500, %p501
      %p504 = scmp.ne.s32.totalorder %s487, %s503
      %p505 = scmp.eq.s32.totalorder %s57, 0
      %p506 = por %p504, %p505
      %s507 = ssub.s32 %s59, %s73
      %p508 = scmp.eq.s32.totalorder %s507, 0
      %s510 = sadd.s32 %s509, 1
      %s511 = scalar_select %p508, %s509, %s510
      %p514 = pneg %p508
      %p515 = scmp.eq.s32.totalorder %s51, 7
      %p516 = por %p514, %p515
      %p517 = scmp.ne.s32.totalorder %s509, %s512
      %p518 = scmp.eq.s32.totalorder %s51, 0
      %p519 = por %p517, %p518
      %p520 = scmp.ne.s32.totalorder %s509, %s512
      %p521 = scmp.eq.s32.totalorder %s56, 7
      %p522 = por %p520, %p521
      %p523 = scmp.ne.s32.totalorder %s512, %s513
      %p524 = scmp.eq.s32.totalorder %s56, 0
      %p525 = por %p523, %p524
      %p526 = scmp.ne.s32.totalorder %s512, %s513
      %p527 = scmp.eq.s32.totalorder %s57, 7
      %p528 = por %p526, %p527
      %p530 = scmp.ne.s32.totalorder %s513, %s529
      %p531 = scmp.eq.s32.totalorder %s57, 0
      %p532 = por %p530, %p531
      %s534 = sadd.s32 %s533, 1
      %p537 = scmp.eq.s32.totalorder %s51, 7
      %p538 = scmp.ne.s32.totalorder %s533, %s535
      %p539 = scmp.eq.s32.totalorder %s51, 0
      %p540 = por %p538, %p539
      %p541 = scmp.ne.s32.totalorder %s533, %s535
      %p542 = scmp.eq.s32.totalorder %s56, 7
      %p543 = por %p541, %p542
      %p544 = scmp.ne.s32.totalorder %s535, %s536
      %p545 = scmp.eq.s32.totalorder %s56, 0
      %p546 = por %p544, %p545
      %p547 = scmp.ne.s32.totalorder %s535, %s536
      %p548 = scmp.eq.s32.totalorder %s57, 7
      %p549 = por %p547, %p548
      %p551 = scmp.ne.s32.totalorder %s536, %s550
      %p552 = scmp.eq.s32.totalorder %s57, 0
      %p553 = por %p551, %p552
      %s555 = sadd.s32 %s554, 1
      %p558 = scmp.eq.s32.totalorder %s51, 7
      %p559 = scmp.ne.s32.totalorder %s554, %s556
      %p560 = scmp.eq.s32.totalorder %s51, 0
      %p561 = por %p559, %p560
      %p562 = scmp.ne.s32.totalorder %s554, %s556
      %p563 = scmp.eq.s32.totalorder %s56, 7
      %p564 = por %p562, %p563
      %p565 = scmp.ne.s32.totalorder %s556, %s557
      %p566 = scmp.eq.s32.totalorder %s56, 0
      %p567 = por %p565, %p566
      %p568 = scmp.ne.s32.totalorder %s556, %s557
      %p569 = scmp.eq.s32.totalorder %s57, 7
      %p570 = por %p568, %p569
      %p572 = scmp.ne.s32.totalorder %s557, %s571
      %p573 = scmp.eq.s32.totalorder %s57, 0
      %p574 = por %p572, %p573
      %s575 = ssub.s32 %s58, %s77
      %p576 = scmp.eq.s32.totalorder %s575, 0
      %s578 = sadd.s32 %s577, 1
      %s579 = scalar_select %p576, %s577, %s578
      %p582 = pneg %p576
      %p583 = scmp.eq.s32.totalorder %s51, 7
      %p584 = por %p582, %p583
      %p585 = scmp.ne.s32.totalorder %s577, %s580
      %p586 = scmp.eq.s32.totalorder %s51, 0
      %p587 = por %p585, %p586
      %p588 = scmp.ne.s32.totalorder %s577, %s580
      %p589 = scmp.eq.s32.totalorder %s56, 7
      %p590 = por %p588, %p589
      %p591 = scmp.ne.s32.totalorder %s580, %s581
      %p592 = scmp.eq.s32.totalorder %s56, 0
      %p593 = por %p591, %p592
      %p594 = scmp.ne.s32.totalorder %s580, %s581
      %p595 = scmp.eq.s32.totalorder %s57, 7
      %p596 = por %p594, %p595
      %p598 = scmp.ne.s32.totalorder %s581, %s597
      %p599 = scmp.eq.s32.totalorder %s57, 0
      %p600 = por %p598, %p599
      %s601 = ssub.s32 %s58, %s77
      %p602 = scmp.eq.s32.totalorder %s601, 0
      %s604 = sadd.s32 %s603, 1
      %s605 = scalar_select %p602, %s603, %s604
      %p608 = pneg %p602
      %p609 = scmp.eq.s32.totalorder %s51, 7
      %p610 = por %p608, %p609
      %p611 = scmp.ne.s32.totalorder %s603, %s606
      %p612 = scmp.eq.s32.totalorder %s51, 0
      %p613 = por %p611, %p612
      %p614 = scmp.ne.s32.totalorder %s603, %s606
      %p615 = scmp.eq.s32.totalorder %s56, 7
      %p616 = por %p614, %p615
      %p617 = scmp.ne.s32.totalorder %s606, %s607
      %p618 = scmp.eq.s32.totalorder %s56, 0
      %p619 = por %p617, %p618
      %p620 = scmp.ne.s32.totalorder %s606, %s607
      %p621 = scmp.eq.s32.totalorder %s57, 7
      %p622 = por %p620, %p621
      %p624 = scmp.ne.s32.totalorder %s607, %s623
      %p625 = scmp.eq.s32.totalorder %s57, 0
      %p626 = por %p624, %p625
      %p627 = scmp.le.s32.totalorder 1, %s51
      %p628 = scmp.lt.s32.totalorder %s51, 9
      %p629 = pnand %p627, %p628
      %p630 = pneg %p629
      // Predicated region
      $region9: #{tpu_custom_call.1} parent=5 // pred_check
        _
      $region10: #{tpu_custom_call.1} parent=5 // pred_check_branch
        %632 = sbr.rel (%p629) target = $region12
      $region11: #{tpu_custom_call.1} parent=5 // pred_region
        %s633 = ssub.s32 %s51, 1
        // Predicated region
        $region13: #{tpu_custom_call.1} parent=11 // pred_check
          %p634 = pneg %p117
        $region14: #{tpu_custom_call.1} parent=11 // pred_check_branch
          %636 = sbr.rel (%p634) target = $region16
        $region15: #{tpu_custom_call.1} parent=11 // pred_region
          %s638 = ssub.s32 128, 128
          %639 = vsyncadd [#allocation9], %s638
          %s640 = sshll.u32 [#allocation8], 4
          %s641 = int_to_ptr.vmem [resolvable:$true] %s640
          %646 = dma.hbm_to_vmem [thread:$0]  %s1, 128, %s641, [#allocation9], 64, 64, 4
        $region16: #{tpu_custom_call.1} parent=11 // pred_fallthru
          _
        // Predicated region
        $region17: #{tpu_custom_call.1} parent=11 // pred_check
          %p647 = pneg %p164
        $region18: #{tpu_custom_call.1} parent=11 // pred_check_branch
          %649 = sbr.rel (%p647) target = $region20
        $region19: #{tpu_custom_call.1} parent=11 // pred_region
          _
        $region20: #{tpu_custom_call.1} parent=11 // pred_fallthru
          _
        // Predicated region
        $region21: #{tpu_custom_call.1} parent=11 // pred_check
          %p650 = pneg %p185
        $region22: #{tpu_custom_call.1} parent=11 // pred_check_branch
          %652 = sbr.rel (%p650) target = $region24
        $region23: #{tpu_custom_call.1} parent=11 // pred_region
          %s654 = ssub.s32 16, 16
          %655 = vsyncadd [#allocation9], %s654
          %s657 = sshll.u32 [#allocation11], 4
          %s658 = int_to_ptr.vmem [resolvable:$true] %s657
          %660 = dma.hbm_to_vmem [thread:$0]  %s4, 16, %s658, [#allocation9]
        $region24: #{tpu_custom_call.1} parent=11 // pred_fallthru
          _
        // Predicated region
        $region25: #{tpu_custom_call.1} parent=11 // pred_check
          %p661 = pneg %p206
        $region26: #{tpu_custom_call.1} parent=11 // pred_check_branch
          %663 = sbr.rel (%p661) target = $region28
        $region27: #{tpu_custom_call.1} parent=11 // pred_region
          %s665 = ssub.s32 1024, 1024
          %666 = vsyncadd [#allocation13], %s665
          %s667 = sshll.u32 [#allocation12], 4
          %s668 = int_to_ptr.vmem [resolvable:$true] %s667
          %673 = dma.hbm_to_vmem [thread:$0]  %s5, 1024, %s668, [#allocation13], 64, 64, 4
        $region28: #{tpu_custom_call.1} parent=11 // pred_fallthru
          _
        // Predicated region
        $region29: #{tpu_custom_call.1} parent=11 // pred_check
          %p674 = pneg %p227
        $region30: #{tpu_custom_call.1} parent=11 // pred_check_branch
          %676 = sbr.rel (%p674) target = $region32
        $region31: #{tpu_custom_call.1} parent=11 // pred_region
          %s678 = ssub.s32 16, 16
          %679 = vsyncadd [#allocation13], %s678
          %s681 = sshll.u32 [#allocation14], 4
          %s682 = int_to_ptr.vmem [resolvable:$true] %s681
          %684 = dma.hbm_to_vmem [thread:$0]  %s6, 16, %s682, [#allocation13]
        $region32: #{tpu_custom_call.1} parent=11 // pred_fallthru
          _
        // Predicated region
        $region33: #{tpu_custom_call.1} parent=11 // pred_check
          %p685 = pneg %p248
        $region34: #{tpu_custom_call.1} parent=11 // pred_check_branch
          %687 = sbr.rel (%p685) target = $region36
        $region35: #{tpu_custom_call.1} parent=11 // pred_region
          %s689 = ssub.s32 128, 128
          %690 = vsyncadd [#allocation16], %s689
          %s691 = sshll.u32 [#allocation15], 4
          %s692 = int_to_ptr.vmem [resolvable:$true] %s691
          %697 = dma.hbm_to_vmem [thread:$0]  %s7, 128, %s692, [#allocation16], 64, 64, 4
        $region36: #{tpu_custom_call.1} parent=11 // pred_fallthru
          _
        // Predicated region
        $region37: #{tpu_custom_call.1} parent=11 // pred_check
          %p698 = pneg %p269
        $region38: #{tpu_custom_call.1} parent=11 // pred_check_branch
          %700 = sbr.rel (%p698) target = $region40
        $region39: #{tpu_custom_call.1} parent=11 // pred_region
          %s702 = ssub.s32 128, 128
          %703 = vsyncadd [#allocation16], %s702
          %s704 = sshll.u32 [#allocation17], 4
          %s705 = int_to_ptr.vmem [resolvable:$true] %s704
          %710 = dma.hbm_to_vmem [thread:$0]  %s8, 128, %s705, [#allocation16], 64, 64, 4
        $region40: #{tpu_custom_call.1} parent=11 // pred_fallthru
          _
        // Predicated region
        $region41: #{tpu_custom_call.1} parent=11 // pred_check
          %p711 = pneg %p290
        $region42: #{tpu_custom_call.1} parent=11 // pred_check_branch
          %713 = sbr.rel (%p711) target = $region44
        $region43: #{tpu_custom_call.1} parent=11 // pred_region
          %s715 = ssub.s32 1024, 1024
          %716 = vsyncadd [#allocation19], %s715
          %s717 = sshll.u32 [#allocation18], 4
          %s718 = int_to_ptr.vmem [resolvable:$true] %s717
          %723 = dma.hbm_to_vmem [thread:$0]  %s9, 1024, %s718, [#allocation19], 64, 64, 4
        $region44: #{tpu_custom_call.1} parent=11 // pred_fallthru
          _
        // Predicated region
        $region45: #{tpu_custom_call.1} parent=11 // pred_check
          %p724 = pneg %p311
        $region46: #{tpu_custom_call.1} parent=11 // pred_check_branch
          %726 = sbr.rel (%p724) target = $region48
        $region47: #{tpu_custom_call.1} parent=11 // pred_region
          %s728 = ssub.s32 1024, 1024
          %729 = vsyncadd [#allocation19], %s728
          %s730 = sshll.u32 [#allocation20], 4
          %s731 = int_to_ptr.vmem [resolvable:$true] %s730
          %736 = dma.hbm_to_vmem [thread:$0]  %s10, 1024, %s731, [#allocation19], 64, 64, 4
        $region48: #{tpu_custom_call.1} parent=11 // pred_fallthru
          _
        // Predicated region
        $region49: #{tpu_custom_call.1} parent=11 // pred_check
          %p737 = pneg %p546
        $region50: #{tpu_custom_call.1} parent=11 // pred_check_branch
          %739 = sbr.rel (%p737) target = $region52
        $region51: #{tpu_custom_call.1} parent=11 // pred_region
          _
        $region52: #{tpu_custom_call.1} parent=11 // pred_fallthru
          _
        // Predicated region
        $region53: #{tpu_custom_call.1} parent=11 // pred_check
          %p740 = pneg %p567
        $region54: #{tpu_custom_call.1} parent=11 // pred_check_branch
          %742 = sbr.rel (%p740) target = $region56
        $region55: #{tpu_custom_call.1} parent=11 // pred_region
          _
        $region56: #{tpu_custom_call.1} parent=11 // pred_fallthru
          _
      $region12: #{tpu_custom_call.1} parent=5 // pred_fallthru
        _
      %p743 = scmp.lt.s32.totalorder %s51, 8
      // Predicated region
      $region57: #{tpu_custom_call.1} parent=5 // pred_check
        %p744 = pneg %p743
      $region58: #{tpu_custom_call.1} parent=5 // pred_check_branch
        %746 = sbr.rel (%p744) target = $region60
      $region59: #{tpu_custom_call.1} parent=5 // pred_region
        // Predicated region
        $region61: #{tpu_custom_call.1} parent=59 // pred_check
          %p747 = pneg %p90
        $region62: #{tpu_custom_call.1} parent=59 // pred_check_branch
          %749 = sbr.rel (%p747) target = $region64
        $region63: #{tpu_custom_call.1} parent=59 // pred_region
          %s750 = sand.u32 %s51, 1
          %s751 = scalar_lea.sflag [#allocation6], %s750
          %s752 = sand.u32 %s80, 1
          %s753 = smul.addr %s752, 64
          %s754 = scalar_lea.vmem [#allocation5], %s753
          %s755 = smul.u32 8, %s58
          %s757 = ssub.s32 1024, 1024
          %758 = vsyncadd %s751, %s757
          %s759 = smul.addr %s755, 2
          %s760 = smul.addr %s759, 64
          %s761 = scalar_lea.hbm %s0, %s760
          %s762 = sshll.u32 %s754, 4
          %s763 = int_to_ptr.vmem [resolvable:$true] %s762
          %768 = dma.hbm_to_vmem [thread:$0]  %s761, 1024, %s763, %s751, 64, 64, 4
        $region64: #{tpu_custom_call.1} parent=59 // pred_fallthru
          _
        // Predicated region
        $region65: #{tpu_custom_call.1} parent=59 // pred_check
          %p769 = pneg %p137
        $region66: #{tpu_custom_call.1} parent=59 // pred_check_branch
          %771 = sbr.rel (%p769) target = $region68
        $region67: #{tpu_custom_call.1} parent=59 // pred_region
          %s772 = sand.u32 %s51, 1
          %s773 = scalar_lea.sflag [#allocation6], %s772
          %s774 = sand.u32 %s127, 1
          %s775 = smul.addr %s774, 64
          %s776 = scalar_lea.vmem [#allocation10], %s775
          %s777 = smul.u32 8, %s58
          %s779 = ssub.s32 1024, 1024
          %780 = vsyncadd %s773, %s779
          %s781 = smul.addr %s777, 2
          %s782 = smul.addr %s781, 64
          %s783 = scalar_lea.hbm %s2, %s782
          %s784 = sshll.u32 %s776, 4
          %s785 = int_to_ptr.vmem [resolvable:$true] %s784
          %790 = dma.hbm_to_vmem [thread:$0]  %s783, 1024, %s785, %s773, 64, 64, 4
        $region68: #{tpu_custom_call.1} parent=59 // pred_fallthru
          _
        // Predicated region
        $region69: #{tpu_custom_call.1} parent=59 // pred_check
          %p791 = pneg %p331
        $region70: #{tpu_custom_call.1} parent=59 // pred_check_branch
          %793 = sbr.rel (%p791) target = $region72
        $region71: #{tpu_custom_call.1} parent=59 // pred_region
          %p794 = scmp.lt.s32.totalorder %s59, 1
          %s795 = scalar_select %p794, %s59, 1
          %s796 = scalar_lea.vmem %s11, %s795
        $region72: #{tpu_custom_call.1} parent=59 // pred_fallthru
          _
        // Predicated region
        $region73: #{tpu_custom_call.1} parent=59 // pred_check
          %p797 = pneg %p357
        $region74: #{tpu_custom_call.1} parent=59 // pred_check_branch
          %799 = sbr.rel (%p797) target = $region76
        $region75: #{tpu_custom_call.1} parent=59 // pred_region
          %p800 = scmp.lt.s32.totalorder %s59, 1
          %s801 = scalar_select %p800, %s59, 1
          %s802 = scalar_lea.vmem %s12, %s801
        $region76: #{tpu_custom_call.1} parent=59 // pred_fallthru
          _
        // Predicated region
        $region77: #{tpu_custom_call.1} parent=59 // pred_check
          %p803 = pneg %p385
        $region78: #{tpu_custom_call.1} parent=59 // pred_check_branch
          %805 = sbr.rel (%p803) target = $region80
        $region79: #{tpu_custom_call.1} parent=59 // pred_region
          %s806 = sand.u32 %s51, 1
          %s807 = scalar_lea.sflag [#allocation22], %s806
          %s808 = sand.u32 %s375, 1
          %s809 = smul.addr %s808, 256
          %s810 = scalar_lea.vmem [#allocation21], %s809
          %s811 = smul.u32 4, %s60
          %s813 = ssub.s32 4096, 4096
          %814 = vsyncadd %s807, %s813
          %s815 = smul.addr %s59, 128
          %s816 = sadd.s32 %s811, %s815
          %s817 = smul.addr %s816, 64
          %s818 = scalar_lea.hbm %s13, %s817
          %s819 = sshll.u32 %s810, 4
          %s820 = int_to_ptr.vmem [resolvable:$true] %s819
          %825 = dma.hbm_to_vmem [thread:$0]  %s818, 4096, %s820, %s807, 512, 256, 16
        $region80: #{tpu_custom_call.1} parent=59 // pred_fallthru
          _
        // Predicated region
        $region81: #{tpu_custom_call.1} parent=59 // pred_check
          %p826 = pneg %p413
        $region82: #{tpu_custom_call.1} parent=59 // pred_check_branch
          %828 = sbr.rel (%p826) target = $region84
        $region83: #{tpu_custom_call.1} parent=59 // pred_region
          %s829 = sand.u32 %s51, 1
          %s830 = scalar_lea.sflag [#allocation22], %s829
          %s831 = sand.u32 %s403, 1
          %s832 = smul.addr %s831, 4
          %s833 = scalar_lea.vmem [#allocation23], %s832
          %s834 = smul.u32 4, %s60
          %s836 = ssub.s32 64, 64
          %837 = vsyncadd %s830, %s836
          %s838 = smul.addr %s59, 8
          %s839 = sadd.s32 %s834, %s838
          %s840 = smul.addr %s839, 16
          %s841 = scalar_lea.hbm %s14, %s840
          %s843 = sshll.u32 %s833, 4
          %s844 = int_to_ptr.vmem [resolvable:$true] %s843
          %846 = dma.hbm_to_vmem [thread:$0]  %s841, 64, %s844, %s830
        $region84: #{tpu_custom_call.1} parent=59 // pred_fallthru
          _
        // Predicated region
        $region85: #{tpu_custom_call.1} parent=59 // pred_check
          %p847 = pneg %p441
        $region86: #{tpu_custom_call.1} parent=59 // pred_check_branch
          %849 = sbr.rel (%p847) target = $region88
        $region87: #{tpu_custom_call.1} parent=59 // pred_region
          %s850 = sand.u32 %s51, 1
          %s851 = scalar_lea.sflag [#allocation25], %s850
          %s852 = sand.u32 %s431, 1
          %s853 = smul.addr %s852, 256
          %s854 = scalar_lea.vmem [#allocation24], %s853
          %s855 = smul.u32 64, %s60
          %s857 = ssub.s32 4096, 4096
          %858 = vsyncadd %s851, %s857
          %s859 = smul.addr %s59, 128
          %s860 = sadd.s32 %s855, %s859
          %s861 = smul.addr %s860, 64
          %s862 = scalar_lea.hbm %s15, %s861
          %s863 = sshll.u32 %s854, 4
          %s864 = int_to_ptr.vmem [resolvable:$true] %s863
          %869 = dma.hbm_to_vmem [thread:$0]  %s862, 4096, %s864, %s851, 64, 64, 4
        $region88: #{tpu_custom_call.1} parent=59 // pred_fallthru
          _
        // Predicated region
        $region89: #{tpu_custom_call.1} parent=59 // pred_check
          %p870 = pneg %p467
        $region90: #{tpu_custom_call.1} parent=59 // pred_check_branch
          %872 = sbr.rel (%p870) target = $region92
        $region91: #{tpu_custom_call.1} parent=59 // pred_region
          %p873 = scmp.lt.s32.totalorder %s59, 1
          %s874 = scalar_select %p873, %s59, 1
          %s875 = scalar_lea.vmem %s16, %s874
        $region92: #{tpu_custom_call.1} parent=59 // pred_fallthru
          _
        // Predicated region
        $region93: #{tpu_custom_call.1} parent=59 // pred_check
          %p876 = pneg %p493
        $region94: #{tpu_custom_call.1} parent=59 // pred_check_branch
          %878 = sbr.rel (%p876) target = $region96
        $region95: #{tpu_custom_call.1} parent=59 // pred_region
          %s879 = sand.u32 %s51, 1
          %s880 = scalar_lea.sflag [#allocation25], %s879
          %s881 = sand.u32 %s483, 1
          %s882 = scalar_lea.vmem [#allocation26], %s881
          %s884 = ssub.s32 16, 16
          %885 = vsyncadd %s880, %s884
          %s886 = smul.addr %s59, 16
          %s887 = scalar_lea.hbm %s17, %s886
          %s889 = sshll.u32 %s882, 4
          %s890 = int_to_ptr.vmem [resolvable:$true] %s889
          %892 = dma.hbm_to_vmem [thread:$0]  %s887, 16, %s890, %s880
        $region96: #{tpu_custom_call.1} parent=59 // pred_fallthru
          _
        // Predicated region
        $region97: #{tpu_custom_call.1} parent=59 // pred_check
          %p893 = pneg %p519
        $region98: #{tpu_custom_call.1} parent=59 // pred_check_branch
          %895 = sbr.rel (%p893) target = $region100
        $region99: #{tpu_custom_call.1} parent=59 // pred_region
          %s896 = sand.u32 %s509, 1
          %s897 = scalar_lea.sflag [#allocation28], %s896
          %s898 = sand.u32 %s509, 1
          %s899 = scalar_lea.vmem [#allocation27], %s898
          %s901 = ssub.s32 16, 16
          %902 = vsyncadd %s897, %s901
          %s903 = smul.addr %s59, 16
          %s904 = scalar_lea.hbm %s18, %s903
          %s906 = sshll.u32 %s899, 4
          %s907 = int_to_ptr.vmem [resolvable:$true] %s906
          %909 = dma.hbm_to_vmem [thread:$0]  %s904, 16, %s907, %s897
        $region100: #{tpu_custom_call.1} parent=59 // pred_fallthru
          _
      $region60: #{tpu_custom_call.1} parent=5 // pred_fallthru
        _
      %p910 = scmp.le.s32.totalorder 1, %s51
      %p911 = scmp.lt.s32.totalorder %s51, 9
      %p912 = pnand %p910, %p911
      %p913 = pneg %p912
      // Predicated region
      $region101: #{tpu_custom_call.1} parent=5 // pred_check
        _
      $region102: #{tpu_custom_call.1} parent=5 // pred_check_branch
        %915 = sbr.rel (%p912) target = $region104
      $region103: #{tpu_custom_call.1} parent=5 // pred_region
        %s916 = ssub.s32 %s51, 1
        %s917 = sand.u32 %s56, 1
        %s918 = scalar_lea.sflag [#allocation6], %s917
        %s919 = sand.u32 %s83, 1
        %s920 = smul.addr %s919, 64
        %s921 = scalar_lea.vmem [#allocation5], %s920
        // Predicated region
        $region105: #{tpu_custom_call.1} parent=103 // pred_check
          %p922 = pneg %p96
        $region106: #{tpu_custom_call.1} parent=103 // pred_check_branch
          %924 = sbr.rel (%p922) target = $region108
        $region107: #{tpu_custom_call.1} parent=103 // pred_region
          %925 = dma.done %s918, 1024
        $region108: #{tpu_custom_call.1} parent=103 // pred_fallthru
          _
        // Predicated region
        $region109: #{tpu_custom_call.1} parent=103 // pred_check
          %p926 = pneg %p117
        $region110: #{tpu_custom_call.1} parent=103 // pred_check_branch
          %928 = sbr.rel (%p926) target = $region112
        $region111: #{tpu_custom_call.1} parent=103 // pred_region
          %929 = dma.done [#allocation9], 128
        $region112: #{tpu_custom_call.1} parent=103 // pred_fallthru
          _
        %s930 = sand.u32 %s56, 1
        %s931 = scalar_lea.sflag [#allocation6], %s930
        %s932 = sand.u32 %s130, 1
        %s933 = smul.addr %s932, 64
        %s934 = scalar_lea.vmem [#allocation10], %s933
        // Predicated region
        $region113: #{tpu_custom_call.1} parent=103 // pred_check
          %p935 = pneg %p143
        $region114: #{tpu_custom_call.1} parent=103 // pred_check_branch
          %937 = sbr.rel (%p935) target = $region116
        $region115: #{tpu_custom_call.1} parent=103 // pred_region
          %938 = dma.done %s931, 1024
        $region116: #{tpu_custom_call.1} parent=103 // pred_fallthru
          _
        // Predicated region
        $region117: #{tpu_custom_call.1} parent=103 // pred_check
          %p939 = pneg %p185
        $region118: #{tpu_custom_call.1} parent=103 // pred_check_branch
          %941 = sbr.rel (%p939) target = $region120
        $region119: #{tpu_custom_call.1} parent=103 // pred_region
          %942 = dma.done [#allocation9], 16
        $region120: #{tpu_custom_call.1} parent=103 // pred_fallthru
          _
        // Predicated region
        $region121: #{tpu_custom_call.1} parent=103 // pred_check
          %p943 = pneg %p206
        $region122: #{tpu_custom_call.1} parent=103 // pred_check_branch
          %945 = sbr.rel (%p943) target = $region124
        $region123: #{tpu_custom_call.1} parent=103 // pred_region
          %946 = dma.done [#allocation13], 1024
        $region124: #{tpu_custom_call.1} parent=103 // pred_fallthru
          _
        // Predicated region
        $region125: #{tpu_custom_call.1} parent=103 // pred_check
          %p947 = pneg %p227
        $region126: #{tpu_custom_call.1} parent=103 // pred_check_branch
          %949 = sbr.rel (%p947) target = $region128
        $region127: #{tpu_custom_call.1} parent=103 // pred_region
          %950 = dma.done [#allocation13], 16
        $region128: #{tpu_custom_call.1} parent=103 // pred_fallthru
          _
        // Predicated region
        $region129: #{tpu_custom_call.1} parent=103 // pred_check
          %p951 = pneg %p248
        $region130: #{tpu_custom_call.1} parent=103 // pred_check_branch
          %953 = sbr.rel (%p951) target = $region132
        $region131: #{tpu_custom_call.1} parent=103 // pred_region
          %954 = dma.done [#allocation16], 128
        $region132: #{tpu_custom_call.1} parent=103 // pred_fallthru
          _
        // Predicated region
        $region133: #{tpu_custom_call.1} parent=103 // pred_check
          %p955 = pneg %p269
        $region134: #{tpu_custom_call.1} parent=103 // pred_check_branch
          %957 = sbr.rel (%p955) target = $region136
        $region135: #{tpu_custom_call.1} parent=103 // pred_region
          %958 = dma.done [#allocation16], 128
        $region136: #{tpu_custom_call.1} parent=103 // pred_fallthru
          _
        // Predicated region
        $region137: #{tpu_custom_call.1} parent=103 // pred_check
          %p959 = pneg %p290
        $region138: #{tpu_custom_call.1} parent=103 // pred_check_branch
          %961 = sbr.rel (%p959) target = $region140
        $region139: #{tpu_custom_call.1} parent=103 // pred_region
          %962 = dma.done [#allocation19], 1024
        $region140: #{tpu_custom_call.1} parent=103 // pred_fallthru
          _
        // Predicated region
        $region141: #{tpu_custom_call.1} parent=103 // pred_check
          %p963 = pneg %p311
        $region142: #{tpu_custom_call.1} parent=103 // pred_check_branch
          %965 = sbr.rel (%p963) target = $region144
        $region143: #{tpu_custom_call.1} parent=103 // pred_region
          %966 = dma.done [#allocation19], 1024
        $region144: #{tpu_custom_call.1} parent=103 // pred_fallthru
          _
        %s967 = sand.u32 %s56, 1
        %s968 = scalar_lea.sflag [#allocation22], %s967
        %s969 = sand.u32 %s378, 1
        %s970 = smul.addr %s969, 256
        %s971 = scalar_lea.vmem [#allocation21], %s970
        // Predicated region
        $region145: #{tpu_custom_call.1} parent=103 // pred_check
          %p972 = pneg %p391
        $region146: #{tpu_custom_call.1} parent=103 // pred_check_branch
          %974 = sbr.rel (%p972) target = $region148
        $region147: #{tpu_custom_call.1} parent=103 // pred_region
          %975 = dma.done %s968, 4096
        $region148: #{tpu_custom_call.1} parent=103 // pred_fallthru
          _
        %s976 = sand.u32 %s56, 1
        %s977 = scalar_lea.sflag [#allocation22], %s976
        %s978 = sand.u32 %s406, 1
        %s979 = smul.addr %s978, 4
        %s980 = scalar_lea.vmem [#allocation23], %s979
        // Predicated region
        $region149: #{tpu_custom_call.1} parent=103 // pred_check
          %p981 = pneg %p419
        $region150: #{tpu_custom_call.1} parent=103 // pred_check_branch
          %983 = sbr.rel (%p981) target = $region152
        $region151: #{tpu_custom_call.1} parent=103 // pred_region
          %984 = dma.done %s977, 64
        $region152: #{tpu_custom_call.1} parent=103 // pred_fallthru
          _
        %s985 = sand.u32 %s56, 1
        %s986 = scalar_lea.sflag [#allocation25], %s985
        %s987 = sand.u32 %s434, 1
        %s988 = smul.addr %s987, 256
        %s989 = scalar_lea.vmem [#allocation24], %s988
        // Predicated region
        $region153: #{tpu_custom_call.1} parent=103 // pred_check
          %p990 = pneg %p447
        $region154: #{tpu_custom_call.1} parent=103 // pred_check_branch
          %992 = sbr.rel (%p990) target = $region156
        $region155: #{tpu_custom_call.1} parent=103 // pred_region
          %993 = dma.done %s986, 4096
        $region156: #{tpu_custom_call.1} parent=103 // pred_fallthru
          _
        %s994 = sand.u32 %s56, 1
        %s995 = scalar_lea.sflag [#allocation25], %s994
        %s996 = sand.u32 %s486, 1
        %s997 = scalar_lea.vmem [#allocation26], %s996
        // Predicated region
        $region157: #{tpu_custom_call.1} parent=103 // pred_check
          %p998 = pneg %p499
        $region158: #{tpu_custom_call.1} parent=103 // pred_check_branch
          %1000 = sbr.rel (%p998) target = $region160
        $region159: #{tpu_custom_call.1} parent=103 // pred_region
          %1001 = dma.done %s995, 16
        $region160: #{tpu_custom_call.1} parent=103 // pred_fallthru
          _
        %s1002 = sand.u32 %s512, 1
        %s1003 = scalar_lea.sflag [#allocation28], %s1002
        %s1004 = sand.u32 %s512, 1
        %s1005 = scalar_lea.vmem [#allocation27], %s1004
        // Predicated region
        $region161: #{tpu_custom_call.1} parent=103 // pred_check
          %p1006 = pneg %p525
        $region162: #{tpu_custom_call.1} parent=103 // pred_check_branch
          %1008 = sbr.rel (%p1006) target = $region164
        $region163: #{tpu_custom_call.1} parent=103 // pred_region
          %1009 = dma.done %s1003, 16
        $region164: #{tpu_custom_call.1} parent=103 // pred_fallthru
          _
        %s1010 = sand.u32 %s56, 1
        %s1011 = scalar_lea.sflag [#allocation6], %s1010
        %s1012 = sand.u32 %s83, 1
        %s1013 = smul.addr %s1012, 64
        %s1014 = scalar_lea.vmem [#allocation5], %s1013
        %p1015 = pneg %p96
        %p1016 = pneg %p93
        %p1017 = pneg %p117
        %p1018 = pneg %p114
        %s1019 = sand.u32 %s56, 1
        %s1020 = scalar_lea.sflag [#allocation6], %s1019
        %s1021 = sand.u32 %s130, 1
        %s1022 = smul.addr %s1021, 64
        %s1023 = scalar_lea.vmem [#allocation10], %s1022
        %p1024 = pneg %p143
        %p1025 = pneg %p140
        %p1026 = pneg %p164
        %p1027 = pneg %p161
        %p1028 = pneg %p185
        %p1029 = pneg %p182
        %p1030 = pneg %p206
        %p1031 = pneg %p203
        %p1032 = pneg %p227
        %p1033 = pneg %p224
        %p1034 = pneg %p248
        %p1035 = pneg %p245
        %p1036 = pneg %p269
        %p1037 = pneg %p266
        %p1038 = pneg %p290
        %p1039 = pneg %p287
        %p1040 = pneg %p311
        %p1041 = pneg %p308
        %p1042 = scmp.lt.s32.totalorder %s62, 1
        %s1043 = scalar_select %p1042, %s62, 1
        %s1044 = scalar_lea.vmem %s11, %s1043
        %p1045 = pneg %p337
        %p1046 = pneg %p334
        %p1047 = scmp.lt.s32.totalorder %s62, 1
        %s1048 = scalar_select %p1047, %s62, 1
        %s1049 = scalar_lea.vmem %s12, %s1048
        %p1050 = pneg %p363
        %p1051 = pneg %p360
        %s1052 = sand.u32 %s56, 1
        %s1053 = scalar_lea.sflag [#allocation22], %s1052
        %s1054 = sand.u32 %s378, 1
        %s1055 = smul.addr %s1054, 256
        %s1056 = scalar_lea.vmem [#allocation21], %s1055
        %p1057 = pneg %p391
        %p1058 = pneg %p388
        %s1059 = sand.u32 %s56, 1
        %s1060 = scalar_lea.sflag [#allocation22], %s1059
        %s1061 = sand.u32 %s406, 1
        %s1062 = smul.addr %s1061, 4
        %s1063 = scalar_lea.vmem [#allocation23], %s1062
        %p1064 = pneg %p419
        %p1065 = pneg %p416
        %s1066 = sand.u32 %s56, 1
        %s1067 = scalar_lea.sflag [#allocation25], %s1066
        %s1068 = sand.u32 %s434, 1
        %s1069 = smul.addr %s1068, 256
        %s1070 = scalar_lea.vmem [#allocation24], %s1069
        %p1071 = pneg %p447
        %p1072 = pneg %p444
        %p1073 = scmp.lt.s32.totalorder %s62, 1
        %s1074 = scalar_select %p1073, %s62, 1
        %s1075 = scalar_lea.vmem %s16, %s1074
        %p1076 = pneg %p473
        %p1077 = pneg %p470
        %s1078 = sand.u32 %s56, 1
        %s1079 = scalar_lea.sflag [#allocation25], %s1078
        %s1080 = sand.u32 %s486, 1
        %s1081 = scalar_lea.vmem [#allocation26], %s1080
        %p1082 = pneg %p499
        %p1083 = pneg %p496
        %s1084 = sand.u32 %s512, 1
        %s1085 = scalar_lea.sflag [#allocation28], %s1084
        %s1086 = sand.u32 %s512, 1
        %s1087 = scalar_lea.vmem [#allocation27], %s1086
        %p1088 = pneg %p525
        %p1089 = pneg %p522
        %p1090 = pneg %p546
        %p1091 = pneg %p543
        %p1092 = pneg %p567
        %p1093 = pneg %p564
        %p1094 = pneg %p593
        %p1095 = pneg %p590
        %s1096 = sand.u32 %s580, 1
        %s1097 = scalar_lea.sflag [#allocation7], %s1096
        %s1098 = sand.u32 %s580, 1
        %s1099 = smul.addr %s1098, 64
        %s1100 = scalar_lea.vmem [#allocation29], %s1099
        %p1101 = pneg %p619
        %p1102 = pneg %p616
        %s1103 = sand.u32 %s606, 1
        %s1104 = scalar_lea.sflag [#allocation31], %s1103
        %s1105 = sand.u32 %s606, 1
        %s1106 = smul.addr %s1105, 8
        %s1107 = scalar_lea.vmem [#allocation30], %s1106
        %s1108 = smul.u32 8, %s61
        %s1109 = smul.u32 8, %s61
        %p1110 = scmp.lt.s32.totalorder %s62, 1
        %s1111 = scalar_select %p1110, %s62, 1
        %s1112 = scalar_lea.vmem %s11, %s1111
        %p1113 = scmp.lt.s32.totalorder %s62, 1
        %s1114 = scalar_select %p1113, %s62, 1
        %s1115 = scalar_lea.vmem %s12, %s1114
        %s1116 = smul.u32 4, %s63
        %s1117 = smul.u32 4, %s63
        %s1118 = smul.u32 64, %s63
        %p1119 = scmp.lt.s32.totalorder %s62, 1
        %s1120 = scalar_select %p1119, %s62, 1
        %s1121 = scalar_lea.vmem %s16, %s1120
        %s1122 = smul.u32 8, %s61
        %s1123 = smul.u32 8, %s61
        %p1125 = scmp.eq.s32.totalorder %s62, 0
        %p1126 = scmp.eq.s32.totalorder %s63, 0
        %p1127 = pnand %p1125, %p1126
        %p1128 = pneg %p1127
        // Predicated region
        $region165: #{tpu_custom_call.1} parent=103 // pred_check
          _
        $region166: #{tpu_custom_call.1} parent=103 // pred_check_branch
          %1130 = sbr.rel (%p1127) target = $region168
        $region167: #{tpu_custom_call.1} parent=103 // pred_region
          %v1131 = vld [vmem:[%s921] sm:$0xf]
          %v1132 = vld [vmem:[%s921 + $0x4] sm:$0xf]
          %v1133 = vld [vmem:[%s921 + $0x8] sm:$0xf]
          %v1134 = vld [vmem:[%s921 + $0xc] sm:$0xf]
          %v1135 = vld [vmem:[%s921 + $0x10] sm:$0xf]
          %v1136 = vld [vmem:[%s921 + $0x14] sm:$0xf]
          %v1137 = vld [vmem:[%s921 + $0x18] sm:$0xf]
          %v1138 = vld [vmem:[%s921 + $0x1c] sm:$0xf]
          %v1139 = vld [vmem:[%s921 + $0x20] sm:$0xf]
          %v1140 = vld [vmem:[%s921 + $0x24] sm:$0xf]
          %v1141 = vld [vmem:[%s921 + $0x28] sm:$0xf]
          %v1142 = vld [vmem:[%s921 + $0x2c] sm:$0xf]
          %v1143 = vld [vmem:[%s921 + $0x30] sm:$0xf]
          %v1144 = vld [vmem:[%s921 + $0x34] sm:$0xf]
          %v1145 = vld [vmem:[%s921 + $0x38] sm:$0xf]
          %v1146 = vld [vmem:[%s921 + $0x3c] sm:$0xf]
          %v1147 = vunpack.c.l.bf16 %v1131
          %v1148 = vunpack.c.l.bf16 %v1132
          %v1149 = vunpack.c.l.bf16 %v1133
          %v1150 = vunpack.c.l.bf16 %v1134
          %v1151 = vunpack.c.l.bf16 %v1135
          %v1152 = vunpack.c.l.bf16 %v1136
          %v1153 = vunpack.c.l.bf16 %v1137
          %v1154 = vunpack.c.l.bf16 %v1138
          %v1155 = vunpack.c.l.bf16 %v1139
          %v1156 = vunpack.c.l.bf16 %v1140
          %v1157 = vunpack.c.l.bf16 %v1141
          %v1158 = vunpack.c.l.bf16 %v1142
          %v1159 = vunpack.c.l.bf16 %v1143
          %v1160 = vunpack.c.l.bf16 %v1144
          %v1161 = vunpack.c.l.bf16 %v1145
          %v1162 = vunpack.c.l.bf16 %v1146
          %v1163 = vld [vmem:[#allocation8] sm:$0xf]
          %v1164 = vld [vmem:[#allocation8 + $0x4] sm:$0xf]
          %v1165 = vunpack.c.l.bf16 %v1163
          %v1166 = vunpack.c.l.bf16 %v1164
          %v1167 = vadd.f32 %v1147, %v1165
          %v1168 = vadd.f32 %v1148, %v1166
          %v1169 = vadd.f32 %v1149, %v1165
          %v1170 = vadd.f32 %v1150, %v1166
          %v1171 = vadd.f32 %v1151, %v1165
          %v1172 = vadd.f32 %v1152, %v1166
          %v1173 = vadd.f32 %v1153, %v1165
          %v1174 = vadd.f32 %v1154, %v1166
          %v1175 = vadd.f32 %v1155, %v1165
          %v1176 = vadd.f32 %v1156, %v1166
          %v1177 = vadd.f32 %v1157, %v1165
          %v1178 = vadd.f32 %v1158, %v1166
          %v1179 = vadd.f32 %v1159, %v1165
          %v1180 = vadd.f32 %v1160, %v1166
          %v1181 = vadd.f32 %v1161, %v1165
          %v1182 = vadd.f32 %v1162, %v1166
          %v1183 = vld [vmem:[%s934] sm:$0xf]
          %v1184 = vld [vmem:[%s934 + $0x4] sm:$0xf]
          %v1185 = vld [vmem:[%s934 + $0x8] sm:$0xf]
          %v1186 = vld [vmem:[%s934 + $0xc] sm:$0xf]
          %v1187 = vld [vmem:[%s934 + $0x10] sm:$0xf]
          %v1188 = vld [vmem:[%s934 + $0x14] sm:$0xf]
          %v1189 = vld [vmem:[%s934 + $0x18] sm:$0xf]
          %v1190 = vld [vmem:[%s934 + $0x1c] sm:$0xf]
          %v1191 = vld [vmem:[%s934 + $0x20] sm:$0xf]
          %v1192 = vld [vmem:[%s934 + $0x24] sm:$0xf]
          %v1193 = vld [vmem:[%s934 + $0x28] sm:$0xf]
          %v1194 = vld [vmem:[%s934 + $0x2c] sm:$0xf]
          %v1195 = vld [vmem:[%s934 + $0x30] sm:$0xf]
          %v1196 = vld [vmem:[%s934 + $0x34] sm:$0xf]
          %v1197 = vld [vmem:[%s934 + $0x38] sm:$0xf]
          %v1198 = vld [vmem:[%s934 + $0x3c] sm:$0xf]
          %v1199 = vunpack.c.l.bf16 %v1183
          %v1200 = vunpack.c.l.bf16 %v1184
          %v1201 = vunpack.c.l.bf16 %v1185
          %v1202 = vunpack.c.l.bf16 %v1186
          %v1203 = vunpack.c.l.bf16 %v1187
          %v1204 = vunpack.c.l.bf16 %v1188
          %v1205 = vunpack.c.l.bf16 %v1189
          %v1206 = vunpack.c.l.bf16 %v1190
          %v1207 = vunpack.c.l.bf16 %v1191
          %v1208 = vunpack.c.l.bf16 %v1192
          %v1209 = vunpack.c.l.bf16 %v1193
          %v1210 = vunpack.c.l.bf16 %v1194
          %v1211 = vunpack.c.l.bf16 %v1195
          %v1212 = vunpack.c.l.bf16 %v1196
          %v1213 = vunpack.c.l.bf16 %v1197
          %v1214 = vunpack.c.l.bf16 %v1198
          %v1215 = vadd.f32 %v1167, %v1199
          %v1216 = vadd.f32 %v1168, %v1200
          %v1217 = vadd.f32 %v1169, %v1201
          %v1218 = vadd.f32 %v1170, %v1202
          %v1219 = vadd.f32 %v1171, %v1203
          %v1220 = vadd.f32 %v1172, %v1204
          %v1221 = vadd.f32 %v1173, %v1205
          %v1222 = vadd.f32 %v1174, %v1206
          %v1223 = vadd.f32 %v1175, %v1207
          %v1224 = vadd.f32 %v1176, %v1208
          %v1225 = vadd.f32 %v1177, %v1209
          %v1226 = vadd.f32 %v1178, %v1210
          %v1227 = vadd.f32 %v1179, %v1211
          %v1228 = vadd.f32 %v1180, %v1212
          %v1229 = vadd.f32 %v1181, %v1213
          %v1230 = vadd.f32 %v1182, %v1214
          %v1231 = vld [vmem:[%s3] sm:$0x1]
          %v1232 = vld [vmem:[#allocation11] sm:$0x1]
          %1233 = vadd.xlane.f32.xlu0 %v1215
          %v1234 = vpop.xlane.xlu0 %1233
          %1235 = vadd.xlane.f32.xlu0 %v1216
          %v1236 = vpop.xlane.xlu0 %1235
          %1237 = vadd.xlane.f32.xlu0 %v1217
          %v1238 = vpop.xlane.xlu0 %1237
          %1239 = vadd.xlane.f32.xlu0 %v1218
          %v1240 = vpop.xlane.xlu0 %1239
          %1241 = vadd.xlane.f32.xlu0 %v1219
          %v1242 = vpop.xlane.xlu0 %1241
          %1243 = vadd.xlane.f32.xlu0 %v1220
          %v1244 = vpop.xlane.xlu0 %1243
          %1245 = vadd.xlane.f32.xlu0 %v1221
          %v1246 = vpop.xlane.xlu0 %1245
          %1247 = vadd.xlane.f32.xlu0 %v1222
          %v1248 = vpop.xlane.xlu0 %1247
          %1249 = vadd.xlane.f32.xlu0 %v1223
          %v1250 = vpop.xlane.xlu0 %1249
          %1251 = vadd.xlane.f32.xlu0 %v1224
          %v1252 = vpop.xlane.xlu0 %1251
          %1253 = vadd.xlane.f32.xlu0 %v1225
          %v1254 = vpop.xlane.xlu0 %1253
          %1255 = vadd.xlane.f32.xlu0 %v1226
          %v1256 = vpop.xlane.xlu0 %1255
          %1257 = vadd.xlane.f32.xlu0 %v1227
          %v1258 = vpop.xlane.xlu0 %1257
          %1259 = vadd.xlane.f32.xlu0 %v1228
          %v1260 = vpop.xlane.xlu0 %1259
          %1261 = vadd.xlane.f32.xlu0 %v1229
          %v1262 = vpop.xlane.xlu0 %1261
          %1263 = vadd.xlane.f32.xlu0 %v1230
          %v1264 = vpop.xlane.xlu0 %1263
          %v1265 = vrcp.pop 128.0
          %v1266 = vmul.f32 %v1234, %v1265
          %v1267 = vmul.f32 %v1236, %v1265
          %v1268 = vmul.f32 %v1238, %v1265
          %v1269 = vmul.f32 %v1240, %v1265
          %v1270 = vmul.f32 %v1242, %v1265
          %v1271 = vmul.f32 %v1244, %v1265
          %v1272 = vmul.f32 %v1246, %v1265
          %v1273 = vmul.f32 %v1248, %v1265
          %v1274 = vmul.f32 %v1250, %v1265
          %v1275 = vmul.f32 %v1252, %v1265
          %v1276 = vmul.f32 %v1254, %v1265
          %v1277 = vmul.f32 %v1256, %v1265
          %v1278 = vmul.f32 %v1258, %v1265
          %v1279 = vmul.f32 %v1260, %v1265
          %v1280 = vmul.f32 %v1262, %v1265
          %v1281 = vmul.f32 %v1264, %v1265
          %v1282 = vsub.f32 %v1215, %v1266
          %v1283 = vsub.f32 %v1216, %v1267
          %v1284 = vsub.f32 %v1217, %v1268
          %v1285 = vsub.f32 %v1218, %v1269
          %v1286 = vsub.f32 %v1219, %v1270
          %v1287 = vsub.f32 %v1220, %v1271
          %v1288 = vsub.f32 %v1221, %v1272
          %v1289 = vsub.f32 %v1222, %v1273
          %v1290 = vsub.f32 %v1223, %v1274
          %v1291 = vsub.f32 %v1224, %v1275
          %v1292 = vsub.f32 %v1225, %v1276
          %v1293 = vsub.f32 %v1226, %v1277
          %v1294 = vsub.f32 %v1227, %v1278
          %v1295 = vsub.f32 %v1228, %v1279
          %v1296 = vsub.f32 %v1229, %v1280
          %v1297 = vsub.f32 %v1230, %v1281
          %v1298 = vmul.f32 %v1282, %v1282
          %v1299 = vmul.f32 %v1283, %v1283
          %v1300 = vmul.f32 %v1284, %v1284
          %v1301 = vmul.f32 %v1285, %v1285
          %v1302 = vmul.f32 %v1286, %v1286
          %v1303 = vmul.f32 %v1287, %v1287
          %v1304 = vmul.f32 %v1288, %v1288
          %v1305 = vmul.f32 %v1289, %v1289
          %v1306 = vmul.f32 %v1290, %v1290
          %v1307 = vmul.f32 %v1291, %v1291
          %v1308 = vmul.f32 %v1292, %v1292
          %v1309 = vmul.f32 %v1293, %v1293
          %v1310 = vmul.f32 %v1294, %v1294
          %v1311 = vmul.f32 %v1295, %v1295
          %v1312 = vmul.f32 %v1296, %v1296
          %v1313 = vmul.f32 %v1297, %v1297
          %1314 = vadd.xlane.f32.xlu0 %v1298
          %v1315 = vpop.xlane.xlu0 %1314
          %1316 = vadd.xlane.f32.xlu0 %v1299
          %v1317 = vpop.xlane.xlu0 %1316
          %1318 = vadd.xlane.f32.xlu0 %v1300
          %v1319 = vpop.xlane.xlu0 %1318
          %1320 = vadd.xlane.f32.xlu0 %v1301
          %v1321 = vpop.xlane.xlu0 %1320
          %1322 = vadd.xlane.f32.xlu0 %v1302
          %v1323 = vpop.xlane.xlu0 %1322
          %1324 = vadd.xlane.f32.xlu0 %v1303
          %v1325 = vpop.xlane.xlu0 %1324
          %1326 = vadd.xlane.f32.xlu0 %v1304
          %v1327 = vpop.xlane.xlu0 %1326
          %1328 = vadd.xlane.f32.xlu0 %v1305
          %v1329 = vpop.xlane.xlu0 %1328
          %1330 = vadd.xlane.f32.xlu0 %v1306
          %v1331 = vpop.xlane.xlu0 %1330
          %1332 = vadd.xlane.f32.xlu0 %v1307
          %v1333 = vpop.xlane.xlu0 %1332
          %1334 = vadd.xlane.f32.xlu0 %v1308
          %v1335 = vpop.xlane.xlu0 %1334
          %1336 = vadd.xlane.f32.xlu0 %v1309
          %v1337 = vpop.xlane.xlu0 %1336
          %1338 = vadd.xlane.f32.xlu0 %v1310
          %v1339 = vpop.xlane.xlu0 %1338
          %1340 = vadd.xlane.f32.xlu0 %v1311
          %v1341 = vpop.xlane.xlu0 %1340
          %1342 = vadd.xlane.f32.xlu0 %v1312
          %v1343 = vpop.xlane.xlu0 %1342
          %1344 = vadd.xlane.f32.xlu0 %v1313
          %v1345 = vpop.xlane.xlu0 %1344
          %v1346 = vmul.f32 %v1315, %v1265
          %v1347 = vmul.f32 %v1317, %v1265
          %v1348 = vmul.f32 %v1319, %v1265
          %v1349 = vmul.f32 %v1321, %v1265
          %v1350 = vmul.f32 %v1323, %v1265
          %v1351 = vmul.f32 %v1325, %v1265
          %v1352 = vmul.f32 %v1327, %v1265
          %v1353 = vmul.f32 %v1329, %v1265
          %v1354 = vmul.f32 %v1331, %v1265
          %v1355 = vmul.f32 %v1333, %v1265
          %v1356 = vmul.f32 %v1335, %v1265
          %v1357 = vmul.f32 %v1337, %v1265
          %v1358 = vmul.f32 %v1339, %v1265
          %v1359 = vmul.f32 %v1341, %v1265
          %v1360 = vmul.f32 %v1343, %v1265
          %v1361 = vmul.f32 %v1345, %v1265
          %v1362 = vadd.f32 %v1346, 1e-12
          %v1363 = vadd.f32 %v1347, 1e-12
          %v1364 = vadd.f32 %v1348, 1e-12
          %v1365 = vadd.f32 %v1349, 1e-12
          %v1366 = vadd.f32 %v1350, 1e-12
          %v1367 = vadd.f32 %v1351, 1e-12
          %v1368 = vadd.f32 %v1352, 1e-12
          %v1369 = vadd.f32 %v1353, 1e-12
          %v1370 = vadd.f32 %v1354, 1e-12
          %v1371 = vadd.f32 %v1355, 1e-12
          %v1372 = vadd.f32 %v1356, 1e-12
          %v1373 = vadd.f32 %v1357, 1e-12
          %v1374 = vadd.f32 %v1358, 1e-12
          %v1375 = vadd.f32 %v1359, 1e-12
          %v1376 = vadd.f32 %v1360, 1e-12
          %v1377 = vadd.f32 %v1361, 1e-12
          %v1378 = vrsqrt.pop %v1362
          %v1379 = vrsqrt.pop %v1363
          %v1380 = vrsqrt.pop %v1364
          %v1381 = vrsqrt.pop %v1365
          %v1382 = vrsqrt.pop %v1366
          %v1383 = vrsqrt.pop %v1367
          %v1384 = vrsqrt.pop %v1368
          %v1385 = vrsqrt.pop %v1369
          %v1386 = vrsqrt.pop %v1370
          %v1387 = vrsqrt.pop %v1371
          %v1388 = vrsqrt.pop %v1372
          %v1389 = vrsqrt.pop %v1373
          %v1390 = vrsqrt.pop %v1374
          %v1391 = vrsqrt.pop %v1375
          %v1392 = vrsqrt.pop %v1376
          %v1393 = vrsqrt.pop %v1377
          %v1394 = vmul.f32 %v1282, %v1378
          %v1395 = vmul.f32 %v1283, %v1379
          %v1396 = vmul.f32 %v1284, %v1380
          %v1397 = vmul.f32 %v1285, %v1381
          %v1398 = vmul.f32 %v1286, %v1382
          %v1399 = vmul.f32 %v1287, %v1383
          %v1400 = vmul.f32 %v1288, %v1384
          %v1401 = vmul.f32 %v1289, %v1385
          %v1402 = vmul.f32 %v1290, %v1386
          %v1403 = vmul.f32 %v1291, %v1387
          %v1404 = vmul.f32 %v1292, %v1388
          %v1405 = vmul.f32 %v1293, %v1389
          %v1406 = vmul.f32 %v1294, %v1390
          %v1407 = vmul.f32 %v1295, %v1391
          %v1408 = vmul.f32 %v1296, %v1392
          %v1409 = vmul.f32 %v1297, %v1393
          %v1411 = vlaneseq
          %v1412 = vshrl.u32 %v1411, 7
          %v1413 = vsub.s32 0, %v1412
          %v1414 = vrot.slane %v1231, %v1413
          %v1416 = vmul.f32 %v1394, %v1414
          %v1417 = vmul.f32 %v1395, %v1414
          %v1418 = vmul.f32 %v1396, %v1414
          %v1419 = vmul.f32 %v1397, %v1414
          %v1420 = vmul.f32 %v1398, %v1414
          %v1421 = vmul.f32 %v1399, %v1414
          %v1422 = vmul.f32 %v1400, %v1414
          %v1423 = vmul.f32 %v1401, %v1414
          %v1424 = vmul.f32 %v1402, %v1414
          %v1425 = vmul.f32 %v1403, %v1414
          %v1426 = vmul.f32 %v1404, %v1414
          %v1427 = vmul.f32 %v1405, %v1414
          %v1428 = vmul.f32 %v1406, %v1414
          %v1429 = vmul.f32 %v1407, %v1414
          %v1430 = vmul.f32 %v1408, %v1414
          %v1431 = vmul.f32 %v1409, %v1414
          %v1433 = vlaneseq
          %v1434 = vshrl.u32 %v1433, 7
          %v1435 = vsub.s32 0, %v1434
          %v1436 = vrot.slane %v1232, %v1435
          %v1438 = vadd.f32 %v1416, %v1436
          %v1439 = vadd.f32 %v1417, %v1436
          %v1440 = vadd.f32 %v1418, %v1436
          %v1441 = vadd.f32 %v1419, %v1436
          %v1442 = vadd.f32 %v1420, %v1436
          %v1443 = vadd.f32 %v1421, %v1436
          %v1444 = vadd.f32 %v1422, %v1436
          %v1445 = vadd.f32 %v1423, %v1436
          %v1446 = vadd.f32 %v1424, %v1436
          %v1447 = vadd.f32 %v1425, %v1436
          %v1448 = vadd.f32 %v1426, %v1436
          %v1449 = vadd.f32 %v1427, %v1436
          %v1450 = vadd.f32 %v1428, %v1436
          %v1451 = vadd.f32 %v1429, %v1436
          %v1452 = vadd.f32 %v1430, %v1436
          %v1453 = vadd.f32 %v1431, %v1436
          %v1454 = vpack.c.bf16 %v1439, %v1438
          %v1455 = vpack.c.bf16 %v1441, %v1440
          %v1456 = vpack.c.bf16 %v1443, %v1442
          %v1457 = vpack.c.bf16 %v1445, %v1444
          %v1458 = vpack.c.bf16 %v1447, %v1446
          %v1459 = vpack.c.bf16 %v1449, %v1448
          %v1460 = vpack.c.bf16 %v1451, %v1450
          %v1461 = vpack.c.bf16 %v1453, %v1452
          %v1462 = vld [vmem:[#allocation12] sm:$0xf]
          %v1463 = vld [vmem:[#allocation12 + $0x4] sm:$0xf]
          %v1464 = vld [vmem:[#allocation12 + $0x8] sm:$0xf]
          %v1465 = vld [vmem:[#allocation12 + $0xc] sm:$0xf]
          %v1466 = vld [vmem:[#allocation12 + $0x10] sm:$0xf]
          %v1467 = vld [vmem:[#allocation12 + $0x14] sm:$0xf]
          %v1468 = vld [vmem:[#allocation12 + $0x18] sm:$0xf]
          %v1469 = vld [vmem:[#allocation12 + $0x1c] sm:$0xf]
          %v1470 = vld [vmem:[#allocation12 + $0x20] sm:$0xf]
          %v1471 = vld [vmem:[#allocation12 + $0x24] sm:$0xf]
          %v1472 = vld [vmem:[#allocation12 + $0x28] sm:$0xf]
          %v1473 = vld [vmem:[#allocation12 + $0x2c] sm:$0xf]
          %v1474 = vld [vmem:[#allocation12 + $0x30] sm:$0xf]
          %v1475 = vld [vmem:[#allocation12 + $0x34] sm:$0xf]
          %v1476 = vld [vmem:[#allocation12 + $0x38] sm:$0xf]
          %v1477 = vld [vmem:[#allocation12 + $0x3c] sm:$0xf]
          %v1478 = vld [vmem:[#allocation14] sm:$0x1]
          %v1480 = vlaneseq
          %v1481 = vshrl.u32 %v1480, 7
          %v1482 = vsub.s32 0, %v1481
          %v1483 = vrot.slane %v1478, %v1482
          %v1501 = vunpack.c.l.b16 %v1462
          %v1502 = vunpack.c.l.b16 %v1463
          %v1503 = vunpack.c.l.b16 %v1464
          %v1504 = vunpack.c.l.b16 %v1465
          %v1505 = vunpack.c.l.b16 %v1466
          %v1506 = vunpack.c.l.b16 %v1467
          %v1507 = vunpack.c.l.b16 %v1468
          %v1508 = vunpack.c.l.b16 %v1469
          %v1509 = vunpack.c.l.b16 %v1470
          %v1510 = vunpack.c.l.b16 %v1471
          %v1511 = vunpack.c.l.b16 %v1472
          %v1512 = vunpack.c.l.b16 %v1473
          %v1513 = vunpack.c.l.b16 %v1474
          %v1514 = vunpack.c.l.b16 %v1475
          %v1515 = vunpack.c.l.b16 %v1476
          %v1516 = vunpack.c.l.b16 %v1477
          %v1517 = vpack.c.b16 %v1502, %v1501
          %v1518 = vpack.c.b16 %v1504, %v1503
          %v1519 = vpack.c.b16 %v1506, %v1505
          %v1520 = vpack.c.b16 %v1508, %v1507
          %v1521 = vpack.c.b16 %v1510, %v1509
          %v1522 = vpack.c.b16 %v1512, %v1511
          %v1523 = vpack.c.b16 %v1514, %v1513
          %v1524 = vpack.c.b16 %v1516, %v1515
          %1533 = vmatprep.subr.bf16.mxu0 0
          %1534 = vmatpush1.bf16.msra.mxu0 %v1517
          %1535 = vmatprep.subr.bf16.mxu0 0
          %1536 = vmatpush1.bf16.msra.mxu0 %v1518
          %1537 = vmatprep.subr.bf16.mxu0 0
          %1538 = vmatpush1.bf16.msra.mxu0 %v1519
          %1539 = vmatprep.subr.bf16.mxu0 0
          %1540 = vmatpush1.bf16.msra.mxu0 %v1520
          %1541 = vmatprep.subr.bf16.mxu0 0
          %1542 = vmatpush1.bf16.msra.mxu0 %v1521
          %1543 = vmatprep.subr.bf16.mxu0 0
          %1544 = vmatpush1.bf16.msra.mxu0 %v1522
          %1545 = vmatprep.subr.bf16.mxu0 0
          %1546 = vmatpush1.bf16.msra.mxu0 %v1523
          %1547 = vmatprep.subr.bf16.mxu0 0
          %1548 = vmatpush1.bf16.msra.mxu0 %v1524
          %1549 = vmatprep.subr.bf16.mxu0 0
          %1550 = vmatpush1.bf16.msra.mxu0 0
          %1551 = vmatprep.subr.bf16.mxu0 0
          %1552 = vmatpush1.bf16.msra.mxu0 0
          %1553 = vmatprep.subr.bf16.mxu0 0
          %1554 = vmatpush1.bf16.msra.mxu0 0
          %1555 = vmatprep.subr.bf16.mxu0 0
          %1556 = vmatpush1.bf16.msra.mxu0 0
          %1557 = vmatprep.subr.bf16.mxu0 0
          %1558 = vmatpush1.bf16.msra.mxu0 0
          %1559 = vmatprep.subr.bf16.mxu0 0
          %1560 = vmatpush1.bf16.msra.mxu0 0
          %1561 = vmatprep.subr.bf16.mxu0 0
          %1562 = vmatpush1.bf16.msra.mxu0 0
          %1563 = vmatprep.subr.bf16.mxu0 0
          %1564 = vmatpush1.bf16.msra.mxu0 0
          %1565 = vmatprep.mubr.bf16.mxu0 0
          %1566 = vmatmul.mubr.bf16.gmra.mrb[0].mxu0 %v1454
          %v1567 = vpop.f32.mrb[0].mxu0
          %v1568 = vadd.f32 %v1483, %v1567
          %v1569 = vpop.f32.mrb[0].mxu0
          %v1570 = vpop.f32.mrb[0].mxu0
          %v1571 = vadd.f32 %v1483, %v1570
          %v1572 = vpop.f32.mrb[0].mxu0
          %1573 = vmatprep.mubr.bf16.mxu0 0
          %1574 = vmatmul.mubr.bf16.gmra.mrb[0].mxu0 %v1455
          %v1575 = vpop.f32.mrb[0].mxu0
          %v1576 = vadd.f32 %v1483, %v1575
          %v1577 = vpop.f32.mrb[0].mxu0
          %v1578 = vpop.f32.mrb[0].mxu0
          %v1579 = vadd.f32 %v1483, %v1578
          %v1580 = vpop.f32.mrb[0].mxu0
          %1581 = vmatprep.mubr.bf16.mxu0 0
          %1582 = vmatmul.mubr.bf16.gmra.mrb[0].mxu0 %v1456
          %v1583 = vpop.f32.mrb[0].mxu0
          %v1584 = vadd.f32 %v1483, %v1583
          %v1585 = vpop.f32.mrb[0].mxu0
          %v1586 = vpop.f32.mrb[0].mxu0
          %v1587 = vadd.f32 %v1483, %v1586
          %v1588 = vpop.f32.mrb[0].mxu0
          %1589 = vmatprep.mubr.bf16.mxu0 0
          %1590 = vmatmul.mubr.bf16.gmra.mrb[0].mxu0 %v1457
          %v1591 = vpop.f32.mrb[0].mxu0
          %v1592 = vadd.f32 %v1483, %v1591
          %v1593 = vpop.f32.mrb[0].mxu0
          %v1594 = vpop.f32.mrb[0].mxu0
          %v1595 = vadd.f32 %v1483, %v1594
          %v1596 = vpop.f32.mrb[0].mxu0
          %1597 = vmatprep.mubr.bf16.mxu0 0
          %1598 = vmatmul.mubr.bf16.gmra.mrb[0].mxu0 %v1458
          %v1599 = vpop.f32.mrb[0].mxu0
          %v1600 = vadd.f32 %v1483, %v1599
          %v1601 = vpop.f32.mrb[0].mxu0
          %v1602 = vpop.f32.mrb[0].mxu0
          %v1603 = vadd.f32 %v1483, %v1602
          %v1604 = vpop.f32.mrb[0].mxu0
          %1605 = vmatprep.mubr.bf16.mxu0 0
          %1606 = vmatmul.mubr.bf16.gmra.mrb[0].mxu0 %v1459
          %v1607 = vpop.f32.mrb[0].mxu0
          %v1608 = vadd.f32 %v1483, %v1607
          %v1609 = vpop.f32.mrb[0].mxu0
          %v1610 = vpop.f32.mrb[0].mxu0
          %v1611 = vadd.f32 %v1483, %v1610
          %v1612 = vpop.f32.mrb[0].mxu0
          %1613 = vmatprep.mubr.bf16.mxu0 0
          %1614 = vmatmul.mubr.bf16.gmra.mrb[0].mxu0 %v1460
          %v1615 = vpop.f32.mrb[0].mxu0
          %v1616 = vadd.f32 %v1483, %v1615
          %v1617 = vpop.f32.mrb[0].mxu0
          %v1618 = vpop.f32.mrb[0].mxu0
          %v1619 = vadd.f32 %v1483, %v1618
          %v1620 = vpop.f32.mrb[0].mxu0
          %1621 = vmatprep.mubr.bf16.mxu0 0
          %1622 = vmatmul.mubr.bf16.gmra.mrb[0].mxu0 %v1461
          %v1623 = vpop.f32.mrb[0].mxu0
          %v1624 = vadd.f32 %v1483, %v1623
          %v1625 = vpop.f32.mrb[0].mxu0
          %v1626 = vpop.f32.mrb[0].mxu0
          %v1627 = vadd.f32 %v1483, %v1626
          %v1628 = vpop.f32.mrb[0].mxu0
          %1629 = vdwg.mxu0
          %1630 = vst [vmem:[#allocation2] sm:$0xff] %v1568
          %1631 = vst [vmem:[#allocation2 + $0x8] sm:$0xff] %v1571
          %1632 = vst [vmem:[#allocation2 + $0x10] sm:$0xff] %v1576
          %1633 = vst [vmem:[#allocation2 + $0x18] sm:$0xff] %v1579
          %1634 = vst [vmem:[#allocation2 + $0x20] sm:$0xff] %v1584
          %1635 = vst [vmem:[#allocation2 + $0x28] sm:$0xff] %v1587
          %1636 = vst [vmem:[#allocation2 + $0x30] sm:$0xff] %v1592
          %1637 = vst [vmem:[#allocation2 + $0x38] sm:$0xff] %v1595
          %1638 = vst [vmem:[#allocation2 + $0x40] sm:$0xff] %v1600
          %1639 = vst [vmem:[#allocation2 + $0x48] sm:$0xff] %v1603
          %1640 = vst [vmem:[#allocation2 + $0x50] sm:$0xff] %v1608
          %1641 = vst [vmem:[#allocation2 + $0x58] sm:$0xff] %v1611
          %1642 = vst [vmem:[#allocation2 + $0x60] sm:$0xff] %v1616
          %1643 = vst [vmem:[#allocation2 + $0x68] sm:$0xff] %v1619
          %1644 = vst [vmem:[#allocation2 + $0x70] sm:$0xff] %v1624
          %1645 = vst [vmem:[#allocation2 + $0x78] sm:$0xff] %v1627
        $region168: #{tpu_custom_call.1} parent=103 // pred_fallthru
          _
        // Predicated region
        $region169: #{tpu_custom_call.1} parent=103 // pred_check
          %p1646 = pneg %p1126
        $region170: #{tpu_custom_call.1} parent=103 // pred_check_branch
          %1648 = sbr.rel (%p1646) target = $region172
        $region171: #{tpu_custom_call.1} parent=103 // pred_region
          %v1649 = vld [vmem:[#allocation2] sm:$0xff]
          %v1650 = vld [vmem:[#allocation2 + $0x8] sm:$0xff]
          %v1651 = vld [vmem:[#allocation2 + $0x10] sm:$0xff]
          %v1652 = vld [vmem:[#allocation2 + $0x18] sm:$0xff]
          %v1653 = vld [vmem:[#allocation2 + $0x20] sm:$0xff]
          %v1654 = vld [vmem:[#allocation2 + $0x28] sm:$0xff]
          %v1655 = vld [vmem:[#allocation2 + $0x30] sm:$0xff]
          %v1656 = vld [vmem:[#allocation2 + $0x38] sm:$0xff]
          %v1657 = vld [vmem:[#allocation2 + $0x40] sm:$0xff]
          %v1658 = vld [vmem:[#allocation2 + $0x48] sm:$0xff]
          %v1659 = vld [vmem:[#allocation2 + $0x50] sm:$0xff]
          %v1660 = vld [vmem:[#allocation2 + $0x58] sm:$0xff]
          %v1661 = vld [vmem:[#allocation2 + $0x60] sm:$0xff]
          %v1662 = vld [vmem:[#allocation2 + $0x68] sm:$0xff]
          %v1663 = vld [vmem:[#allocation2 + $0x70] sm:$0xff]
          %v1664 = vld [vmem:[#allocation2 + $0x78] sm:$0xff]
          %v1665 = vpack.c.bf16 %v1650, %v1649
          %v1666 = vld [vmem:[#allocation15] sm:$0xf]
          %v1667 = vld [vmem:[#allocation15 + $0x4] sm:$0xf]
          %v1670 = vunpack.c.l.b16 %v1666
          %v1671 = vunpack.c.l.b16 %v1667
          %v1672 = vpack.c.b16 %v1671, %v1670
          %vm1673 = vcmask 130048
          %v1675 = vsel %vm1673, %v1672, 0
          %1677 = vmatprep.subr.bf16.mxu0 0
          %1678 = vmatpush1.bf16.msra.mxu0 %v1665
          %1679 = vmatprep.subr.bf16.mxu0 0
          %1680 = vmatpush1.bf16.msra.mxu0 0
          %1681 = vmatprep.subr.bf16.mxu0 0
          %1682 = vmatpush1.bf16.msra.mxu0 0
          %1683 = vmatprep.subr.bf16.mxu0 0
          %1684 = vmatpush1.bf16.msra.mxu0 0
          %1685 = vmatprep.subr.bf16.mxu0 0
          %1686 = vmatpush1.bf16.msra.mxu0 0
          %1687 = vmatprep.subr.bf16.mxu0 0
          %1688 = vmatpush1.bf16.msra.mxu0 0
          %1689 = vmatprep.subr.bf16.mxu0 0
          %1690 = vmatpush1.bf16.msra.mxu0 0
          %1691 = vmatprep.subr.bf16.mxu0 0
          %1692 = vmatpush1.bf16.msra.mxu0 0
          %1693 = vmatprep.subr.bf16.mxu0 0
          %1694 = vmatpush1.bf16.msra.mxu0 0
          %1695 = vmatprep.subr.bf16.mxu0 0
          %1696 = vmatpush1.bf16.msra.mxu0 0
          %1697 = vmatprep.subr.bf16.mxu0 0
          %1698 = vmatpush1.bf16.msra.mxu0 0
          %1699 = vmatprep.subr.bf16.mxu0 0
          %1700 = vmatpush1.bf16.msra.mxu0 0
          %1701 = vmatprep.subr.bf16.mxu0 0
          %1702 = vmatpush1.bf16.msra.mxu0 0
          %1703 = vmatprep.subr.bf16.mxu0 0
          %1704 = vmatpush1.bf16.msra.mxu0 0
          %1705 = vmatprep.subr.bf16.mxu0 0
          %1706 = vmatpush1.bf16.msra.mxu0 0
          %1707 = vmatprep.subr.bf16.mxu0 0
          %1708 = vmatpush1.bf16.msra.mxu0 0
          %1709 = vmatprep.mubr.bf16.mxu0 0
          %1710 = vmatmul.mubr.bf16.gmra.mrb[0].mxu0 %v1675
          %v1711 = vpop.f32.mrb[0].mxu0
          %v1712 = vadd.f32 0.0, %v1711
          %v1713 = vpop.f32.mrb[0].mxu0
          %v1714 = vpop.f32.mrb[0].mxu0
          %v1715 = vadd.f32 0.0, %v1714
          %v1716 = vpop.f32.mrb[0].mxu0
          %1717 = vdwg.mxu0
          %v1718 = vld [vmem:[#allocation17] sm:$0xf]
          %v1719 = vld [vmem:[#allocation17 + $0x4] sm:$0xf]
          %v1722 = vunpack.c.l.b16 %v1718
          %v1723 = vunpack.c.l.b16 %v1719
          %v1724 = vpack.c.b16 %v1723, %v1722
          %v1726 = vsel %vm1673, %v1724, 0
          %1728 = vmatprep.subr.bf16.mxu0 0
          %1729 = vmatpush1.bf16.msra.mxu0 %v1665
          %1730 = vmatprep.subr.bf16.mxu0 0
          %1731 = vmatpush1.bf16.msra.mxu0 0
          %1732 = vmatprep.subr.bf16.mxu0 0
          %1733 = vmatpush1.bf16.msra.mxu0 0
          %1734 = vmatprep.subr.bf16.mxu0 0
          %1735 = vmatpush1.bf16.msra.mxu0 0
          %1736 = vmatprep.subr.bf16.mxu0 0
          %1737 = vmatpush1.bf16.msra.mxu0 0
          %1738 = vmatprep.subr.bf16.mxu0 0
          %1739 = vmatpush1.bf16.msra.mxu0 0
          %1740 = vmatprep.subr.bf16.mxu0 0
          %1741 = vmatpush1.bf16.msra.mxu0 0
          %1742 = vmatprep.subr.bf16.mxu0 0
          %1743 = vmatpush1.bf16.msra.mxu0 0
          %1744 = vmatprep.subr.bf16.mxu0 0
          %1745 = vmatpush1.bf16.msra.mxu0 0
          %1746 = vmatprep.subr.bf16.mxu0 0
          %1747 = vmatpush1.bf16.msra.mxu0 0
          %1748 = vmatprep.subr.bf16.mxu0 0
          %1749 = vmatpush1.bf16.msra.mxu0 0
          %1750 = vmatprep.subr.bf16.mxu0 0
          %1751 = vmatpush1.bf16.msra.mxu0 0
          %1752 = vmatprep.subr.bf16.mxu0 0
          %1753 = vmatpush1.bf16.msra.mxu0 0
          %1754 = vmatprep.subr.bf16.mxu0 0
          %1755 = vmatpush1.bf16.msra.mxu0 0
          %1756 = vmatprep.subr.bf16.mxu0 0
          %1757 = vmatpush1.bf16.msra.mxu0 0
          %1758 = vmatprep.subr.bf16.mxu0 0
          %1759 = vmatpush1.bf16.msra.mxu0 0
          %1760 = vmatprep.mubr.bf16.mxu0 0
          %1761 = vmatmul.mubr.bf16.gmra.mrb[0].mxu0 %v1726
          %v1762 = vpop.f32.mrb[0].mxu0
          %v1763 = vadd.f32 0.0, %v1762
          %v1764 = vpop.f32.mrb[0].mxu0
          %v1765 = vpop.f32.mrb[0].mxu0
          %v1766 = vadd.f32 0.0, %v1765
          %v1767 = vpop.f32.mrb[0].mxu0
          %1768 = vdwg.mxu0
          %v1769 = vpack.c.bf16 %v1715, %v1712
          %v1770 = vld [vmem:[#allocation18] sm:$0xf]
          %v1771 = vld [vmem:[#allocation18 + $0x4] sm:$0xf]
          %v1772 = vld [vmem:[#allocation18 + $0x8] sm:$0xf]
          %v1773 = vld [vmem:[#allocation18 + $0xc] sm:$0xf]
          %v1774 = vld [vmem:[#allocation18 + $0x10] sm:$0xf]
          %v1775 = vld [vmem:[#allocation18 + $0x14] sm:$0xf]
          %v1776 = vld [vmem:[#allocation18 + $0x18] sm:$0xf]
          %v1777 = vld [vmem:[#allocation18 + $0x1c] sm:$0xf]
          %v1778 = vld [vmem:[#allocation18 + $0x20] sm:$0xf]
          %v1779 = vld [vmem:[#allocation18 + $0x24] sm:$0xf]
          %v1780 = vld [vmem:[#allocation18 + $0x28] sm:$0xf]
          %v1781 = vld [vmem:[#allocation18 + $0x2c] sm:$0xf]
          %v1782 = vld [vmem:[#allocation18 + $0x30] sm:$0xf]
          %v1783 = vld [vmem:[#allocation18 + $0x34] sm:$0xf]
          %v1784 = vld [vmem:[#allocation18 + $0x38] sm:$0xf]
          %v1785 = vld [vmem:[#allocation18 + $0x3c] sm:$0xf]
          %v1802 = vunpack.c.l.b16 %v1770
          %v1803 = vunpack.c.l.b16 %v1771
          %v1804 = vunpack.c.l.b16 %v1772
          %v1805 = vunpack.c.l.b16 %v1773
          %v1806 = vunpack.c.l.b16 %v1774
          %v1807 = vunpack.c.l.b16 %v1775
          %v1808 = vunpack.c.l.b16 %v1776
          %v1809 = vunpack.c.l.b16 %v1777
          %v1810 = vunpack.c.l.b16 %v1778
          %v1811 = vunpack.c.l.b16 %v1779
          %v1812 = vunpack.c.l.b16 %v1780
          %v1813 = vunpack.c.l.b16 %v1781
          %v1814 = vunpack.c.l.b16 %v1782
          %v1815 = vunpack.c.l.b16 %v1783
          %v1816 = vunpack.c.l.b16 %v1784
          %v1817 = vunpack.c.l.b16 %v1785
          %v1818 = vpack.c.b16 %v1803, %v1802
          %v1819 = vpack.c.b16 %v1805, %v1804
          %v1820 = vpack.c.b16 %v1807, %v1806
          %v1821 = vpack.c.b16 %v1809, %v1808
          %v1822 = vpack.c.b16 %v1811, %v1810
          %v1823 = vpack.c.b16 %v1813, %v1812
          %v1824 = vpack.c.b16 %v1815, %v1814
          %v1825 = vpack.c.b16 %v1817, %v1816
          %1834 = vmatprep.subr.bf16.mxu0 0
          %1835 = vmatpush1.bf16.msra.mxu0 %v1818
          %1836 = vmatprep.subr.bf16.mxu0 0
          %1837 = vmatpush1.bf16.msra.mxu0 %v1819
          %1838 = vmatprep.subr.bf16.mxu0 0
          %1839 = vmatpush1.bf16.msra.mxu0 %v1820
          %1840 = vmatprep.subr.bf16.mxu0 0
          %1841 = vmatpush1.bf16.msra.mxu0 %v1821
          %1842 = vmatprep.subr.bf16.mxu0 0
          %1843 = vmatpush1.bf16.msra.mxu0 %v1822
          %1844 = vmatprep.subr.bf16.mxu0 0
          %1845 = vmatpush1.bf16.msra.mxu0 %v1823
          %1846 = vmatprep.subr.bf16.mxu0 0
          %1847 = vmatpush1.bf16.msra.mxu0 %v1824
          %1848 = vmatprep.subr.bf16.mxu0 0
          %1849 = vmatpush1.bf16.msra.mxu0 %v1825
          %1850 = vmatprep.subr.bf16.mxu0 0
          %1851 = vmatpush1.bf16.msra.mxu0 0
          %1852 = vmatprep.subr.bf16.mxu0 0
          %1853 = vmatpush1.bf16.msra.mxu0 0
          %1854 = vmatprep.subr.bf16.mxu0 0
          %1855 = vmatpush1.bf16.msra.mxu0 0
          %1856 = vmatprep.subr.bf16.mxu0 0
          %1857 = vmatpush1.bf16.msra.mxu0 0
          %1858 = vmatprep.subr.bf16.mxu0 0
          %1859 = vmatpush1.bf16.msra.mxu0 0
          %1860 = vmatprep.subr.bf16.mxu0 0
          %1861 = vmatpush1.bf16.msra.mxu0 0
          %1862 = vmatprep.subr.bf16.mxu0 0
          %1863 = vmatpush1.bf16.msra.mxu0 0
          %1864 = vmatprep.subr.bf16.mxu0 0
          %1865 = vmatpush1.bf16.msra.mxu0 0
          %1866 = vmatprep.mubr.bf16.mxu0 0
          %1867 = vmatmul.mubr.bf16.gmra.mrb[0].mxu0 %v1769
          %v1868 = vpop.f32.mrb[0].mxu0
          %v1869 = vadd.f32 0.0, %v1868
          %v1870 = vpop.f32.mrb[0].mxu0
          %v1871 = vpop.f32.mrb[0].mxu0
          %v1872 = vadd.f32 0.0, %v1871
          %v1873 = vpop.f32.mrb[0].mxu0
          %1874 = vdwg.mxu0
          %v1875 = vpack.c.bf16 %v1766, %v1763
          %v1876 = vld [vmem:[#allocation20] sm:$0xf]
          %v1877 = vld [vmem:[#allocation20 + $0x4] sm:$0xf]
          %v1878 = vld [vmem:[#allocation20 + $0x8] sm:$0xf]
          %v1879 = vld [vmem:[#allocation20 + $0xc] sm:$0xf]
          %v1880 = vld [vmem:[#allocation20 + $0x10] sm:$0xf]
          %v1881 = vld [vmem:[#allocation20 + $0x14] sm:$0xf]
          %v1882 = vld [vmem:[#allocation20 + $0x18] sm:$0xf]
          %v1883 = vld [vmem:[#allocation20 + $0x1c] sm:$0xf]
          %v1884 = vld [vmem:[#allocation20 + $0x20] sm:$0xf]
          %v1885 = vld [vmem:[#allocation20 + $0x24] sm:$0xf]
          %v1886 = vld [vmem:[#allocation20 + $0x28] sm:$0xf]
          %v1887 = vld [vmem:[#allocation20 + $0x2c] sm:$0xf]
          %v1888 = vld [vmem:[#allocation20 + $0x30] sm:$0xf]
          %v1889 = vld [vmem:[#allocation20 + $0x34] sm:$0xf]
          %v1890 = vld [vmem:[#allocation20 + $0x38] sm:$0xf]
          %v1891 = vld [vmem:[#allocation20 + $0x3c] sm:$0xf]
          %v1908 = vunpack.c.l.b16 %v1876
          %v1909 = vunpack.c.l.b16 %v1877
          %v1910 = vunpack.c.l.b16 %v1878
          %v1911 = vunpack.c.l.b16 %v1879
          %v1912 = vunpack.c.l.b16 %v1880
          %v1913 = vunpack.c.l.b16 %v1881
          %v1914 = vunpack.c.l.b16 %v1882
          %v1915 = vunpack.c.l.b16 %v1883
          %v1916 = vunpack.c.l.b16 %v1884
          %v1917 = vunpack.c.l.b16 %v1885
          %v1918 = vunpack.c.l.b16 %v1886
          %v1919 = vunpack.c.l.b16 %v1887
          %v1920 = vunpack.c.l.b16 %v1888
          %v1921 = vunpack.c.l.b16 %v1889
          %v1922 = vunpack.c.l.b16 %v1890
          %v1923 = vunpack.c.l.b16 %v1891
          %v1924 = vpack.c.b16 %v1909, %v1908
          %v1925 = vpack.c.b16 %v1911, %v1910
          %v1926 = vpack.c.b16 %v1913, %v1912
          %v1927 = vpack.c.b16 %v1915, %v1914
          %v1928 = vpack.c.b16 %v1917, %v1916
          %v1929 = vpack.c.b16 %v1919, %v1918
          %v1930 = vpack.c.b16 %v1921, %v1920
          %v1931 = vpack.c.b16 %v1923, %v1922
          %1940 = vmatprep.subr.bf16.mxu0 0
          %1941 = vmatpush1.bf16.msra.mxu0 %v1924
          %1942 = vmatprep.subr.bf16.mxu0 0
          %1943 = vmatpush1.bf16.msra.mxu0 %v1925
          %1944 = vmatprep.subr.bf16.mxu0 0
          %1945 = vmatpush1.bf16.msra.mxu0 %v1926
          %1946 = vmatprep.subr.bf16.mxu0 0
          %1947 = vmatpush1.bf16.msra.mxu0 %v1927
          %1948 = vmatprep.subr.bf16.mxu0 0
          %1949 = vmatpush1.bf16.msra.mxu0 %v1928
          %1950 = vmatprep.subr.bf16.mxu0 0
          %1951 = vmatpush1.bf16.msra.mxu0 %v1929
          %1952 = vmatprep.subr.bf16.mxu0 0
          %1953 = vmatpush1.bf16.msra.mxu0 %v1930
          %1954 = vmatprep.subr.bf16.mxu0 0
          %1955 = vmatpush1.bf16.msra.mxu0 %v1931
          %1956 = vmatprep.subr.bf16.mxu0 0
          %1957 = vmatpush1.bf16.msra.mxu0 0
          %1958 = vmatprep.subr.bf16.mxu0 0
          %1959 = vmatpush1.bf16.msra.mxu0 0
          %1960 = vmatprep.subr.bf16.mxu0 0
          %1961 = vmatpush1.bf16.msra.mxu0 0
          %1962 = vmatprep.subr.bf16.mxu0 0
          %1963 = vmatpush1.bf16.msra.mxu0 0
          %1964 = vmatprep.subr.bf16.mxu0 0
          %1965 = vmatpush1.bf16.msra.mxu0 0
          %1966 = vmatprep.subr.bf16.mxu0 0
          %1967 = vmatpush1.bf16.msra.mxu0 0
          %1968 = vmatprep.subr.bf16.mxu0 0
          %1969 = vmatpush1.bf16.msra.mxu0 0
          %1970 = vmatprep.subr.bf16.mxu0 0
          %1971 = vmatpush1.bf16.msra.mxu0 0
          %1972 = vmatprep.mubr.bf16.mxu0 0
          %1973 = vmatmul.mubr.bf16.gmra.mrb[0].mxu0 %v1875
          %v1974 = vpop.f32.mrb[0].mxu0
          %v1975 = vadd.f32 0.0, %v1974
          %v1976 = vpop.f32.mrb[0].mxu0
          %v1977 = vpop.f32.mrb[0].mxu0
          %v1978 = vadd.f32 0.0, %v1977
          %v1979 = vpop.f32.mrb[0].mxu0
          %1980 = vdwg.mxu0
          %v1981 = vsub.f32 %v1869, %v1975
          %v1982 = vsub.f32 %v1872, %v1978
          %v1983 = vadd.f32 %v1981, %v1649
          %v1984 = vadd.f32 %v1982, %v1650
          %v1985 = vld [vmem:[%s1112] sm:$0x1]
          %v1986 = vld [vmem:[%s1115] sm:$0x1]
          %1987 = vadd.xlane.f32.xlu0 %v1983
          %v1988 = vpop.xlane.xlu0 %1987
          %1989 = vadd.xlane.f32.xlu0 %v1984
          %v1990 = vpop.xlane.xlu0 %1989
          %v1991 = vrcp.pop 128.0
          %v1992 = vmul.f32 %v1988, %v1991
          %v1993 = vmul.f32 %v1990, %v1991
          %v1994 = vsub.f32 %v1983, %v1992
          %v1995 = vsub.f32 %v1984, %v1993
          %v1996 = vmul.f32 %v1994, %v1994
          %v1997 = vmul.f32 %v1995, %v1995
          %1998 = vadd.xlane.f32.xlu0 %v1996
          %v1999 = vpop.xlane.xlu0 %1998
          %2000 = vadd.xlane.f32.xlu0 %v1997
          %v2001 = vpop.xlane.xlu0 %2000
          %v2002 = vmul.f32 %v1999, %v1991
          %v2003 = vmul.f32 %v2001, %v1991
          %v2004 = vadd.f32 %v2002, 1e-12
          %v2005 = vadd.f32 %v2003, 1e-12
          %v2006 = vrsqrt.pop %v2004
          %v2007 = vrsqrt.pop %v2005
          %v2008 = vmul.f32 %v1994, %v2006
          %v2009 = vmul.f32 %v1995, %v2007
          %v2011 = vlaneseq
          %v2012 = vshrl.u32 %v2011, 7
          %v2013 = vsub.s32 0, %v2012
          %v2014 = vrot.slane %v1985, %v2013
          %v2016 = vmul.f32 %v2008, %v2014
          %v2017 = vmul.f32 %v2009, %v2014
          %v2019 = vlaneseq
          %v2020 = vshrl.u32 %v2019, 7
          %v2021 = vsub.s32 0, %v2020
          %v2022 = vrot.slane %v1986, %v2021
          %v2024 = vadd.f32 %v2016, %v2022
          %v2025 = vadd.f32 %v2017, %v2022
          %2026 = vst [vmem:[#allocation3] sm:$0xff] %v2024
          %2027 = vst [vmem:[#allocation3 + $0x8] sm:$0xff] %v2025
          %v2028 = vpack.c.bf16 %v1652, %v1651
          %v2029 = vld [vmem:[#allocation15] sm:$0xf]
          %v2030 = vld [vmem:[#allocation15 + $0x4] sm:$0xf]
          %v2033 = vunpack.c.l.b16 %v2029
          %v2034 = vunpack.c.l.b16 %v2030
          %v2035 = vpack.c.b16 %v2034, %v2033
          %v2037 = vsel %vm1673, %v2035, 0
          %2039 = vmatprep.subr.bf16.mxu0 0
          %2040 = vmatpush1.bf16.msra.mxu0 %v2028
          %2041 = vmatprep.subr.bf16.mxu0 0
          %2042 = vmatpush1.bf16.msra.mxu0 0
          %2043 = vmatprep.subr.bf16.mxu0 0
          %2044 = vmatpush1.bf16.msra.mxu0 0
          %2045 = vmatprep.subr.bf16.mxu0 0
          %2046 = vmatpush1.bf16.msra.mxu0 0
          %2047 = vmatprep.subr.bf16.mxu0 0
          %2048 = vmatpush1.bf16.msra.mxu0 0
          %2049 = vmatprep.subr.bf16.mxu0 0
          %2050 = vmatpush1.bf16.msra.mxu0 0
          %2051 = vmatprep.subr.bf16.mxu0 0
          %2052 = vmatpush1.bf16.msra.mxu0 0
          %2053 = vmatprep.subr.bf16.mxu0 0
          %2054 = vmatpush1.bf16.msra.mxu0 0
          %2055 = vmatprep.subr.bf16.mxu0 0
          %2056 = vmatpush1.bf16.msra.mxu0 0
          %2057 = vmatprep.subr.bf16.mxu0 0
          %2058 = vmatpush1.bf16.msra.mxu0 0
          %2059 = vmatprep.subr.bf16.mxu0 0
          %2060 = vmatpush1.bf16.msra.mxu0 0
          %2061 = vmatprep.subr.bf16.mxu0 0
          %2062 = vmatpush1.bf16.msra.mxu0 0
          %2063 = vmatprep.subr.bf16.mxu0 0
          %2064 = vmatpush1.bf16.msra.mxu0 0
          %2065 = vmatprep.subr.bf16.mxu0 0
          %2066 = vmatpush1.bf16.msra.mxu0 0
          %2067 = vmatprep.subr.bf16.mxu0 0
          %2068 = vmatpush1.bf16.msra.mxu0 0
          %2069 = vmatprep.subr.bf16.mxu0 0
          %2070 = vmatpush1.bf16.msra.mxu0 0
          %2071 = vmatprep.mubr.bf16.mxu0 0
          %2072 = vmatmul.mubr.bf16.gmra.mrb[0].mxu0 %v2037
          %v2073 = vpop.f32.mrb[0].mxu0
          %v2074 = vadd.f32 0.0, %v2073
          %v2075 = vpop.f32.mrb[0].mxu0
          %v2076 = vpop.f32.mrb[0].mxu0
          %v2077 = vadd.f32 0.0, %v2076
          %v2078 = vpop.f32.mrb[0].mxu0
          %2079 = vdwg.mxu0
          %v2080 = vld [vmem:[#allocation17] sm:$0xf]
          %v2081 = vld [vmem:[#allocation17 + $0x4] sm:$0xf]
          %v2084 = vunpack.c.l.b16 %v2080
          %v2085 = vunpack.c.l.b16 %v2081
          %v2086 = vpack.c.b16 %v2085, %v2084
          %v2088 = vsel %vm1673, %v2086, 0
          %2090 = vmatprep.subr.bf16.mxu0 0
          %2091 = vmatpush1.bf16.msra.mxu0 %v2028
          %2092 = vmatprep.subr.bf16.mxu0 0
          %2093 = vmatpush1.bf16.msra.mxu0 0
          %2094 = vmatprep.subr.bf16.mxu0 0
          %2095 = vmatpush1.bf16.msra.mxu0 0
          %2096 = vmatprep.subr.bf16.mxu0 0
          %2097 = vmatpush1.bf16.msra.mxu0 0
          %2098 = vmatprep.subr.bf16.mxu0 0
          %2099 = vmatpush1.bf16.msra.mxu0 0
          %2100 = vmatprep.subr.bf16.mxu0 0
          %2101 = vmatpush1.bf16.msra.mxu0 0
          %2102 = vmatprep.subr.bf16.mxu0 0
          %2103 = vmatpush1.bf16.msra.mxu0 0
          %2104 = vmatprep.subr.bf16.mxu0 0
          %2105 = vmatpush1.bf16.msra.mxu0 0
          %2106 = vmatprep.subr.bf16.mxu0 0
          %2107 = vmatpush1.bf16.msra.mxu0 0
          %2108 = vmatprep.subr.bf16.mxu0 0
          %2109 = vmatpush1.bf16.msra.mxu0 0
          %2110 = vmatprep.subr.bf16.mxu0 0
          %2111 = vmatpush1.bf16.msra.mxu0 0
          %2112 = vmatprep.subr.bf16.mxu0 0
          %2113 = vmatpush1.bf16.msra.mxu0 0
          %2114 = vmatprep.subr.bf16.mxu0 0
          %2115 = vmatpush1.bf16.msra.mxu0 0
          %2116 = vmatprep.subr.bf16.mxu0 0
          %2117 = vmatpush1.bf16.msra.mxu0 0
          %2118 = vmatprep.subr.bf16.mxu0 0
          %2119 = vmatpush1.bf16.msra.mxu0 0
          %2120 = vmatprep.subr.bf16.mxu0 0
          %2121 = vmatpush1.bf16.msra.mxu0 0
          %2122 = vmatprep.mubr.bf16.mxu0 0
          %2123 = vmatmul.mubr.bf16.gmra.mrb[0].mxu0 %v2088
          %v2124 = vpop.f32.mrb[0].mxu0
          %v2125 = vadd.f32 0.0, %v2124
          %v2126 = vpop.f32.mrb[0].mxu0
          %v2127 = vpop.f32.mrb[0].mxu0
          %v2128 = vadd.f32 0.0, %v2127
          %v2129 = vpop.f32.mrb[0].mxu0
          %2130 = vdwg.mxu0
          %v2131 = vpack.c.bf16 %v2077, %v2074
          %v2132 = vld [vmem:[#allocation18] sm:$0xf]
          %v2133 = vld [vmem:[#allocation18 + $0x4] sm:$0xf]
          %v2134 = vld [vmem:[#allocation18 + $0x8] sm:$0xf]
          %v2135 = vld [vmem:[#allocation18 + $0xc] sm:$0xf]
          %v2136 = vld [vmem:[#allocation18 + $0x10] sm:$0xf]
          %v2137 = vld [vmem:[#allocation18 + $0x14] sm:$0xf]
          %v2138 = vld [vmem:[#allocation18 + $0x18] sm:$0xf]
          %v2139 = vld [vmem:[#allocation18 + $0x1c] sm:$0xf]
          %v2140 = vld [vmem:[#allocation18 + $0x20] sm:$0xf]
          %v2141 = vld [vmem:[#allocation18 + $0x24] sm:$0xf]
          %v2142 = vld [vmem:[#allocation18 + $0x28] sm:$0xf]
          %v2143 = vld [vmem:[#allocation18 + $0x2c] sm:$0xf]
          %v2144 = vld [vmem:[#allocation18 + $0x30] sm:$0xf]
          %v2145 = vld [vmem:[#allocation18 + $0x34] sm:$0xf]
          %v2146 = vld [vmem:[#allocation18 + $0x38] sm:$0xf]
          %v2147 = vld [vmem:[#allocation18 + $0x3c] sm:$0xf]
          %v2164 = vunpack.c.l.b16 %v2132
          %v2165 = vunpack.c.l.b16 %v2133
          %v2166 = vunpack.c.l.b16 %v2134
          %v2167 = vunpack.c.l.b16 %v2135
          %v2168 = vunpack.c.l.b16 %v2136
          %v2169 = vunpack.c.l.b16 %v2137
          %v2170 = vunpack.c.l.b16 %v2138
          %v2171 = vunpack.c.l.b16 %v2139
          %v2172 = vunpack.c.l.b16 %v2140
          %v2173 = vunpack.c.l.b16 %v2141
          %v2174 = vunpack.c.l.b16 %v2142
          %v2175 = vunpack.c.l.b16 %v2143
          %v2176 = vunpack.c.l.b16 %v2144
          %v2177 = vunpack.c.l.b16 %v2145
          %v2178 = vunpack.c.l.b16 %v2146
          %v2179 = vunpack.c.l.b16 %v2147
          %v2180 = vpack.c.b16 %v2165, %v2164
          %v2181 = vpack.c.b16 %v2167, %v2166
          %v2182 = vpack.c.b16 %v2169, %v2168
          %v2183 = vpack.c.b16 %v2171, %v2170
          %v2184 = vpack.c.b16 %v2173, %v2172
          %v2185 = vpack.c.b16 %v2175, %v2174
          %v2186 = vpack.c.b16 %v2177, %v2176
          %v2187 = vpack.c.b16 %v2179, %v2178
          %2196 = vmatprep.subr.bf16.mxu0 0
          %2197 = vmatpush1.bf16.msra.mxu0 %v2180
          %2198 = vmatprep.subr.bf16.mxu0 0
          %2199 = vmatpush1.bf16.msra.mxu0 %v2181
          %2200 = vmatprep.subr.bf16.mxu0 0
          %2201 = vmatpush1.bf16.msra.mxu0 %v2182
          %2202 = vmatprep.subr.bf16.mxu0 0
          %2203 = vmatpush1.bf16.msra.mxu0 %v2183
          %2204 = vmatprep.subr.bf16.mxu0 0
          %2205 = vmatpush1.bf16.msra.mxu0 %v2184
          %2206 = vmatprep.subr.bf16.mxu0 0
          %2207 = vmatpush1.bf16.msra.mxu0 %v2185
          %2208 = vmatprep.subr.bf16.mxu0 0
          %2209 = vmatpush1.bf16.msra.mxu0 %v2186
          %2210 = vmatprep.subr.bf16.mxu0 0
          %2211 = vmatpush1.bf16.msra.mxu0 %v2187
          %2212 = vmatprep.subr.bf16.mxu0 0
          %2213 = vmatpush1.bf16.msra.mxu0 0
          %2214 = vmatprep.subr.bf16.mxu0 0
          %2215 = vmatpush1.bf16.msra.mxu0 0
          %2216 = vmatprep.subr.bf16.mxu0 0
          %2217 = vmatpush1.bf16.msra.mxu0 0
          %2218 = vmatprep.subr.bf16.mxu0 0
          %2219 = vmatpush1.bf16.msra.mxu0 0
          %2220 = vmatprep.subr.bf16.mxu0 0
          %2221 = vmatpush1.bf16.msra.mxu0 0
          %2222 = vmatprep.subr.bf16.mxu0 0
          %2223 = vmatpush1.bf16.msra.mxu0 0
          %2224 = vmatprep.subr.bf16.mxu0 0
          %2225 = vmatpush1.bf16.msra.mxu0 0
          %2226 = vmatprep.subr.bf16.mxu0 0
          %2227 = vmatpush1.bf16.msra.mxu0 0
          %2228 = vmatprep.mubr.bf16.mxu0 0
          %2229 = vmatmul.mubr.bf16.gmra.mrb[0].mxu0 %v2131
          %v2230 = vpop.f32.mrb[0].mxu0
          %v2231 = vadd.f32 0.0, %v2230
          %v2232 = vpop.f32.mrb[0].mxu0
          %v2233 = vpop.f32.mrb[0].mxu0
          %v2234 = vadd.f32 0.0, %v2233
          %v2235 = vpop.f32.mrb[0].mxu0
          %2236 = vdwg.mxu0
          %v2237 = vpack.c.bf16 %v2128, %v2125
          %v2238 = vld [vmem:[#allocation20] sm:$0xf]
          %v2239 = vld [vmem:[#allocation20 + $0x4] sm:$0xf]
          %v2240 = vld [vmem:[#allocation20 + $0x8] sm:$0xf]
          %v2241 = vld [vmem:[#allocation20 + $0xc] sm:$0xf]
          %v2242 = vld [vmem:[#allocation20 + $0x10] sm:$0xf]
          %v2243 = vld [vmem:[#allocation20 + $0x14] sm:$0xf]
          %v2244 = vld [vmem:[#allocation20 + $0x18] sm:$0xf]
          %v2245 = vld [vmem:[#allocation20 + $0x1c] sm:$0xf]
          %v2246 = vld [vmem:[#allocation20 + $0x20] sm:$0xf]
          %v2247 = vld [vmem:[#allocation20 + $0x24] sm:$0xf]
          %v2248 = vld [vmem:[#allocation20 + $0x28] sm:$0xf]
          %v2249 = vld [vmem:[#allocation20 + $0x2c] sm:$0xf]
          %v2250 = vld [vmem:[#allocation20 + $0x30] sm:$0xf]
          %v2251 = vld [vmem:[#allocation20 + $0x34] sm:$0xf]
          %v2252 = vld [vmem:[#allocation20 + $0x38] sm:$0xf]
          %v2253 = vld [vmem:[#allocation20 + $0x3c] sm:$0xf]
          %v2270 = vunpack.c.l.b16 %v2238
          %v2271 = vunpack.c.l.b16 %v2239
          %v2272 = vunpack.c.l.b16 %v2240
          %v2273 = vunpack.c.l.b16 %v2241
          %v2274 = vunpack.c.l.b16 %v2242
          %v2275 = vunpack.c.l.b16 %v2243
          %v2276 = vunpack.c.l.b16 %v2244
          %v2277 = vunpack.c.l.b16 %v2245
          %v2278 = vunpack.c.l.b16 %v2246
          %v2279 = vunpack.c.l.b16 %v2247
          %v2280 = vunpack.c.l.b16 %v2248
          %v2281 = vunpack.c.l.b16 %v2249
          %v2282 = vunpack.c.l.b16 %v2250
          %v2283 = vunpack.c.l.b16 %v2251
          %v2284 = vunpack.c.l.b16 %v2252
          %v2285 = vunpack.c.l.b16 %v2253
          %v2286 = vpack.c.b16 %v2271, %v2270
          %v2287 = vpack.c.b16 %v2273, %v2272
          %v2288 = vpack.c.b16 %v2275, %v2274
          %v2289 = vpack.c.b16 %v2277, %v2276
          %v2290 = vpack.c.b16 %v2279, %v2278
          %v2291 = vpack.c.b16 %v2281, %v2280
          %v2292 = vpack.c.b16 %v2283, %v2282
          %v2293 = vpack.c.b16 %v2285, %v2284
          %2302 = vmatprep.subr.bf16.mxu0 0
          %2303 = vmatpush1.bf16.msra.mxu0 %v2286
          %2304 = vmatprep.subr.bf16.mxu0 0
          %2305 = vmatpush1.bf16.msra.mxu0 %v2287
          %2306 = vmatprep.subr.bf16.mxu0 0
          %2307 = vmatpush1.bf16.msra.mxu0 %v2288
          %2308 = vmatprep.subr.bf16.mxu0 0
          %2309 = vmatpush1.bf16.msra.mxu0 %v2289
          %2310 = vmatprep.subr.bf16.mxu0 0
          %2311 = vmatpush1.bf16.msra.mxu0 %v2290
          %2312 = vmatprep.subr.bf16.mxu0 0
          %2313 = vmatpush1.bf16.msra.mxu0 %v2291
          %2314 = vmatprep.subr.bf16.mxu0 0
          %2315 = vmatpush1.bf16.msra.mxu0 %v2292
          %2316 = vmatprep.subr.bf16.mxu0 0
          %2317 = vmatpush1.bf16.msra.mxu0 %v2293
          %2318 = vmatprep.subr.bf16.mxu0 0
          %2319 = vmatpush1.bf16.msra.mxu0 0
          %2320 = vmatprep.subr.bf16.mxu0 0
          %2321 = vmatpush1.bf16.msra.mxu0 0
          %2322 = vmatprep.subr.bf16.mxu0 0
          %2323 = vmatpush1.bf16.msra.mxu0 0
          %2324 = vmatprep.subr.bf16.mxu0 0
          %2325 = vmatpush1.bf16.msra.mxu0 0
          %2326 = vmatprep.subr.bf16.mxu0 0
          %2327 = vmatpush1.bf16.msra.mxu0 0
          %2328 = vmatprep.subr.bf16.mxu0 0
          %2329 = vmatpush1.bf16.msra.mxu0 0
          %2330 = vmatprep.subr.bf16.mxu0 0
          %2331 = vmatpush1.bf16.msra.mxu0 0
          %2332 = vmatprep.subr.bf16.mxu0 0
          %2333 = vmatpush1.bf16.msra.mxu0 0
          %2334 = vmatprep.mubr.bf16.mxu0 0
          %2335 = vmatmul.mubr.bf16.gmra.mrb[0].mxu0 %v2237
          %v2336 = vpop.f32.mrb[0].mxu0
          %v2337 = vadd.f32 0.0, %v2336
          %v2338 = vpop.f32.mrb[0].mxu0
          %v2339 = vpop.f32.mrb[0].mxu0
          %v2340 = vadd.f32 0.0, %v2339
          %v2341 = vpop.f32.mrb[0].mxu0
          %2342 = vdwg.mxu0
          %v2343 = vsub.f32 %v2231, %v2337
          %v2344 = vsub.f32 %v2234, %v2340
          %v2345 = vadd.f32 %v2343, %v1651
          %v2346 = vadd.f32 %v2344, %v1652
          %v2347 = vld [vmem:[%s1112] sm:$0x1]
          %v2348 = vld [vmem:[%s1115] sm:$0x1]
          %2349 = vadd.xlane.f32.xlu0 %v2345
          %v2350 = vpop.xlane.xlu0 %2349
          %2351 = vadd.xlane.f32.xlu0 %v2346
          %v2352 = vpop.xlane.xlu0 %2351
          %v2353 = vmul.f32 %v2350, %v1991
          %v2354 = vmul.f32 %v2352, %v1991
          %v2355 = vsub.f32 %v2345, %v2353
          %v2356 = vsub.f32 %v2346, %v2354
          %v2357 = vmul.f32 %v2355, %v2355
          %v2358 = vmul.f32 %v2356, %v2356
          %2359 = vadd.xlane.f32.xlu0 %v2357
          %v2360 = vpop.xlane.xlu0 %2359
          %2361 = vadd.xlane.f32.xlu0 %v2358
          %v2362 = vpop.xlane.xlu0 %2361
          %v2363 = vmul.f32 %v2360, %v1991
          %v2364 = vmul.f32 %v2362, %v1991
          %v2365 = vadd.f32 %v2363, 1e-12
          %v2366 = vadd.f32 %v2364, 1e-12
          %v2367 = vrsqrt.pop %v2365
          %v2368 = vrsqrt.pop %v2366
          %v2369 = vmul.f32 %v2355, %v2367
          %v2370 = vmul.f32 %v2356, %v2368
          %v2372 = vlaneseq
          %v2373 = vshrl.u32 %v2372, 7
          %v2374 = vsub.s32 0, %v2373
          %v2375 = vrot.slane %v2347, %v2374
          %v2377 = vmul.f32 %v2369, %v2375
          %v2378 = vmul.f32 %v2370, %v2375
          %v2380 = vlaneseq
          %v2381 = vshrl.u32 %v2380, 7
          %v2382 = vsub.s32 0, %v2381
          %v2383 = vrot.slane %v2348, %v2382
          %v2385 = vadd.f32 %v2377, %v2383
          %v2386 = vadd.f32 %v2378, %v2383
          %2387 = vst [vmem:[#allocation3 + $0x10] sm:$0xff] %v2385
          %2388 = vst [vmem:[#allocation3 + $0x18] sm:$0xff] %v2386
          %v2389 = vpack.c.bf16 %v1654, %v1653
          %v2390 = vld [vmem:[#allocation15] sm:$0xf]
          %v2391 = vld [vmem:[#allocation15 + $0x4] sm:$0xf]
          %v2394 = vunpack.c.l.b16 %v2390
          %v2395 = vunpack.c.l.b16 %v2391
          %v2396 = vpack.c.b16 %v2395, %v2394
          %v2398 = vsel %vm1673, %v2396, 0
          %2400 = vmatprep.subr.bf16.mxu0 0
          %2401 = vmatpush1.bf16.msra.mxu0 %v2389
          %2402 = vmatprep.subr.bf16.mxu0 0
          %2403 = vmatpush1.bf16.msra.mxu0 0
          %2404 = vmatprep.subr.bf16.mxu0 0
          %2405 = vmatpush1.bf16.msra.mxu0 0
          %2406 = vmatprep.subr.bf16.mxu0 0
          %2407 = vmatpush1.bf16.msra.mxu0 0
          %2408 = vmatprep.subr.bf16.mxu0 0
          %2409 = vmatpush1.bf16.msra.mxu0 0
          %2410 = vmatprep.subr.bf16.mxu0 0
          %2411 = vmatpush1.bf16.msra.mxu0 0
          %2412 = vmatprep.subr.bf16.mxu0 0
          %2413 = vmatpush1.bf16.msra.mxu0 0
          %2414 = vmatprep.subr.bf16.mxu0 0
          %2415 = vmatpush1.bf16.msra.mxu0 0
          %2416 = vmatprep.subr.bf16.mxu0 0
          %2417 = vmatpush1.bf16.msra.mxu0 0
          %2418 = vmatprep.subr.bf16.mxu0 0
          %2419 = vmatpush1.bf16.msra.mxu0 0
          %2420 = vmatprep.subr.bf16.mxu0 0
          %2421 = vmatpush1.bf16.msra.mxu0 0
          %2422 = vmatprep.subr.bf16.mxu0 0
          %2423 = vmatpush1.bf16.msra.mxu0 0
          %2424 = vmatprep.subr.bf16.mxu0 0
          %2425 = vmatpush1.bf16.msra.mxu0 0
          %2426 = vmatprep.subr.bf16.mxu0 0
          %2427 = vmatpush1.bf16.msra.mxu0 0
          %2428 = vmatprep.subr.bf16.mxu0 0
          %2429 = vmatpush1.bf16.msra.mxu0 0
          %2430 = vmatprep.subr.bf16.mxu0 0
          %2431 = vmatpush1.bf16.msra.mxu0 0
          %2432 = vmatprep.mubr.bf16.mxu0 0
          %2433 = vmatmul.mubr.bf16.gmra.mrb[0].mxu0 %v2398
          %v2434 = vpop.f32.mrb[0].mxu0
          %v2435 = vadd.f32 0.0, %v2434
          %v2436 = vpop.f32.mrb[0].mxu0
          %v2437 = vpop.f32.mrb[0].mxu0
          %v2438 = vadd.f32 0.0, %v2437
          %v2439 = vpop.f32.mrb[0].mxu0
          %2440 = vdwg.mxu0
          %v2441 = vld [vmem:[#allocation17] sm:$0xf]
          %v2442 = vld [vmem:[#allocation17 + $0x4] sm:$0xf]
          %v2445 = vunpack.c.l.b16 %v2441
          %v2446 = vunpack.c.l.b16 %v2442
          %v2447 = vpack.c.b16 %v2446, %v2445
          %v2449 = vsel %vm1673, %v2447, 0
          %2451 = vmatprep.subr.bf16.mxu0 0
          %2452 = vmatpush1.bf16.msra.mxu0 %v2389
          %2453 = vmatprep.subr.bf16.mxu0 0
          %2454 = vmatpush1.bf16.msra.mxu0 0
          %2455 = vmatprep.subr.bf16.mxu0 0
          %2456 = vmatpush1.bf16.msra.mxu0 0
          %2457 = vmatprep.subr.bf16.mxu0 0
          %2458 = vmatpush1.bf16.msra.mxu0 0
          %2459 = vmatprep.subr.bf16.mxu0 0
          %2460 = vmatpush1.bf16.msra.mxu0 0
          %2461 = vmatprep.subr.bf16.mxu0 0
          %2462 = vmatpush1.bf16.msra.mxu0 0
          %2463 = vmatprep.subr.bf16.mxu0 0
          %2464 = vmatpush1.bf16.msra.mxu0 0
          %2465 = vmatprep.subr.bf16.mxu0 0
          %2466 = vmatpush1.bf16.msra.mxu0 0
          %2467 = vmatprep.subr.bf16.mxu0 0
          %2468 = vmatpush1.bf16.msra.mxu0 0
          %2469 = vmatprep.subr.bf16.mxu0 0
          %2470 = vmatpush1.bf16.msra.mxu0 0
          %2471 = vmatprep.subr.bf16.mxu0 0
          %2472 = vmatpush1.bf16.msra.mxu0 0
          %2473 = vmatprep.subr.bf16.mxu0 0
          %2474 = vmatpush1.bf16.msra.mxu0 0
          %2475 = vmatprep.subr.bf16.mxu0 0
          %2476 = vmatpush1.bf16.msra.mxu0 0
          %2477 = vmatprep.subr.bf16.mxu0 0
          %2478 = vmatpush1.bf16.msra.mxu0 0
          %2479 = vmatprep.subr.bf16.mxu0 0
          %2480 = vmatpush1.bf16.msra.mxu0 0
          %2481 = vmatprep.subr.bf16.mxu0 0
          %2482 = vmatpush1.bf16.msra.mxu0 0
          %2483 = vmatprep.mubr.bf16.mxu0 0
          %2484 = vmatmul.mubr.bf16.gmra.mrb[0].mxu0 %v2449
          %v2485 = vpop.f32.mrb[0].mxu0
          %v2486 = vadd.f32 0.0, %v2485
          %v2487 = vpop.f32.mrb[0].mxu0
          %v2488 = vpop.f32.mrb[0].mxu0
          %v2489 = vadd.f32 0.0, %v2488
          %v2490 = vpop.f32.mrb[0].mxu0
          %2491 = vdwg.mxu0
          %v2492 = vpack.c.bf16 %v2438, %v2435
          %v2493 = vld [vmem:[#allocation18] sm:$0xf]
          %v2494 = vld [vmem:[#allocation18 + $0x4] sm:$0xf]
          %v2495 = vld [vmem:[#allocation18 + $0x8] sm:$0xf]
          %v2496 = vld [vmem:[#allocation18 + $0xc] sm:$0xf]
          %v2497 = vld [vmem:[#allocation18 + $0x10] sm:$0xf]
          %v2498 = vld [vmem:[#allocation18 + $0x14] sm:$0xf]
          %v2499 = vld [vmem:[#allocation18 + $0x18] sm:$0xf]
          %v2500 = vld [vmem:[#allocation18 + $0x1c] sm:$0xf]
          %v2501 = vld [vmem:[#allocation18 + $0x20] sm:$0xf]
          %v2502 = vld [vmem:[#allocation18 + $0x24] sm:$0xf]
          %v2503 = vld [vmem:[#allocation18 + $0x28] sm:$0xf]
          %v2504 = vld [vmem:[#allocation18 + $0x2c] sm:$0xf]
          %v2505 = vld [vmem:[#allocation18 + $0x30] sm:$0xf]
          %v2506 = vld [vmem:[#allocation18 + $0x34] sm:$0xf]
          %v2507 = vld [vmem:[#allocation18 + $0x38] sm:$0xf]
          %v2508 = vld [vmem:[#allocation18 + $0x3c] sm:$0xf]
          %v2525 = vunpack.c.l.b16 %v2493
          %v2526 = vunpack.c.l.b16 %v2494
          %v2527 = vunpack.c.l.b16 %v2495
          %v2528 = vunpack.c.l.b16 %v2496
          %v2529 = vunpack.c.l.b16 %v2497
          %v2530 = vunpack.c.l.b16 %v2498
          %v2531 = vunpack.c.l.b16 %v2499
          %v2532 = vunpack.c.l.b16 %v2500
          %v2533 = vunpack.c.l.b16 %v2501
          %v2534 = vunpack.c.l.b16 %v2502
          %v2535 = vunpack.c.l.b16 %v2503
          %v2536 = vunpack.c.l.b16 %v2504
          %v2537 = vunpack.c.l.b16 %v2505
          %v2538 = vunpack.c.l.b16 %v2506
          %v2539 = vunpack.c.l.b16 %v2507
          %v2540 = vunpack.c.l.b16 %v2508
          %v2541 = vpack.c.b16 %v2526, %v2525
          %v2542 = vpack.c.b16 %v2528, %v2527
          %v2543 = vpack.c.b16 %v2530, %v2529
          %v2544 = vpack.c.b16 %v2532, %v2531
          %v2545 = vpack.c.b16 %v2534, %v2533
          %v2546 = vpack.c.b16 %v2536, %v2535
          %v2547 = vpack.c.b16 %v2538, %v2537
          %v2548 = vpack.c.b16 %v2540, %v2539
          %2557 = vmatprep.subr.bf16.mxu0 0
          %2558 = vmatpush1.bf16.msra.mxu0 %v2541
          %2559 = vmatprep.subr.bf16.mxu0 0
          %2560 = vmatpush1.bf16.msra.mxu0 %v2542
          %2561 = vmatprep.subr.bf16.mxu0 0
          %2562 = vmatpush1.bf16.msra.mxu0 %v2543
          %2563 = vmatprep.subr.bf16.mxu0 0
          %2564 = vmatpush1.bf16.msra.mxu0 %v2544
          %2565 = vmatprep.subr.bf16.mxu0 0
          %2566 = vmatpush1.bf16.msra.mxu0 %v2545
          %2567 = vmatprep.subr.bf16.mxu0 0
          %2568 = vmatpush1.bf16.msra.mxu0 %v2546
          %2569 = vmatprep.subr.bf16.mxu0 0
          %2570 = vmatpush1.bf16.msra.mxu0 %v2547
          %2571 = vmatprep.subr.bf16.mxu0 0
          %2572 = vmatpush1.bf16.msra.mxu0 %v2548
          %2573 = vmatprep.subr.bf16.mxu0 0
          %2574 = vmatpush1.bf16.msra.mxu0 0
          %2575 = vmatprep.subr.bf16.mxu0 0
          %2576 = vmatpush1.bf16.msra.mxu0 0
          %2577 = vmatprep.subr.bf16.mxu0 0
          %2578 = vmatpush1.bf16.msra.mxu0 0
          %2579 = vmatprep.subr.bf16.mxu0 0
          %2580 = vmatpush1.bf16.msra.mxu0 0
          %2581 = vmatprep.subr.bf16.mxu0 0
          %2582 = vmatpush1.bf16.msra.mxu0 0
          %2583 = vmatprep.subr.bf16.mxu0 0
          %2584 = vmatpush1.bf16.msra.mxu0 0
          %2585 = vmatprep.subr.bf16.mxu0 0
          %2586 = vmatpush1.bf16.msra.mxu0 0
          %2587 = vmatprep.subr.bf16.mxu0 0
          %2588 = vmatpush1.bf16.msra.mxu0 0
          %2589 = vmatprep.mubr.bf16.mxu0 0
          %2590 = vmatmul.mubr.bf16.gmra.mrb[0].mxu0 %v2492
          %v2591 = vpop.f32.mrb[0].mxu0
          %v2592 = vadd.f32 0.0, %v2591
          %v2593 = vpop.f32.mrb[0].mxu0
          %v2594 = vpop.f32.mrb[0].mxu0
          %v2595 = vadd.f32 0.0, %v2594
          %v2596 = vpop.f32.mrb[0].mxu0
          %2597 = vdwg.mxu0
          %v2598 = vpack.c.bf16 %v2489, %v2486
          %v2599 = vld [vmem:[#allocation20] sm:$0xf]
          %v2600 = vld [vmem:[#allocation20 + $0x4] sm:$0xf]
          %v2601 = vld [vmem:[#allocation20 + $0x8] sm:$0xf]
          %v2602 = vld [vmem:[#allocation20 + $0xc] sm:$0xf]
          %v2603 = vld [vmem:[#allocation20 + $0x10] sm:$0xf]
          %v2604 = vld [vmem:[#allocation20 + $0x14] sm:$0xf]
          %v2605 = vld [vmem:[#allocation20 + $0x18] sm:$0xf]
          %v2606 = vld [vmem:[#allocation20 + $0x1c] sm:$0xf]
          %v2607 = vld [vmem:[#allocation20 + $0x20] sm:$0xf]
          %v2608 = vld [vmem:[#allocation20 + $0x24] sm:$0xf]
          %v2609 = vld [vmem:[#allocation20 + $0x28] sm:$0xf]
          %v2610 = vld [vmem:[#allocation20 + $0x2c] sm:$0xf]
          %v2611 = vld [vmem:[#allocation20 + $0x30] sm:$0xf]
          %v2612 = vld [vmem:[#allocation20 + $0x34] sm:$0xf]
          %v2613 = vld [vmem:[#allocation20 + $0x38] sm:$0xf]
          %v2614 = vld [vmem:[#allocation20 + $0x3c] sm:$0xf]
          %v2631 = vunpack.c.l.b16 %v2599
          %v2632 = vunpack.c.l.b16 %v2600
          %v2633 = vunpack.c.l.b16 %v2601
          %v2634 = vunpack.c.l.b16 %v2602
          %v2635 = vunpack.c.l.b16 %v2603
          %v2636 = vunpack.c.l.b16 %v2604
          %v2637 = vunpack.c.l.b16 %v2605
          %v2638 = vunpack.c.l.b16 %v2606
          %v2639 = vunpack.c.l.b16 %v2607
          %v2640 = vunpack.c.l.b16 %v2608
          %v2641 = vunpack.c.l.b16 %v2609
          %v2642 = vunpack.c.l.b16 %v2610
          %v2643 = vunpack.c.l.b16 %v2611
          %v2644 = vunpack.c.l.b16 %v2612
          %v2645 = vunpack.c.l.b16 %v2613
          %v2646 = vunpack.c.l.b16 %v2614
          %v2647 = vpack.c.b16 %v2632, %v2631
          %v2648 = vpack.c.b16 %v2634, %v2633
          %v2649 = vpack.c.b16 %v2636, %v2635
          %v2650 = vpack.c.b16 %v2638, %v2637
          %v2651 = vpack.c.b16 %v2640, %v2639
          %v2652 = vpack.c.b16 %v2642, %v2641
          %v2653 = vpack.c.b16 %v2644, %v2643
          %v2654 = vpack.c.b16 %v2646, %v2645
          %2663 = vmatprep.subr.bf16.mxu0 0
          %2664 = vmatpush1.bf16.msra.mxu0 %v2647
          %2665 = vmatprep.subr.bf16.mxu0 0
          %2666 = vmatpush1.bf16.msra.mxu0 %v2648
          %2667 = vmatprep.subr.bf16.mxu0 0
          %2668 = vmatpush1.bf16.msra.mxu0 %v2649
          %2669 = vmatprep.subr.bf16.mxu0 0
          %2670 = vmatpush1.bf16.msra.mxu0 %v2650
          %2671 = vmatprep.subr.bf16.mxu0 0
          %2672 = vmatpush1.bf16.msra.mxu0 %v2651
          %2673 = vmatprep.subr.bf16.mxu0 0
          %2674 = vmatpush1.bf16.msra.mxu0 %v2652
          %2675 = vmatprep.subr.bf16.mxu0 0
          %2676 = vmatpush1.bf16.msra.mxu0 %v2653
          %2677 = vmatprep.subr.bf16.mxu0 0
          %2678 = vmatpush1.bf16.msra.mxu0 %v2654
          %2679 = vmatprep.subr.bf16.mxu0 0
          %2680 = vmatpush1.bf16.msra.mxu0 0
          %2681 = vmatprep.subr.bf16.mxu0 0
          %2682 = vmatpush1.bf16.msra.mxu0 0
          %2683 = vmatprep.subr.bf16.mxu0 0
          %2684 = vmatpush1.bf16.msra.mxu0 0
          %2685 = vmatprep.subr.bf16.mxu0 0
          %2686 = vmatpush1.bf16.msra.mxu0 0
          %2687 = vmatprep.subr.bf16.mxu0 0
          %2688 = vmatpush1.bf16.msra.mxu0 0
          %2689 = vmatprep.subr.bf16.mxu0 0
          %2690 = vmatpush1.bf16.msra.mxu0 0
          %2691 = vmatprep.subr.bf16.mxu0 0
          %2692 = vmatpush1.bf16.msra.mxu0 0
          %2693 = vmatprep.subr.bf16.mxu0 0
          %2694 = vmatpush1.bf16.msra.mxu0 0
          %2695 = vmatprep.mubr.bf16.mxu0 0
          %2696 = vmatmul.mubr.bf16.gmra.mrb[0].mxu0 %v2598
          %v2697 = vpop.f32.mrb[0].mxu0
          %v2698 = vadd.f32 0.0, %v2697
          %v2699 = vpop.f32.mrb[0].mxu0
          %v2700 = vpop.f32.mrb[0].mxu0
          %v2701 = vadd.f32 0.0, %v2700
          %v2702 = vpop.f32.mrb[0].mxu0
          %2703 = vdwg.mxu0
          %v2704 = vsub.f32 %v2592, %v2698
          %v2705 = vsub.f32 %v2595, %v2701
          %v2706 = vadd.f32 %v2704, %v1653
          %v2707 = vadd.f32 %v2705, %v1654
          %v2708 = vld [vmem:[%s1112] sm:$0x1]
          %v2709 = vld [vmem:[%s1115] sm:$0x1]
          %2710 = vadd.xlane.f32.xlu0 %v2706
          %v2711 = vpop.xlane.xlu0 %2710
          %2712 = vadd.xlane.f32.xlu0 %v2707
          %v2713 = vpop.xlane.xlu0 %2712
          %v2714 = vmul.f32 %v2711, %v1991
          %v2715 = vmul.f32 %v2713, %v1991
          %v2716 = vsub.f32 %v2706, %v2714
          %v2717 = vsub.f32 %v2707, %v2715
          %v2718 = vmul.f32 %v2716, %v2716
          %v2719 = vmul.f32 %v2717, %v2717
          %2720 = vadd.xlane.f32.xlu0 %v2718
          %v2721 = vpop.xlane.xlu0 %2720
          %2722 = vadd.xlane.f32.xlu0 %v2719
          %v2723 = vpop.xlane.xlu0 %2722
          %v2724 = vmul.f32 %v2721, %v1991
          %v2725 = vmul.f32 %v2723, %v1991
          %v2726 = vadd.f32 %v2724, 1e-12
          %v2727 = vadd.f32 %v2725, 1e-12
          %v2728 = vrsqrt.pop %v2726
          %v2729 = vrsqrt.pop %v2727
          %v2730 = vmul.f32 %v2716, %v2728
          %v2731 = vmul.f32 %v2717, %v2729
          %v2733 = vlaneseq
          %v2734 = vshrl.u32 %v2733, 7
          %v2735 = vsub.s32 0, %v2734
          %v2736 = vrot.slane %v2708, %v2735
          %v2738 = vmul.f32 %v2730, %v2736
          %v2739 = vmul.f32 %v2731, %v2736
          %v2741 = vlaneseq
          %v2742 = vshrl.u32 %v2741, 7
          %v2743 = vsub.s32 0, %v2742
          %v2744 = vrot.slane %v2709, %v2743
          %v2746 = vadd.f32 %v2738, %v2744
          %v2747 = vadd.f32 %v2739, %v2744
          %2748 = vst [vmem:[#allocation3 + $0x20] sm:$0xff] %v2746
          %2749 = vst [vmem:[#allocation3 + $0x28] sm:$0xff] %v2747
          %v2750 = vpack.c.bf16 %v1656, %v1655
          %v2751 = vld [vmem:[#allocation15] sm:$0xf]
          %v2752 = vld [vmem:[#allocation15 + $0x4] sm:$0xf]
          %v2755 = vunpack.c.l.b16 %v2751
          %v2756 = vunpack.c.l.b16 %v2752
          %v2757 = vpack.c.b16 %v2756, %v2755
          %v2759 = vsel %vm1673, %v2757, 0
          %2761 = vmatprep.subr.bf16.mxu0 0
          %2762 = vmatpush1.bf16.msra.mxu0 %v2750
          %2763 = vmatprep.subr.bf16.mxu0 0
          %2764 = vmatpush1.bf16.msra.mxu0 0
          %2765 = vmatprep.subr.bf16.mxu0 0
          %2766 = vmatpush1.bf16.msra.mxu0 0
          %2767 = vmatprep.subr.bf16.mxu0 0
          %2768 = vmatpush1.bf16.msra.mxu0 0
          %2769 = vmatprep.subr.bf16.mxu0 0
          %2770 = vmatpush1.bf16.msra.mxu0 0
          %2771 = vmatprep.subr.bf16.mxu0 0
          %2772 = vmatpush1.bf16.msra.mxu0 0
          %2773 = vmatprep.subr.bf16.mxu0 0
          %2774 = vmatpush1.bf16.msra.mxu0 0
          %2775 = vmatprep.subr.bf16.mxu0 0
          %2776 = vmatpush1.bf16.msra.mxu0 0
          %2777 = vmatprep.subr.bf16.mxu0 0
          %2778 = vmatpush1.bf16.msra.mxu0 0
          %2779 = vmatprep.subr.bf16.mxu0 0
          %2780 = vmatpush1.bf16.msra.mxu0 0
          %2781 = vmatprep.subr.bf16.mxu0 0
          %2782 = vmatpush1.bf16.msra.mxu0 0
          %2783 = vmatprep.subr.bf16.mxu0 0
          %2784 = vmatpush1.bf16.msra.mxu0 0
          %2785 = vmatprep.subr.bf16.mxu0 0
          %2786 = vmatpush1.bf16.msra.mxu0 0
          %2787 = vmatprep.subr.bf16.mxu0 0
          %2788 = vmatpush1.bf16.msra.mxu0 0
          %2789 = vmatprep.subr.bf16.mxu0 0
          %2790 = vmatpush1.bf16.msra.mxu0 0
          %2791 = vmatprep.subr.bf16.mxu0 0
          %2792 = vmatpush1.bf16.msra.mxu0 0
          %2793 = vmatprep.mubr.bf16.mxu0 0
          %2794 = vmatmul.mubr.bf16.gmra.mrb[0].mxu0 %v2759
          %v2795 = vpop.f32.mrb[0].mxu0
          %v2796 = vadd.f32 0.0, %v2795
          %v2797 = vpop.f32.mrb[0].mxu0
          %v2798 = vpop.f32.mrb[0].mxu0
          %v2799 = vadd.f32 0.0, %v2798
          %v2800 = vpop.f32.mrb[0].mxu0
          %2801 = vdwg.mxu0
          %v2802 = vld [vmem:[#allocation17] sm:$0xf]
          %v2803 = vld [vmem:[#allocation17 + $0x4] sm:$0xf]
          %v2806 = vunpack.c.l.b16 %v2802
          %v2807 = vunpack.c.l.b16 %v2803
          %v2808 = vpack.c.b16 %v2807, %v2806
          %v2810 = vsel %vm1673, %v2808, 0
          %2812 = vmatprep.subr.bf16.mxu0 0
          %2813 = vmatpush1.bf16.msra.mxu0 %v2750
          %2814 = vmatprep.subr.bf16.mxu0 0
          %2815 = vmatpush1.bf16.msra.mxu0 0
          %2816 = vmatprep.subr.bf16.mxu0 0
          %2817 = vmatpush1.bf16.msra.mxu0 0
          %2818 = vmatprep.subr.bf16.mxu0 0
          %2819 = vmatpush1.bf16.msra.mxu0 0
          %2820 = vmatprep.subr.bf16.mxu0 0
          %2821 = vmatpush1.bf16.msra.mxu0 0
          %2822 = vmatprep.subr.bf16.mxu0 0
          %2823 = vmatpush1.bf16.msra.mxu0 0
          %2824 = vmatprep.subr.bf16.mxu0 0
          %2825 = vmatpush1.bf16.msra.mxu0 0
          %2826 = vmatprep.subr.bf16.mxu0 0
          %2827 = vmatpush1.bf16.msra.mxu0 0
          %2828 = vmatprep.subr.bf16.mxu0 0
          %2829 = vmatpush1.bf16.msra.mxu0 0
          %2830 = vmatprep.subr.bf16.mxu0 0
          %2831 = vmatpush1.bf16.msra.mxu0 0
          %2832 = vmatprep.subr.bf16.mxu0 0
          %2833 = vmatpush1.bf16.msra.mxu0 0
          %2834 = vmatprep.subr.bf16.mxu0 0
          %2835 = vmatpush1.bf16.msra.mxu0 0
          %2836 = vmatprep.subr.bf16.mxu0 0
          %2837 = vmatpush1.bf16.msra.mxu0 0
          %2838 = vmatprep.subr.bf16.mxu0 0
          %2839 = vmatpush1.bf16.msra.mxu0 0
          %2840 = vmatprep.subr.bf16.mxu0 0
          %2841 = vmatpush1.bf16.msra.mxu0 0
          %2842 = vmatprep.subr.bf16.mxu0 0
          %2843 = vmatpush1.bf16.msra.mxu0 0
          %2844 = vmatprep.mubr.bf16.mxu0 0
          %2845 = vmatmul.mubr.bf16.gmra.mrb[0].mxu0 %v2810
          %v2846 = vpop.f32.mrb[0].mxu0
          %v2847 = vadd.f32 0.0, %v2846
          %v2848 = vpop.f32.mrb[0].mxu0
          %v2849 = vpop.f32.mrb[0].mxu0
          %v2850 = vadd.f32 0.0, %v2849
          %v2851 = vpop.f32.mrb[0].mxu0
          %2852 = vdwg.mxu0
          %v2853 = vpack.c.bf16 %v2799, %v2796
          %v2854 = vld [vmem:[#allocation18] sm:$0xf]
          %v2855 = vld [vmem:[#allocation18 + $0x4] sm:$0xf]
          %v2856 = vld [vmem:[#allocation18 + $0x8] sm:$0xf]
          %v2857 = vld [vmem:[#allocation18 + $0xc] sm:$0xf]
          %v2858 = vld [vmem:[#allocation18 + $0x10] sm:$0xf]
          %v2859 = vld [vmem:[#allocation18 + $0x14] sm:$0xf]
          %v2860 = vld [vmem:[#allocation18 + $0x18] sm:$0xf]
          %v2861 = vld [vmem:[#allocation18 + $0x1c] sm:$0xf]
          %v2862 = vld [vmem:[#allocation18 + $0x20] sm:$0xf]
          %v2863 = vld [vmem:[#allocation18 + $0x24] sm:$0xf]
          %v2864 = vld [vmem:[#allocation18 + $0x28] sm:$0xf]
          %v2865 = vld [vmem:[#allocation18 + $0x2c] sm:$0xf]
          %v2866 = vld [vmem:[#allocation18 + $0x30] sm:$0xf]
          %v2867 = vld [vmem:[#allocation18 + $0x34] sm:$0xf]
          %v2868 = vld [vmem:[#allocation18 + $0x38] sm:$0xf]
          %v2869 = vld [vmem:[#allocation18 + $0x3c] sm:$0xf]
          %v2886 = vunpack.c.l.b16 %v2854
          %v2887 = vunpack.c.l.b16 %v2855
          %v2888 = vunpack.c.l.b16 %v2856
          %v2889 = vunpack.c.l.b16 %v2857
          %v2890 = vunpack.c.l.b16 %v2858
          %v2891 = vunpack.c.l.b16 %v2859
          %v2892 = vunpack.c.l.b16 %v2860
          %v2893 = vunpack.c.l.b16 %v2861
          %v2894 = vunpack.c.l.b16 %v2862
          %v2895 = vunpack.c.l.b16 %v2863
          %v2896 = vunpack.c.l.b16 %v2864
          %v2897 = vunpack.c.l.b16 %v2865
          %v2898 = vunpack.c.l.b16 %v2866
          %v2899 = vunpack.c.l.b16 %v2867
          %v2900 = vunpack.c.l.b16 %v2868
          %v2901 = vunpack.c.l.b16 %v2869
          %v2902 = vpack.c.b16 %v2887, %v2886
          %v2903 = vpack.c.b16 %v2889, %v2888
          %v2904 = vpack.c.b16 %v2891, %v2890
          %v2905 = vpack.c.b16 %v2893, %v2892
          %v2906 = vpack.c.b16 %v2895, %v2894
          %v2907 = vpack.c.b16 %v2897, %v2896
          %v2908 = vpack.c.b16 %v2899, %v2898
          %v2909 = vpack.c.b16 %v2901, %v2900
          %2918 = vmatprep.subr.bf16.mxu0 0
          %2919 = vmatpush1.bf16.msra.mxu0 %v2902
          %2920 = vmatprep.subr.bf16.mxu0 0
          %2921 = vmatpush1.bf16.msra.mxu0 %v2903
          %2922 = vmatprep.subr.bf16.mxu0 0
          %2923 = vmatpush1.bf16.msra.mxu0 %v2904
          %2924 = vmatprep.subr.bf16.mxu0 0
          %2925 = vmatpush1.bf16.msra.mxu0 %v2905
          %2926 = vmatprep.subr.bf16.mxu0 0
          %2927 = vmatpush1.bf16.msra.mxu0 %v2906
          %2928 = vmatprep.subr.bf16.mxu0 0
          %2929 = vmatpush1.bf16.msra.mxu0 %v2907
          %2930 = vmatprep.subr.bf16.mxu0 0
          %2931 = vmatpush1.bf16.msra.mxu0 %v2908
          %2932 = vmatprep.subr.bf16.mxu0 0
          %2933 = vmatpush1.bf16.msra.mxu0 %v2909
          %2934 = vmatprep.subr.bf16.mxu0 0
          %2935 = vmatpush1.bf16.msra.mxu0 0
          %2936 = vmatprep.subr.bf16.mxu0 0
          %2937 = vmatpush1.bf16.msra.mxu0 0
          %2938 = vmatprep.subr.bf16.mxu0 0
          %2939 = vmatpush1.bf16.msra.mxu0 0
          %2940 = vmatprep.subr.bf16.mxu0 0
          %2941 = vmatpush1.bf16.msra.mxu0 0
          %2942 = vmatprep.subr.bf16.mxu0 0
          %2943 = vmatpush1.bf16.msra.mxu0 0
          %2944 = vmatprep.subr.bf16.mxu0 0
          %2945 = vmatpush1.bf16.msra.mxu0 0
          %2946 = vmatprep.subr.bf16.mxu0 0
          %2947 = vmatpush1.bf16.msra.mxu0 0
          %2948 = vmatprep.subr.bf16.mxu0 0
          %2949 = vmatpush1.bf16.msra.mxu0 0
          %2950 = vmatprep.mubr.bf16.mxu0 0
          %2951 = vmatmul.mubr.bf16.gmra.mrb[0].mxu0 %v2853
          %v2952 = vpop.f32.mrb[0].mxu0
          %v2953 = vadd.f32 0.0, %v2952
          %v2954 = vpop.f32.mrb[0].mxu0
          %v2955 = vpop.f32.mrb[0].mxu0
          %v2956 = vadd.f32 0.0, %v2955
          %v2957 = vpop.f32.mrb[0].mxu0
          %2958 = vdwg.mxu0
          %v2959 = vpack.c.bf16 %v2850, %v2847
          %v2960 = vld [vmem:[#allocation20] sm:$0xf]
          %v2961 = vld [vmem:[#allocation20 + $0x4] sm:$0xf]
          %v2962 = vld [vmem:[#allocation20 + $0x8] sm:$0xf]
          %v2963 = vld [vmem:[#allocation20 + $0xc] sm:$0xf]
          %v2964 = vld [vmem:[#allocation20 + $0x10] sm:$0xf]
          %v2965 = vld [vmem:[#allocation20 + $0x14] sm:$0xf]
          %v2966 = vld [vmem:[#allocation20 + $0x18] sm:$0xf]
          %v2967 = vld [vmem:[#allocation20 + $0x1c] sm:$0xf]
          %v2968 = vld [vmem:[#allocation20 + $0x20] sm:$0xf]
          %v2969 = vld [vmem:[#allocation20 + $0x24] sm:$0xf]
          %v2970 = vld [vmem:[#allocation20 + $0x28] sm:$0xf]
          %v2971 = vld [vmem:[#allocation20 + $0x2c] sm:$0xf]
          %v2972 = vld [vmem:[#allocation20 + $0x30] sm:$0xf]
          %v2973 = vld [vmem:[#allocation20 + $0x34] sm:$0xf]
          %v2974 = vld [vmem:[#allocation20 + $0x38] sm:$0xf]
          %v2975 = vld [vmem:[#allocation20 + $0x3c] sm:$0xf]
          %v2992 = vunpack.c.l.b16 %v2960
          %v2993 = vunpack.c.l.b16 %v2961
          %v2994 = vunpack.c.l.b16 %v2962
          %v2995 = vunpack.c.l.b16 %v2963
          %v2996 = vunpack.c.l.b16 %v2964
          %v2997 = vunpack.c.l.b16 %v2965
          %v2998 = vunpack.c.l.b16 %v2966
          %v2999 = vunpack.c.l.b16 %v2967
          %v3000 = vunpack.c.l.b16 %v2968
          %v3001 = vunpack.c.l.b16 %v2969
          %v3002 = vunpack.c.l.b16 %v2970
          %v3003 = vunpack.c.l.b16 %v2971
          %v3004 = vunpack.c.l.b16 %v2972
          %v3005 = vunpack.c.l.b16 %v2973
          %v3006 = vunpack.c.l.b16 %v2974
          %v3007 = vunpack.c.l.b16 %v2975
          %v3008 = vpack.c.b16 %v2993, %v2992
          %v3009 = vpack.c.b16 %v2995, %v2994
          %v3010 = vpack.c.b16 %v2997, %v2996
          %v3011 = vpack.c.b16 %v2999, %v2998
          %v3012 = vpack.c.b16 %v3001, %v3000
          %v3013 = vpack.c.b16 %v3003, %v3002
          %v3014 = vpack.c.b16 %v3005, %v3004
          %v3015 = vpack.c.b16 %v3007, %v3006
          %3024 = vmatprep.subr.bf16.mxu0 0
          %3025 = vmatpush1.bf16.msra.mxu0 %v3008
          %3026 = vmatprep.subr.bf16.mxu0 0
          %3027 = vmatpush1.bf16.msra.mxu0 %v3009
          %3028 = vmatprep.subr.bf16.mxu0 0
          %3029 = vmatpush1.bf16.msra.mxu0 %v3010
          %3030 = vmatprep.subr.bf16.mxu0 0
          %3031 = vmatpush1.bf16.msra.mxu0 %v3011
          %3032 = vmatprep.subr.bf16.mxu0 0
          %3033 = vmatpush1.bf16.msra.mxu0 %v3012
          %3034 = vmatprep.subr.bf16.mxu0 0
          %3035 = vmatpush1.bf16.msra.mxu0 %v3013
          %3036 = vmatprep.subr.bf16.mxu0 0
          %3037 = vmatpush1.bf16.msra.mxu0 %v3014
          %3038 = vmatprep.subr.bf16.mxu0 0
          %3039 = vmatpush1.bf16.msra.mxu0 %v3015
          %3040 = vmatprep.subr.bf16.mxu0 0
          %3041 = vmatpush1.bf16.msra.mxu0 0
          %3042 = vmatprep.subr.bf16.mxu0 0
          %3043 = vmatpush1.bf16.msra.mxu0 0
          %3044 = vmatprep.subr.bf16.mxu0 0
          %3045 = vmatpush1.bf16.msra.mxu0 0
          %3046 = vmatprep.subr.bf16.mxu0 0
          %3047 = vmatpush1.bf16.msra.mxu0 0
          %3048 = vmatprep.subr.bf16.mxu0 0
          %3049 = vmatpush1.bf16.msra.mxu0 0
          %3050 = vmatprep.subr.bf16.mxu0 0
          %3051 = vmatpush1.bf16.msra.mxu0 0
          %3052 = vmatprep.subr.bf16.mxu0 0
          %3053 = vmatpush1.bf16.msra.mxu0 0
          %3054 = vmatprep.subr.bf16.mxu0 0
          %3055 = vmatpush1.bf16.msra.mxu0 0
          %3056 = vmatprep.mubr.bf16.mxu0 0
          %3057 = vmatmul.mubr.bf16.gmra.mrb[0].mxu0 %v2959
          %v3058 = vpop.f32.mrb[0].mxu0
          %v3059 = vadd.f32 0.0, %v3058
          %v3060 = vpop.f32.mrb[0].mxu0
          %v3061 = vpop.f32.mrb[0].mxu0
          %v3062 = vadd.f32 0.0, %v3061
          %v3063 = vpop.f32.mrb[0].mxu0
          %3064 = vdwg.mxu0
          %v3065 = vsub.f32 %v2953, %v3059
          %v3066 = vsub.f32 %v2956, %v3062
          %v3067 = vadd.f32 %v3065, %v1655
          %v3068 = vadd.f32 %v3066, %v1656
          %v3069 = vld [vmem:[%s1112] sm:$0x1]
          %v3070 = vld [vmem:[%s1115] sm:$0x1]
          %3071 = vadd.xlane.f32.xlu0 %v3067
          %v3072 = vpop.xlane.xlu0 %3071
          %3073 = vadd.xlane.f32.xlu0 %v3068
          %v3074 = vpop.xlane.xlu0 %3073
          %v3075 = vmul.f32 %v3072, %v1991
          %v3076 = vmul.f32 %v3074, %v1991
          %v3077 = vsub.f32 %v3067, %v3075
          %v3078 = vsub.f32 %v3068, %v3076
          %v3079 = vmul.f32 %v3077, %v3077
          %v3080 = vmul.f32 %v3078, %v3078
          %3081 = vadd.xlane.f32.xlu0 %v3079
          %v3082 = vpop.xlane.xlu0 %3081
          %3083 = vadd.xlane.f32.xlu0 %v3080
          %v3084 = vpop.xlane.xlu0 %3083
          %v3085 = vmul.f32 %v3082, %v1991
          %v3086 = vmul.f32 %v3084, %v1991
          %v3087 = vadd.f32 %v3085, 1e-12
          %v3088 = vadd.f32 %v3086, 1e-12
          %v3089 = vrsqrt.pop %v3087
          %v3090 = vrsqrt.pop %v3088
          %v3091 = vmul.f32 %v3077, %v3089
          %v3092 = vmul.f32 %v3078, %v3090
          %v3094 = vlaneseq
          %v3095 = vshrl.u32 %v3094, 7
          %v3096 = vsub.s32 0, %v3095
          %v3097 = vrot.slane %v3069, %v3096
          %v3099 = vmul.f32 %v3091, %v3097
          %v3100 = vmul.f32 %v3092, %v3097
          %v3102 = vlaneseq
          %v3103 = vshrl.u32 %v3102, 7
          %v3104 = vsub.s32 0, %v3103
          %v3105 = vrot.slane %v3070, %v3104
          %v3107 = vadd.f32 %v3099, %v3105
          %v3108 = vadd.f32 %v3100, %v3105
          %3109 = vst [vmem:[#allocation3 + $0x30] sm:$0xff] %v3107
          %3110 = vst [vmem:[#allocation3 + $0x38] sm:$0xff] %v3108
          %v3111 = vpack.c.bf16 %v1658, %v1657
          %v3112 = vld [vmem:[#allocation15] sm:$0xf]
          %v3113 = vld [vmem:[#allocation15 + $0x4] sm:$0xf]
          %v3116 = vunpack.c.l.b16 %v3112
          %v3117 = vunpack.c.l.b16 %v3113
          %v3118 = vpack.c.b16 %v3117, %v3116
          %v3120 = vsel %vm1673, %v3118, 0
          %3122 = vmatprep.subr.bf16.mxu0 0
          %3123 = vmatpush1.bf16.msra.mxu0 %v3111
          %3124 = vmatprep.subr.bf16.mxu0 0
          %3125 = vmatpush1.bf16.msra.mxu0 0
          %3126 = vmatprep.subr.bf16.mxu0 0
          %3127 = vmatpush1.bf16.msra.mxu0 0
          %3128 = vmatprep.subr.bf16.mxu0 0
          %3129 = vmatpush1.bf16.msra.mxu0 0
          %3130 = vmatprep.subr.bf16.mxu0 0
          %3131 = vmatpush1.bf16.msra.mxu0 0
          %3132 = vmatprep.subr.bf16.mxu0 0
          %3133 = vmatpush1.bf16.msra.mxu0 0
          %3134 = vmatprep.subr.bf16.mxu0 0
          %3135 = vmatpush1.bf16.msra.mxu0 0
          %3136 = vmatprep.subr.bf16.mxu0 0
          %3137 = vmatpush1.bf16.msra.mxu0 0
          %3138 = vmatprep.subr.bf16.mxu0 0
          %3139 = vmatpush1.bf16.msra.mxu0 0
          %3140 = vmatprep.subr.bf16.mxu0 0
          %3141 = vmatpush1.bf16.msra.mxu0 0
          %3142 = vmatprep.subr.bf16.mxu0 0
          %3143 = vmatpush1.bf16.msra.mxu0 0
          %3144 = vmatprep.subr.bf16.mxu0 0
          %3145 = vmatpush1.bf16.msra.mxu0 0
          %3146 = vmatprep.subr.bf16.mxu0 0
          %3147 = vmatpush1.bf16.msra.mxu0 0
          %3148 = vmatprep.subr.bf16.mxu0 0
          %3149 = vmatpush1.bf16.msra.mxu0 0
          %3150 = vmatprep.subr.bf16.mxu0 0
          %3151 = vmatpush1.bf16.msra.mxu0 0
          %3152 = vmatprep.subr.bf16.mxu0 0
          %3153 = vmatpush1.bf16.msra.mxu0 0
          %3154 = vmatprep.mubr.bf16.mxu0 0
          %3155 = vmatmul.mubr.bf16.gmra.mrb[0].mxu0 %v3120
          %v3156 = vpop.f32.mrb[0].mxu0
          %v3157 = vadd.f32 0.0, %v3156
          %v3158 = vpop.f32.mrb[0].mxu0
          %v3159 = vpop.f32.mrb[0].mxu0
          %v3160 = vadd.f32 0.0, %v3159
          %v3161 = vpop.f32.mrb[0].mxu0
          %3162 = vdwg.mxu0
          %v3163 = vld [vmem:[#allocation17] sm:$0xf]
          %v3164 = vld [vmem:[#allocation17 + $0x4] sm:$0xf]
          %v3167 = vunpack.c.l.b16 %v3163
          %v3168 = vunpack.c.l.b16 %v3164
          %v3169 = vpack.c.b16 %v3168, %v3167
          %v3171 = vsel %vm1673, %v3169, 0
          %3173 = vmatprep.subr.bf16.mxu0 0
          %3174 = vmatpush1.bf16.msra.mxu0 %v3111
          %3175 = vmatprep.subr.bf16.mxu0 0
          %3176 = vmatpush1.bf16.msra.mxu0 0
          %3177 = vmatprep.subr.bf16.mxu0 0
          %3178 = vmatpush1.bf16.msra.mxu0 0
          %3179 = vmatprep.subr.bf16.mxu0 0
          %3180 = vmatpush1.bf16.msra.mxu0 0
          %3181 = vmatprep.subr.bf16.mxu0 0
          %3182 = vmatpush1.bf16.msra.mxu0 0
          %3183 = vmatprep.subr.bf16.mxu0 0
          %3184 = vmatpush1.bf16.msra.mxu0 0
          %3185 = vmatprep.subr.bf16.mxu0 0
          %3186 = vmatpush1.bf16.msra.mxu0 0
          %3187 = vmatprep.subr.bf16.mxu0 0
          %3188 = vmatpush1.bf16.msra.mxu0 0
          %3189 = vmatprep.subr.bf16.mxu0 0
          %3190 = vmatpush1.bf16.msra.mxu0 0
          %3191 = vmatprep.subr.bf16.mxu0 0
          %3192 = vmatpush1.bf16.msra.mxu0 0
          %3193 = vmatprep.subr.bf16.mxu0 0
          %3194 = vmatpush1.bf16.msra.mxu0 0
          %3195 = vmatprep.subr.bf16.mxu0 0
          %3196 = vmatpush1.bf16.msra.mxu0 0
          %3197 = vmatprep.subr.bf16.mxu0 0
          %3198 = vmatpush1.bf16.msra.mxu0 0
          %3199 = vmatprep.subr.bf16.mxu0 0
          %3200 = vmatpush1.bf16.msra.mxu0 0
          %3201 = vmatprep.subr.bf16.mxu0 0
          %3202 = vmatpush1.bf16.msra.mxu0 0
          %3203 = vmatprep.subr.bf16.mxu0 0
          %3204 = vmatpush1.bf16.msra.mxu0 0
          %3205 = vmatprep.mubr.bf16.mxu0 0
          %3206 = vmatmul.mubr.bf16.gmra.mrb[0].mxu0 %v3171
          %v3207 = vpop.f32.mrb[0].mxu0
          %v3208 = vadd.f32 0.0, %v3207
          %v3209 = vpop.f32.mrb[0].mxu0
          %v3210 = vpop.f32.mrb[0].mxu0
          %v3211 = vadd.f32 0.0, %v3210
          %v3212 = vpop.f32.mrb[0].mxu0
          %3213 = vdwg.mxu0
          %v3214 = vpack.c.bf16 %v3160, %v3157
          %v3215 = vld [vmem:[#allocation18] sm:$0xf]
          %v3216 = vld [vmem:[#allocation18 + $0x4] sm:$0xf]
          %v3217 = vld [vmem:[#allocation18 + $0x8] sm:$0xf]
          %v3218 = vld [vmem:[#allocation18 + $0xc] sm:$0xf]
          %v3219 = vld [vmem:[#allocation18 + $0x10] sm:$0xf]
          %v3220 = vld [vmem:[#allocation18 + $0x14] sm:$0xf]
          %v3221 = vld [vmem:[#allocation18 + $0x18] sm:$0xf]
          %v3222 = vld [vmem:[#allocation18 + $0x1c] sm:$0xf]
          %v3223 = vld [vmem:[#allocation18 + $0x20] sm:$0xf]
          %v3224 = vld [vmem:[#allocation18 + $0x24] sm:$0xf]
          %v3225 = vld [vmem:[#allocation18 + $0x28] sm:$0xf]
          %v3226 = vld [vmem:[#allocation18 + $0x2c] sm:$0xf]
          %v3227 = vld [vmem:[#allocation18 + $0x30] sm:$0xf]
          %v3228 = vld [vmem:[#allocation18 + $0x34] sm:$0xf]
          %v3229 = vld [vmem:[#allocation18 + $0x38] sm:$0xf]
          %v3230 = vld [vmem:[#allocation18 + $0x3c] sm:$0xf]
          %v3247 = vunpack.c.l.b16 %v3215
          %v3248 = vunpack.c.l.b16 %v3216
          %v3249 = vunpack.c.l.b16 %v3217
          %v3250 = vunpack.c.l.b16 %v3218
          %v3251 = vunpack.c.l.b16 %v3219
          %v3252 = vunpack.c.l.b16 %v3220
          %v3253 = vunpack.c.l.b16 %v3221
          %v3254 = vunpack.c.l.b16 %v3222
          %v3255 = vunpack.c.l.b16 %v3223
          %v3256 = vunpack.c.l.b16 %v3224
          %v3257 = vunpack.c.l.b16 %v3225
          %v3258 = vunpack.c.l.b16 %v3226
          %v3259 = vunpack.c.l.b16 %v3227
          %v3260 = vunpack.c.l.b16 %v3228
          %v3261 = vunpack.c.l.b16 %v3229
          %v3262 = vunpack.c.l.b16 %v3230
          %v3263 = vpack.c.b16 %v3248, %v3247
          %v3264 = vpack.c.b16 %v3250, %v3249
          %v3265 = vpack.c.b16 %v3252, %v3251
          %v3266 = vpack.c.b16 %v3254, %v3253
          %v3267 = vpack.c.b16 %v3256, %v3255
          %v3268 = vpack.c.b16 %v3258, %v3257
          %v3269 = vpack.c.b16 %v3260, %v3259
          %v3270 = vpack.c.b16 %v3262, %v3261
          %3279 = vmatprep.subr.bf16.mxu0 0
          %3280 = vmatpush1.bf16.msra.mxu0 %v3263
          %3281 = vmatprep.subr.bf16.mxu0 0
          %3282 = vmatpush1.bf16.msra.mxu0 %v3264
          %3283 = vmatprep.subr.bf16.mxu0 0
          %3284 = vmatpush1.bf16.msra.mxu0 %v3265
          %3285 = vmatprep.subr.bf16.mxu0 0
          %3286 = vmatpush1.bf16.msra.mxu0 %v3266
          %3287 = vmatprep.subr.bf16.mxu0 0
          %3288 = vmatpush1.bf16.msra.mxu0 %v3267
          %3289 = vmatprep.subr.bf16.mxu0 0
          %3290 = vmatpush1.bf16.msra.mxu0 %v3268
          %3291 = vmatprep.subr.bf16.mxu0 0
          %3292 = vmatpush1.bf16.msra.mxu0 %v3269
          %3293 = vmatprep.subr.bf16.mxu0 0
          %3294 = vmatpush1.bf16.msra.mxu0 %v3270
          %3295 = vmatprep.subr.bf16.mxu0 0
          %3296 = vmatpush1.bf16.msra.mxu0 0
          %3297 = vmatprep.subr.bf16.mxu0 0
          %3298 = vmatpush1.bf16.msra.mxu0 0
          %3299 = vmatprep.subr.bf16.mxu0 0
          %3300 = vmatpush1.bf16.msra.mxu0 0
          %3301 = vmatprep.subr.bf16.mxu0 0
          %3302 = vmatpush1.bf16.msra.mxu0 0
          %3303 = vmatprep.subr.bf16.mxu0 0
          %3304 = vmatpush1.bf16.msra.mxu0 0
          %3305 = vmatprep.subr.bf16.mxu0 0
          %3306 = vmatpush1.bf16.msra.mxu0 0
          %3307 = vmatprep.subr.bf16.mxu0 0
          %3308 = vmatpush1.bf16.msra.mxu0 0
          %3309 = vmatprep.subr.bf16.mxu0 0
          %3310 = vmatpush1.bf16.msra.mxu0 0
          %3311 = vmatprep.mubr.bf16.mxu0 0
          %3312 = vmatmul.mubr.bf16.gmra.mrb[0].mxu0 %v3214
          %v3313 = vpop.f32.mrb[0].mxu0
          %v3314 = vadd.f32 0.0, %v3313
          %v3315 = vpop.f32.mrb[0].mxu0
          %v3316 = vpop.f32.mrb[0].mxu0
          %v3317 = vadd.f32 0.0, %v3316
          %v3318 = vpop.f32.mrb[0].mxu0
          %3319 = vdwg.mxu0
          %v3320 = vpack.c.bf16 %v3211, %v3208
          %v3321 = vld [vmem:[#allocation20] sm:$0xf]
          %v3322 = vld [vmem:[#allocation20 + $0x4] sm:$0xf]
          %v3323 = vld [vmem:[#allocation20 + $0x8] sm:$0xf]
          %v3324 = vld [vmem:[#allocation20 + $0xc] sm:$0xf]
          %v3325 = vld [vmem:[#allocation20 + $0x10] sm:$0xf]
          %v3326 = vld [vmem:[#allocation20 + $0x14] sm:$0xf]
          %v3327 = vld [vmem:[#allocation20 + $0x18] sm:$0xf]
          %v3328 = vld [vmem:[#allocation20 + $0x1c] sm:$0xf]
          %v3329 = vld [vmem:[#allocation20 + $0x20] sm:$0xf]
          %v3330 = vld [vmem:[#allocation20 + $0x24] sm:$0xf]
          %v3331 = vld [vmem:[#allocation20 + $0x28] sm:$0xf]
          %v3332 = vld [vmem:[#allocation20 + $0x2c] sm:$0xf]
          %v3333 = vld [vmem:[#allocation20 + $0x30] sm:$0xf]
          %v3334 = vld [vmem:[#allocation20 + $0x34] sm:$0xf]
          %v3335 = vld [vmem:[#allocation20 + $0x38] sm:$0xf]
          %v3336 = vld [vmem:[#allocation20 + $0x3c] sm:$0xf]
          %v3353 = vunpack.c.l.b16 %v3321
          %v3354 = vunpack.c.l.b16 %v3322
          %v3355 = vunpack.c.l.b16 %v3323
          %v3356 = vunpack.c.l.b16 %v3324
          %v3357 = vunpack.c.l.b16 %v3325
          %v3358 = vunpack.c.l.b16 %v3326
          %v3359 = vunpack.c.l.b16 %v3327
          %v3360 = vunpack.c.l.b16 %v3328
          %v3361 = vunpack.c.l.b16 %v3329
          %v3362 = vunpack.c.l.b16 %v3330
          %v3363 = vunpack.c.l.b16 %v3331
          %v3364 = vunpack.c.l.b16 %v3332
          %v3365 = vunpack.c.l.b16 %v3333
          %v3366 = vunpack.c.l.b16 %v3334
          %v3367 = vunpack.c.l.b16 %v3335
          %v3368 = vunpack.c.l.b16 %v3336
          %v3369 = vpack.c.b16 %v3354, %v3353
          %v3370 = vpack.c.b16 %v3356, %v3355
          %v3371 = vpack.c.b16 %v3358, %v3357
          %v3372 = vpack.c.b16 %v3360, %v3359
          %v3373 = vpack.c.b16 %v3362, %v3361
          %v3374 = vpack.c.b16 %v3364, %v3363
          %v3375 = vpack.c.b16 %v3366, %v3365
          %v3376 = vpack.c.b16 %v3368, %v3367
          %3385 = vmatprep.subr.bf16.mxu0 0
          %3386 = vmatpush1.bf16.msra.mxu0 %v3369
          %3387 = vmatprep.subr.bf16.mxu0 0
          %3388 = vmatpush1.bf16.msra.mxu0 %v3370
          %3389 = vmatprep.subr.bf16.mxu0 0
          %3390 = vmatpush1.bf16.msra.mxu0 %v3371
          %3391 = vmatprep.subr.bf16.mxu0 0
          %3392 = vmatpush1.bf16.msra.mxu0 %v3372
          %3393 = vmatprep.subr.bf16.mxu0 0
          %3394 = vmatpush1.bf16.msra.mxu0 %v3373
          %3395 = vmatprep.subr.bf16.mxu0 0
          %3396 = vmatpush1.bf16.msra.mxu0 %v3374
          %3397 = vmatprep.subr.bf16.mxu0 0
          %3398 = vmatpush1.bf16.msra.mxu0 %v3375
          %3399 = vmatprep.subr.bf16.mxu0 0
          %3400 = vmatpush1.bf16.msra.mxu0 %v3376
          %3401 = vmatprep.subr.bf16.mxu0 0
          %3402 = vmatpush1.bf16.msra.mxu0 0
          %3403 = vmatprep.subr.bf16.mxu0 0
          %3404 = vmatpush1.bf16.msra.mxu0 0
          %3405 = vmatprep.subr.bf16.mxu0 0
          %3406 = vmatpush1.bf16.msra.mxu0 0
          %3407 = vmatprep.subr.bf16.mxu0 0
          %3408 = vmatpush1.bf16.msra.mxu0 0
          %3409 = vmatprep.subr.bf16.mxu0 0
          %3410 = vmatpush1.bf16.msra.mxu0 0
          %3411 = vmatprep.subr.bf16.mxu0 0
          %3412 = vmatpush1.bf16.msra.mxu0 0
          %3413 = vmatprep.subr.bf16.mxu0 0
          %3414 = vmatpush1.bf16.msra.mxu0 0
          %3415 = vmatprep.subr.bf16.mxu0 0
          %3416 = vmatpush1.bf16.msra.mxu0 0
          %3417 = vmatprep.mubr.bf16.mxu0 0
          %3418 = vmatmul.mubr.bf16.gmra.mrb[0].mxu0 %v3320
          %v3419 = vpop.f32.mrb[0].mxu0
          %v3420 = vadd.f32 0.0, %v3419
          %v3421 = vpop.f32.mrb[0].mxu0
          %v3422 = vpop.f32.mrb[0].mxu0
          %v3423 = vadd.f32 0.0, %v3422
          %v3424 = vpop.f32.mrb[0].mxu0
          %3425 = vdwg.mxu0
          %v3426 = vsub.f32 %v3314, %v3420
          %v3427 = vsub.f32 %v3317, %v3423
          %v3428 = vadd.f32 %v3426, %v1657
          %v3429 = vadd.f32 %v3427, %v1658
          %v3430 = vld [vmem:[%s1112] sm:$0x1]
          %v3431 = vld [vmem:[%s1115] sm:$0x1]
          %3432 = vadd.xlane.f32.xlu0 %v3428
          %v3433 = vpop.xlane.xlu0 %3432
          %3434 = vadd.xlane.f32.xlu0 %v3429
          %v3435 = vpop.xlane.xlu0 %3434
          %v3436 = vmul.f32 %v3433, %v1991
          %v3437 = vmul.f32 %v3435, %v1991
          %v3438 = vsub.f32 %v3428, %v3436
          %v3439 = vsub.f32 %v3429, %v3437
          %v3440 = vmul.f32 %v3438, %v3438
          %v3441 = vmul.f32 %v3439, %v3439
          %3442 = vadd.xlane.f32.xlu0 %v3440
          %v3443 = vpop.xlane.xlu0 %3442
          %3444 = vadd.xlane.f32.xlu0 %v3441
          %v3445 = vpop.xlane.xlu0 %3444
          %v3446 = vmul.f32 %v3443, %v1991
          %v3447 = vmul.f32 %v3445, %v1991
          %v3448 = vadd.f32 %v3446, 1e-12
          %v3449 = vadd.f32 %v3447, 1e-12
          %v3450 = vrsqrt.pop %v3448
          %v3451 = vrsqrt.pop %v3449
          %v3452 = vmul.f32 %v3438, %v3450
          %v3453 = vmul.f32 %v3439, %v3451
          %v3455 = vlaneseq
          %v3456 = vshrl.u32 %v3455, 7
          %v3457 = vsub.s32 0, %v3456
          %v3458 = vrot.slane %v3430, %v3457
          %v3460 = vmul.f32 %v3452, %v3458
          %v3461 = vmul.f32 %v3453, %v3458
          %v3463 = vlaneseq
          %v3464 = vshrl.u32 %v3463, 7
          %v3465 = vsub.s32 0, %v3464
          %v3466 = vrot.slane %v3431, %v3465
          %v3468 = vadd.f32 %v3460, %v3466
          %v3469 = vadd.f32 %v3461, %v3466
          %3470 = vst [vmem:[#allocation3 + $0x40] sm:$0xff] %v3468
          %3471 = vst [vmem:[#allocation3 + $0x48] sm:$0xff] %v3469
          %v3472 = vpack.c.bf16 %v1660, %v1659
          %v3473 = vld [vmem:[#allocation15] sm:$0xf]
          %v3474 = vld [vmem:[#allocation15 + $0x4] sm:$0xf]
          %v3477 = vunpack.c.l.b16 %v3473
          %v3478 = vunpack.c.l.b16 %v3474
          %v3479 = vpack.c.b16 %v3478, %v3477
          %v3481 = vsel %vm1673, %v3479, 0
          %3483 = vmatprep.subr.bf16.mxu0 0
          %3484 = vmatpush1.bf16.msra.mxu0 %v3472
          %3485 = vmatprep.subr.bf16.mxu0 0
          %3486 = vmatpush1.bf16.msra.mxu0 0
          %3487 = vmatprep.subr.bf16.mxu0 0
          %3488 = vmatpush1.bf16.msra.mxu0 0
          %3489 = vmatprep.subr.bf16.mxu0 0
          %3490 = vmatpush1.bf16.msra.mxu0 0
          %3491 = vmatprep.subr.bf16.mxu0 0
          %3492 = vmatpush1.bf16.msra.mxu0 0
          %3493 = vmatprep.subr.bf16.mxu0 0
          %3494 = vmatpush1.bf16.msra.mxu0 0
          %3495 = vmatprep.subr.bf16.mxu0 0
          %3496 = vmatpush1.bf16.msra.mxu0 0
          %3497 = vmatprep.subr.bf16.mxu0 0
          %3498 = vmatpush1.bf16.msra.mxu0 0
          %3499 = vmatprep.subr.bf16.mxu0 0
          %3500 = vmatpush1.bf16.msra.mxu0 0
          %3501 = vmatprep.subr.bf16.mxu0 0
          %3502 = vmatpush1.bf16.msra.mxu0 0
          %3503 = vmatprep.subr.bf16.mxu0 0
          %3504 = vmatpush1.bf16.msra.mxu0 0
          %3505 = vmatprep.subr.bf16.mxu0 0
          %3506 = vmatpush1.bf16.msra.mxu0 0
          %3507 = vmatprep.subr.bf16.mxu0 0
          %3508 = vmatpush1.bf16.msra.mxu0 0
          %3509 = vmatprep.subr.bf16.mxu0 0
          %3510 = vmatpush1.bf16.msra.mxu0 0
          %3511 = vmatprep.subr.bf16.mxu0 0
          %3512 = vmatpush1.bf16.msra.mxu0 0
          %3513 = vmatprep.subr.bf16.mxu0 0
          %3514 = vmatpush1.bf16.msra.mxu0 0
          %3515 = vmatprep.mubr.bf16.mxu0 0
          %3516 = vmatmul.mubr.bf16.gmra.mrb[0].mxu0 %v3481
          %v3517 = vpop.f32.mrb[0].mxu0
          %v3518 = vadd.f32 0.0, %v3517
          %v3519 = vpop.f32.mrb[0].mxu0
          %v3520 = vpop.f32.mrb[0].mxu0
          %v3521 = vadd.f32 0.0, %v3520
          %v3522 = vpop.f32.mrb[0].mxu0
          %3523 = vdwg.mxu0
          %v3524 = vld [vmem:[#allocation17] sm:$0xf]
          %v3525 = vld [vmem:[#allocation17 + $0x4] sm:$0xf]
          %v3528 = vunpack.c.l.b16 %v3524
          %v3529 = vunpack.c.l.b16 %v3525
          %v3530 = vpack.c.b16 %v3529, %v3528
          %v3532 = vsel %vm1673, %v3530, 0
          %3534 = vmatprep.subr.bf16.mxu0 0
          %3535 = vmatpush1.bf16.msra.mxu0 %v3472
          %3536 = vmatprep.subr.bf16.mxu0 0
          %3537 = vmatpush1.bf16.msra.mxu0 0
          %3538 = vmatprep.subr.bf16.mxu0 0
          %3539 = vmatpush1.bf16.msra.mxu0 0
          %3540 = vmatprep.subr.bf16.mxu0 0
          %3541 = vmatpush1.bf16.msra.mxu0 0
          %3542 = vmatprep.subr.bf16.mxu0 0
          %3543 = vmatpush1.bf16.msra.mxu0 0
          %3544 = vmatprep.subr.bf16.mxu0 0
          %3545 = vmatpush1.bf16.msra.mxu0 0
          %3546 = vmatprep.subr.bf16.mxu0 0
          %3547 = vmatpush1.bf16.msra.mxu0 0
          %3548 = vmatprep.subr.bf16.mxu0 0
          %3549 = vmatpush1.bf16.msra.mxu0 0
          %3550 = vmatprep.subr.bf16.mxu0 0
          %3551 = vmatpush1.bf16.msra.mxu0 0
          %3552 = vmatprep.subr.bf16.mxu0 0
          %3553 = vmatpush1.bf16.msra.mxu0 0
          %3554 = vmatprep.subr.bf16.mxu0 0
          %3555 = vmatpush1.bf16.msra.mxu0 0
          %3556 = vmatprep.subr.bf16.mxu0 0
          %3557 = vmatpush1.bf16.msra.mxu0 0
          %3558 = vmatprep.subr.bf16.mxu0 0
          %3559 = vmatpush1.bf16.msra.mxu0 0
          %3560 = vmatprep.subr.bf16.mxu0 0
          %3561 = vmatpush1.bf16.msra.mxu0 0
          %3562 = vmatprep.subr.bf16.mxu0 0
          %3563 = vmatpush1.bf16.msra.mxu0 0
          %3564 = vmatprep.subr.bf16.mxu0 0
          %3565 = vmatpush1.bf16.msra.mxu0 0
          %3566 = vmatprep.mubr.bf16.mxu0 0
          %3567 = vmatmul.mubr.bf16.gmra.mrb[0].mxu0 %v3532
          %v3568 = vpop.f32.mrb[0].mxu0
          %v3569 = vadd.f32 0.0, %v3568
          %v3570 = vpop.f32.mrb[0].mxu0
          %v3571 = vpop.f32.mrb[0].mxu0
          %v3572 = vadd.f32 0.0, %v3571
          %v3573 = vpop.f32.mrb[0].mxu0
          %3574 = vdwg.mxu0
          %v3575 = vpack.c.bf16 %v3521, %v3518
          %v3576 = vld [vmem:[#allocation18] sm:$0xf]
          %v3577 = vld [vmem:[#allocation18 + $0x4] sm:$0xf]
          %v3578 = vld [vmem:[#allocation18 + $0x8] sm:$0xf]
          %v3579 = vld [vmem:[#allocation18 + $0xc] sm:$0xf]
          %v3580 = vld [vmem:[#allocation18 + $0x10] sm:$0xf]
          %v3581 = vld [vmem:[#allocation18 + $0x14] sm:$0xf]
          %v3582 = vld [vmem:[#allocation18 + $0x18] sm:$0xf]
          %v3583 = vld [vmem:[#allocation18 + $0x1c] sm:$0xf]
          %v3584 = vld [vmem:[#allocation18 + $0x20] sm:$0xf]
          %v3585 = vld [vmem:[#allocation18 + $0x24] sm:$0xf]
          %v3586 = vld [vmem:[#allocation18 + $0x28] sm:$0xf]
          %v3587 = vld [vmem:[#allocation18 + $0x2c] sm:$0xf]
          %v3588 = vld [vmem:[#allocation18 + $0x30] sm:$0xf]
          %v3589 = vld [vmem:[#allocation18 + $0x34] sm:$0xf]
          %v3590 = vld [vmem:[#allocation18 + $0x38] sm:$0xf]
          %v3591 = vld [vmem:[#allocation18 + $0x3c] sm:$0xf]
          %v3608 = vunpack.c.l.b16 %v3576
          %v3609 = vunpack.c.l.b16 %v3577
          %v3610 = vunpack.c.l.b16 %v3578
          %v3611 = vunpack.c.l.b16 %v3579
          %v3612 = vunpack.c.l.b16 %v3580
          %v3613 = vunpack.c.l.b16 %v3581
          %v3614 = vunpack.c.l.b16 %v3582
          %v3615 = vunpack.c.l.b16 %v3583
          %v3616 = vunpack.c.l.b16 %v3584
          %v3617 = vunpack.c.l.b16 %v3585
          %v3618 = vunpack.c.l.b16 %v3586
          %v3619 = vunpack.c.l.b16 %v3587
          %v3620 = vunpack.c.l.b16 %v3588
          %v3621 = vunpack.c.l.b16 %v3589
          %v3622 = vunpack.c.l.b16 %v3590
          %v3623 = vunpack.c.l.b16 %v3591
          %v3624 = vpack.c.b16 %v3609, %v3608
          %v3625 = vpack.c.b16 %v3611, %v3610
          %v3626 = vpack.c.b16 %v3613, %v3612
          %v3627 = vpack.c.b16 %v3615, %v3614
          %v3628 = vpack.c.b16 %v3617, %v3616
          %v3629 = vpack.c.b16 %v3619, %v3618
          %v3630 = vpack.c.b16 %v3621, %v3620
          %v3631 = vpack.c.b16 %v3623, %v3622
          %3640 = vmatprep.subr.bf16.mxu0 0
          %3641 = vmatpush1.bf16.msra.mxu0 %v3624
          %3642 = vmatprep.subr.bf16.mxu0 0
          %3643 = vmatpush1.bf16.msra.mxu0 %v3625
          %3644 = vmatprep.subr.bf16.mxu0 0
          %3645 = vmatpush1.bf16.msra.mxu0 %v3626
          %3646 = vmatprep.subr.bf16.mxu0 0
          %3647 = vmatpush1.bf16.msra.mxu0 %v3627
          %3648 = vmatprep.subr.bf16.mxu0 0
          %3649 = vmatpush1.bf16.msra.mxu0 %v3628
          %3650 = vmatprep.subr.bf16.mxu0 0
          %3651 = vmatpush1.bf16.msra.mxu0 %v3629
          %3652 = vmatprep.subr.bf16.mxu0 0
          %3653 = vmatpush1.bf16.msra.mxu0 %v3630
          %3654 = vmatprep.subr.bf16.mxu0 0
          %3655 = vmatpush1.bf16.msra.mxu0 %v3631
          %3656 = vmatprep.subr.bf16.mxu0 0
          %3657 = vmatpush1.bf16.msra.mxu0 0
          %3658 = vmatprep.subr.bf16.mxu0 0
          %3659 = vmatpush1.bf16.msra.mxu0 0
          %3660 = vmatprep.subr.bf16.mxu0 0
          %3661 = vmatpush1.bf16.msra.mxu0 0
          %3662 = vmatprep.subr.bf16.mxu0 0
          %3663 = vmatpush1.bf16.msra.mxu0 0
          %3664 = vmatprep.subr.bf16.mxu0 0
          %3665 = vmatpush1.bf16.msra.mxu0 0
          %3666 = vmatprep.subr.bf16.mxu0 0
          %3667 = vmatpush1.bf16.msra.mxu0 0
          %3668 = vmatprep.subr.bf16.mxu0 0
          %3669 = vmatpush1.bf16.msra.mxu0 0
          %3670 = vmatprep.subr.bf16.mxu0 0
          %3671 = vmatpush1.bf16.msra.mxu0 0
          %3672 = vmatprep.mubr.bf16.mxu0 0
          %3673 = vmatmul.mubr.bf16.gmra.mrb[0].mxu0 %v3575
          %v3674 = vpop.f32.mrb[0].mxu0
          %v3675 = vadd.f32 0.0, %v3674
          %v3676 = vpop.f32.mrb[0].mxu0
          %v3677 = vpop.f32.mrb[0].mxu0
          %v3678 = vadd.f32 0.0, %v3677
          %v3679 = vpop.f32.mrb[0].mxu0
          %3680 = vdwg.mxu0
          %v3681 = vpack.c.bf16 %v3572, %v3569
          %v3682 = vld [vmem:[#allocation20] sm:$0xf]
          %v3683 = vld [vmem:[#allocation20 + $0x4] sm:$0xf]
          %v3684 = vld [vmem:[#allocation20 + $0x8] sm:$0xf]
          %v3685 = vld [vmem:[#allocation20 + $0xc] sm:$0xf]
          %v3686 = vld [vmem:[#allocation20 + $0x10] sm:$0xf]
          %v3687 = vld [vmem:[#allocation20 + $0x14] sm:$0xf]
          %v3688 = vld [vmem:[#allocation20 + $0x18] sm:$0xf]
          %v3689 = vld [vmem:[#allocation20 + $0x1c] sm:$0xf]
          %v3690 = vld [vmem:[#allocation20 + $0x20] sm:$0xf]
          %v3691 = vld [vmem:[#allocation20 + $0x24] sm:$0xf]
          %v3692 = vld [vmem:[#allocation20 + $0x28] sm:$0xf]
          %v3693 = vld [vmem:[#allocation20 + $0x2c] sm:$0xf]
          %v3694 = vld [vmem:[#allocation20 + $0x30] sm:$0xf]
          %v3695 = vld [vmem:[#allocation20 + $0x34] sm:$0xf]
          %v3696 = vld [vmem:[#allocation20 + $0x38] sm:$0xf]
          %v3697 = vld [vmem:[#allocation20 + $0x3c] sm:$0xf]
          %v3714 = vunpack.c.l.b16 %v3682
          %v3715 = vunpack.c.l.b16 %v3683
          %v3716 = vunpack.c.l.b16 %v3684
          %v3717 = vunpack.c.l.b16 %v3685
          %v3718 = vunpack.c.l.b16 %v3686
          %v3719 = vunpack.c.l.b16 %v3687
          %v3720 = vunpack.c.l.b16 %v3688
          %v3721 = vunpack.c.l.b16 %v3689
          %v3722 = vunpack.c.l.b16 %v3690
          %v3723 = vunpack.c.l.b16 %v3691
          %v3724 = vunpack.c.l.b16 %v3692
          %v3725 = vunpack.c.l.b16 %v3693
          %v3726 = vunpack.c.l.b16 %v3694
          %v3727 = vunpack.c.l.b16 %v3695
          %v3728 = vunpack.c.l.b16 %v3696
          %v3729 = vunpack.c.l.b16 %v3697
          %v3730 = vpack.c.b16 %v3715, %v3714
          %v3731 = vpack.c.b16 %v3717, %v3716
          %v3732 = vpack.c.b16 %v3719, %v3718
          %v3733 = vpack.c.b16 %v3721, %v3720
          %v3734 = vpack.c.b16 %v3723, %v3722
          %v3735 = vpack.c.b16 %v3725, %v3724
          %v3736 = vpack.c.b16 %v3727, %v3726
          %v3737 = vpack.c.b16 %v3729, %v3728
          %3746 = vmatprep.subr.bf16.mxu0 0
          %3747 = vmatpush1.bf16.msra.mxu0 %v3730
          %3748 = vmatprep.subr.bf16.mxu0 0
          %3749 = vmatpush1.bf16.msra.mxu0 %v3731
          %3750 = vmatprep.subr.bf16.mxu0 0
          %3751 = vmatpush1.bf16.msra.mxu0 %v3732
          %3752 = vmatprep.subr.bf16.mxu0 0
          %3753 = vmatpush1.bf16.msra.mxu0 %v3733
          %3754 = vmatprep.subr.bf16.mxu0 0
          %3755 = vmatpush1.bf16.msra.mxu0 %v3734
          %3756 = vmatprep.subr.bf16.mxu0 0
          %3757 = vmatpush1.bf16.msra.mxu0 %v3735
          %3758 = vmatprep.subr.bf16.mxu0 0
          %3759 = vmatpush1.bf16.msra.mxu0 %v3736
          %3760 = vmatprep.subr.bf16.mxu0 0
          %3761 = vmatpush1.bf16.msra.mxu0 %v3737
          %3762 = vmatprep.subr.bf16.mxu0 0
          %3763 = vmatpush1.bf16.msra.mxu0 0
          %3764 = vmatprep.subr.bf16.mxu0 0
          %3765 = vmatpush1.bf16.msra.mxu0 0
          %3766 = vmatprep.subr.bf16.mxu0 0
          %3767 = vmatpush1.bf16.msra.mxu0 0
          %3768 = vmatprep.subr.bf16.mxu0 0
          %3769 = vmatpush1.bf16.msra.mxu0 0
          %3770 = vmatprep.subr.bf16.mxu0 0
          %3771 = vmatpush1.bf16.msra.mxu0 0
          %3772 = vmatprep.subr.bf16.mxu0 0
          %3773 = vmatpush1.bf16.msra.mxu0 0
          %3774 = vmatprep.subr.bf16.mxu0 0
          %3775 = vmatpush1.bf16.msra.mxu0 0
          %3776 = vmatprep.subr.bf16.mxu0 0
          %3777 = vmatpush1.bf16.msra.mxu0 0
          %3778 = vmatprep.mubr.bf16.mxu0 0
          %3779 = vmatmul.mubr.bf16.gmra.mrb[0].mxu0 %v3681
          %v3780 = vpop.f32.mrb[0].mxu0
          %v3781 = vadd.f32 0.0, %v3780
          %v3782 = vpop.f32.mrb[0].mxu0
          %v3783 = vpop.f32.mrb[0].mxu0
          %v3784 = vadd.f32 0.0, %v3783
          %v3785 = vpop.f32.mrb[0].mxu0
          %3786 = vdwg.mxu0
          %v3787 = vsub.f32 %v3675, %v3781
          %v3788 = vsub.f32 %v3678, %v3784
          %v3789 = vadd.f32 %v3787, %v1659
          %v3790 = vadd.f32 %v3788, %v1660
          %v3791 = vld [vmem:[%s1112] sm:$0x1]
          %v3792 = vld [vmem:[%s1115] sm:$0x1]
          %3793 = vadd.xlane.f32.xlu0 %v3789
          %v3794 = vpop.xlane.xlu0 %3793
          %3795 = vadd.xlane.f32.xlu0 %v3790
          %v3796 = vpop.xlane.xlu0 %3795
          %v3797 = vmul.f32 %v3794, %v1991
          %v3798 = vmul.f32 %v3796, %v1991
          %v3799 = vsub.f32 %v3789, %v3797
          %v3800 = vsub.f32 %v3790, %v3798
          %v3801 = vmul.f32 %v3799, %v3799
          %v3802 = vmul.f32 %v3800, %v3800
          %3803 = vadd.xlane.f32.xlu0 %v3801
          %v3804 = vpop.xlane.xlu0 %3803
          %3805 = vadd.xlane.f32.xlu0 %v3802
          %v3806 = vpop.xlane.xlu0 %3805
          %v3807 = vmul.f32 %v3804, %v1991
          %v3808 = vmul.f32 %v3806, %v1991
          %v3809 = vadd.f32 %v3807, 1e-12
          %v3810 = vadd.f32 %v3808, 1e-12
          %v3811 = vrsqrt.pop %v3809
          %v3812 = vrsqrt.pop %v3810
          %v3813 = vmul.f32 %v3799, %v3811
          %v3814 = vmul.f32 %v3800, %v3812
          %v3816 = vlaneseq
          %v3817 = vshrl.u32 %v3816, 7
          %v3818 = vsub.s32 0, %v3817
          %v3819 = vrot.slane %v3791, %v3818
          %v3821 = vmul.f32 %v3813, %v3819
          %v3822 = vmul.f32 %v3814, %v3819
          %v3824 = vlaneseq
          %v3825 = vshrl.u32 %v3824, 7
          %v3826 = vsub.s32 0, %v3825
          %v3827 = vrot.slane %v3792, %v3826
          %v3829 = vadd.f32 %v3821, %v3827
          %v3830 = vadd.f32 %v3822, %v3827
          %3831 = vst [vmem:[#allocation3 + $0x50] sm:$0xff] %v3829
          %3832 = vst [vmem:[#allocation3 + $0x58] sm:$0xff] %v3830
          %v3833 = vpack.c.bf16 %v1662, %v1661
          %v3834 = vld [vmem:[#allocation15] sm:$0xf]
          %v3835 = vld [vmem:[#allocation15 + $0x4] sm:$0xf]
          %v3838 = vunpack.c.l.b16 %v3834
          %v3839 = vunpack.c.l.b16 %v3835
          %v3840 = vpack.c.b16 %v3839, %v3838
          %v3842 = vsel %vm1673, %v3840, 0
          %3844 = vmatprep.subr.bf16.mxu0 0
          %3845 = vmatpush1.bf16.msra.mxu0 %v3833
          %3846 = vmatprep.subr.bf16.mxu0 0
          %3847 = vmatpush1.bf16.msra.mxu0 0
          %3848 = vmatprep.subr.bf16.mxu0 0
          %3849 = vmatpush1.bf16.msra.mxu0 0
          %3850 = vmatprep.subr.bf16.mxu0 0
          %3851 = vmatpush1.bf16.msra.mxu0 0
          %3852 = vmatprep.subr.bf16.mxu0 0
          %3853 = vmatpush1.bf16.msra.mxu0 0
          %3854 = vmatprep.subr.bf16.mxu0 0
          %3855 = vmatpush1.bf16.msra.mxu0 0
          %3856 = vmatprep.subr.bf16.mxu0 0
          %3857 = vmatpush1.bf16.msra.mxu0 0
          %3858 = vmatprep.subr.bf16.mxu0 0
          %3859 = vmatpush1.bf16.msra.mxu0 0
          %3860 = vmatprep.subr.bf16.mxu0 0
          %3861 = vmatpush1.bf16.msra.mxu0 0
          %3862 = vmatprep.subr.bf16.mxu0 0
          %3863 = vmatpush1.bf16.msra.mxu0 0
          %3864 = vmatprep.subr.bf16.mxu0 0
          %3865 = vmatpush1.bf16.msra.mxu0 0
          %3866 = vmatprep.subr.bf16.mxu0 0
          %3867 = vmatpush1.bf16.msra.mxu0 0
          %3868 = vmatprep.subr.bf16.mxu0 0
          %3869 = vmatpush1.bf16.msra.mxu0 0
          %3870 = vmatprep.subr.bf16.mxu0 0
          %3871 = vmatpush1.bf16.msra.mxu0 0
          %3872 = vmatprep.subr.bf16.mxu0 0
          %3873 = vmatpush1.bf16.msra.mxu0 0
          %3874 = vmatprep.subr.bf16.mxu0 0
          %3875 = vmatpush1.bf16.msra.mxu0 0
          %3876 = vmatprep.mubr.bf16.mxu0 0
          %3877 = vmatmul.mubr.bf16.gmra.mrb[0].mxu0 %v3842
          %v3878 = vpop.f32.mrb[0].mxu0
          %v3879 = vadd.f32 0.0, %v3878
          %v3880 = vpop.f32.mrb[0].mxu0
          %v3881 = vpop.f32.mrb[0].mxu0
          %v3882 = vadd.f32 0.0, %v3881
          %v3883 = vpop.f32.mrb[0].mxu0
          %3884 = vdwg.mxu0
          %v3885 = vld [vmem:[#allocation17] sm:$0xf]
          %v3886 = vld [vmem:[#allocation17 + $0x4] sm:$0xf]
          %v3889 = vunpack.c.l.b16 %v3885
          %v3890 = vunpack.c.l.b16 %v3886
          %v3891 = vpack.c.b16 %v3890, %v3889
          %v3893 = vsel %vm1673, %v3891, 0
          %3895 = vmatprep.subr.bf16.mxu0 0
          %3896 = vmatpush1.bf16.msra.mxu0 %v3833
          %3897 = vmatprep.subr.bf16.mxu0 0
          %3898 = vmatpush1.bf16.msra.mxu0 0
          %3899 = vmatprep.subr.bf16.mxu0 0
          %3900 = vmatpush1.bf16.msra.mxu0 0
          %3901 = vmatprep.subr.bf16.mxu0 0
          %3902 = vmatpush1.bf16.msra.mxu0 0
          %3903 = vmatprep.subr.bf16.mxu0 0
          %3904 = vmatpush1.bf16.msra.mxu0 0
          %3905 = vmatprep.subr.bf16.mxu0 0
          %3906 = vmatpush1.bf16.msra.mxu0 0
          %3907 = vmatprep.subr.bf16.mxu0 0
          %3908 = vmatpush1.bf16.msra.mxu0 0
          %3909 = vmatprep.subr.bf16.mxu0 0
          %3910 = vmatpush1.bf16.msra.mxu0 0
          %3911 = vmatprep.subr.bf16.mxu0 0
          %3912 = vmatpush1.bf16.msra.mxu0 0
          %3913 = vmatprep.subr.bf16.mxu0 0
          %3914 = vmatpush1.bf16.msra.mxu0 0
          %3915 = vmatprep.subr.bf16.mxu0 0
          %3916 = vmatpush1.bf16.msra.mxu0 0
          %3917 = vmatprep.subr.bf16.mxu0 0
          %3918 = vmatpush1.bf16.msra.mxu0 0
          %3919 = vmatprep.subr.bf16.mxu0 0
          %3920 = vmatpush1.bf16.msra.mxu0 0
          %3921 = vmatprep.subr.bf16.mxu0 0
          %3922 = vmatpush1.bf16.msra.mxu0 0
          %3923 = vmatprep.subr.bf16.mxu0 0
          %3924 = vmatpush1.bf16.msra.mxu0 0
          %3925 = vmatprep.subr.bf16.mxu0 0
          %3926 = vmatpush1.bf16.msra.mxu0 0
          %3927 = vmatprep.mubr.bf16.mxu0 0
          %3928 = vmatmul.mubr.bf16.gmra.mrb[0].mxu0 %v3893
          %v3929 = vpop.f32.mrb[0].mxu0
          %v3930 = vadd.f32 0.0, %v3929
          %v3931 = vpop.f32.mrb[0].mxu0
          %v3932 = vpop.f32.mrb[0].mxu0
          %v3933 = vadd.f32 0.0, %v3932
          %v3934 = vpop.f32.mrb[0].mxu0
          %3935 = vdwg.mxu0
          %v3936 = vpack.c.bf16 %v3882, %v3879
          %v3937 = vld [vmem:[#allocation18] sm:$0xf]
          %v3938 = vld [vmem:[#allocation18 + $0x4] sm:$0xf]
          %v3939 = vld [vmem:[#allocation18 + $0x8] sm:$0xf]
          %v3940 = vld [vmem:[#allocation18 + $0xc] sm:$0xf]
          %v3941 = vld [vmem:[#allocation18 + $0x10] sm:$0xf]
          %v3942 = vld [vmem:[#allocation18 + $0x14] sm:$0xf]
          %v3943 = vld [vmem:[#allocation18 + $0x18] sm:$0xf]
          %v3944 = vld [vmem:[#allocation18 + $0x1c] sm:$0xf]
          %v3945 = vld [vmem:[#allocation18 + $0x20] sm:$0xf]
          %v3946 = vld [vmem:[#allocation18 + $0x24] sm:$0xf]
          %v3947 = vld [vmem:[#allocation18 + $0x28] sm:$0xf]
          %v3948 = vld [vmem:[#allocation18 + $0x2c] sm:$0xf]
          %v3949 = vld [vmem:[#allocation18 + $0x30] sm:$0xf]
          %v3950 = vld [vmem:[#allocation18 + $0x34] sm:$0xf]
          %v3951 = vld [vmem:[#allocation18 + $0x38] sm:$0xf]
          %v3952 = vld [vmem:[#allocation18 + $0x3c] sm:$0xf]
          %v3969 = vunpack.c.l.b16 %v3937
          %v3970 = vunpack.c.l.b16 %v3938
          %v3971 = vunpack.c.l.b16 %v3939
          %v3972 = vunpack.c.l.b16 %v3940
          %v3973 = vunpack.c.l.b16 %v3941
          %v3974 = vunpack.c.l.b16 %v3942
          %v3975 = vunpack.c.l.b16 %v3943
          %v3976 = vunpack.c.l.b16 %v3944
          %v3977 = vunpack.c.l.b16 %v3945
          %v3978 = vunpack.c.l.b16 %v3946
          %v3979 = vunpack.c.l.b16 %v3947
          %v3980 = vunpack.c.l.b16 %v3948
          %v3981 = vunpack.c.l.b16 %v3949
          %v3982 = vunpack.c.l.b16 %v3950
          %v3983 = vunpack.c.l.b16 %v3951
          %v3984 = vunpack.c.l.b16 %v3952
          %v3985 = vpack.c.b16 %v3970, %v3969
          %v3986 = vpack.c.b16 %v3972, %v3971
          %v3987 = vpack.c.b16 %v3974, %v3973
          %v3988 = vpack.c.b16 %v3976, %v3975
          %v3989 = vpack.c.b16 %v3978, %v3977
          %v3990 = vpack.c.b16 %v3980, %v3979
          %v3991 = vpack.c.b16 %v3982, %v3981
          %v3992 = vpack.c.b16 %v3984, %v3983
          %4001 = vmatprep.subr.bf16.mxu0 0
          %4002 = vmatpush1.bf16.msra.mxu0 %v3985
          %4003 = vmatprep.subr.bf16.mxu0 0
          %4004 = vmatpush1.bf16.msra.mxu0 %v3986
          %4005 = vmatprep.subr.bf16.mxu0 0
          %4006 = vmatpush1.bf16.msra.mxu0 %v3987
          %4007 = vmatprep.subr.bf16.mxu0 0
          %4008 = vmatpush1.bf16.msra.mxu0 %v3988
          %4009 = vmatprep.subr.bf16.mxu0 0
          %4010 = vmatpush1.bf16.msra.mxu0 %v3989
          %4011 = vmatprep.subr.bf16.mxu0 0
          %4012 = vmatpush1.bf16.msra.mxu0 %v3990
          %4013 = vmatprep.subr.bf16.mxu0 0
          %4014 = vmatpush1.bf16.msra.mxu0 %v3991
          %4015 = vmatprep.subr.bf16.mxu0 0
          %4016 = vmatpush1.bf16.msra.mxu0 %v3992
          %4017 = vmatprep.subr.bf16.mxu0 0
          %4018 = vmatpush1.bf16.msra.mxu0 0
          %4019 = vmatprep.subr.bf16.mxu0 0
          %4020 = vmatpush1.bf16.msra.mxu0 0
          %4021 = vmatprep.subr.bf16.mxu0 0
          %4022 = vmatpush1.bf16.msra.mxu0 0
          %4023 = vmatprep.subr.bf16.mxu0 0
          %4024 = vmatpush1.bf16.msra.mxu0 0
          %4025 = vmatprep.subr.bf16.mxu0 0
          %4026 = vmatpush1.bf16.msra.mxu0 0
          %4027 = vmatprep.subr.bf16.mxu0 0
          %4028 = vmatpush1.bf16.msra.mxu0 0
          %4029 = vmatprep.subr.bf16.mxu0 0
          %4030 = vmatpush1.bf16.msra.mxu0 0
          %4031 = vmatprep.subr.bf16.mxu0 0
          %4032 = vmatpush1.bf16.msra.mxu0 0
          %4033 = vmatprep.mubr.bf16.mxu0 0
          %4034 = vmatmul.mubr.bf16.gmra.mrb[0].mxu0 %v3936
          %v4035 = vpop.f32.mrb[0].mxu0
          %v4036 = vadd.f32 0.0, %v4035
          %v4037 = vpop.f32.mrb[0].mxu0
          %v4038 = vpop.f32.mrb[0].mxu0
          %v4039 = vadd.f32 0.0, %v4038
          %v4040 = vpop.f32.mrb[0].mxu0
          %4041 = vdwg.mxu0
          %v4042 = vpack.c.bf16 %v3933, %v3930
          %v4043 = vld [vmem:[#allocation20] sm:$0xf]
          %v4044 = vld [vmem:[#allocation20 + $0x4] sm:$0xf]
          %v4045 = vld [vmem:[#allocation20 + $0x8] sm:$0xf]
          %v4046 = vld [vmem:[#allocation20 + $0xc] sm:$0xf]
          %v4047 = vld [vmem:[#allocation20 + $0x10] sm:$0xf]
          %v4048 = vld [vmem:[#allocation20 + $0x14] sm:$0xf]
          %v4049 = vld [vmem:[#allocation20 + $0x18] sm:$0xf]
          %v4050 = vld [vmem:[#allocation20 + $0x1c] sm:$0xf]
          %v4051 = vld [vmem:[#allocation20 + $0x20] sm:$0xf]
          %v4052 = vld [vmem:[#allocation20 + $0x24] sm:$0xf]
          %v4053 = vld [vmem:[#allocation20 + $0x28] sm:$0xf]
          %v4054 = vld [vmem:[#allocation20 + $0x2c] sm:$0xf]
          %v4055 = vld [vmem:[#allocation20 + $0x30] sm:$0xf]
          %v4056 = vld [vmem:[#allocation20 + $0x34] sm:$0xf]
          %v4057 = vld [vmem:[#allocation20 + $0x38] sm:$0xf]
          %v4058 = vld [vmem:[#allocation20 + $0x3c] sm:$0xf]
          %v4075 = vunpack.c.l.b16 %v4043
          %v4076 = vunpack.c.l.b16 %v4044
          %v4077 = vunpack.c.l.b16 %v4045
          %v4078 = vunpack.c.l.b16 %v4046
          %v4079 = vunpack.c.l.b16 %v4047
          %v4080 = vunpack.c.l.b16 %v4048
          %v4081 = vunpack.c.l.b16 %v4049
          %v4082 = vunpack.c.l.b16 %v4050
          %v4083 = vunpack.c.l.b16 %v4051
          %v4084 = vunpack.c.l.b16 %v4052
          %v4085 = vunpack.c.l.b16 %v4053
          %v4086 = vunpack.c.l.b16 %v4054
          %v4087 = vunpack.c.l.b16 %v4055
          %v4088 = vunpack.c.l.b16 %v4056
          %v4089 = vunpack.c.l.b16 %v4057
          %v4090 = vunpack.c.l.b16 %v4058
          %v4091 = vpack.c.b16 %v4076, %v4075
          %v4092 = vpack.c.b16 %v4078, %v4077
          %v4093 = vpack.c.b16 %v4080, %v4079
          %v4094 = vpack.c.b16 %v4082, %v4081
          %v4095 = vpack.c.b16 %v4084, %v4083
          %v4096 = vpack.c.b16 %v4086, %v4085
          %v4097 = vpack.c.b16 %v4088, %v4087
          %v4098 = vpack.c.b16 %v4090, %v4089
          %4107 = vmatprep.subr.bf16.mxu0 0
          %4108 = vmatpush1.bf16.msra.mxu0 %v4091
          %4109 = vmatprep.subr.bf16.mxu0 0
          %4110 = vmatpush1.bf16.msra.mxu0 %v4092
          %4111 = vmatprep.subr.bf16.mxu0 0
          %4112 = vmatpush1.bf16.msra.mxu0 %v4093
          %4113 = vmatprep.subr.bf16.mxu0 0
          %4114 = vmatpush1.bf16.msra.mxu0 %v4094
          %4115 = vmatprep.subr.bf16.mxu0 0
          %4116 = vmatpush1.bf16.msra.mxu0 %v4095
          %4117 = vmatprep.subr.bf16.mxu0 0
          %4118 = vmatpush1.bf16.msra.mxu0 %v4096
          %4119 = vmatprep.subr.bf16.mxu0 0
          %4120 = vmatpush1.bf16.msra.mxu0 %v4097
          %4121 = vmatprep.subr.bf16.mxu0 0
          %4122 = vmatpush1.bf16.msra.mxu0 %v4098
          %4123 = vmatprep.subr.bf16.mxu0 0
          %4124 = vmatpush1.bf16.msra.mxu0 0
          %4125 = vmatprep.subr.bf16.mxu0 0
          %4126 = vmatpush1.bf16.msra.mxu0 0
          %4127 = vmatprep.subr.bf16.mxu0 0
          %4128 = vmatpush1.bf16.msra.mxu0 0
          %4129 = vmatprep.subr.bf16.mxu0 0
          %4130 = vmatpush1.bf16.msra.mxu0 0
          %4131 = vmatprep.subr.bf16.mxu0 0
          %4132 = vmatpush1.bf16.msra.mxu0 0
          %4133 = vmatprep.subr.bf16.mxu0 0
          %4134 = vmatpush1.bf16.msra.mxu0 0
          %4135 = vmatprep.subr.bf16.mxu0 0
          %4136 = vmatpush1.bf16.msra.mxu0 0
          %4137 = vmatprep.subr.bf16.mxu0 0
          %4138 = vmatpush1.bf16.msra.mxu0 0
          %4139 = vmatprep.mubr.bf16.mxu0 0
          %4140 = vmatmul.mubr.bf16.gmra.mrb[0].mxu0 %v4042
          %v4141 = vpop.f32.mrb[0].mxu0
          %v4142 = vadd.f32 0.0, %v4141
          %v4143 = vpop.f32.mrb[0].mxu0
          %v4144 = vpop.f32.mrb[0].mxu0
          %v4145 = vadd.f32 0.0, %v4144
          %v4146 = vpop.f32.mrb[0].mxu0
          %4147 = vdwg.mxu0
          %v4148 = vsub.f32 %v4036, %v4142
          %v4149 = vsub.f32 %v4039, %v4145
          %v4150 = vadd.f32 %v4148, %v1661
          %v4151 = vadd.f32 %v4149, %v1662
          %v4152 = vld [vmem:[%s1112] sm:$0x1]
          %v4153 = vld [vmem:[%s1115] sm:$0x1]
          %4154 = vadd.xlane.f32.xlu0 %v4150
          %v4155 = vpop.xlane.xlu0 %4154
          %4156 = vadd.xlane.f32.xlu0 %v4151
          %v4157 = vpop.xlane.xlu0 %4156
          %v4158 = vmul.f32 %v4155, %v1991
          %v4159 = vmul.f32 %v4157, %v1991
          %v4160 = vsub.f32 %v4150, %v4158
          %v4161 = vsub.f32 %v4151, %v4159
          %v4162 = vmul.f32 %v4160, %v4160
          %v4163 = vmul.f32 %v4161, %v4161
          %4164 = vadd.xlane.f32.xlu0 %v4162
          %v4165 = vpop.xlane.xlu0 %4164
          %4166 = vadd.xlane.f32.xlu0 %v4163
          %v4167 = vpop.xlane.xlu0 %4166
          %v4168 = vmul.f32 %v4165, %v1991
          %v4169 = vmul.f32 %v4167, %v1991
          %v4170 = vadd.f32 %v4168, 1e-12
          %v4171 = vadd.f32 %v4169, 1e-12
          %v4172 = vrsqrt.pop %v4170
          %v4173 = vrsqrt.pop %v4171
          %v4174 = vmul.f32 %v4160, %v4172
          %v4175 = vmul.f32 %v4161, %v4173
          %v4177 = vlaneseq
          %v4178 = vshrl.u32 %v4177, 7
          %v4179 = vsub.s32 0, %v4178
          %v4180 = vrot.slane %v4152, %v4179
          %v4182 = vmul.f32 %v4174, %v4180
          %v4183 = vmul.f32 %v4175, %v4180
          %v4185 = vlaneseq
          %v4186 = vshrl.u32 %v4185, 7
          %v4187 = vsub.s32 0, %v4186
          %v4188 = vrot.slane %v4153, %v4187
          %v4190 = vadd.f32 %v4182, %v4188
          %v4191 = vadd.f32 %v4183, %v4188
          %4192 = vst [vmem:[#allocation3 + $0x60] sm:$0xff] %v4190
          %4193 = vst [vmem:[#allocation3 + $0x68] sm:$0xff] %v4191
          %v4194 = vpack.c.bf16 %v1664, %v1663
          %v4195 = vld [vmem:[#allocation15] sm:$0xf]
          %v4196 = vld [vmem:[#allocation15 + $0x4] sm:$0xf]
          %v4199 = vunpack.c.l.b16 %v4195
          %v4200 = vunpack.c.l.b16 %v4196
          %v4201 = vpack.c.b16 %v4200, %v4199
          %v4203 = vsel %vm1673, %v4201, 0
          %4205 = vmatprep.subr.bf16.mxu0 0
          %4206 = vmatpush1.bf16.msra.mxu0 %v4194
          %4207 = vmatprep.subr.bf16.mxu0 0
          %4208 = vmatpush1.bf16.msra.mxu0 0
          %4209 = vmatprep.subr.bf16.mxu0 0
          %4210 = vmatpush1.bf16.msra.mxu0 0
          %4211 = vmatprep.subr.bf16.mxu0 0
          %4212 = vmatpush1.bf16.msra.mxu0 0
          %4213 = vmatprep.subr.bf16.mxu0 0
          %4214 = vmatpush1.bf16.msra.mxu0 0
          %4215 = vmatprep.subr.bf16.mxu0 0
          %4216 = vmatpush1.bf16.msra.mxu0 0
          %4217 = vmatprep.subr.bf16.mxu0 0
          %4218 = vmatpush1.bf16.msra.mxu0 0
          %4219 = vmatprep.subr.bf16.mxu0 0
          %4220 = vmatpush1.bf16.msra.mxu0 0
          %4221 = vmatprep.subr.bf16.mxu0 0
          %4222 = vmatpush1.bf16.msra.mxu0 0
          %4223 = vmatprep.subr.bf16.mxu0 0
          %4224 = vmatpush1.bf16.msra.mxu0 0
          %4225 = vmatprep.subr.bf16.mxu0 0
          %4226 = vmatpush1.bf16.msra.mxu0 0
          %4227 = vmatprep.subr.bf16.mxu0 0
          %4228 = vmatpush1.bf16.msra.mxu0 0
          %4229 = vmatprep.subr.bf16.mxu0 0
          %4230 = vmatpush1.bf16.msra.mxu0 0
          %4231 = vmatprep.subr.bf16.mxu0 0
          %4232 = vmatpush1.bf16.msra.mxu0 0
          %4233 = vmatprep.subr.bf16.mxu0 0
          %4234 = vmatpush1.bf16.msra.mxu0 0
          %4235 = vmatprep.subr.bf16.mxu0 0
          %4236 = vmatpush1.bf16.msra.mxu0 0
          %4237 = vmatprep.mubr.bf16.mxu0 0
          %4238 = vmatmul.mubr.bf16.gmra.mrb[0].mxu0 %v4203
          %v4239 = vpop.f32.mrb[0].mxu0
          %v4240 = vadd.f32 0.0, %v4239
          %v4241 = vpop.f32.mrb[0].mxu0
          %v4242 = vpop.f32.mrb[0].mxu0
          %v4243 = vadd.f32 0.0, %v4242
          %v4244 = vpop.f32.mrb[0].mxu0
          %4245 = vdwg.mxu0
          %v4246 = vld [vmem:[#allocation17] sm:$0xf]
          %v4247 = vld [vmem:[#allocation17 + $0x4] sm:$0xf]
          %v4250 = vunpack.c.l.b16 %v4246
          %v4251 = vunpack.c.l.b16 %v4247
          %v4252 = vpack.c.b16 %v4251, %v4250
          %v4254 = vsel %vm1673, %v4252, 0
          %4256 = vmatprep.subr.bf16.mxu0 0
          %4257 = vmatpush1.bf16.msra.mxu0 %v4194
          %4258 = vmatprep.subr.bf16.mxu0 0
          %4259 = vmatpush1.bf16.msra.mxu0 0
          %4260 = vmatprep.subr.bf16.mxu0 0
          %4261 = vmatpush1.bf16.msra.mxu0 0
          %4262 = vmatprep.subr.bf16.mxu0 0
          %4263 = vmatpush1.bf16.msra.mxu0 0
          %4264 = vmatprep.subr.bf16.mxu0 0
          %4265 = vmatpush1.bf16.msra.mxu0 0
          %4266 = vmatprep.subr.bf16.mxu0 0
          %4267 = vmatpush1.bf16.msra.mxu0 0
          %4268 = vmatprep.subr.bf16.mxu0 0
          %4269 = vmatpush1.bf16.msra.mxu0 0
          %4270 = vmatprep.subr.bf16.mxu0 0
          %4271 = vmatpush1.bf16.msra.mxu0 0
          %4272 = vmatprep.subr.bf16.mxu0 0
          %4273 = vmatpush1.bf16.msra.mxu0 0
          %4274 = vmatprep.subr.bf16.mxu0 0
          %4275 = vmatpush1.bf16.msra.mxu0 0
          %4276 = vmatprep.subr.bf16.mxu0 0
          %4277 = vmatpush1.bf16.msra.mxu0 0
          %4278 = vmatprep.subr.bf16.mxu0 0
          %4279 = vmatpush1.bf16.msra.mxu0 0
          %4280 = vmatprep.subr.bf16.mxu0 0
          %4281 = vmatpush1.bf16.msra.mxu0 0
          %4282 = vmatprep.subr.bf16.mxu0 0
          %4283 = vmatpush1.bf16.msra.mxu0 0
          %4284 = vmatprep.subr.bf16.mxu0 0
          %4285 = vmatpush1.bf16.msra.mxu0 0
          %4286 = vmatprep.subr.bf16.mxu0 0
          %4287 = vmatpush1.bf16.msra.mxu0 0
          %4288 = vmatprep.mubr.bf16.mxu0 0
          %4289 = vmatmul.mubr.bf16.gmra.mrb[0].mxu0 %v4254
          %v4290 = vpop.f32.mrb[0].mxu0
          %v4291 = vadd.f32 0.0, %v4290
          %v4292 = vpop.f32.mrb[0].mxu0
          %v4293 = vpop.f32.mrb[0].mxu0
          %v4294 = vadd.f32 0.0, %v4293
          %v4295 = vpop.f32.mrb[0].mxu0
          %4296 = vdwg.mxu0
          %v4297 = vpack.c.bf16 %v4243, %v4240
          %v4298 = vld [vmem:[#allocation18] sm:$0xf]
          %v4299 = vld [vmem:[#allocation18 + $0x4] sm:$0xf]
          %v4300 = vld [vmem:[#allocation18 + $0x8] sm:$0xf]
          %v4301 = vld [vmem:[#allocation18 + $0xc] sm:$0xf]
          %v4302 = vld [vmem:[#allocation18 + $0x10] sm:$0xf]
          %v4303 = vld [vmem:[#allocation18 + $0x14] sm:$0xf]
          %v4304 = vld [vmem:[#allocation18 + $0x18] sm:$0xf]
          %v4305 = vld [vmem:[#allocation18 + $0x1c] sm:$0xf]
          %v4306 = vld [vmem:[#allocation18 + $0x20] sm:$0xf]
          %v4307 = vld [vmem:[#allocation18 + $0x24] sm:$0xf]
          %v4308 = vld [vmem:[#allocation18 + $0x28] sm:$0xf]
          %v4309 = vld [vmem:[#allocation18 + $0x2c] sm:$0xf]
          %v4310 = vld [vmem:[#allocation18 + $0x30] sm:$0xf]
          %v4311 = vld [vmem:[#allocation18 + $0x34] sm:$0xf]
          %v4312 = vld [vmem:[#allocation18 + $0x38] sm:$0xf]
          %v4313 = vld [vmem:[#allocation18 + $0x3c] sm:$0xf]
          %v4330 = vunpack.c.l.b16 %v4298
          %v4331 = vunpack.c.l.b16 %v4299
          %v4332 = vunpack.c.l.b16 %v4300
          %v4333 = vunpack.c.l.b16 %v4301
          %v4334 = vunpack.c.l.b16 %v4302
          %v4335 = vunpack.c.l.b16 %v4303
          %v4336 = vunpack.c.l.b16 %v4304
          %v4337 = vunpack.c.l.b16 %v4305
          %v4338 = vunpack.c.l.b16 %v4306
          %v4339 = vunpack.c.l.b16 %v4307
          %v4340 = vunpack.c.l.b16 %v4308
          %v4341 = vunpack.c.l.b16 %v4309
          %v4342 = vunpack.c.l.b16 %v4310
          %v4343 = vunpack.c.l.b16 %v4311
          %v4344 = vunpack.c.l.b16 %v4312
          %v4345 = vunpack.c.l.b16 %v4313
          %v4346 = vpack.c.b16 %v4331, %v4330
          %v4347 = vpack.c.b16 %v4333, %v4332
          %v4348 = vpack.c.b16 %v4335, %v4334
          %v4349 = vpack.c.b16 %v4337, %v4336
          %v4350 = vpack.c.b16 %v4339, %v4338
          %v4351 = vpack.c.b16 %v4341, %v4340
          %v4352 = vpack.c.b16 %v4343, %v4342
          %v4353 = vpack.c.b16 %v4345, %v4344
          %4362 = vmatprep.subr.bf16.mxu0 0
          %4363 = vmatpush1.bf16.msra.mxu0 %v4346
          %4364 = vmatprep.subr.bf16.mxu0 0
          %4365 = vmatpush1.bf16.msra.mxu0 %v4347
          %4366 = vmatprep.subr.bf16.mxu0 0
          %4367 = vmatpush1.bf16.msra.mxu0 %v4348
          %4368 = vmatprep.subr.bf16.mxu0 0
          %4369 = vmatpush1.bf16.msra.mxu0 %v4349
          %4370 = vmatprep.subr.bf16.mxu0 0
          %4371 = vmatpush1.bf16.msra.mxu0 %v4350
          %4372 = vmatprep.subr.bf16.mxu0 0
          %4373 = vmatpush1.bf16.msra.mxu0 %v4351
          %4374 = vmatprep.subr.bf16.mxu0 0
          %4375 = vmatpush1.bf16.msra.mxu0 %v4352
          %4376 = vmatprep.subr.bf16.mxu0 0
          %4377 = vmatpush1.bf16.msra.mxu0 %v4353
          %4378 = vmatprep.subr.bf16.mxu0 0
          %4379 = vmatpush1.bf16.msra.mxu0 0
          %4380 = vmatprep.subr.bf16.mxu0 0
          %4381 = vmatpush1.bf16.msra.mxu0 0
          %4382 = vmatprep.subr.bf16.mxu0 0
          %4383 = vmatpush1.bf16.msra.mxu0 0
          %4384 = vmatprep.subr.bf16.mxu0 0
          %4385 = vmatpush1.bf16.msra.mxu0 0
          %4386 = vmatprep.subr.bf16.mxu0 0
          %4387 = vmatpush1.bf16.msra.mxu0 0
          %4388 = vmatprep.subr.bf16.mxu0 0
          %4389 = vmatpush1.bf16.msra.mxu0 0
          %4390 = vmatprep.subr.bf16.mxu0 0
          %4391 = vmatpush1.bf16.msra.mxu0 0
          %4392 = vmatprep.subr.bf16.mxu0 0
          %4393 = vmatpush1.bf16.msra.mxu0 0
          %4394 = vmatprep.mubr.bf16.mxu0 0
          %4395 = vmatmul.mubr.bf16.gmra.mrb[0].mxu0 %v4297
          %v4396 = vpop.f32.mrb[0].mxu0
          %v4397 = vadd.f32 0.0, %v4396
          %v4398 = vpop.f32.mrb[0].mxu0
          %v4399 = vpop.f32.mrb[0].mxu0
          %v4400 = vadd.f32 0.0, %v4399
          %v4401 = vpop.f32.mrb[0].mxu0
          %4402 = vdwg.mxu0
          %v4403 = vpack.c.bf16 %v4294, %v4291
          %v4404 = vld [vmem:[#allocation20] sm:$0xf]
          %v4405 = vld [vmem:[#allocation20 + $0x4] sm:$0xf]
          %v4406 = vld [vmem:[#allocation20 + $0x8] sm:$0xf]
          %v4407 = vld [vmem:[#allocation20 + $0xc] sm:$0xf]
          %v4408 = vld [vmem:[#allocation20 + $0x10] sm:$0xf]
          %v4409 = vld [vmem:[#allocation20 + $0x14] sm:$0xf]
          %v4410 = vld [vmem:[#allocation20 + $0x18] sm:$0xf]
          %v4411 = vld [vmem:[#allocation20 + $0x1c] sm:$0xf]
          %v4412 = vld [vmem:[#allocation20 + $0x20] sm:$0xf]
          %v4413 = vld [vmem:[#allocation20 + $0x24] sm:$0xf]
          %v4414 = vld [vmem:[#allocation20 + $0x28] sm:$0xf]
          %v4415 = vld [vmem:[#allocation20 + $0x2c] sm:$0xf]
          %v4416 = vld [vmem:[#allocation20 + $0x30] sm:$0xf]
          %v4417 = vld [vmem:[#allocation20 + $0x34] sm:$0xf]
          %v4418 = vld [vmem:[#allocation20 + $0x38] sm:$0xf]
          %v4419 = vld [vmem:[#allocation20 + $0x3c] sm:$0xf]
          %v4436 = vunpack.c.l.b16 %v4404
          %v4437 = vunpack.c.l.b16 %v4405
          %v4438 = vunpack.c.l.b16 %v4406
          %v4439 = vunpack.c.l.b16 %v4407
          %v4440 = vunpack.c.l.b16 %v4408
          %v4441 = vunpack.c.l.b16 %v4409
          %v4442 = vunpack.c.l.b16 %v4410
          %v4443 = vunpack.c.l.b16 %v4411
          %v4444 = vunpack.c.l.b16 %v4412
          %v4445 = vunpack.c.l.b16 %v4413
          %v4446 = vunpack.c.l.b16 %v4414
          %v4447 = vunpack.c.l.b16 %v4415
          %v4448 = vunpack.c.l.b16 %v4416
          %v4449 = vunpack.c.l.b16 %v4417
          %v4450 = vunpack.c.l.b16 %v4418
          %v4451 = vunpack.c.l.b16 %v4419
          %v4452 = vpack.c.b16 %v4437, %v4436
          %v4453 = vpack.c.b16 %v4439, %v4438
          %v4454 = vpack.c.b16 %v4441, %v4440
          %v4455 = vpack.c.b16 %v4443, %v4442
          %v4456 = vpack.c.b16 %v4445, %v4444
          %v4457 = vpack.c.b16 %v4447, %v4446
          %v4458 = vpack.c.b16 %v4449, %v4448
          %v4459 = vpack.c.b16 %v4451, %v4450
          %4468 = vmatprep.subr.bf16.mxu0 0
          %4469 = vmatpush1.bf16.msra.mxu0 %v4452
          %4470 = vmatprep.subr.bf16.mxu0 0
          %4471 = vmatpush1.bf16.msra.mxu0 %v4453
          %4472 = vmatprep.subr.bf16.mxu0 0
          %4473 = vmatpush1.bf16.msra.mxu0 %v4454
          %4474 = vmatprep.subr.bf16.mxu0 0
          %4475 = vmatpush1.bf16.msra.mxu0 %v4455
          %4476 = vmatprep.subr.bf16.mxu0 0
          %4477 = vmatpush1.bf16.msra.mxu0 %v4456
          %4478 = vmatprep.subr.bf16.mxu0 0
          %4479 = vmatpush1.bf16.msra.mxu0 %v4457
          %4480 = vmatprep.subr.bf16.mxu0 0
          %4481 = vmatpush1.bf16.msra.mxu0 %v4458
          %4482 = vmatprep.subr.bf16.mxu0 0
          %4483 = vmatpush1.bf16.msra.mxu0 %v4459
          %4484 = vmatprep.subr.bf16.mxu0 0
          %4485 = vmatpush1.bf16.msra.mxu0 0
          %4486 = vmatprep.subr.bf16.mxu0 0
          %4487 = vmatpush1.bf16.msra.mxu0 0
          %4488 = vmatprep.subr.bf16.mxu0 0
          %4489 = vmatpush1.bf16.msra.mxu0 0
          %4490 = vmatprep.subr.bf16.mxu0 0
          %4491 = vmatpush1.bf16.msra.mxu0 0
          %4492 = vmatprep.subr.bf16.mxu0 0
          %4493 = vmatpush1.bf16.msra.mxu0 0
          %4494 = vmatprep.subr.bf16.mxu0 0
          %4495 = vmatpush1.bf16.msra.mxu0 0
          %4496 = vmatprep.subr.bf16.mxu0 0
          %4497 = vmatpush1.bf16.msra.mxu0 0
          %4498 = vmatprep.subr.bf16.mxu0 0
          %4499 = vmatpush1.bf16.msra.mxu0 0
          %4500 = vmatprep.mubr.bf16.mxu0 0
          %4501 = vmatmul.mubr.bf16.gmra.mrb[0].mxu0 %v4403
          %v4502 = vpop.f32.mrb[0].mxu0
          %v4503 = vadd.f32 0.0, %v4502
          %v4504 = vpop.f32.mrb[0].mxu0
          %v4505 = vpop.f32.mrb[0].mxu0
          %v4506 = vadd.f32 0.0, %v4505
          %v4507 = vpop.f32.mrb[0].mxu0
          %4508 = vdwg.mxu0
          %v4509 = vsub.f32 %v4397, %v4503
          %v4510 = vsub.f32 %v4400, %v4506
          %v4511 = vadd.f32 %v4509, %v1663
          %v4512 = vadd.f32 %v4510, %v1664
          %v4513 = vld [vmem:[%s1112] sm:$0x1]
          %v4514 = vld [vmem:[%s1115] sm:$0x1]
          %4515 = vadd.xlane.f32.xlu0 %v4511
          %v4516 = vpop.xlane.xlu0 %4515
          %4517 = vadd.xlane.f32.xlu0 %v4512
          %v4518 = vpop.xlane.xlu0 %4517
          %v4519 = vmul.f32 %v4516, %v1991
          %v4520 = vmul.f32 %v4518, %v1991
          %v4521 = vsub.f32 %v4511, %v4519
          %v4522 = vsub.f32 %v4512, %v4520
          %v4523 = vmul.f32 %v4521, %v4521
          %v4524 = vmul.f32 %v4522, %v4522
          %4525 = vadd.xlane.f32.xlu0 %v4523
          %v4526 = vpop.xlane.xlu0 %4525
          %4527 = vadd.xlane.f32.xlu0 %v4524
          %v4528 = vpop.xlane.xlu0 %4527
          %v4529 = vmul.f32 %v4526, %v1991
          %v4530 = vmul.f32 %v4528, %v1991
          %v4531 = vadd.f32 %v4529, 1e-12
          %v4532 = vadd.f32 %v4530, 1e-12
          %v4533 = vrsqrt.pop %v4531
          %v4534 = vrsqrt.pop %v4532
          %v4535 = vmul.f32 %v4521, %v4533
          %v4536 = vmul.f32 %v4522, %v4534
          %v4538 = vlaneseq
          %v4539 = vshrl.u32 %v4538, 7
          %v4540 = vsub.s32 0, %v4539
          %v4541 = vrot.slane %v4513, %v4540
          %v4543 = vmul.f32 %v4535, %v4541
          %v4544 = vmul.f32 %v4536, %v4541
          %v4546 = vlaneseq
          %v4547 = vshrl.u32 %v4546, 7
          %v4548 = vsub.s32 0, %v4547
          %v4549 = vrot.slane %v4514, %v4548
          %v4551 = vadd.f32 %v4543, %v4549
          %v4552 = vadd.f32 %v4544, %v4549
          %4553 = vst [vmem:[#allocation3 + $0x70] sm:$0xff] %v4551
          %4554 = vst [vmem:[#allocation3 + $0x78] sm:$0xff] %v4552
          %4555 = vst [vmem:[#allocation4] sm:$0xff] 0.0
          %4556 = vst [vmem:[#allocation4 + $0x8] sm:$0xff] 0.0
          %4557 = vst [vmem:[#allocation4 + $0x10] sm:$0xff] 0.0
          %4558 = vst [vmem:[#allocation4 + $0x18] sm:$0xff] 0.0
          %4559 = vst [vmem:[#allocation4 + $0x20] sm:$0xff] 0.0
          %4560 = vst [vmem:[#allocation4 + $0x28] sm:$0xff] 0.0
          %4561 = vst [vmem:[#allocation4 + $0x30] sm:$0xff] 0.0
          %4562 = vst [vmem:[#allocation4 + $0x38] sm:$0xff] 0.0
          %4563 = vst [vmem:[#allocation4 + $0x40] sm:$0xff] 0.0
          %4564 = vst [vmem:[#allocation4 + $0x48] sm:$0xff] 0.0
          %4565 = vst [vmem:[#allocation4 + $0x50] sm:$0xff] 0.0
          %4566 = vst [vmem:[#allocation4 + $0x58] sm:$0xff] 0.0
          %4567 = vst [vmem:[#allocation4 + $0x60] sm:$0xff] 0.0
          %4568 = vst [vmem:[#allocation4 + $0x68] sm:$0xff] 0.0
          %4569 = vst [vmem:[#allocation4 + $0x70] sm:$0xff] 0.0
          %4570 = vst [vmem:[#allocation4 + $0x78] sm:$0xff] 0.0
        $region172: #{tpu_custom_call.1} parent=103 // pred_fallthru
          _
        %v4571 = vld [vmem:[#allocation3] sm:$0xff]
        %v4572 = vld [vmem:[#allocation3 + $0x8] sm:$0xff]
        %v4573 = vld [vmem:[#allocation3 + $0x10] sm:$0xff]
        %v4574 = vld [vmem:[#allocation3 + $0x18] sm:$0xff]
        %v4575 = vld [vmem:[#allocation3 + $0x20] sm:$0xff]
        %v4576 = vld [vmem:[#allocation3 + $0x28] sm:$0xff]
        %v4577 = vld [vmem:[#allocation3 + $0x30] sm:$0xff]
        %v4578 = vld [vmem:[#allocation3 + $0x38] sm:$0xff]
        %v4579 = vld [vmem:[#allocation3 + $0x40] sm:$0xff]
        %v4580 = vld [vmem:[#allocation3 + $0x48] sm:$0xff]
        %v4581 = vld [vmem:[#allocation3 + $0x50] sm:$0xff]
        %v4582 = vld [vmem:[#allocation3 + $0x58] sm:$0xff]
        %v4583 = vld [vmem:[#allocation3 + $0x60] sm:$0xff]
        %v4584 = vld [vmem:[#allocation3 + $0x68] sm:$0xff]
        %v4585 = vld [vmem:[#allocation3 + $0x70] sm:$0xff]
        %v4586 = vld [vmem:[#allocation3 + $0x78] sm:$0xff]
        %v4587 = vpack.c.bf16 %v4572, %v4571
        %v4588 = vpack.c.bf16 %v4574, %v4573
        %v4589 = vpack.c.bf16 %v4576, %v4575
        %v4590 = vpack.c.bf16 %v4578, %v4577
        %v4591 = vpack.c.bf16 %v4580, %v4579
        %v4592 = vpack.c.bf16 %v4582, %v4581
        %v4593 = vpack.c.bf16 %v4584, %v4583
        %v4594 = vpack.c.bf16 %v4586, %v4585
        %v4595 = vld [vmem:[%s971] sm:$0xff]
        %v4596 = vld [vmem:[%s971 + $0x8] sm:$0xff]
        %v4597 = vld [vmem:[%s971 + $0x10] sm:$0xff]
        %v4598 = vld [vmem:[%s971 + $0x18] sm:$0xff]
        %v4599 = vld [vmem:[%s971 + $0x20] sm:$0xff]
        %v4600 = vld [vmem:[%s971 + $0x28] sm:$0xff]
        %v4601 = vld [vmem:[%s971 + $0x30] sm:$0xff]
        %v4602 = vld [vmem:[%s971 + $0x38] sm:$0xff]
        %v4603 = vld [vmem:[%s971 + $0x40] sm:$0xff]
        %v4604 = vld [vmem:[%s971 + $0x48] sm:$0xff]
        %v4605 = vld [vmem:[%s971 + $0x50] sm:$0xff]
        %v4606 = vld [vmem:[%s971 + $0x58] sm:$0xff]
        %v4607 = vld [vmem:[%s971 + $0x60] sm:$0xff]
        %v4608 = vld [vmem:[%s971 + $0x68] sm:$0xff]
        %v4609 = vld [vmem:[%s971 + $0x70] sm:$0xff]
        %v4610 = vld [vmem:[%s971 + $0x78] sm:$0xff]
        %v4611 = vld [vmem:[%s971 + $0x80] sm:$0xff]
        %v4612 = vld [vmem:[%s971 + $0x88] sm:$0xff]
        %v4613 = vld [vmem:[%s971 + $0x90] sm:$0xff]
        %v4614 = vld [vmem:[%s971 + $0x98] sm:$0xff]
        %v4615 = vld [vmem:[%s971 + $0xa0] sm:$0xff]
        %v4616 = vld [vmem:[%s971 + $0xa8] sm:$0xff]
        %v4617 = vld [vmem:[%s971 + $0xb0] sm:$0xff]
        %v4618 = vld [vmem:[%s971 + $0xb8] sm:$0xff]
        %v4619 = vld [vmem:[%s971 + $0xc0] sm:$0xff]
        %v4620 = vld [vmem:[%s971 + $0xc8] sm:$0xff]
        %v4621 = vld [vmem:[%s971 + $0xd0] sm:$0xff]
        %v4622 = vld [vmem:[%s971 + $0xd8] sm:$0xff]
        %v4623 = vld [vmem:[%s971 + $0xe0] sm:$0xff]
        %v4624 = vld [vmem:[%s971 + $0xe8] sm:$0xff]
        %v4625 = vld [vmem:[%s971 + $0xf0] sm:$0xff]
        %v4626 = vld [vmem:[%s971 + $0xf8] sm:$0xff]
        %v4627 = vld [vmem:[%s980] sm:$0xf]
        %v4629 = vlaneseq
        %v4630 = vshrl.u32 %v4629, 7
        %v4631 = vsub.s32 0, %v4630
        %v4632 = vrot.slane %v4627, %v4631
        %v4633 = vlaneseq
        %v4634 = vshrl.u32 %v4633, 7
        %v4635 = vsub.s32 1, %v4634
        %v4636 = vrot.slane %v4627, %v4635
        %v4637 = vlaneseq
        %v4638 = vshrl.u32 %v4637, 7
        %v4639 = vsub.s32 2, %v4638
        %v4640 = vrot.slane %v4627, %v4639
        %v4641 = vlaneseq
        %v4642 = vshrl.u32 %v4641, 7
        %v4643 = vsub.s32 3, %v4642
        %v4644 = vrot.slane %v4627, %v4643
        %v4681 = vunpack.c.l.b16 %v4595
        %v4682 = vunpack.c.h.b16 %v4595
        %v4683 = vunpack.c.l.b16 %v4596
        %v4684 = vunpack.c.h.b16 %v4596
        %v4685 = vunpack.c.l.b16 %v4597
        %v4686 = vunpack.c.h.b16 %v4597
        %v4687 = vunpack.c.l.b16 %v4598
        %v4688 = vunpack.c.h.b16 %v4598
        %v4689 = vunpack.c.l.b16 %v4599
        %v4690 = vunpack.c.h.b16 %v4599
        %v4691 = vunpack.c.l.b16 %v4600
        %v4692 = vunpack.c.h.b16 %v4600
        %v4693 = vunpack.c.l.b16 %v4601
        %v4694 = vunpack.c.h.b16 %v4601
        %v4695 = vunpack.c.l.b16 %v4602
        %v4696 = vunpack.c.h.b16 %v4602
        %v4697 = vunpack.c.l.b16 %v4603
        %v4698 = vunpack.c.h.b16 %v4603
        %v4699 = vunpack.c.l.b16 %v4604
        %v4700 = vunpack.c.h.b16 %v4604
        %v4701 = vunpack.c.l.b16 %v4605
        %v4702 = vunpack.c.h.b16 %v4605
        %v4703 = vunpack.c.l.b16 %v4606
        %v4704 = vunpack.c.h.b16 %v4606
        %v4705 = vunpack.c.l.b16 %v4607
        %v4706 = vunpack.c.h.b16 %v4607
        %v4707 = vunpack.c.l.b16 %v4608
        %v4708 = vunpack.c.h.b16 %v4608
        %v4709 = vunpack.c.l.b16 %v4609
        %v4710 = vunpack.c.h.b16 %v4609
        %v4711 = vunpack.c.l.b16 %v4610
        %v4712 = vunpack.c.h.b16 %v4610
        %v4713 = vunpack.c.l.b16 %v4611
        %v4714 = vunpack.c.h.b16 %v4611
        %v4715 = vunpack.c.l.b16 %v4612
        %v4716 = vunpack.c.h.b16 %v4612
        %v4717 = vunpack.c.l.b16 %v4613
        %v4718 = vunpack.c.h.b16 %v4613
        %v4719 = vunpack.c.l.b16 %v4614
        %v4720 = vunpack.c.h.b16 %v4614
        %v4721 = vunpack.c.l.b16 %v4615
        %v4722 = vunpack.c.h.b16 %v4615
        %v4723 = vunpack.c.l.b16 %v4616
        %v4724 = vunpack.c.h.b16 %v4616
        %v4725 = vunpack.c.l.b16 %v4617
        %v4726 = vunpack.c.h.b16 %v4617
        %v4727 = vunpack.c.l.b16 %v4618
        %v4728 = vunpack.c.h.b16 %v4618
        %v4729 = vunpack.c.l.b16 %v4619
        %v4730 = vunpack.c.h.b16 %v4619
        %v4731 = vunpack.c.l.b16 %v4620
        %v4732 = vunpack.c.h.b16 %v4620
        %v4733 = vunpack.c.l.b16 %v4621
        %v4734 = vunpack.c.h.b16 %v4621
        %v4735 = vunpack.c.l.b16 %v4622
        %v4736 = vunpack.c.h.b16 %v4622
        %v4737 = vunpack.c.l.b16 %v4623
        %v4738 = vunpack.c.h.b16 %v4623
        %v4739 = vunpack.c.l.b16 %v4624
        %v4740 = vunpack.c.h.b16 %v4624
        %v4741 = vunpack.c.l.b16 %v4625
        %v4742 = vunpack.c.h.b16 %v4625
        %v4743 = vunpack.c.l.b16 %v4626
        %v4744 = vunpack.c.h.b16 %v4626
        %v4745 = vpack.c.b16 %v4685, %v4681
        %v4746 = vpack.c.b16 %v4686, %v4682
        %v4747 = vpack.c.b16 %v4687, %v4683
        %v4748 = vpack.c.b16 %v4688, %v4684
        %v4749 = vpack.c.b16 %v4693, %v4689
        %v4750 = vpack.c.b16 %v4694, %v4690
        %v4751 = vpack.c.b16 %v4695, %v4691
        %v4752 = vpack.c.b16 %v4696, %v4692
        %v4753 = vpack.c.b16 %v4701, %v4697
        %v4754 = vpack.c.b16 %v4702, %v4698
        %v4755 = vpack.c.b16 %v4703, %v4699
        %v4756 = vpack.c.b16 %v4704, %v4700
        %v4757 = vpack.c.b16 %v4709, %v4705
        %v4758 = vpack.c.b16 %v4710, %v4706
        %v4759 = vpack.c.b16 %v4711, %v4707
        %v4760 = vpack.c.b16 %v4712, %v4708
        %v4761 = vpack.c.b16 %v4717, %v4713
        %v4762 = vpack.c.b16 %v4718, %v4714
        %v4763 = vpack.c.b16 %v4719, %v4715
        %v4764 = vpack.c.b16 %v4720, %v4716
        %v4765 = vpack.c.b16 %v4725, %v4721
        %v4766 = vpack.c.b16 %v4726, %v4722
        %v4767 = vpack.c.b16 %v4727, %v4723
        %v4768 = vpack.c.b16 %v4728, %v4724
        %v4769 = vpack.c.b16 %v4733, %v4729
        %v4770 = vpack.c.b16 %v4734, %v4730
        %v4771 = vpack.c.b16 %v4735, %v4731
        %v4772 = vpack.c.b16 %v4736, %v4732
        %v4773 = vpack.c.b16 %v4741, %v4737
        %v4774 = vpack.c.b16 %v4742, %v4738
        %v4775 = vpack.c.b16 %v4743, %v4739
        %v4776 = vpack.c.b16 %v4744, %v4740
        %4809 = vmatprep.subr.bf16.mxu0 %v4746
        %4810 = vmatpush1.bf16.msra.mxu0 %v4745
        %4811 = vmatprep.subr.bf16.mxu0 %v4750
        %4812 = vmatpush1.bf16.msra.mxu0 %v4749
        %4813 = vmatprep.subr.bf16.mxu0 %v4754
        %4814 = vmatpush1.bf16.msra.mxu0 %v4753
        %4815 = vmatprep.subr.bf16.mxu0 %v4758
        %4816 = vmatpush1.bf16.msra.mxu0 %v4757
        %4817 = vmatprep.subr.bf16.mxu0 %v4762
        %4818 = vmatpush1.bf16.msra.mxu0 %v4761
        %4819 = vmatprep.subr.bf16.mxu0 %v4766
        %4820 = vmatpush1.bf16.msra.mxu0 %v4765
        %4821 = vmatprep.subr.bf16.mxu0 %v4770
        %4822 = vmatpush1.bf16.msra.mxu0 %v4769
        %4823 = vmatprep.subr.bf16.mxu0 %v4774
        %4824 = vmatpush1.bf16.msra.mxu0 %v4773
        %4825 = vmatprep.subr.bf16.mxu0 0
        %4826 = vmatpush1.bf16.msra.mxu0 0
        %4827 = vmatprep.subr.bf16.mxu0 0
        %4828 = vmatpush1.bf16.msra.mxu0 0
        %4829 = vmatprep.subr.bf16.mxu0 0
        %4830 = vmatpush1.bf16.msra.mxu0 0
        %4831 = vmatprep.subr.bf16.mxu0 0
        %4832 = vmatpush1.bf16.msra.mxu0 0
        %4833 = vmatprep.subr.bf16.mxu0 0
        %4834 = vmatpush1.bf16.msra.mxu0 0
        %4835 = vmatprep.subr.bf16.mxu0 0
        %4836 = vmatpush1.bf16.msra.mxu0 0
        %4837 = vmatprep.subr.bf16.mxu0 0
        %4838 = vmatpush1.bf16.msra.mxu0 0
        %4839 = vmatprep.subr.bf16.mxu0 0
        %4840 = vmatpush1.bf16.msra.mxu0 0
        %4841 = vmatprep.mubr.bf16.mxu0 0
        %4842 = vmatmul.mubr.bf16.gmra.mrb[0].mxu0 %v4587
        %v4843 = vpop.f32.mrb[0].mxu0
        %v4844 = vadd.f32 %v4632, %v4843
        %v4845 = vpop.f32.mrb[0].mxu0
        %v4846 = vadd.f32 %v4636, %v4845
        %v4847 = vpop.f32.mrb[0].mxu0
        %v4848 = vadd.f32 %v4632, %v4847
        %v4849 = vpop.f32.mrb[0].mxu0
        %v4850 = vadd.f32 %v4636, %v4849
        %4851 = vmatprep.mubr.bf16.mxu0 0
        %4852 = vmatmul.mubr.bf16.gmra.mrb[0].mxu0 %v4588
        %v4853 = vpop.f32.mrb[0].mxu0
        %v4854 = vadd.f32 %v4632, %v4853
        %v4855 = vpop.f32.mrb[0].mxu0
        %v4856 = vadd.f32 %v4636, %v4855
        %v4857 = vpop.f32.mrb[0].mxu0
        %v4858 = vadd.f32 %v4632, %v4857
        %v4859 = vpop.f32.mrb[0].mxu0
        %v4860 = vadd.f32 %v4636, %v4859
        %4861 = vmatprep.mubr.bf16.mxu0 0
        %4862 = vmatmul.mubr.bf16.gmra.mrb[0].mxu0 %v4589
        %v4863 = vpop.f32.mrb[0].mxu0
        %v4864 = vadd.f32 %v4632, %v4863
        %v4865 = vpop.f32.mrb[0].mxu0
        %v4866 = vadd.f32 %v4636, %v4865
        %v4867 = vpop.f32.mrb[0].mxu0
        %v4868 = vadd.f32 %v4632, %v4867
        %v4869 = vpop.f32.mrb[0].mxu0
        %v4870 = vadd.f32 %v4636, %v4869
        %4871 = vmatprep.mubr.bf16.mxu0 0
        %4872 = vmatmul.mubr.bf16.gmra.mrb[0].mxu0 %v4590
        %v4873 = vpop.f32.mrb[0].mxu0
        %v4874 = vadd.f32 %v4632, %v4873
        %v4875 = vpop.f32.mrb[0].mxu0
        %v4876 = vadd.f32 %v4636, %v4875
        %v4877 = vpop.f32.mrb[0].mxu0
        %v4878 = vadd.f32 %v4632, %v4877
        %v4879 = vpop.f32.mrb[0].mxu0
        %v4880 = vadd.f32 %v4636, %v4879
        %4881 = vmatprep.mubr.bf16.mxu0 0
        %4882 = vmatmul.mubr.bf16.gmra.mrb[0].mxu0 %v4591
        %v4883 = vpop.f32.mrb[0].mxu0
        %v4884 = vadd.f32 %v4632, %v4883
        %v4885 = vpop.f32.mrb[0].mxu0
        %v4886 = vadd.f32 %v4636, %v4885
        %v4887 = vpop.f32.mrb[0].mxu0
        %v4888 = vadd.f32 %v4632, %v4887
        %v4889 = vpop.f32.mrb[0].mxu0
        %v4890 = vadd.f32 %v4636, %v4889
        %4891 = vmatprep.mubr.bf16.mxu0 0
        %4892 = vmatmul.mubr.bf16.gmra.mrb[0].mxu0 %v4592
        %v4893 = vpop.f32.mrb[0].mxu0
        %v4894 = vadd.f32 %v4632, %v4893
        %v4895 = vpop.f32.mrb[0].mxu0
        %v4896 = vadd.f32 %v4636, %v4895
        %v4897 = vpop.f32.mrb[0].mxu0
        %v4898 = vadd.f32 %v4632, %v4897
        %v4899 = vpop.f32.mrb[0].mxu0
        %v4900 = vadd.f32 %v4636, %v4899
        %4901 = vmatprep.mubr.bf16.mxu0 0
        %4902 = vmatmul.mubr.bf16.gmra.mrb[0].mxu0 %v4593
        %v4903 = vpop.f32.mrb[0].mxu0
        %v4904 = vadd.f32 %v4632, %v4903
        %v4905 = vpop.f32.mrb[0].mxu0
        %v4906 = vadd.f32 %v4636, %v4905
        %v4907 = vpop.f32.mrb[0].mxu0
        %v4908 = vadd.f32 %v4632, %v4907
        %v4909 = vpop.f32.mrb[0].mxu0
        %v4910 = vadd.f32 %v4636, %v4909
        %4911 = vmatprep.mubr.bf16.mxu0 0
        %4912 = vmatmul.mubr.bf16.gmra.mrb[0].mxu0 %v4594
        %v4913 = vpop.f32.mrb[0].mxu0
        %v4914 = vadd.f32 %v4632, %v4913
        %v4915 = vpop.f32.mrb[0].mxu0
        %v4916 = vadd.f32 %v4636, %v4915
        %v4917 = vpop.f32.mrb[0].mxu0
        %v4918 = vadd.f32 %v4632, %v4917
        %v4919 = vpop.f32.mrb[0].mxu0
        %v4920 = vadd.f32 %v4636, %v4919
        %4921 = vdwg.mxu0
        %4922 = vmatprep.subr.bf16.mxu0 %v4748
        %4923 = vmatpush1.bf16.msra.mxu0 %v4747
        %4924 = vmatprep.subr.bf16.mxu0 %v4752
        %4925 = vmatpush1.bf16.msra.mxu0 %v4751
        %4926 = vmatprep.subr.bf16.mxu0 %v4756
        %4927 = vmatpush1.bf16.msra.mxu0 %v4755
        %4928 = vmatprep.subr.bf16.mxu0 %v4760
        %4929 = vmatpush1.bf16.msra.mxu0 %v4759
        %4930 = vmatprep.subr.bf16.mxu0 %v4764
        %4931 = vmatpush1.bf16.msra.mxu0 %v4763
        %4932 = vmatprep.subr.bf16.mxu0 %v4768
        %4933 = vmatpush1.bf16.msra.mxu0 %v4767
        %4934 = vmatprep.subr.bf16.mxu0 %v4772
        %4935 = vmatpush1.bf16.msra.mxu0 %v4771
        %4936 = vmatprep.subr.bf16.mxu0 %v4776
        %4937 = vmatpush1.bf16.msra.mxu0 %v4775
        %4938 = vmatprep.subr.bf16.mxu0 0
        %4939 = vmatpush1.bf16.msra.mxu0 0
        %4940 = vmatprep.subr.bf16.mxu0 0
        %4941 = vmatpush1.bf16.msra.mxu0 0
        %4942 = vmatprep.subr.bf16.mxu0 0
        %4943 = vmatpush1.bf16.msra.mxu0 0
        %4944 = vmatprep.subr.bf16.mxu0 0
        %4945 = vmatpush1.bf16.msra.mxu0 0
        %4946 = vmatprep.subr.bf16.mxu0 0
        %4947 = vmatpush1.bf16.msra.mxu0 0
        %4948 = vmatprep.subr.bf16.mxu0 0
        %4949 = vmatpush1.bf16.msra.mxu0 0
        %4950 = vmatprep.subr.bf16.mxu0 0
        %4951 = vmatpush1.bf16.msra.mxu0 0
        %4952 = vmatprep.subr.bf16.mxu0 0
        %4953 = vmatpush1.bf16.msra.mxu0 0
        %4954 = vmatprep.mubr.bf16.mxu0 0
        %4955 = vmatmul.mubr.bf16.gmra.mrb[0].mxu0 %v4587
        %v4956 = vpop.f32.mrb[0].mxu0
        %v4957 = vadd.f32 %v4640, %v4956
        %v4958 = vpop.f32.mrb[0].mxu0
        %v4959 = vadd.f32 %v4644, %v4958
        %v4960 = vpop.f32.mrb[0].mxu0
        %v4961 = vadd.f32 %v4640, %v4960
        %v4962 = vpop.f32.mrb[0].mxu0
        %v4963 = vadd.f32 %v4644, %v4962
        %4964 = vmatprep.mubr.bf16.mxu0 0
        %4965 = vmatmul.mubr.bf16.gmra.mrb[0].mxu0 %v4588
        %v4966 = vpop.f32.mrb[0].mxu0
        %v4967 = vadd.f32 %v4640, %v4966
        %v4968 = vpop.f32.mrb[0].mxu0
        %v4969 = vadd.f32 %v4644, %v4968
        %v4970 = vpop.f32.mrb[0].mxu0
        %v4971 = vadd.f32 %v4640, %v4970
        %v4972 = vpop.f32.mrb[0].mxu0
        %v4973 = vadd.f32 %v4644, %v4972
        %4974 = vmatprep.mubr.bf16.mxu0 0
        %4975 = vmatmul.mubr.bf16.gmra.mrb[0].mxu0 %v4589
        %v4976 = vpop.f32.mrb[0].mxu0
        %v4977 = vadd.f32 %v4640, %v4976
        %v4978 = vpop.f32.mrb[0].mxu0
        %v4979 = vadd.f32 %v4644, %v4978
        %v4980 = vpop.f32.mrb[0].mxu0
        %v4981 = vadd.f32 %v4640, %v4980
        %v4982 = vpop.f32.mrb[0].mxu0
        %v4983 = vadd.f32 %v4644, %v4982
        %4984 = vmatprep.mubr.bf16.mxu0 0
        %4985 = vmatmul.mubr.bf16.gmra.mrb[0].mxu0 %v4590
        %v4986 = vpop.f32.mrb[0].mxu0
        %v4987 = vadd.f32 %v4640, %v4986
        %v4988 = vpop.f32.mrb[0].mxu0
        %v4989 = vadd.f32 %v4644, %v4988
        %v4990 = vpop.f32.mrb[0].mxu0
        %v4991 = vadd.f32 %v4640, %v4990
        %v4992 = vpop.f32.mrb[0].mxu0
        %v4993 = vadd.f32 %v4644, %v4992
        %4994 = vmatprep.mubr.bf16.mxu0 0
        %4995 = vmatmul.mubr.bf16.gmra.mrb[0].mxu0 %v4591
        %v4996 = vpop.f32.mrb[0].mxu0
        %v4997 = vadd.f32 %v4640, %v4996
        %v4998 = vpop.f32.mrb[0].mxu0
        %v4999 = vadd.f32 %v4644, %v4998
        %v5000 = vpop.f32.mrb[0].mxu0
        %v5001 = vadd.f32 %v4640, %v5000
        %v5002 = vpop.f32.mrb[0].mxu0
        %v5003 = vadd.f32 %v4644, %v5002
        %5004 = vmatprep.mubr.bf16.mxu0 0
        %5005 = vmatmul.mubr.bf16.gmra.mrb[0].mxu0 %v4592
        %v5006 = vpop.f32.mrb[0].mxu0
        %v5007 = vadd.f32 %v4640, %v5006
        %v5008 = vpop.f32.mrb[0].mxu0
        %v5009 = vadd.f32 %v4644, %v5008
        %v5010 = vpop.f32.mrb[0].mxu0
        %v5011 = vadd.f32 %v4640, %v5010
        %v5012 = vpop.f32.mrb[0].mxu0
        %v5013 = vadd.f32 %v4644, %v5012
        %5014 = vmatprep.mubr.bf16.mxu0 0
        %5015 = vmatmul.mubr.bf16.gmra.mrb[0].mxu0 %v4593
        %v5016 = vpop.f32.mrb[0].mxu0
        %v5017 = vadd.f32 %v4640, %v5016
        %v5018 = vpop.f32.mrb[0].mxu0
        %v5019 = vadd.f32 %v4644, %v5018
        %v5020 = vpop.f32.mrb[0].mxu0
        %v5021 = vadd.f32 %v4640, %v5020
        %v5022 = vpop.f32.mrb[0].mxu0
        %v5023 = vadd.f32 %v4644, %v5022
        %5024 = vmatprep.mubr.bf16.mxu0 0
        %5025 = vmatmul.mubr.bf16.gmra.mrb[0].mxu0 %v4594
        %v5026 = vpop.f32.mrb[0].mxu0
        %v5027 = vadd.f32 %v4640, %v5026
        %v5028 = vpop.f32.mrb[0].mxu0
        %v5029 = vadd.f32 %v4644, %v5028
        %v5030 = vpop.f32.mrb[0].mxu0
        %v5031 = vadd.f32 %v4640, %v5030
        %v5032 = vpop.f32.mrb[0].mxu0
        %v5033 = vadd.f32 %v4644, %v5032
        %5034 = vdwg.mxu0
        %v5035 = vmul.f32 %v4844, %v4844
        %v5036 = vmul.f32 %v4846, %v4846
        %v5037 = vmul.f32 %v4957, %v4957
        %v5038 = vmul.f32 %v4959, %v4959
        %v5039 = vmul.f32 %v4848, %v4848
        %v5040 = vmul.f32 %v4850, %v4850
        %v5041 = vmul.f32 %v4961, %v4961
        %v5042 = vmul.f32 %v4963, %v4963
        %v5043 = vmul.f32 %v4854, %v4854
        %v5044 = vmul.f32 %v4856, %v4856
        %v5045 = vmul.f32 %v4967, %v4967
        %v5046 = vmul.f32 %v4969, %v4969
        %v5047 = vmul.f32 %v4858, %v4858
        %v5048 = vmul.f32 %v4860, %v4860
        %v5049 = vmul.f32 %v4971, %v4971
        %v5050 = vmul.f32 %v4973, %v4973
        %v5051 = vmul.f32 %v4864, %v4864
        %v5052 = vmul.f32 %v4866, %v4866
        %v5053 = vmul.f32 %v4977, %v4977
        %v5054 = vmul.f32 %v4979, %v4979
        %v5055 = vmul.f32 %v4868, %v4868
        %v5056 = vmul.f32 %v4870, %v4870
        %v5057 = vmul.f32 %v4981, %v4981
        %v5058 = vmul.f32 %v4983, %v4983
        %v5059 = vmul.f32 %v4874, %v4874
        %v5060 = vmul.f32 %v4876, %v4876
        %v5061 = vmul.f32 %v4987, %v4987
        %v5062 = vmul.f32 %v4989, %v4989
        %v5063 = vmul.f32 %v4878, %v4878
        %v5064 = vmul.f32 %v4880, %v4880
        %v5065 = vmul.f32 %v4991, %v4991
        %v5066 = vmul.f32 %v4993, %v4993
        %v5067 = vmul.f32 %v4884, %v4884
        %v5068 = vmul.f32 %v4886, %v4886
        %v5069 = vmul.f32 %v4997, %v4997
        %v5070 = vmul.f32 %v4999, %v4999
        %v5071 = vmul.f32 %v4888, %v4888
        %v5072 = vmul.f32 %v4890, %v4890
        %v5073 = vmul.f32 %v5001, %v5001
        %v5074 = vmul.f32 %v5003, %v5003
        %v5075 = vmul.f32 %v4894, %v4894
        %v5076 = vmul.f32 %v4896, %v4896
        %v5077 = vmul.f32 %v5007, %v5007
        %v5078 = vmul.f32 %v5009, %v5009
        %v5079 = vmul.f32 %v4898, %v4898
        %v5080 = vmul.f32 %v4900, %v4900
        %v5081 = vmul.f32 %v5011, %v5011
        %v5082 = vmul.f32 %v5013, %v5013
        %v5083 = vmul.f32 %v4904, %v4904
        %v5084 = vmul.f32 %v4906, %v4906
        %v5085 = vmul.f32 %v5017, %v5017
        %v5086 = vmul.f32 %v5019, %v5019
        %v5087 = vmul.f32 %v4908, %v4908
        %v5088 = vmul.f32 %v4910, %v4910
        %v5089 = vmul.f32 %v5021, %v5021
        %v5090 = vmul.f32 %v5023, %v5023
        %v5091 = vmul.f32 %v4914, %v4914
        %v5092 = vmul.f32 %v4916, %v4916
        %v5093 = vmul.f32 %v5027, %v5027
        %v5094 = vmul.f32 %v5029, %v5029
        %v5095 = vmul.f32 %v4918, %v4918
        %v5096 = vmul.f32 %v4920, %v4920
        %v5097 = vmul.f32 %v5031, %v5031
        %v5098 = vmul.f32 %v5033, %v5033
        %v5099 = vmul.f32 %v4844, %v5035
        %v5100 = vmul.f32 %v4846, %v5036
        %v5101 = vmul.f32 %v4957, %v5037
        %v5102 = vmul.f32 %v4959, %v5038
        %v5103 = vmul.f32 %v4848, %v5039
        %v5104 = vmul.f32 %v4850, %v5040
        %v5105 = vmul.f32 %v4961, %v5041
        %v5106 = vmul.f32 %v4963, %v5042
        %v5107 = vmul.f32 %v4854, %v5043
        %v5108 = vmul.f32 %v4856, %v5044
        %v5109 = vmul.f32 %v4967, %v5045
        %v5110 = vmul.f32 %v4969, %v5046
        %v5111 = vmul.f32 %v4858, %v5047
        %v5112 = vmul.f32 %v4860, %v5048
        %v5113 = vmul.f32 %v4971, %v5049
        %v5114 = vmul.f32 %v4973, %v5050
        %v5115 = vmul.f32 %v4864, %v5051
        %v5116 = vmul.f32 %v4866, %v5052
        %v5117 = vmul.f32 %v4977, %v5053
        %v5118 = vmul.f32 %v4979, %v5054
        %v5119 = vmul.f32 %v4868, %v5055
        %v5120 = vmul.f32 %v4870, %v5056
        %v5121 = vmul.f32 %v4981, %v5057
        %v5122 = vmul.f32 %v4983, %v5058
        %v5123 = vmul.f32 %v4874, %v5059
        %v5124 = vmul.f32 %v4876, %v5060
        %v5125 = vmul.f32 %v4987, %v5061
        %v5126 = vmul.f32 %v4989, %v5062
        %v5127 = vmul.f32 %v4878, %v5063
        %v5128 = vmul.f32 %v4880, %v5064
        %v5129 = vmul.f32 %v4991, %v5065
        %v5130 = vmul.f32 %v4993, %v5066
        %v5131 = vmul.f32 %v4884, %v5067
        %v5132 = vmul.f32 %v4886, %v5068
        %v5133 = vmul.f32 %v4997, %v5069
        %v5134 = vmul.f32 %v4999, %v5070
        %v5135 = vmul.f32 %v4888, %v5071
        %v5136 = vmul.f32 %v4890, %v5072
        %v5137 = vmul.f32 %v5001, %v5073
        %v5138 = vmul.f32 %v5003, %v5074
        %v5139 = vmul.f32 %v4894, %v5075
        %v5140 = vmul.f32 %v4896, %v5076
        %v5141 = vmul.f32 %v5007, %v5077
        %v5142 = vmul.f32 %v5009, %v5078
        %v5143 = vmul.f32 %v4898, %v5079
        %v5144 = vmul.f32 %v4900, %v5080
        %v5145 = vmul.f32 %v5011, %v5081
        %v5146 = vmul.f32 %v5013, %v5082
        %v5147 = vmul.f32 %v4904, %v5083
        %v5148 = vmul.f32 %v4906, %v5084
        %v5149 = vmul.f32 %v5017, %v5085
        %v5150 = vmul.f32 %v5019, %v5086
        %v5151 = vmul.f32 %v4908, %v5087
        %v5152 = vmul.f32 %v4910, %v5088
        %v5153 = vmul.f32 %v5021, %v5089
        %v5154 = vmul.f32 %v5023, %v5090
        %v5155 = vmul.f32 %v4914, %v5091
        %v5156 = vmul.f32 %v4916, %v5092
        %v5157 = vmul.f32 %v5027, %v5093
        %v5158 = vmul.f32 %v5029, %v5094
        %v5159 = vmul.f32 %v4918, %v5095
        %v5160 = vmul.f32 %v4920, %v5096
        %v5161 = vmul.f32 %v5031, %v5097
        %v5162 = vmul.f32 %v5033, %v5098
        %v5163 = vmul.f32 %v5099, 0.044715
        %v5164 = vmul.f32 %v5100, 0.044715
        %v5165 = vmul.f32 %v5101, 0.044715
        %v5166 = vmul.f32 %v5102, 0.044715
        %v5167 = vmul.f32 %v5103, 0.044715
        %v5168 = vmul.f32 %v5104, 0.044715
        %v5169 = vmul.f32 %v5105, 0.044715
        %v5170 = vmul.f32 %v5106, 0.044715
        %v5171 = vmul.f32 %v5107, 0.044715
        %v5172 = vmul.f32 %v5108, 0.044715
        %v5173 = vmul.f32 %v5109, 0.044715
        %v5174 = vmul.f32 %v5110, 0.044715
        %v5175 = vmul.f32 %v5111, 0.044715
        %v5176 = vmul.f32 %v5112, 0.044715
        %v5177 = vmul.f32 %v5113, 0.044715
        %v5178 = vmul.f32 %v5114, 0.044715
        %v5179 = vmul.f32 %v5115, 0.044715
        %v5180 = vmul.f32 %v5116, 0.044715
        %v5181 = vmul.f32 %v5117, 0.044715
        %v5182 = vmul.f32 %v5118, 0.044715
        %v5183 = vmul.f32 %v5119, 0.044715
        %v5184 = vmul.f32 %v5120, 0.044715
        %v5185 = vmul.f32 %v5121, 0.044715
        %v5186 = vmul.f32 %v5122, 0.044715
        %v5187 = vmul.f32 %v5123, 0.044715
        %v5188 = vmul.f32 %v5124, 0.044715
        %v5189 = vmul.f32 %v5125, 0.044715
        %v5190 = vmul.f32 %v5126, 0.044715
        %v5191 = vmul.f32 %v5127, 0.044715
        %v5192 = vmul.f32 %v5128, 0.044715
        %v5193 = vmul.f32 %v5129, 0.044715
        %v5194 = vmul.f32 %v5130, 0.044715
        %v5195 = vmul.f32 %v5131, 0.044715
        %v5196 = vmul.f32 %v5132, 0.044715
        %v5197 = vmul.f32 %v5133, 0.044715
        %v5198 = vmul.f32 %v5134, 0.044715
        %v5199 = vmul.f32 %v5135, 0.044715
        %v5200 = vmul.f32 %v5136, 0.044715
        %v5201 = vmul.f32 %v5137, 0.044715
        %v5202 = vmul.f32 %v5138, 0.044715
        %v5203 = vmul.f32 %v5139, 0.044715
        %v5204 = vmul.f32 %v5140, 0.044715
        %v5205 = vmul.f32 %v5141, 0.044715
        %v5206 = vmul.f32 %v5142, 0.044715
        %v5207 = vmul.f32 %v5143, 0.044715
        %v5208 = vmul.f32 %v5144, 0.044715
        %v5209 = vmul.f32 %v5145, 0.044715
        %v5210 = vmul.f32 %v5146, 0.044715
        %v5211 = vmul.f32 %v5147, 0.044715
        %v5212 = vmul.f32 %v5148, 0.044715
        %v5213 = vmul.f32 %v5149, 0.044715
        %v5214 = vmul.f32 %v5150, 0.044715
        %v5215 = vmul.f32 %v5151, 0.044715
        %v5216 = vmul.f32 %v5152, 0.044715
        %v5217 = vmul.f32 %v5153, 0.044715
        %v5218 = vmul.f32 %v5154, 0.044715
        %v5219 = vmul.f32 %v5155, 0.044715
        %v5220 = vmul.f32 %v5156, 0.044715
        %v5221 = vmul.f32 %v5157, 0.044715
        %v5222 = vmul.f32 %v5158, 0.044715
        %v5223 = vmul.f32 %v5159, 0.044715
        %v5224 = vmul.f32 %v5160, 0.044715
        %v5225 = vmul.f32 %v5161, 0.044715
        %v5226 = vmul.f32 %v5162, 0.044715
        %v5227 = vadd.f32 %v4844, %v5163
        %v5228 = vadd.f32 %v4846, %v5164
        %v5229 = vadd.f32 %v4957, %v5165
        %v5230 = vadd.f32 %v4959, %v5166
        %v5231 = vadd.f32 %v4848, %v5167
        %v5232 = vadd.f32 %v4850, %v5168
        %v5233 = vadd.f32 %v4961, %v5169
        %v5234 = vadd.f32 %v4963, %v5170
        %v5235 = vadd.f32 %v4854, %v5171
        %v5236 = vadd.f32 %v4856, %v5172
        %v5237 = vadd.f32 %v4967, %v5173
        %v5238 = vadd.f32 %v4969, %v5174
        %v5239 = vadd.f32 %v4858, %v5175
        %v5240 = vadd.f32 %v4860, %v5176
        %v5241 = vadd.f32 %v4971, %v5177
        %v5242 = vadd.f32 %v4973, %v5178
        %v5243 = vadd.f32 %v4864, %v5179
        %v5244 = vadd.f32 %v4866, %v5180
        %v5245 = vadd.f32 %v4977, %v5181
        %v5246 = vadd.f32 %v4979, %v5182
        %v5247 = vadd.f32 %v4868, %v5183
        %v5248 = vadd.f32 %v4870, %v5184
        %v5249 = vadd.f32 %v4981, %v5185
        %v5250 = vadd.f32 %v4983, %v5186
        %v5251 = vadd.f32 %v4874, %v5187
        %v5252 = vadd.f32 %v4876, %v5188
        %v5253 = vadd.f32 %v4987, %v5189
        %v5254 = vadd.f32 %v4989, %v5190
        %v5255 = vadd.f32 %v4878, %v5191
        %v5256 = vadd.f32 %v4880, %v5192
        %v5257 = vadd.f32 %v4991, %v5193
        %v5258 = vadd.f32 %v4993, %v5194
        %v5259 = vadd.f32 %v4884, %v5195
        %v5260 = vadd.f32 %v4886, %v5196
        %v5261 = vadd.f32 %v4997, %v5197
        %v5262 = vadd.f32 %v4999, %v5198
        %v5263 = vadd.f32 %v4888, %v5199
        %v5264 = vadd.f32 %v4890, %v5200
        %v5265 = vadd.f32 %v5001, %v5201
        %v5266 = vadd.f32 %v5003, %v5202
        %v5267 = vadd.f32 %v4894, %v5203
        %v5268 = vadd.f32 %v4896, %v5204
        %v5269 = vadd.f32 %v5007, %v5205
        %v5270 = vadd.f32 %v5009, %v5206
        %v5271 = vadd.f32 %v4898, %v5207
        %v5272 = vadd.f32 %v4900, %v5208
        %v5273 = vadd.f32 %v5011, %v5209
        %v5274 = vadd.f32 %v5013, %v5210
        %v5275 = vadd.f32 %v4904, %v5211
        %v5276 = vadd.f32 %v4906, %v5212
        %v5277 = vadd.f32 %v5017, %v5213
        %v5278 = vadd.f32 %v5019, %v5214
        %v5279 = vadd.f32 %v4908, %v5215
        %v5280 = vadd.f32 %v4910, %v5216
        %v5281 = vadd.f32 %v5021, %v5217
        %v5282 = vadd.f32 %v5023, %v5218
        %v5283 = vadd.f32 %v4914, %v5219
        %v5284 = vadd.f32 %v4916, %v5220
        %v5285 = vadd.f32 %v5027, %v5221
        %v5286 = vadd.f32 %v5029, %v5222
        %v5287 = vadd.f32 %v4918, %v5223
        %v5288 = vadd.f32 %v4920, %v5224
        %v5289 = vadd.f32 %v5031, %v5225
        %v5290 = vadd.f32 %v5033, %v5226
        %v5291 = vmul.f32 %v5227, 0.7978846
        %v5292 = vmul.f32 %v5228, 0.7978846
        %v5293 = vmul.f32 %v5229, 0.7978846
        %v5294 = vmul.f32 %v5230, 0.7978846
        %v5295 = vmul.f32 %v5231, 0.7978846
        %v5296 = vmul.f32 %v5232, 0.7978846
        %v5297 = vmul.f32 %v5233, 0.7978846
        %v5298 = vmul.f32 %v5234, 0.7978846
        %v5299 = vmul.f32 %v5235, 0.7978846
        %v5300 = vmul.f32 %v5236, 0.7978846
        %v5301 = vmul.f32 %v5237, 0.7978846
        %v5302 = vmul.f32 %v5238, 0.7978846
        %v5303 = vmul.f32 %v5239, 0.7978846
        %v5304 = vmul.f32 %v5240, 0.7978846
        %v5305 = vmul.f32 %v5241, 0.7978846
        %v5306 = vmul.f32 %v5242, 0.7978846
        %v5307 = vmul.f32 %v5243, 0.7978846
        %v5308 = vmul.f32 %v5244, 0.7978846
        %v5309 = vmul.f32 %v5245, 0.7978846
        %v5310 = vmul.f32 %v5246, 0.7978846
        %v5311 = vmul.f32 %v5247, 0.7978846
        %v5312 = vmul.f32 %v5248, 0.7978846
        %v5313 = vmul.f32 %v5249, 0.7978846
        %v5314 = vmul.f32 %v5250, 0.7978846
        %v5315 = vmul.f32 %v5251, 0.7978846
        %v5316 = vmul.f32 %v5252, 0.7978846
        %v5317 = vmul.f32 %v5253, 0.7978846
        %v5318 = vmul.f32 %v5254, 0.7978846
        %v5319 = vmul.f32 %v5255, 0.7978846
        %v5320 = vmul.f32 %v5256, 0.7978846
        %v5321 = vmul.f32 %v5257, 0.7978846
        %v5322 = vmul.f32 %v5258, 0.7978846
        %v5323 = vmul.f32 %v5259, 0.7978846
        %v5324 = vmul.f32 %v5260, 0.7978846
        %v5325 = vmul.f32 %v5261, 0.7978846
        %v5326 = vmul.f32 %v5262, 0.7978846
        %v5327 = vmul.f32 %v5263, 0.7978846
        %v5328 = vmul.f32 %v5264, 0.7978846
        %v5329 = vmul.f32 %v5265, 0.7978846
        %v5330 = vmul.f32 %v5266, 0.7978846
        %v5331 = vmul.f32 %v5267, 0.7978846
        %v5332 = vmul.f32 %v5268, 0.7978846
        %v5333 = vmul.f32 %v5269, 0.7978846
        %v5334 = vmul.f32 %v5270, 0.7978846
        %v5335 = vmul.f32 %v5271, 0.7978846
        %v5336 = vmul.f32 %v5272, 0.7978846
        %v5337 = vmul.f32 %v5273, 0.7978846
        %v5338 = vmul.f32 %v5274, 0.7978846
        %v5339 = vmul.f32 %v5275, 0.7978846
        %v5340 = vmul.f32 %v5276, 0.7978846
        %v5341 = vmul.f32 %v5277, 0.7978846
        %v5342 = vmul.f32 %v5278, 0.7978846
        %v5343 = vmul.f32 %v5279, 0.7978846
        %v5344 = vmul.f32 %v5280, 0.7978846
        %v5345 = vmul.f32 %v5281, 0.7978846
        %v5346 = vmul.f32 %v5282, 0.7978846
        %v5347 = vmul.f32 %v5283, 0.7978846
        %v5348 = vmul.f32 %v5284, 0.7978846
        %v5349 = vmul.f32 %v5285, 0.7978846
        %v5350 = vmul.f32 %v5286, 0.7978846
        %v5351 = vmul.f32 %v5287, 0.7978846
        %v5352 = vmul.f32 %v5288, 0.7978846
        %v5353 = vmul.f32 %v5289, 0.7978846
        %v5354 = vmul.f32 %v5290, 0.7978846
        %v5355 = vtanh.pop %v5291
        %v5356 = vtanh.pop %v5292
        %v5357 = vtanh.pop %v5293
        %v5358 = vtanh.pop %v5294
        %v5359 = vtanh.pop %v5295
        %v5360 = vtanh.pop %v5296
        %v5361 = vtanh.pop %v5297
        %v5362 = vtanh.pop %v5298
        %v5363 = vtanh.pop %v5299
        %v5364 = vtanh.pop %v5300
        %v5365 = vtanh.pop %v5301
        %v5366 = vtanh.pop %v5302
        %v5367 = vtanh.pop %v5303
        %v5368 = vtanh.pop %v5304
        %v5369 = vtanh.pop %v5305
        %v5370 = vtanh.pop %v5306
        %v5371 = vtanh.pop %v5307
        %v5372 = vtanh.pop %v5308
        %v5373 = vtanh.pop %v5309
        %v5374 = vtanh.pop %v5310
        %v5375 = vtanh.pop %v5311
        %v5376 = vtanh.pop %v5312
        %v5377 = vtanh.pop %v5313
        %v5378 = vtanh.pop %v5314
        %v5379 = vtanh.pop %v5315
        %v5380 = vtanh.pop %v5316
        %v5381 = vtanh.pop %v5317
        %v5382 = vtanh.pop %v5318
        %v5383 = vtanh.pop %v5319
        %v5384 = vtanh.pop %v5320
        %v5385 = vtanh.pop %v5321
        %v5386 = vtanh.pop %v5322
        %v5387 = vtanh.pop %v5323
        %v5388 = vtanh.pop %v5324
        %v5389 = vtanh.pop %v5325
        %v5390 = vtanh.pop %v5326
        %v5391 = vtanh.pop %v5327
        %v5392 = vtanh.pop %v5328
        %v5393 = vtanh.pop %v5329
        %v5394 = vtanh.pop %v5330
        %v5395 = vtanh.pop %v5331
        %v5396 = vtanh.pop %v5332
        %v5397 = vtanh.pop %v5333
        %v5398 = vtanh.pop %v5334
        %v5399 = vtanh.pop %v5335
        %v5400 = vtanh.pop %v5336
        %v5401 = vtanh.pop %v5337
        %v5402 = vtanh.pop %v5338
        %v5403 = vtanh.pop %v5339
        %v5404 = vtanh.pop %v5340
        %v5405 = vtanh.pop %v5341
        %v5406 = vtanh.pop %v5342
        %v5407 = vtanh.pop %v5343
        %v5408 = vtanh.pop %v5344
        %v5409 = vtanh.pop %v5345
        %v5410 = vtanh.pop %v5346
        %v5411 = vtanh.pop %v5347
        %v5412 = vtanh.pop %v5348
        %v5413 = vtanh.pop %v5349
        %v5414 = vtanh.pop %v5350
        %v5415 = vtanh.pop %v5351
        %v5416 = vtanh.pop %v5352
        %v5417 = vtanh.pop %v5353
        %v5418 = vtanh.pop %v5354
        %v5419 = vadd.f32 %v5355, 1.0
        %v5420 = vadd.f32 %v5356, 1.0
        %v5421 = vadd.f32 %v5357, 1.0
        %v5422 = vadd.f32 %v5358, 1.0
        %v5423 = vadd.f32 %v5359, 1.0
        %v5424 = vadd.f32 %v5360, 1.0
        %v5425 = vadd.f32 %v5361, 1.0
        %v5426 = vadd.f32 %v5362, 1.0
        %v5427 = vadd.f32 %v5363, 1.0
        %v5428 = vadd.f32 %v5364, 1.0
        %v5429 = vadd.f32 %v5365, 1.0
        %v5430 = vadd.f32 %v5366, 1.0
        %v5431 = vadd.f32 %v5367, 1.0
        %v5432 = vadd.f32 %v5368, 1.0
        %v5433 = vadd.f32 %v5369, 1.0
        %v5434 = vadd.f32 %v5370, 1.0
        %v5435 = vadd.f32 %v5371, 1.0
        %v5436 = vadd.f32 %v5372, 1.0
        %v5437 = vadd.f32 %v5373, 1.0
        %v5438 = vadd.f32 %v5374, 1.0
        %v5439 = vadd.f32 %v5375, 1.0
        %v5440 = vadd.f32 %v5376, 1.0
        %v5441 = vadd.f32 %v5377, 1.0
        %v5442 = vadd.f32 %v5378, 1.0
        %v5443 = vadd.f32 %v5379, 1.0
        %v5444 = vadd.f32 %v5380, 1.0
        %v5445 = vadd.f32 %v5381, 1.0
        %v5446 = vadd.f32 %v5382, 1.0
        %v5447 = vadd.f32 %v5383, 1.0
        %v5448 = vadd.f32 %v5384, 1.0
        %v5449 = vadd.f32 %v5385, 1.0
        %v5450 = vadd.f32 %v5386, 1.0
        %v5451 = vadd.f32 %v5387, 1.0
        %v5452 = vadd.f32 %v5388, 1.0
        %v5453 = vadd.f32 %v5389, 1.0
        %v5454 = vadd.f32 %v5390, 1.0
        %v5455 = vadd.f32 %v5391, 1.0
        %v5456 = vadd.f32 %v5392, 1.0
        %v5457 = vadd.f32 %v5393, 1.0
        %v5458 = vadd.f32 %v5394, 1.0
        %v5459 = vadd.f32 %v5395, 1.0
        %v5460 = vadd.f32 %v5396, 1.0
        %v5461 = vadd.f32 %v5397, 1.0
        %v5462 = vadd.f32 %v5398, 1.0
        %v5463 = vadd.f32 %v5399, 1.0
        %v5464 = vadd.f32 %v5400, 1.0
        %v5465 = vadd.f32 %v5401, 1.0
        %v5466 = vadd.f32 %v5402, 1.0
        %v5467 = vadd.f32 %v5403, 1.0
        %v5468 = vadd.f32 %v5404, 1.0
        %v5469 = vadd.f32 %v5405, 1.0
        %v5470 = vadd.f32 %v5406, 1.0
        %v5471 = vadd.f32 %v5407, 1.0
        %v5472 = vadd.f32 %v5408, 1.0
        %v5473 = vadd.f32 %v5409, 1.0
        %v5474 = vadd.f32 %v5410, 1.0
        %v5475 = vadd.f32 %v5411, 1.0
        %v5476 = vadd.f32 %v5412, 1.0
        %v5477 = vadd.f32 %v5413, 1.0
        %v5478 = vadd.f32 %v5414, 1.0
        %v5479 = vadd.f32 %v5415, 1.0
        %v5480 = vadd.f32 %v5416, 1.0
        %v5481 = vadd.f32 %v5417, 1.0
        %v5482 = vadd.f32 %v5418, 1.0
        %v5483 = vmul.f32 %v5419, 0.5
        %v5484 = vmul.f32 %v5420, 0.5
        %v5485 = vmul.f32 %v5421, 0.5
        %v5486 = vmul.f32 %v5422, 0.5
        %v5487 = vmul.f32 %v5423, 0.5
        %v5488 = vmul.f32 %v5424, 0.5
        %v5489 = vmul.f32 %v5425, 0.5
        %v5490 = vmul.f32 %v5426, 0.5
        %v5491 = vmul.f32 %v5427, 0.5
        %v5492 = vmul.f32 %v5428, 0.5
        %v5493 = vmul.f32 %v5429, 0.5
        %v5494 = vmul.f32 %v5430, 0.5
        %v5495 = vmul.f32 %v5431, 0.5
        %v5496 = vmul.f32 %v5432, 0.5
        %v5497 = vmul.f32 %v5433, 0.5
        %v5498 = vmul.f32 %v5434, 0.5
        %v5499 = vmul.f32 %v5435, 0.5
        %v5500 = vmul.f32 %v5436, 0.5
        %v5501 = vmul.f32 %v5437, 0.5
        %v5502 = vmul.f32 %v5438, 0.5
        %v5503 = vmul.f32 %v5439, 0.5
        %v5504 = vmul.f32 %v5440, 0.5
        %v5505 = vmul.f32 %v5441, 0.5
        %v5506 = vmul.f32 %v5442, 0.5
        %v5507 = vmul.f32 %v5443, 0.5
        %v5508 = vmul.f32 %v5444, 0.5
        %v5509 = vmul.f32 %v5445, 0.5
        %v5510 = vmul.f32 %v5446, 0.5
        %v5511 = vmul.f32 %v5447, 0.5
        %v5512 = vmul.f32 %v5448, 0.5
        %v5513 = vmul.f32 %v5449, 0.5
        %v5514 = vmul.f32 %v5450, 0.5
        %v5515 = vmul.f32 %v5451, 0.5
        %v5516 = vmul.f32 %v5452, 0.5
        %v5517 = vmul.f32 %v5453, 0.5
        %v5518 = vmul.f32 %v5454, 0.5
        %v5519 = vmul.f32 %v5455, 0.5
        %v5520 = vmul.f32 %v5456, 0.5
        %v5521 = vmul.f32 %v5457, 0.5
        %v5522 = vmul.f32 %v5458, 0.5
        %v5523 = vmul.f32 %v5459, 0.5
        %v5524 = vmul.f32 %v5460, 0.5
        %v5525 = vmul.f32 %v5461, 0.5
        %v5526 = vmul.f32 %v5462, 0.5
        %v5527 = vmul.f32 %v5463, 0.5
        %v5528 = vmul.f32 %v5464, 0.5
        %v5529 = vmul.f32 %v5465, 0.5
        %v5530 = vmul.f32 %v5466, 0.5
        %v5531 = vmul.f32 %v5467, 0.5
        %v5532 = vmul.f32 %v5468, 0.5
        %v5533 = vmul.f32 %v5469, 0.5
        %v5534 = vmul.f32 %v5470, 0.5
        %v5535 = vmul.f32 %v5471, 0.5
        %v5536 = vmul.f32 %v5472, 0.5
        %v5537 = vmul.f32 %v5473, 0.5
        %v5538 = vmul.f32 %v5474, 0.5
        %v5539 = vmul.f32 %v5475, 0.5
        %v5540 = vmul.f32 %v5476, 0.5
        %v5541 = vmul.f32 %v5477, 0.5
        %v5542 = vmul.f32 %v5478, 0.5
        %v5543 = vmul.f32 %v5479, 0.5
        %v5544 = vmul.f32 %v5480, 0.5
        %v5545 = vmul.f32 %v5481, 0.5
        %v5546 = vmul.f32 %v5482, 0.5
        %v5547 = vmul.f32 %v4844, %v5483
        %v5548 = vmul.f32 %v4846, %v5484
        %v5549 = vmul.f32 %v4957, %v5485
        %v5550 = vmul.f32 %v4959, %v5486
        %v5551 = vmul.f32 %v4848, %v5487
        %v5552 = vmul.f32 %v4850, %v5488
        %v5553 = vmul.f32 %v4961, %v5489
        %v5554 = vmul.f32 %v4963, %v5490
        %v5555 = vmul.f32 %v4854, %v5491
        %v5556 = vmul.f32 %v4856, %v5492
        %v5557 = vmul.f32 %v4967, %v5493
        %v5558 = vmul.f32 %v4969, %v5494
        %v5559 = vmul.f32 %v4858, %v5495
        %v5560 = vmul.f32 %v4860, %v5496
        %v5561 = vmul.f32 %v4971, %v5497
        %v5562 = vmul.f32 %v4973, %v5498
        %v5563 = vmul.f32 %v4864, %v5499
        %v5564 = vmul.f32 %v4866, %v5500
        %v5565 = vmul.f32 %v4977, %v5501
        %v5566 = vmul.f32 %v4979, %v5502
        %v5567 = vmul.f32 %v4868, %v5503
        %v5568 = vmul.f32 %v4870, %v5504
        %v5569 = vmul.f32 %v4981, %v5505
        %v5570 = vmul.f32 %v4983, %v5506
        %v5571 = vmul.f32 %v4874, %v5507
        %v5572 = vmul.f32 %v4876, %v5508
        %v5573 = vmul.f32 %v4987, %v5509
        %v5574 = vmul.f32 %v4989, %v5510
        %v5575 = vmul.f32 %v4878, %v5511
        %v5576 = vmul.f32 %v4880, %v5512
        %v5577 = vmul.f32 %v4991, %v5513
        %v5578 = vmul.f32 %v4993, %v5514
        %v5579 = vmul.f32 %v4884, %v5515
        %v5580 = vmul.f32 %v4886, %v5516
        %v5581 = vmul.f32 %v4997, %v5517
        %v5582 = vmul.f32 %v4999, %v5518
        %v5583 = vmul.f32 %v4888, %v5519
        %v5584 = vmul.f32 %v4890, %v5520
        %v5585 = vmul.f32 %v5001, %v5521
        %v5586 = vmul.f32 %v5003, %v5522
        %v5587 = vmul.f32 %v4894, %v5523
        %v5588 = vmul.f32 %v4896, %v5524
        %v5589 = vmul.f32 %v5007, %v5525
        %v5590 = vmul.f32 %v5009, %v5526
        %v5591 = vmul.f32 %v4898, %v5527
        %v5592 = vmul.f32 %v4900, %v5528
        %v5593 = vmul.f32 %v5011, %v5529
        %v5594 = vmul.f32 %v5013, %v5530
        %v5595 = vmul.f32 %v4904, %v5531
        %v5596 = vmul.f32 %v4906, %v5532
        %v5597 = vmul.f32 %v5017, %v5533
        %v5598 = vmul.f32 %v5019, %v5534
        %v5599 = vmul.f32 %v4908, %v5535
        %v5600 = vmul.f32 %v4910, %v5536
        %v5601 = vmul.f32 %v5021, %v5537
        %v5602 = vmul.f32 %v5023, %v5538
        %v5603 = vmul.f32 %v4914, %v5539
        %v5604 = vmul.f32 %v4916, %v5540
        %v5605 = vmul.f32 %v5027, %v5541
        %v5606 = vmul.f32 %v5029, %v5542
        %v5607 = vmul.f32 %v4918, %v5543
        %v5608 = vmul.f32 %v4920, %v5544
        %v5609 = vmul.f32 %v5031, %v5545
        %v5610 = vmul.f32 %v5033, %v5546
        %v5611 = vld [vmem:[#allocation4] sm:$0xff]
        %v5612 = vld [vmem:[#allocation4 + $0x8] sm:$0xff]
        %v5613 = vld [vmem:[#allocation4 + $0x10] sm:$0xff]
        %v5614 = vld [vmem:[#allocation4 + $0x18] sm:$0xff]
        %v5615 = vld [vmem:[#allocation4 + $0x20] sm:$0xff]
        %v5616 = vld [vmem:[#allocation4 + $0x28] sm:$0xff]
        %v5617 = vld [vmem:[#allocation4 + $0x30] sm:$0xff]
        %v5618 = vld [vmem:[#allocation4 + $0x38] sm:$0xff]
        %v5619 = vld [vmem:[#allocation4 + $0x40] sm:$0xff]
        %v5620 = vld [vmem:[#allocation4 + $0x48] sm:$0xff]
        %v5621 = vld [vmem:[#allocation4 + $0x50] sm:$0xff]
        %v5622 = vld [vmem:[#allocation4 + $0x58] sm:$0xff]
        %v5623 = vld [vmem:[#allocation4 + $0x60] sm:$0xff]
        %v5624 = vld [vmem:[#allocation4 + $0x68] sm:$0xff]
        %v5625 = vld [vmem:[#allocation4 + $0x70] sm:$0xff]
        %v5626 = vld [vmem:[#allocation4 + $0x78] sm:$0xff]
        %v5627 = vpack.c.bf16 %v5551, %v5547
        %v5628 = vpack.c.bf16 %v5552, %v5548
        %v5629 = vpack.c.bf16 %v5553, %v5549
        %v5630 = vpack.c.bf16 %v5554, %v5550
        %v5631 = vpack.c.bf16 %v5559, %v5555
        %v5632 = vpack.c.bf16 %v5560, %v5556
        %v5633 = vpack.c.bf16 %v5561, %v5557
        %v5634 = vpack.c.bf16 %v5562, %v5558
        %v5635 = vpack.c.bf16 %v5567, %v5563
        %v5636 = vpack.c.bf16 %v5568, %v5564
        %v5637 = vpack.c.bf16 %v5569, %v5565
        %v5638 = vpack.c.bf16 %v5570, %v5566
        %v5639 = vpack.c.bf16 %v5575, %v5571
        %v5640 = vpack.c.bf16 %v5576, %v5572
        %v5641 = vpack.c.bf16 %v5577, %v5573
        %v5642 = vpack.c.bf16 %v5578, %v5574
        %v5643 = vpack.c.bf16 %v5583, %v5579
        %v5644 = vpack.c.bf16 %v5584, %v5580
        %v5645 = vpack.c.bf16 %v5585, %v5581
        %v5646 = vpack.c.bf16 %v5586, %v5582
        %v5647 = vpack.c.bf16 %v5591, %v5587
        %v5648 = vpack.c.bf16 %v5592, %v5588
        %v5649 = vpack.c.bf16 %v5593, %v5589
        %v5650 = vpack.c.bf16 %v5594, %v5590
        %v5651 = vpack.c.bf16 %v5599, %v5595
        %v5652 = vpack.c.bf16 %v5600, %v5596
        %v5653 = vpack.c.bf16 %v5601, %v5597
        %v5654 = vpack.c.bf16 %v5602, %v5598
        %v5655 = vpack.c.bf16 %v5607, %v5603
        %v5656 = vpack.c.bf16 %v5608, %v5604
        %v5657 = vpack.c.bf16 %v5609, %v5605
        %v5658 = vpack.c.bf16 %v5610, %v5606
        %v5659 = vld [vmem:[%s989] sm:$0xf]
        %v5660 = vld [vmem:[%s989 + $0x4] sm:$0xf]
        %v5661 = vld [vmem:[%s989 + $0x8] sm:$0xf]
        %v5662 = vld [vmem:[%s989 + $0xc] sm:$0xf]
        %v5663 = vld [vmem:[%s989 + $0x10] sm:$0xf]
        %v5664 = vld [vmem:[%s989 + $0x14] sm:$0xf]
        %v5665 = vld [vmem:[%s989 + $0x18] sm:$0xf]
        %v5666 = vld [vmem:[%s989 + $0x1c] sm:$0xf]
        %v5667 = vld [vmem:[%s989 + $0x20] sm:$0xf]
        %v5668 = vld [vmem:[%s989 + $0x24] sm:$0xf]
        %v5669 = vld [vmem:[%s989 + $0x28] sm:$0xf]
        %v5670 = vld [vmem:[%s989 + $0x2c] sm:$0xf]
        %v5671 = vld [vmem:[%s989 + $0x30] sm:$0xf]
        %v5672 = vld [vmem:[%s989 + $0x34] sm:$0xf]
        %v5673 = vld [vmem:[%s989 + $0x38] sm:$0xf]
        %v5674 = vld [vmem:[%s989 + $0x3c] sm:$0xf]
        %v5675 = vld [vmem:[%s989 + $0x40] sm:$0xf]
        %v5676 = vld [vmem:[%s989 + $0x44] sm:$0xf]
        %v5677 = vld [vmem:[%s989 + $0x48] sm:$0xf]
        %v5678 = vld [vmem:[%s989 + $0x4c] sm:$0xf]
        %v5679 = vld [vmem:[%s989 + $0x50] sm:$0xf]
        %v5680 = vld [vmem:[%s989 + $0x54] sm:$0xf]
        %v5681 = vld [vmem:[%s989 + $0x58] sm:$0xf]
        %v5682 = vld [vmem:[%s989 + $0x5c] sm:$0xf]
        %v5683 = vld [vmem:[%s989 + $0x60] sm:$0xf]
        %v5684 = vld [vmem:[%s989 + $0x64] sm:$0xf]
        %v5685 = vld [vmem:[%s989 + $0x68] sm:$0xf]
        %v5686 = vld [vmem:[%s989 + $0x6c] sm:$0xf]
        %v5687 = vld [vmem:[%s989 + $0x70] sm:$0xf]
        %v5688 = vld [vmem:[%s989 + $0x74] sm:$0xf]
        %v5689 = vld [vmem:[%s989 + $0x78] sm:$0xf]
        %v5690 = vld [vmem:[%s989 + $0x7c] sm:$0xf]
        %v5691 = vld [vmem:[%s989 + $0x80] sm:$0xf]
        %v5692 = vld [vmem:[%s989 + $0x84] sm:$0xf]
        %v5693 = vld [vmem:[%s989 + $0x88] sm:$0xf]
        %v5694 = vld [vmem:[%s989 + $0x8c] sm:$0xf]
        %v5695 = vld [vmem:[%s989 + $0x90] sm:$0xf]
        %v5696 = vld [vmem:[%s989 + $0x94] sm:$0xf]
        %v5697 = vld [vmem:[%s989 + $0x98] sm:$0xf]
        %v5698 = vld [vmem:[%s989 + $0x9c] sm:$0xf]
        %v5699 = vld [vmem:[%s989 + $0xa0] sm:$0xf]
        %v5700 = vld [vmem:[%s989 + $0xa4] sm:$0xf]
        %v5701 = vld [vmem:[%s989 + $0xa8] sm:$0xf]
        %v5702 = vld [vmem:[%s989 + $0xac] sm:$0xf]
        %v5703 = vld [vmem:[%s989 + $0xb0] sm:$0xf]
        %v5704 = vld [vmem:[%s989 + $0xb4] sm:$0xf]
        %v5705 = vld [vmem:[%s989 + $0xb8] sm:$0xf]
        %v5706 = vld [vmem:[%s989 + $0xbc] sm:$0xf]
        %v5707 = vld [vmem:[%s989 + $0xc0] sm:$0xf]
        %v5708 = vld [vmem:[%s989 + $0xc4] sm:$0xf]
        %v5709 = vld [vmem:[%s989 + $0xc8] sm:$0xf]
        %v5710 = vld [vmem:[%s989 + $0xcc] sm:$0xf]
        %v5711 = vld [vmem:[%s989 + $0xd0] sm:$0xf]
        %v5712 = vld [vmem:[%s989 + $0xd4] sm:$0xf]
        %v5713 = vld [vmem:[%s989 + $0xd8] sm:$0xf]
        %v5714 = vld [vmem:[%s989 + $0xdc] sm:$0xf]
        %v5715 = vld [vmem:[%s989 + $0xe0] sm:$0xf]
        %v5716 = vld [vmem:[%s989 + $0xe4] sm:$0xf]
        %v5717 = vld [vmem:[%s989 + $0xe8] sm:$0xf]
        %v5718 = vld [vmem:[%s989 + $0xec] sm:$0xf]
        %v5719 = vld [vmem:[%s989 + $0xf0] sm:$0xf]
        %v5720 = vld [vmem:[%s989 + $0xf4] sm:$0xf]
        %v5721 = vld [vmem:[%s989 + $0xf8] sm:$0xf]
        %v5722 = vld [vmem:[%s989 + $0xfc] sm:$0xf]
        %v5787 = vunpack.c.l.b16 %v5659
        %v5788 = vunpack.c.l.b16 %v5660
        %v5789 = vunpack.c.l.b16 %v5661
        %v5790 = vunpack.c.l.b16 %v5662
        %v5791 = vunpack.c.l.b16 %v5663
        %v5792 = vunpack.c.l.b16 %v5664
        %v5793 = vunpack.c.l.b16 %v5665
        %v5794 = vunpack.c.l.b16 %v5666
        %v5795 = vunpack.c.l.b16 %v5667
        %v5796 = vunpack.c.l.b16 %v5668
        %v5797 = vunpack.c.l.b16 %v5669
        %v5798 = vunpack.c.l.b16 %v5670
        %v5799 = vunpack.c.l.b16 %v5671
        %v5800 = vunpack.c.l.b16 %v5672
        %v5801 = vunpack.c.l.b16 %v5673
        %v5802 = vunpack.c.l.b16 %v5674
        %v5803 = vunpack.c.l.b16 %v5675
        %v5804 = vunpack.c.l.b16 %v5676
        %v5805 = vunpack.c.l.b16 %v5677
        %v5806 = vunpack.c.l.b16 %v5678
        %v5807 = vunpack.c.l.b16 %v5679
        %v5808 = vunpack.c.l.b16 %v5680
        %v5809 = vunpack.c.l.b16 %v5681
        %v5810 = vunpack.c.l.b16 %v5682
        %v5811 = vunpack.c.l.b16 %v5683
        %v5812 = vunpack.c.l.b16 %v5684
        %v5813 = vunpack.c.l.b16 %v5685
        %v5814 = vunpack.c.l.b16 %v5686
        %v5815 = vunpack.c.l.b16 %v5687
        %v5816 = vunpack.c.l.b16 %v5688
        %v5817 = vunpack.c.l.b16 %v5689
        %v5818 = vunpack.c.l.b16 %v5690
        %v5819 = vunpack.c.l.b16 %v5691
        %v5820 = vunpack.c.l.b16 %v5692
        %v5821 = vunpack.c.l.b16 %v5693
        %v5822 = vunpack.c.l.b16 %v5694
        %v5823 = vunpack.c.l.b16 %v5695
        %v5824 = vunpack.c.l.b16 %v5696
        %v5825 = vunpack.c.l.b16 %v5697
        %v5826 = vunpack.c.l.b16 %v5698
        %v5827 = vunpack.c.l.b16 %v5699
        %v5828 = vunpack.c.l.b16 %v5700
        %v5829 = vunpack.c.l.b16 %v5701
        %v5830 = vunpack.c.l.b16 %v5702
        %v5831 = vunpack.c.l.b16 %v5703
        %v5832 = vunpack.c.l.b16 %v5704
        %v5833 = vunpack.c.l.b16 %v5705
        %v5834 = vunpack.c.l.b16 %v5706
        %v5835 = vunpack.c.l.b16 %v5707
        %v5836 = vunpack.c.l.b16 %v5708
        %v5837 = vunpack.c.l.b16 %v5709
        %v5838 = vunpack.c.l.b16 %v5710
        %v5839 = vunpack.c.l.b16 %v5711
        %v5840 = vunpack.c.l.b16 %v5712
        %v5841 = vunpack.c.l.b16 %v5713
        %v5842 = vunpack.c.l.b16 %v5714
        %v5843 = vunpack.c.l.b16 %v5715
        %v5844 = vunpack.c.l.b16 %v5716
        %v5845 = vunpack.c.l.b16 %v5717
        %v5846 = vunpack.c.l.b16 %v5718
        %v5847 = vunpack.c.l.b16 %v5719
        %v5848 = vunpack.c.l.b16 %v5720
        %v5849 = vunpack.c.l.b16 %v5721
        %v5850 = vunpack.c.l.b16 %v5722
        %v5851 = vpack.c.b16 %v5788, %v5787
        %v5852 = vpack.c.b16 %v5790, %v5789
        %v5853 = vpack.c.b16 %v5792, %v5791
        %v5854 = vpack.c.b16 %v5794, %v5793
        %v5855 = vpack.c.b16 %v5796, %v5795
        %v5856 = vpack.c.b16 %v5798, %v5797
        %v5857 = vpack.c.b16 %v5800, %v5799
        %v5858 = vpack.c.b16 %v5802, %v5801
        %v5859 = vpack.c.b16 %v5804, %v5803
        %v5860 = vpack.c.b16 %v5806, %v5805
        %v5861 = vpack.c.b16 %v5808, %v5807
        %v5862 = vpack.c.b16 %v5810, %v5809
        %v5863 = vpack.c.b16 %v5812, %v5811
        %v5864 = vpack.c.b16 %v5814, %v5813
        %v5865 = vpack.c.b16 %v5816, %v5815
        %v5866 = vpack.c.b16 %v5818, %v5817
        %v5867 = vpack.c.b16 %v5820, %v5819
        %v5868 = vpack.c.b16 %v5822, %v5821
        %v5869 = vpack.c.b16 %v5824, %v5823
        %v5870 = vpack.c.b16 %v5826, %v5825
        %v5871 = vpack.c.b16 %v5828, %v5827
        %v5872 = vpack.c.b16 %v5830, %v5829
        %v5873 = vpack.c.b16 %v5832, %v5831
        %v5874 = vpack.c.b16 %v5834, %v5833
        %v5875 = vpack.c.b16 %v5836, %v5835
        %v5876 = vpack.c.b16 %v5838, %v5837
        %v5877 = vpack.c.b16 %v5840, %v5839
        %v5878 = vpack.c.b16 %v5842, %v5841
        %v5879 = vpack.c.b16 %v5844, %v5843
        %v5880 = vpack.c.b16 %v5846, %v5845
        %v5881 = vpack.c.b16 %v5848, %v5847
        %v5882 = vpack.c.b16 %v5850, %v5849
        %5915 = vmatprep.subr.bf16.mxu0 0
        %5916 = vmatpush1.bf16.msra.mxu0 %v5851
        %5917 = vmatprep.subr.bf16.mxu0 0
        %5918 = vmatpush1.bf16.msra.mxu0 %v5852
        %5919 = vmatprep.subr.bf16.mxu0 0
        %5920 = vmatpush1.bf16.msra.mxu0 %v5853
        %5921 = vmatprep.subr.bf16.mxu0 0
        %5922 = vmatpush1.bf16.msra.mxu0 %v5854
        %5923 = vmatprep.subr.bf16.mxu0 0
        %5924 = vmatpush1.bf16.msra.mxu0 %v5855
        %5925 = vmatprep.subr.bf16.mxu0 0
        %5926 = vmatpush1.bf16.msra.mxu0 %v5856
        %5927 = vmatprep.subr.bf16.mxu0 0
        %5928 = vmatpush1.bf16.msra.mxu0 %v5857
        %5929 = vmatprep.subr.bf16.mxu0 0
        %5930 = vmatpush1.bf16.msra.mxu0 %v5858
        %5931 = vmatprep.subr.bf16.mxu0 0
        %5932 = vmatpush1.bf16.msra.mxu0 %v5859
        %5933 = vmatprep.subr.bf16.mxu0 0
        %5934 = vmatpush1.bf16.msra.mxu0 %v5860
        %5935 = vmatprep.subr.bf16.mxu0 0
        %5936 = vmatpush1.bf16.msra.mxu0 %v5861
        %5937 = vmatprep.subr.bf16.mxu0 0
        %5938 = vmatpush1.bf16.msra.mxu0 %v5862
        %5939 = vmatprep.subr.bf16.mxu0 0
        %5940 = vmatpush1.bf16.msra.mxu0 %v5863
        %5941 = vmatprep.subr.bf16.mxu0 0
        %5942 = vmatpush1.bf16.msra.mxu0 %v5864
        %5943 = vmatprep.subr.bf16.mxu0 0
        %5944 = vmatpush1.bf16.msra.mxu0 %v5865
        %5945 = vmatprep.subr.bf16.mxu0 0
        %5946 = vmatpush1.bf16.msra.mxu0 %v5866
        %5947 = vmatprep.mubr.bf16.mxu0 %v5628
        %5948 = vmatmul.mubr.bf16.gmra.mrb[0].mxu0 %v5627
        %v5949 = vpop.f32.mrb[0].mxu0
        %v5950 = vadd.f32 0.0, %v5949
        %v5951 = vpop.f32.mrb[0].mxu0
        %v5952 = vpop.f32.mrb[0].mxu0
        %v5953 = vadd.f32 0.0, %v5952
        %v5954 = vpop.f32.mrb[0].mxu0
        %5955 = vmatprep.mubr.bf16.mxu0 %v5632
        %5956 = vmatmul.mubr.bf16.gmra.mrb[0].mxu0 %v5631
        %v5957 = vpop.f32.mrb[0].mxu0
        %v5958 = vadd.f32 0.0, %v5957
        %v5959 = vpop.f32.mrb[0].mxu0
        %v5960 = vpop.f32.mrb[0].mxu0
        %v5961 = vadd.f32 0.0, %v5960
        %v5962 = vpop.f32.mrb[0].mxu0
        %5963 = vmatprep.mubr.bf16.mxu0 %v5636
        %5964 = vmatmul.mubr.bf16.gmra.mrb[0].mxu0 %v5635
        %v5965 = vpop.f32.mrb[0].mxu0
        %v5966 = vadd.f32 0.0, %v5965
        %v5967 = vpop.f32.mrb[0].mxu0
        %v5968 = vpop.f32.mrb[0].mxu0
        %v5969 = vadd.f32 0.0, %v5968
        %v5970 = vpop.f32.mrb[0].mxu0
        %5971 = vmatprep.mubr.bf16.mxu0 %v5640
        %5972 = vmatmul.mubr.bf16.gmra.mrb[0].mxu0 %v5639
        %v5973 = vpop.f32.mrb[0].mxu0
        %v5974 = vadd.f32 0.0, %v5973
        %v5975 = vpop.f32.mrb[0].mxu0
        %v5976 = vpop.f32.mrb[0].mxu0
        %v5977 = vadd.f32 0.0, %v5976
        %v5978 = vpop.f32.mrb[0].mxu0
        %5979 = vmatprep.mubr.bf16.mxu0 %v5644
        %5980 = vmatmul.mubr.bf16.gmra.mrb[0].mxu0 %v5643
        %v5981 = vpop.f32.mrb[0].mxu0
        %v5982 = vadd.f32 0.0, %v5981
        %v5983 = vpop.f32.mrb[0].mxu0
        %v5984 = vpop.f32.mrb[0].mxu0
        %v5985 = vadd.f32 0.0, %v5984
        %v5986 = vpop.f32.mrb[0].mxu0
        %5987 = vmatprep.mubr.bf16.mxu0 %v5648
        %5988 = vmatmul.mubr.bf16.gmra.mrb[0].mxu0 %v5647
        %v5989 = vpop.f32.mrb[0].mxu0
        %v5990 = vadd.f32 0.0, %v5989
        %v5991 = vpop.f32.mrb[0].mxu0
        %v5992 = vpop.f32.mrb[0].mxu0
        %v5993 = vadd.f32 0.0, %v5992
        %v5994 = vpop.f32.mrb[0].mxu0
        %5995 = vmatprep.mubr.bf16.mxu0 %v5652
        %5996 = vmatmul.mubr.bf16.gmra.mrb[0].mxu0 %v5651
        %v5997 = vpop.f32.mrb[0].mxu0
        %v5998 = vadd.f32 0.0, %v5997
        %v5999 = vpop.f32.mrb[0].mxu0
        %v6000 = vpop.f32.mrb[0].mxu0
        %v6001 = vadd.f32 0.0, %v6000
        %v6002 = vpop.f32.mrb[0].mxu0
        %6003 = vmatprep.mubr.bf16.mxu0 %v5656
        %6004 = vmatmul.mubr.bf16.gmra.mrb[0].mxu0 %v5655
        %v6005 = vpop.f32.mrb[0].mxu0
        %v6006 = vadd.f32 0.0, %v6005
        %v6007 = vpop.f32.mrb[0].mxu0
        %v6008 = vpop.f32.mrb[0].mxu0
        %v6009 = vadd.f32 0.0, %v6008
        %v6010 = vpop.f32.mrb[0].mxu0
        %6011 = vdwg.mxu0
        %6012 = vmatprep.subr.bf16.mxu0 0
        %6013 = vmatpush1.bf16.msra.mxu0 %v5867
        %6014 = vmatprep.subr.bf16.mxu0 0
        %6015 = vmatpush1.bf16.msra.mxu0 %v5868
        %6016 = vmatprep.subr.bf16.mxu0 0
        %6017 = vmatpush1.bf16.msra.mxu0 %v5869
        %6018 = vmatprep.subr.bf16.mxu0 0
        %6019 = vmatpush1.bf16.msra.mxu0 %v5870
        %6020 = vmatprep.subr.bf16.mxu0 0
        %6021 = vmatpush1.bf16.msra.mxu0 %v5871
        %6022 = vmatprep.subr.bf16.mxu0 0
        %6023 = vmatpush1.bf16.msra.mxu0 %v5872
        %6024 = vmatprep.subr.bf16.mxu0 0
        %6025 = vmatpush1.bf16.msra.mxu0 %v5873
        %6026 = vmatprep.subr.bf16.mxu0 0
        %6027 = vmatpush1.bf16.msra.mxu0 %v5874
        %6028 = vmatprep.subr.bf16.mxu0 0
        %6029 = vmatpush1.bf16.msra.mxu0 %v5875
        %6030 = vmatprep.subr.bf16.mxu0 0
        %6031 = vmatpush1.bf16.msra.mxu0 %v5876
        %6032 = vmatprep.subr.bf16.mxu0 0
        %6033 = vmatpush1.bf16.msra.mxu0 %v5877
        %6034 = vmatprep.subr.bf16.mxu0 0
        %6035 = vmatpush1.bf16.msra.mxu0 %v5878
        %6036 = vmatprep.subr.bf16.mxu0 0
        %6037 = vmatpush1.bf16.msra.mxu0 %v5879
        %6038 = vmatprep.subr.bf16.mxu0 0
        %6039 = vmatpush1.bf16.msra.mxu0 %v5880
        %6040 = vmatprep.subr.bf16.mxu0 0
        %6041 = vmatpush1.bf16.msra.mxu0 %v5881
        %6042 = vmatprep.subr.bf16.mxu0 0
        %6043 = vmatpush1.bf16.msra.mxu0 %v5882
        %6044 = vmatprep.mubr.bf16.mxu0 %v5630
        %6045 = vmatmul.mubr.bf16.gmra.mrb[0].mxu0 %v5629
        %v6046 = vpop.f32.mrb[0].mxu0
        %v6047 = vadd.f32 %v5950, %v6046
        %v6048 = vpop.f32.mrb[0].mxu0
        %v6049 = vpop.f32.mrb[0].mxu0
        %v6050 = vadd.f32 %v5953, %v6049
        %v6051 = vpop.f32.mrb[0].mxu0
        %6052 = vmatprep.mubr.bf16.mxu0 %v5634
        %6053 = vmatmul.mubr.bf16.gmra.mrb[0].mxu0 %v5633
        %v6054 = vpop.f32.mrb[0].mxu0
        %v6055 = vadd.f32 %v5958, %v6054
        %v6056 = vpop.f32.mrb[0].mxu0
        %v6057 = vpop.f32.mrb[0].mxu0
        %v6058 = vadd.f32 %v5961, %v6057
        %v6059 = vpop.f32.mrb[0].mxu0
        %6060 = vmatprep.mubr.bf16.mxu0 %v5638
        %6061 = vmatmul.mubr.bf16.gmra.mrb[0].mxu0 %v5637
        %v6062 = vpop.f32.mrb[0].mxu0
        %v6063 = vadd.f32 %v5966, %v6062
        %v6064 = vpop.f32.mrb[0].mxu0
        %v6065 = vpop.f32.mrb[0].mxu0
        %v6066 = vadd.f32 %v5969, %v6065
        %v6067 = vpop.f32.mrb[0].mxu0
        %6068 = vmatprep.mubr.bf16.mxu0 %v5642
        %6069 = vmatmul.mubr.bf16.gmra.mrb[0].mxu0 %v5641
        %v6070 = vpop.f32.mrb[0].mxu0
        %v6071 = vadd.f32 %v5974, %v6070
        %v6072 = vpop.f32.mrb[0].mxu0
        %v6073 = vpop.f32.mrb[0].mxu0
        %v6074 = vadd.f32 %v5977, %v6073
        %v6075 = vpop.f32.mrb[0].mxu0
        %6076 = vmatprep.mubr.bf16.mxu0 %v5646
        %6077 = vmatmul.mubr.bf16.gmra.mrb[0].mxu0 %v5645
        %v6078 = vpop.f32.mrb[0].mxu0
        %v6079 = vadd.f32 %v5982, %v6078
        %v6080 = vpop.f32.mrb[0].mxu0
        %v6081 = vpop.f32.mrb[0].mxu0
        %v6082 = vadd.f32 %v5985, %v6081
        %v6083 = vpop.f32.mrb[0].mxu0
        %6084 = vmatprep.mubr.bf16.mxu0 %v5650
        %6085 = vmatmul.mubr.bf16.gmra.mrb[0].mxu0 %v5649
        %v6086 = vpop.f32.mrb[0].mxu0
        %v6087 = vadd.f32 %v5990, %v6086
        %v6088 = vpop.f32.mrb[0].mxu0
        %v6089 = vpop.f32.mrb[0].mxu0
        %v6090 = vadd.f32 %v5993, %v6089
        %v6091 = vpop.f32.mrb[0].mxu0
        %6092 = vmatprep.mubr.bf16.mxu0 %v5654
        %6093 = vmatmul.mubr.bf16.gmra.mrb[0].mxu0 %v5653
        %v6094 = vpop.f32.mrb[0].mxu0
        %v6095 = vadd.f32 %v5998, %v6094
        %v6096 = vpop.f32.mrb[0].mxu0
        %v6097 = vpop.f32.mrb[0].mxu0
        %v6098 = vadd.f32 %v6001, %v6097
        %v6099 = vpop.f32.mrb[0].mxu0
        %6100 = vmatprep.mubr.bf16.mxu0 %v5658
        %6101 = vmatmul.mubr.bf16.gmra.mrb[0].mxu0 %v5657
        %v6102 = vpop.f32.mrb[0].mxu0
        %v6103 = vadd.f32 %v6006, %v6102
        %v6104 = vpop.f32.mrb[0].mxu0
        %v6105 = vpop.f32.mrb[0].mxu0
        %v6106 = vadd.f32 %v6009, %v6105
        %v6107 = vpop.f32.mrb[0].mxu0
        %6108 = vdwg.mxu0
        %v6109 = vadd.f32 %v5611, %v6047
        %v6110 = vadd.f32 %v5612, %v6050
        %v6111 = vadd.f32 %v5613, %v6055
        %v6112 = vadd.f32 %v5614, %v6058
        %v6113 = vadd.f32 %v5615, %v6063
        %v6114 = vadd.f32 %v5616, %v6066
        %v6115 = vadd.f32 %v5617, %v6071
        %v6116 = vadd.f32 %v5618, %v6074
        %v6117 = vadd.f32 %v5619, %v6079
        %v6118 = vadd.f32 %v5620, %v6082
        %v6119 = vadd.f32 %v5621, %v6087
        %v6120 = vadd.f32 %v5622, %v6090
        %v6121 = vadd.f32 %v5623, %v6095
        %v6122 = vadd.f32 %v5624, %v6098
        %v6123 = vadd.f32 %v5625, %v6103
        %v6124 = vadd.f32 %v5626, %v6106
        %6125 = vst [vmem:[#allocation4] sm:$0xff] %v6109
        %6126 = vst [vmem:[#allocation4 + $0x8] sm:$0xff] %v6110
        %6127 = vst [vmem:[#allocation4 + $0x10] sm:$0xff] %v6111
        %6128 = vst [vmem:[#allocation4 + $0x18] sm:$0xff] %v6112
        %6129 = vst [vmem:[#allocation4 + $0x20] sm:$0xff] %v6113
        %6130 = vst [vmem:[#allocation4 + $0x28] sm:$0xff] %v6114
        %6131 = vst [vmem:[#allocation4 + $0x30] sm:$0xff] %v6115
        %6132 = vst [vmem:[#allocation4 + $0x38] sm:$0xff] %v6116
        %6133 = vst [vmem:[#allocation4 + $0x40] sm:$0xff] %v6117
        %6134 = vst [vmem:[#allocation4 + $0x48] sm:$0xff] %v6118
        %6135 = vst [vmem:[#allocation4 + $0x50] sm:$0xff] %v6119
        %6136 = vst [vmem:[#allocation4 + $0x58] sm:$0xff] %v6120
        %6137 = vst [vmem:[#allocation4 + $0x60] sm:$0xff] %v6121
        %6138 = vst [vmem:[#allocation4 + $0x68] sm:$0xff] %v6122
        %6139 = vst [vmem:[#allocation4 + $0x70] sm:$0xff] %v6123
        %6140 = vst [vmem:[#allocation4 + $0x78] sm:$0xff] %v6124
        %p6141 = scmp.eq.s32.totalorder %s63, 1
        // Predicated region
        $region173: #{tpu_custom_call.1} parent=103 // pred_check
          %p6142 = pneg %p6141
        $region174: #{tpu_custom_call.1} parent=103 // pred_check_branch
          %6144 = sbr.rel (%p6142) target = $region176
        $region175: #{tpu_custom_call.1} parent=103 // pred_region
          %v6145 = vld [vmem:[#allocation4] sm:$0xff]
          %v6146 = vld [vmem:[#allocation4 + $0x8] sm:$0xff]
          %v6147 = vld [vmem:[#allocation4 + $0x10] sm:$0xff]
          %v6148 = vld [vmem:[#allocation4 + $0x18] sm:$0xff]
          %v6149 = vld [vmem:[#allocation4 + $0x20] sm:$0xff]
          %v6150 = vld [vmem:[#allocation4 + $0x28] sm:$0xff]
          %v6151 = vld [vmem:[#allocation4 + $0x30] sm:$0xff]
          %v6152 = vld [vmem:[#allocation4 + $0x38] sm:$0xff]
          %v6153 = vld [vmem:[#allocation4 + $0x40] sm:$0xff]
          %v6154 = vld [vmem:[#allocation4 + $0x48] sm:$0xff]
          %v6155 = vld [vmem:[#allocation4 + $0x50] sm:$0xff]
          %v6156 = vld [vmem:[#allocation4 + $0x58] sm:$0xff]
          %v6157 = vld [vmem:[#allocation4 + $0x60] sm:$0xff]
          %v6158 = vld [vmem:[#allocation4 + $0x68] sm:$0xff]
          %v6159 = vld [vmem:[#allocation4 + $0x70] sm:$0xff]
          %v6160 = vld [vmem:[#allocation4 + $0x78] sm:$0xff]
          %v6161 = vld [vmem:[%s1121] sm:$0x1]
          %v6163 = vlaneseq
          %v6164 = vshrl.u32 %v6163, 7
          %v6165 = vsub.s32 0, %v6164
          %v6166 = vrot.slane %v6161, %v6165
          %v6168 = vadd.f32 %v6145, %v6166
          %v6169 = vadd.f32 %v6146, %v6166
          %v6170 = vadd.f32 %v6147, %v6166
          %v6171 = vadd.f32 %v6148, %v6166
          %v6172 = vadd.f32 %v6149, %v6166
          %v6173 = vadd.f32 %v6150, %v6166
          %v6174 = vadd.f32 %v6151, %v6166
          %v6175 = vadd.f32 %v6152, %v6166
          %v6176 = vadd.f32 %v6153, %v6166
          %v6177 = vadd.f32 %v6154, %v6166
          %v6178 = vadd.f32 %v6155, %v6166
          %v6179 = vadd.f32 %v6156, %v6166
          %v6180 = vadd.f32 %v6157, %v6166
          %v6181 = vadd.f32 %v6158, %v6166
          %v6182 = vadd.f32 %v6159, %v6166
          %v6183 = vadd.f32 %v6160, %v6166
          %v6184 = vld [vmem:[#allocation3] sm:$0xff]
          %v6185 = vld [vmem:[#allocation3 + $0x8] sm:$0xff]
          %v6186 = vld [vmem:[#allocation3 + $0x10] sm:$0xff]
          %v6187 = vld [vmem:[#allocation3 + $0x18] sm:$0xff]
          %v6188 = vld [vmem:[#allocation3 + $0x20] sm:$0xff]
          %v6189 = vld [vmem:[#allocation3 + $0x28] sm:$0xff]
          %v6190 = vld [vmem:[#allocation3 + $0x30] sm:$0xff]
          %v6191 = vld [vmem:[#allocation3 + $0x38] sm:$0xff]
          %v6192 = vld [vmem:[#allocation3 + $0x40] sm:$0xff]
          %v6193 = vld [vmem:[#allocation3 + $0x48] sm:$0xff]
          %v6194 = vld [vmem:[#allocation3 + $0x50] sm:$0xff]
          %v6195 = vld [vmem:[#allocation3 + $0x58] sm:$0xff]
          %v6196 = vld [vmem:[#allocation3 + $0x60] sm:$0xff]
          %v6197 = vld [vmem:[#allocation3 + $0x68] sm:$0xff]
          %v6198 = vld [vmem:[#allocation3 + $0x70] sm:$0xff]
          %v6199 = vld [vmem:[#allocation3 + $0x78] sm:$0xff]
          %v6200 = vadd.f32 %v6168, %v6184
          %v6201 = vadd.f32 %v6169, %v6185
          %v6202 = vadd.f32 %v6170, %v6186
          %v6203 = vadd.f32 %v6171, %v6187
          %v6204 = vadd.f32 %v6172, %v6188
          %v6205 = vadd.f32 %v6173, %v6189
          %v6206 = vadd.f32 %v6174, %v6190
          %v6207 = vadd.f32 %v6175, %v6191
          %v6208 = vadd.f32 %v6176, %v6192
          %v6209 = vadd.f32 %v6177, %v6193
          %v6210 = vadd.f32 %v6178, %v6194
          %v6211 = vadd.f32 %v6179, %v6195
          %v6212 = vadd.f32 %v6180, %v6196
          %v6213 = vadd.f32 %v6181, %v6197
          %v6214 = vadd.f32 %v6182, %v6198
          %v6215 = vadd.f32 %v6183, %v6199
          %v6216 = vld [vmem:[%s997] sm:$0x1]
          %v6217 = vld [vmem:[%s1005] sm:$0x1]
          %6218 = vadd.xlane.f32.xlu0 %v6200
          %v6219 = vpop.xlane.xlu0 %6218
          %6220 = vadd.xlane.f32.xlu0 %v6201
          %v6221 = vpop.xlane.xlu0 %6220
          %6222 = vadd.xlane.f32.xlu0 %v6202
          %v6223 = vpop.xlane.xlu0 %6222
          %6224 = vadd.xlane.f32.xlu0 %v6203
          %v6225 = vpop.xlane.xlu0 %6224
          %6226 = vadd.xlane.f32.xlu0 %v6204
          %v6227 = vpop.xlane.xlu0 %6226
          %6228 = vadd.xlane.f32.xlu0 %v6205
          %v6229 = vpop.xlane.xlu0 %6228
          %6230 = vadd.xlane.f32.xlu0 %v6206
          %v6231 = vpop.xlane.xlu0 %6230
          %6232 = vadd.xlane.f32.xlu0 %v6207
          %v6233 = vpop.xlane.xlu0 %6232
          %6234 = vadd.xlane.f32.xlu0 %v6208
          %v6235 = vpop.xlane.xlu0 %6234
          %6236 = vadd.xlane.f32.xlu0 %v6209
          %v6237 = vpop.xlane.xlu0 %6236
          %6238 = vadd.xlane.f32.xlu0 %v6210
          %v6239 = vpop.xlane.xlu0 %6238
          %6240 = vadd.xlane.f32.xlu0 %v6211
          %v6241 = vpop.xlane.xlu0 %6240
          %6242 = vadd.xlane.f32.xlu0 %v6212
          %v6243 = vpop.xlane.xlu0 %6242
          %6244 = vadd.xlane.f32.xlu0 %v6213
          %v6245 = vpop.xlane.xlu0 %6244
          %6246 = vadd.xlane.f32.xlu0 %v6214
          %v6247 = vpop.xlane.xlu0 %6246
          %6248 = vadd.xlane.f32.xlu0 %v6215
          %v6249 = vpop.xlane.xlu0 %6248
          %v6250 = vrcp.pop 128.0
          %v6251 = vmul.f32 %v6219, %v6250
          %v6252 = vmul.f32 %v6221, %v6250
          %v6253 = vmul.f32 %v6223, %v6250
          %v6254 = vmul.f32 %v6225, %v6250
          %v6255 = vmul.f32 %v6227, %v6250
          %v6256 = vmul.f32 %v6229, %v6250
          %v6257 = vmul.f32 %v6231, %v6250
          %v6258 = vmul.f32 %v6233, %v6250
          %v6259 = vmul.f32 %v6235, %v6250
          %v6260 = vmul.f32 %v6237, %v6250
          %v6261 = vmul.f32 %v6239, %v6250
          %v6262 = vmul.f32 %v6241, %v6250
          %v6263 = vmul.f32 %v6243, %v6250
          %v6264 = vmul.f32 %v6245, %v6250
          %v6265 = vmul.f32 %v6247, %v6250
          %v6266 = vmul.f32 %v6249, %v6250
          %v6267 = vsub.f32 %v6200, %v6251
          %v6268 = vsub.f32 %v6201, %v6252
          %v6269 = vsub.f32 %v6202, %v6253
          %v6270 = vsub.f32 %v6203, %v6254
          %v6271 = vsub.f32 %v6204, %v6255
          %v6272 = vsub.f32 %v6205, %v6256
          %v6273 = vsub.f32 %v6206, %v6257
          %v6274 = vsub.f32 %v6207, %v6258
          %v6275 = vsub.f32 %v6208, %v6259
          %v6276 = vsub.f32 %v6209, %v6260
          %v6277 = vsub.f32 %v6210, %v6261
          %v6278 = vsub.f32 %v6211, %v6262
          %v6279 = vsub.f32 %v6212, %v6263
          %v6280 = vsub.f32 %v6213, %v6264
          %v6281 = vsub.f32 %v6214, %v6265
          %v6282 = vsub.f32 %v6215, %v6266
          %v6283 = vmul.f32 %v6267, %v6267
          %v6284 = vmul.f32 %v6268, %v6268
          %v6285 = vmul.f32 %v6269, %v6269
          %v6286 = vmul.f32 %v6270, %v6270
          %v6287 = vmul.f32 %v6271, %v6271
          %v6288 = vmul.f32 %v6272, %v6272
          %v6289 = vmul.f32 %v6273, %v6273
          %v6290 = vmul.f32 %v6274, %v6274
          %v6291 = vmul.f32 %v6275, %v6275
          %v6292 = vmul.f32 %v6276, %v6276
          %v6293 = vmul.f32 %v6277, %v6277
          %v6294 = vmul.f32 %v6278, %v6278
          %v6295 = vmul.f32 %v6279, %v6279
          %v6296 = vmul.f32 %v6280, %v6280
          %v6297 = vmul.f32 %v6281, %v6281
          %v6298 = vmul.f32 %v6282, %v6282
          %6299 = vadd.xlane.f32.xlu0 %v6283
          %v6300 = vpop.xlane.xlu0 %6299
          %6301 = vadd.xlane.f32.xlu0 %v6284
          %v6302 = vpop.xlane.xlu0 %6301
          %6303 = vadd.xlane.f32.xlu0 %v6285
          %v6304 = vpop.xlane.xlu0 %6303
          %6305 = vadd.xlane.f32.xlu0 %v6286
          %v6306 = vpop.xlane.xlu0 %6305
          %6307 = vadd.xlane.f32.xlu0 %v6287
          %v6308 = vpop.xlane.xlu0 %6307
          %6309 = vadd.xlane.f32.xlu0 %v6288
          %v6310 = vpop.xlane.xlu0 %6309
          %6311 = vadd.xlane.f32.xlu0 %v6289
          %v6312 = vpop.xlane.xlu0 %6311
          %6313 = vadd.xlane.f32.xlu0 %v6290
          %v6314 = vpop.xlane.xlu0 %6313
          %6315 = vadd.xlane.f32.xlu0 %v6291
          %v6316 = vpop.xlane.xlu0 %6315
          %6317 = vadd.xlane.f32.xlu0 %v6292
          %v6318 = vpop.xlane.xlu0 %6317
          %6319 = vadd.xlane.f32.xlu0 %v6293
          %v6320 = vpop.xlane.xlu0 %6319
          %6321 = vadd.xlane.f32.xlu0 %v6294
          %v6322 = vpop.xlane.xlu0 %6321
          %6323 = vadd.xlane.f32.xlu0 %v6295
          %v6324 = vpop.xlane.xlu0 %6323
          %6325 = vadd.xlane.f32.xlu0 %v6296
          %v6326 = vpop.xlane.xlu0 %6325
          %6327 = vadd.xlane.f32.xlu0 %v6297
          %v6328 = vpop.xlane.xlu0 %6327
          %6329 = vadd.xlane.f32.xlu0 %v6298
          %v6330 = vpop.xlane.xlu0 %6329
          %v6331 = vmul.f32 %v6300, %v6250
          %v6332 = vmul.f32 %v6302, %v6250
          %v6333 = vmul.f32 %v6304, %v6250
          %v6334 = vmul.f32 %v6306, %v6250
          %v6335 = vmul.f32 %v6308, %v6250
          %v6336 = vmul.f32 %v6310, %v6250
          %v6337 = vmul.f32 %v6312, %v6250
          %v6338 = vmul.f32 %v6314, %v6250
          %v6339 = vmul.f32 %v6316, %v6250
          %v6340 = vmul.f32 %v6318, %v6250
          %v6341 = vmul.f32 %v6320, %v6250
          %v6342 = vmul.f32 %v6322, %v6250
          %v6343 = vmul.f32 %v6324, %v6250
          %v6344 = vmul.f32 %v6326, %v6250
          %v6345 = vmul.f32 %v6328, %v6250
          %v6346 = vmul.f32 %v6330, %v6250
          %v6347 = vadd.f32 %v6331, 1e-12
          %v6348 = vadd.f32 %v6332, 1e-12
          %v6349 = vadd.f32 %v6333, 1e-12
          %v6350 = vadd.f32 %v6334, 1e-12
          %v6351 = vadd.f32 %v6335, 1e-12
          %v6352 = vadd.f32 %v6336, 1e-12
          %v6353 = vadd.f32 %v6337, 1e-12
          %v6354 = vadd.f32 %v6338, 1e-12
          %v6355 = vadd.f32 %v6339, 1e-12
          %v6356 = vadd.f32 %v6340, 1e-12
          %v6357 = vadd.f32 %v6341, 1e-12
          %v6358 = vadd.f32 %v6342, 1e-12
          %v6359 = vadd.f32 %v6343, 1e-12
          %v6360 = vadd.f32 %v6344, 1e-12
          %v6361 = vadd.f32 %v6345, 1e-12
          %v6362 = vadd.f32 %v6346, 1e-12
          %v6363 = vrsqrt.pop %v6347
          %v6364 = vrsqrt.pop %v6348
          %v6365 = vrsqrt.pop %v6349
          %v6366 = vrsqrt.pop %v6350
          %v6367 = vrsqrt.pop %v6351
          %v6368 = vrsqrt.pop %v6352
          %v6369 = vrsqrt.pop %v6353
          %v6370 = vrsqrt.pop %v6354
          %v6371 = vrsqrt.pop %v6355
          %v6372 = vrsqrt.pop %v6356
          %v6373 = vrsqrt.pop %v6357
          %v6374 = vrsqrt.pop %v6358
          %v6375 = vrsqrt.pop %v6359
          %v6376 = vrsqrt.pop %v6360
          %v6377 = vrsqrt.pop %v6361
          %v6378 = vrsqrt.pop %v6362
          %v6379 = vmul.f32 %v6267, %v6363
          %v6380 = vmul.f32 %v6268, %v6364
          %v6381 = vmul.f32 %v6269, %v6365
          %v6382 = vmul.f32 %v6270, %v6366
          %v6383 = vmul.f32 %v6271, %v6367
          %v6384 = vmul.f32 %v6272, %v6368
          %v6385 = vmul.f32 %v6273, %v6369
          %v6386 = vmul.f32 %v6274, %v6370
          %v6387 = vmul.f32 %v6275, %v6371
          %v6388 = vmul.f32 %v6276, %v6372
          %v6389 = vmul.f32 %v6277, %v6373
          %v6390 = vmul.f32 %v6278, %v6374
          %v6391 = vmul.f32 %v6279, %v6375
          %v6392 = vmul.f32 %v6280, %v6376
          %v6393 = vmul.f32 %v6281, %v6377
          %v6394 = vmul.f32 %v6282, %v6378
          %v6396 = vlaneseq
          %v6397 = vshrl.u32 %v6396, 7
          %v6398 = vsub.s32 0, %v6397
          %v6399 = vrot.slane %v6216, %v6398
          %v6401 = vmul.f32 %v6379, %v6399
          %v6402 = vmul.f32 %v6380, %v6399
          %v6403 = vmul.f32 %v6381, %v6399
          %v6404 = vmul.f32 %v6382, %v6399
          %v6405 = vmul.f32 %v6383, %v6399
          %v6406 = vmul.f32 %v6384, %v6399
          %v6407 = vmul.f32 %v6385, %v6399
          %v6408 = vmul.f32 %v6386, %v6399
          %v6409 = vmul.f32 %v6387, %v6399
          %v6410 = vmul.f32 %v6388, %v6399
          %v6411 = vmul.f32 %v6389, %v6399
          %v6412 = vmul.f32 %v6390, %v6399
          %v6413 = vmul.f32 %v6391, %v6399
          %v6414 = vmul.f32 %v6392, %v6399
          %v6415 = vmul.f32 %v6393, %v6399
          %v6416 = vmul.f32 %v6394, %v6399
          %v6418 = vlaneseq
          %v6419 = vshrl.u32 %v6418, 7
          %v6420 = vsub.s32 0, %v6419
          %v6421 = vrot.slane %v6217, %v6420
          %v6423 = vadd.f32 %v6401, %v6421
          %v6424 = vadd.f32 %v6402, %v6421
          %v6425 = vadd.f32 %v6403, %v6421
          %v6426 = vadd.f32 %v6404, %v6421
          %v6427 = vadd.f32 %v6405, %v6421
          %v6428 = vadd.f32 %v6406, %v6421
          %v6429 = vadd.f32 %v6407, %v6421
          %v6430 = vadd.f32 %v6408, %v6421
          %v6431 = vadd.f32 %v6409, %v6421
          %v6432 = vadd.f32 %v6410, %v6421
          %v6433 = vadd.f32 %v6411, %v6421
          %v6434 = vadd.f32 %v6412, %v6421
          %v6435 = vadd.f32 %v6413, %v6421
          %v6436 = vadd.f32 %v6414, %v6421
          %v6437 = vadd.f32 %v6415, %v6421
          %v6438 = vadd.f32 %v6416, %v6421
          %6439 = vst [vmem:[#allocation2] sm:$0xff] %v6423
          %6440 = vst [vmem:[#allocation2 + $0x8] sm:$0xff] %v6424
          %6441 = vst [vmem:[#allocation2 + $0x10] sm:$0xff] %v6425
          %6442 = vst [vmem:[#allocation2 + $0x18] sm:$0xff] %v6426
          %6443 = vst [vmem:[#allocation2 + $0x20] sm:$0xff] %v6427
          %6444 = vst [vmem:[#allocation2 + $0x28] sm:$0xff] %v6428
          %6445 = vst [vmem:[#allocation2 + $0x30] sm:$0xff] %v6429
          %6446 = vst [vmem:[#allocation2 + $0x38] sm:$0xff] %v6430
          %6447 = vst [vmem:[#allocation2 + $0x40] sm:$0xff] %v6431
          %6448 = vst [vmem:[#allocation2 + $0x48] sm:$0xff] %v6432
          %6449 = vst [vmem:[#allocation2 + $0x50] sm:$0xff] %v6433
          %6450 = vst [vmem:[#allocation2 + $0x58] sm:$0xff] %v6434
          %6451 = vst [vmem:[#allocation2 + $0x60] sm:$0xff] %v6435
          %6452 = vst [vmem:[#allocation2 + $0x68] sm:$0xff] %v6436
          %6453 = vst [vmem:[#allocation2 + $0x70] sm:$0xff] %v6437
          %6454 = vst [vmem:[#allocation2 + $0x78] sm:$0xff] %v6438
        $region176: #{tpu_custom_call.1} parent=103 // pred_fallthru
          _
        %p6455 = scmp.eq.s32.totalorder %s62, 1
        %p6456 = pnand %p6455, %p6141
        %p6457 = pneg %p6456
        // Predicated region
        $region177: #{tpu_custom_call.1} parent=103 // pred_check
          _
        $region178: #{tpu_custom_call.1} parent=103 // pred_check_branch
          %6459 = sbr.rel (%p6456) target = $region180
        $region179: #{tpu_custom_call.1} parent=103 // pred_region
          %v6460 = vld [vmem:[#allocation2] sm:$0xff]
          %v6461 = vld [vmem:[#allocation2 + $0x8] sm:$0xff]
          %v6462 = vld [vmem:[#allocation2 + $0x10] sm:$0xff]
          %v6463 = vld [vmem:[#allocation2 + $0x18] sm:$0xff]
          %v6464 = vld [vmem:[#allocation2 + $0x20] sm:$0xff]
          %v6465 = vld [vmem:[#allocation2 + $0x28] sm:$0xff]
          %v6466 = vld [vmem:[#allocation2 + $0x30] sm:$0xff]
          %v6467 = vld [vmem:[#allocation2 + $0x38] sm:$0xff]
          %v6468 = vld [vmem:[#allocation2 + $0x40] sm:$0xff]
          %v6469 = vld [vmem:[#allocation2 + $0x48] sm:$0xff]
          %v6470 = vld [vmem:[#allocation2 + $0x50] sm:$0xff]
          %v6471 = vld [vmem:[#allocation2 + $0x58] sm:$0xff]
          %v6472 = vld [vmem:[#allocation2 + $0x60] sm:$0xff]
          %v6473 = vld [vmem:[#allocation2 + $0x68] sm:$0xff]
          %v6474 = vld [vmem:[#allocation2 + $0x70] sm:$0xff]
          %v6475 = vld [vmem:[#allocation2 + $0x78] sm:$0xff]
          %v6476 = vpack.c.bf16 %v6461, %v6460
          %v6477 = vpack.c.bf16 %v6463, %v6462
          %v6478 = vpack.c.bf16 %v6465, %v6464
          %v6479 = vpack.c.bf16 %v6467, %v6466
          %v6480 = vpack.c.bf16 %v6469, %v6468
          %v6481 = vpack.c.bf16 %v6471, %v6470
          %v6482 = vpack.c.bf16 %v6473, %v6472
          %v6483 = vpack.c.bf16 %v6475, %v6474
          %v6492 = vunpack.c.l.b16 %v6476
          %v6493 = vunpack.c.h.b16 %v6476
          %v6494 = vunpack.c.l.b16 %v6477
          %v6495 = vunpack.c.h.b16 %v6477
          %v6496 = vunpack.c.l.b16 %v6478
          %v6497 = vunpack.c.h.b16 %v6478
          %v6498 = vunpack.c.l.b16 %v6479
          %v6499 = vunpack.c.h.b16 %v6479
          %v6500 = vunpack.c.l.b16 %v6480
          %v6501 = vunpack.c.h.b16 %v6480
          %v6502 = vunpack.c.l.b16 %v6481
          %v6503 = vunpack.c.h.b16 %v6481
          %v6504 = vunpack.c.l.b16 %v6482
          %v6505 = vunpack.c.h.b16 %v6482
          %v6506 = vunpack.c.l.b16 %v6483
          %v6507 = vunpack.c.h.b16 %v6483
          %v6508 = vpack.c.b16 %v6492, %v6492
          %v6509 = vpack.c.b16 %v6493, %v6493
          %v6510 = vpack.c.b16 %v6494, %v6494
          %v6511 = vpack.c.b16 %v6495, %v6495
          %v6512 = vpack.c.b16 %v6496, %v6496
          %v6513 = vpack.c.b16 %v6497, %v6497
          %v6514 = vpack.c.b16 %v6498, %v6498
          %v6515 = vpack.c.b16 %v6499, %v6499
          %v6516 = vpack.c.b16 %v6500, %v6500
          %v6517 = vpack.c.b16 %v6501, %v6501
          %v6518 = vpack.c.b16 %v6502, %v6502
          %v6519 = vpack.c.b16 %v6503, %v6503
          %v6520 = vpack.c.b16 %v6504, %v6504
          %v6521 = vpack.c.b16 %v6505, %v6505
          %v6522 = vpack.c.b16 %v6506, %v6506
          %v6523 = vpack.c.b16 %v6507, %v6507
          %6540 = vst [vmem:[%s1100] sm:$0xf] %v6508
          %6541 = vst [vmem:[%s1100 + $0x4] sm:$0xf] %v6509
          %6542 = vst [vmem:[%s1100 + $0x8] sm:$0xf] %v6510
          %6543 = vst [vmem:[%s1100 + $0xc] sm:$0xf] %v6511
          %6544 = vst [vmem:[%s1100 + $0x10] sm:$0xf] %v6512
          %6545 = vst [vmem:[%s1100 + $0x14] sm:$0xf] %v6513
          %6546 = vst [vmem:[%s1100 + $0x18] sm:$0xf] %v6514
          %6547 = vst [vmem:[%s1100 + $0x1c] sm:$0xf] %v6515
          %6548 = vst [vmem:[%s1100 + $0x20] sm:$0xf] %v6516
          %6549 = vst [vmem:[%s1100 + $0x24] sm:$0xf] %v6517
          %6550 = vst [vmem:[%s1100 + $0x28] sm:$0xf] %v6518
          %6551 = vst [vmem:[%s1100 + $0x2c] sm:$0xf] %v6519
          %6552 = vst [vmem:[%s1100 + $0x30] sm:$0xf] %v6520
          %6553 = vst [vmem:[%s1100 + $0x34] sm:$0xf] %v6521
          %6554 = vst [vmem:[%s1100 + $0x38] sm:$0xf] %v6522
          %6555 = vst [vmem:[%s1100 + $0x3c] sm:$0xf] %v6523
          %v6557 = vrot.slane %v6462, 7
          %v6560 = vrot.slane %v6464, 6
          %v6563 = vrot.slane %v6466, 5
          %v6566 = vrot.slane %v6468, 4
          %v6569 = vrot.slane %v6470, 3
          %v6572 = vrot.slane %v6472, 2
          %v6575 = vrot.slane %v6474, 1
          %vm6577 = vcmask 1040384
          %v6578 = vsel %vm6577, %v6460, %v6557
          %vm6579 = vcmask 1041408
          %v6580 = vsel %vm6579, %v6578, %v6560
          %vm6581 = vcmask 1042432
          %v6582 = vsel %vm6581, %v6580, %v6563
          %vm6583 = vcmask 1043456
          %v6584 = vsel %vm6583, %v6582, %v6566
          %vm6585 = vcmask 1044480
          %v6586 = vsel %vm6585, %v6584, %v6569
          %vm6587 = vcmask 1045504
          %v6588 = vsel %vm6587, %v6586, %v6572
          %vm6589 = vcmask 1046528
          %v6590 = vsel %vm6589, %v6588, %v6575
          %v6591 = vpack.c.bf16 %v6590, %v6590
          %v6592 = vld [vmem:[%s19] sm:$0xf]
          %v6593 = vld [vmem:[%s19 + $0x4] sm:$0xf]
          %v6594 = vld [vmem:[%s19 + $0x8] sm:$0xf]
          %v6595 = vld [vmem:[%s19 + $0xc] sm:$0xf]
          %v6596 = vld [vmem:[%s19 + $0x10] sm:$0xf]
          %v6597 = vld [vmem:[%s19 + $0x14] sm:$0xf]
          %v6598 = vld [vmem:[%s19 + $0x18] sm:$0xf]
          %v6599 = vld [vmem:[%s19 + $0x1c] sm:$0xf]
          %v6600 = vld [vmem:[%s19 + $0x20] sm:$0xf]
          %v6601 = vld [vmem:[%s19 + $0x24] sm:$0xf]
          %v6602 = vld [vmem:[%s19 + $0x28] sm:$0xf]
          %v6603 = vld [vmem:[%s19 + $0x2c] sm:$0xf]
          %v6604 = vld [vmem:[%s19 + $0x30] sm:$0xf]
          %v6605 = vld [vmem:[%s19 + $0x34] sm:$0xf]
          %v6606 = vld [vmem:[%s19 + $0x38] sm:$0xf]
          %v6607 = vld [vmem:[%s19 + $0x3c] sm:$0xf]
          %v6608 = vld [vmem:[%s20] sm:$0x1]
          %v6610 = vlaneseq
          %v6611 = vshrl.u32 %v6610, 7
          %v6612 = vsub.s32 0, %v6611
          %v6613 = vrot.slane %v6608, %v6612
          %v6631 = vunpack.c.l.b16 %v6592
          %v6632 = vunpack.c.l.b16 %v6593
          %v6633 = vunpack.c.l.b16 %v6594
          %v6634 = vunpack.c.l.b16 %v6595
          %v6635 = vunpack.c.l.b16 %v6596
          %v6636 = vunpack.c.l.b16 %v6597
          %v6637 = vunpack.c.l.b16 %v6598
          %v6638 = vunpack.c.l.b16 %v6599
          %v6639 = vunpack.c.l.b16 %v6600
          %v6640 = vunpack.c.l.b16 %v6601
          %v6641 = vunpack.c.l.b16 %v6602
          %v6642 = vunpack.c.l.b16 %v6603
          %v6643 = vunpack.c.l.b16 %v6604
          %v6644 = vunpack.c.l.b16 %v6605
          %v6645 = vunpack.c.l.b16 %v6606
          %v6646 = vunpack.c.l.b16 %v6607
          %v6647 = vpack.c.b16 %v6632, %v6631
          %v6648 = vpack.c.b16 %v6634, %v6633
          %v6649 = vpack.c.b16 %v6636, %v6635
          %v6650 = vpack.c.b16 %v6638, %v6637
          %v6651 = vpack.c.b16 %v6640, %v6639
          %v6652 = vpack.c.b16 %v6642, %v6641
          %v6653 = vpack.c.b16 %v6644, %v6643
          %v6654 = vpack.c.b16 %v6646, %v6645
          %6663 = vmatprep.subr.bf16.mxu0 0
          %6664 = vmatpush1.bf16.msra.mxu0 %v6647
          %6665 = vmatprep.subr.bf16.mxu0 0
          %6666 = vmatpush1.bf16.msra.mxu0 %v6648
          %6667 = vmatprep.subr.bf16.mxu0 0
          %6668 = vmatpush1.bf16.msra.mxu0 %v6649
          %6669 = vmatprep.subr.bf16.mxu0 0
          %6670 = vmatpush1.bf16.msra.mxu0 %v6650
          %6671 = vmatprep.subr.bf16.mxu0 0
          %6672 = vmatpush1.bf16.msra.mxu0 %v6651
          %6673 = vmatprep.subr.bf16.mxu0 0
          %6674 = vmatpush1.bf16.msra.mxu0 %v6652
          %6675 = vmatprep.subr.bf16.mxu0 0
          %6676 = vmatpush1.bf16.msra.mxu0 %v6653
          %6677 = vmatprep.subr.bf16.mxu0 0
          %6678 = vmatpush1.bf16.msra.mxu0 %v6654
          %6679 = vmatprep.subr.bf16.mxu0 0
          %6680 = vmatpush1.bf16.msra.mxu0 0
          %6681 = vmatprep.subr.bf16.mxu0 0
          %6682 = vmatpush1.bf16.msra.mxu0 0
          %6683 = vmatprep.subr.bf16.mxu0 0
          %6684 = vmatpush1.bf16.msra.mxu0 0
          %6685 = vmatprep.subr.bf16.mxu0 0
          %6686 = vmatpush1.bf16.msra.mxu0 0
          %6687 = vmatprep.subr.bf16.mxu0 0
          %6688 = vmatpush1.bf16.msra.mxu0 0
          %6689 = vmatprep.subr.bf16.mxu0 0
          %6690 = vmatpush1.bf16.msra.mxu0 0
          %6691 = vmatprep.subr.bf16.mxu0 0
          %6692 = vmatpush1.bf16.msra.mxu0 0
          %6693 = vmatprep.subr.bf16.mxu0 0
          %6694 = vmatpush1.bf16.msra.mxu0 0
          %6695 = vmatprep.mubr.bf16.mxu0 0
          %6696 = vmatmul.mubr.bf16.gmra.mrb[0].mxu0 %v6591
          %v6697 = vpop.f32.mrb[0].mxu0
          %v6698 = vadd.f32 %v6613, %v6697
          %v6699 = vpop.f32.mrb[0].mxu0
          %v6700 = vpop.f32.mrb[0].mxu0
          %v6701 = vpop.f32.mrb[0].mxu0
          %6702 = vdwg.mxu0
          %v6703 = vtanh.pop %v6698
          %v6705 = vcombine.high %v6703, %v6703
          %v6707 = vunpack.c.l.s4 1966171168
          %v6708 = vunpack.c.0.s8 %v6707
          %v6709 = vlaneseq
          %v6710 = vshrl.u32 %v6709, 7
          %v6711 = vsub.s32 %v6708, %v6710
          %v6712 = vrot.slane %v6703, %v6711
          %v6714 = vunpack.c.l.s4 1966171168
          %v6715 = vunpack.c.0.s8 %v6714
          %v6716 = vlaneseq
          %v6717 = vshrl.u32 %v6716, 7
          %v6718 = vsub.s32 %v6715, %v6717
          %v6719 = vrot.slane %v6705, %v6718
          %v6720 = vcombine.high %v6712, %v6712
          %v6721 = vcombine.high %v6719, %v6719
          %v6723 = vunpack.c.l.s4 1966171168
          %v6724 = vunpack.c.0.s8 %v6723
          %v6725 = vlaneseq
          %v6726 = vshrl.u32 %v6725, 7
          %v6727 = vsub.s32 %v6724, %v6726
          %v6728 = vrot.slane %v6712, %v6727
          %v6730 = vunpack.c.l.s4 1966171168
          %v6731 = vunpack.c.0.s8 %v6730
          %v6732 = vlaneseq
          %v6733 = vshrl.u32 %v6732, 7
          %v6734 = vsub.s32 %v6731, %v6733
          %v6735 = vrot.slane %v6719, %v6734
          %v6737 = vunpack.c.l.s4 1966171168
          %v6738 = vunpack.c.0.s8 %v6737
          %v6739 = vlaneseq
          %v6740 = vshrl.u32 %v6739, 7
          %v6741 = vsub.s32 %v6738, %v6740
          %v6742 = vrot.slane %v6720, %v6741
          %v6744 = vunpack.c.l.s4 1966171168
          %v6745 = vunpack.c.0.s8 %v6744
          %v6746 = vlaneseq
          %v6747 = vshrl.u32 %v6746, 7
          %v6748 = vsub.s32 %v6745, %v6747
          %v6749 = vrot.slane %v6721, %v6748
          %v6750 = vcombine.high %v6728, %v6728
          %v6751 = vcombine.high %v6735, %v6735
          %v6752 = vcombine.high %v6742, %v6742
          %v6753 = vcombine.high %v6749, %v6749
          %6762 = vst [vmem:[%s1107] sm:$0x1] %v6728
          %6763 = vst [vmem:[%s1107 + $0x1] sm:$0x1] %v6742
          %6764 = vst [vmem:[%s1107 + $0x2] sm:$0x1] %v6750
          %6765 = vst [vmem:[%s1107 + $0x3] sm:$0x1] %v6752
          %6766 = vst [vmem:[%s1107 + $0x4] sm:$0x1] %v6735
          %6767 = vst [vmem:[%s1107 + $0x5] sm:$0x1] %v6749
          %6768 = vst [vmem:[%s1107 + $0x6] sm:$0x1] %v6751
          %6769 = vst [vmem:[%s1107 + $0x7] sm:$0x1] %v6753
        $region180: #{tpu_custom_call.1} parent=103 // pred_fallthru
          _
        %s6770 = sand.u32 %s580, 1
        %s6771 = scalar_lea.sflag [#allocation7], %s6770
        %s6772 = sand.u32 %s580, 1
        %s6773 = smul.addr %s6772, 64
        %s6774 = scalar_lea.vmem [#allocation29], %s6773
        %s6775 = sand.u32 %s606, 1
        %s6776 = scalar_lea.sflag [#allocation31], %s6775
        %s6777 = sand.u32 %s606, 1
        %s6778 = smul.addr %s6777, 8
        %s6779 = scalar_lea.vmem [#allocation30], %s6778
        // Predicated region
        $region181: #{tpu_custom_call.1} parent=103 // pred_check
          %p6780 = pneg %p590
        $region182: #{tpu_custom_call.1} parent=103 // pred_check_branch
          %6782 = sbr.rel (%p6780) target = $region184
        $region183: #{tpu_custom_call.1} parent=103 // pred_region
          %s6783 = smul.u32 8, %s61
          %s6785 = ssub.s32 1024, 1024
          %6786 = vsyncadd %s6771, %s6785
          %s6787 = smul.addr %s6783, 2
          %s6788 = smul.addr %s6787, 64
          %s6789 = scalar_lea.hbm %s21, %s6788
          %s6790 = sshll.u32 %s6774, 4
          %s6791 = int_to_ptr.vmem [resolvable:$true] %s6790
          %6796 = dma.vmem_to_hbm [thread:$0]  %s6791, 1024, %s6789, %s6771, 64, 64, 4
        $region184: #{tpu_custom_call.1} parent=103 // pred_fallthru
          _
        // Predicated region
        $region185: #{tpu_custom_call.1} parent=103 // pred_check
          %p6797 = pneg %p616
        $region186: #{tpu_custom_call.1} parent=103 // pred_check_branch
          %6799 = sbr.rel (%p6797) target = $region188
        $region187: #{tpu_custom_call.1} parent=103 // pred_region
          %s6800 = smul.u32 8, %s61
          %s6802 = ssub.s32 128, 128
          %6803 = vsyncadd %s6776, %s6802
          %s6804 = smul.addr %s6800, 16
          %s6805 = scalar_lea.hbm %s22, %s6804
          %s6806 = sshll.u32 %s6779, 4
          %s6807 = int_to_ptr.vmem [resolvable:$true] %s6806
          %6812 = dma.vmem_to_hbm [thread:$0]  %s6807, 128, %s6805, %s6776, 16, 16, 1
        $region188: #{tpu_custom_call.1} parent=103 // pred_fallthru
          _
      $region104: #{tpu_custom_call.1} parent=5 // pred_fallthru
        _
      %p6813 = scmp.le.s32.totalorder 2, %s51
      // Predicated region
      $region189: #{tpu_custom_call.1} parent=5 // pred_check
        %p6814 = pneg %p6813
      $region190: #{tpu_custom_call.1} parent=5 // pred_check_branch
        %6816 = sbr.rel (%p6814) target = $region192
      $region191: #{tpu_custom_call.1} parent=5 // pred_region
        %s6817 = ssub.s32 %s51, 2
        // Predicated region
        $region193: #{tpu_custom_call.1} parent=191 // pred_check
          %p6818 = pneg %p596
        $region194: #{tpu_custom_call.1} parent=191 // pred_check_branch
          %6820 = sbr.rel (%p6818) target = $region196
        $region195: #{tpu_custom_call.1} parent=191 // pred_region
          %s6821 = sand.u32 %s581, 1
          %s6822 = scalar_lea.sflag [#allocation7], %s6821
          %s6823 = sand.u32 %s581, 1
          %s6824 = smul.addr %s6823, 64
          %s6825 = scalar_lea.vmem [#allocation29], %s6824
          %6826 = dma.done %s6822, 1024
        $region196: #{tpu_custom_call.1} parent=191 // pred_fallthru
          _
        // Predicated region
        $region197: #{tpu_custom_call.1} parent=191 // pred_check
          %p6827 = pneg %p622
        $region198: #{tpu_custom_call.1} parent=191 // pred_check_branch
          %6829 = sbr.rel (%p6827) target = $region200
        $region199: #{tpu_custom_call.1} parent=191 // pred_region
          %s6830 = sand.u32 %s607, 1
          %s6831 = scalar_lea.sflag [#allocation31], %s6830
          %s6832 = sand.u32 %s607, 1
          %s6833 = smul.addr %s6832, 8
          %s6834 = scalar_lea.vmem [#allocation30], %s6833
          %6835 = dma.done %s6831, 128
        $region200: #{tpu_custom_call.1} parent=191 // pred_fallthru
          _
      $region192: #{tpu_custom_call.1} parent=5 // pred_fallthru
        _
    $region6: #{tpu_custom_call.1} parent=1 // loop_footer
      %s55 = sadd.s32 1, %s51
    $region7: #{tpu_custom_call.1} parent=1 // loop_footer_branch
      %50 = sbr.rel target = $region3
    $region8: #{tpu_custom_call.1} parent=1 // loop_exit
      _
    %6836 = vsyncpa [#allocation6], 1
    %s6837 = scalar_lea.sflag [#allocation6], 1
    %6838 = vsyncpa %s6837, 1
    %6839 = vsyncpa [#allocation9], 1
    %6840 = vsyncpa [#allocation13], 1
    %6841 = vsyncpa [#allocation16], 1
    %6842 = vsyncpa [#allocation19], 1
    %6843 = vsyncpa [#allocation22], 1
    %s6844 = scalar_lea.sflag [#allocation22], 1
    %6845 = vsyncpa %s6844, 1
    %6846 = vsyncpa [#allocation25], 1
    %s6847 = scalar_lea.sflag [#allocation25], 1
    %6848 = vsyncpa %s6847, 1
    %6849 = vsyncpa [#allocation28], 1
    %s6850 = scalar_lea.sflag [#allocation28], 1
    %6851 = vsyncpa %s6850, 1
    %6852 = vsyncpa [#allocation7], 1
    %s6853 = scalar_lea.sflag [#allocation7], 1
    %6854 = vsyncpa %s6853, 1
    %6855 = vsyncpa [#allocation31], 1
    %s6856 = scalar_lea.sflag [#allocation31], 1
    %6857 = vsyncpa %s6856, 1

</llo_original>
